<compile_context>
chip_gen: v7x
topology: tpu7x:2x2x1
jax: 0.10.0
libtpu: 0.0.40
codegen_flags: <defaults>
</compile_context>

<pallas_src>
import functools

import jax
import jax.numpy as jnp
from jax import lax
from jax.experimental import pallas as pl
from jax.experimental.pallas import tpu as pltpu


# ----------------------------------------------------------------------------
# Pallas kernel: out = act( sum_t W[t] @ X[:, off_t : off_t + L] + b )
# ----------------------------------------------------------------------------
def _taps_gemm_kernel(x_ref, w_ref, b_ref, o_ref, *, offsets, negative_slope,
                      apply_act):
    # x_ref: (C_in, P)        bf16   flat zero-padded input (one batch element)
    # w_ref: (T, C_out, C_in) bf16   per-tap weight matrices
    # b_ref: (C_out, 1)       f32
    # o_ref: (C_out, L)       f32    L = flattened spatial rows (lane-dense)
    L = o_ref.shape[-1]
    acc = jnp.zeros(o_ref.shape, jnp.float32)
    for t, off in enumerate(offsets):          # static 27-way (or 1-way) unroll
        acc = acc + jnp.dot(w_ref[t], x_ref[:, off:off + L],
                            preferred_element_type=jnp.float32)
    y = acc + b_ref[...]                       # f32 epilogue
    if apply_act:
        y = jnp.where(y > 0.0, y, negative_slope * y)   # LeakyReLU(0.01)
    o_ref[...] = y.astype(o_ref.dtype)


def _taps_conv_call(xs, w_t, b2, offsets, out_rows, *, apply_act,
                    negative_slope=0.01):
    """xs: (N, C_in, P) bf16, w_t: (T, C_out, C_in) bf16, b2: (C_out, 1) f32."""
    N, C_in, P = xs.shape
    T, C_out, _ = w_t.shape
    kernel = functools.partial(_taps_gemm_kernel, offsets=tuple(offsets),
                               negative_slope=negative_slope,
                               apply_act=apply_act)
    return pl.pallas_call(
        kernel,
        out_shape=jax.ShapeDtypeStruct((N, C_out, out_rows), jnp.float32),
        grid=(N,),
        in_specs=[
            pl.BlockSpec((None, C_in, P), lambda n: (n, 0, 0)),     # input
            pl.BlockSpec((T, C_out, C_in), lambda n: (0, 0, 0)),    # weights
            pl.BlockSpec((C_out, 1), lambda n: (0, 0)),             # bias
        ],
        out_specs=pl.BlockSpec((None, C_out, out_rows), lambda n: (n, 0, 0)),
        compiler_params=pltpu.CompilerParams(
            dimension_semantics=("parallel",),          # megacore on v7x
            vmem_limit_bytes=64 * 1024 * 1024,
        ),
    )(xs, w_t, b2)


# ----------------------------------------------------------------------------
# Conv wrappers (Pallas path)
# ----------------------------------------------------------------------------
def conv3x3_leaky_pallas(x, weight, bias, *, negative_slope=0.01,
                         apply_act=True):
    """x: (N,C_in,D,H,W) f32, weight: (C_out,C_in,3,3,3), bias: (C_out,)."""
    N, C_in, D, H, W = x.shape
    C_out = weight.shape[0]
    Hp, Wp = H + 2, W + 2
    xp = jnp.pad(x, ((0, 0), (0, 0), (1, 1), (1, 1), (1, 1)))   # zero pad=1
    P = (D + 2) * Hp * Wp
    xs = xp.reshape(N, C_in, P).astype(jnp.bfloat16)
    # tap t = kd*9 + kh*3 + kw  ->  lane offset into the flat padded volume
    offsets = tuple((kd * Hp + kh) * Wp + kw
                    for kd in range(3) for kh in range(3) for kw in range(3))
    w_t = jnp.transpose(weight, (2, 3, 4, 0, 1)).reshape(
        27, C_out, C_in).astype(jnp.bfloat16)
    b2 = bias.reshape(C_out, 1).astype(jnp.float32)
    # rows actually computed: valid rows + halo "junk" rows (cropped below)
    L = (D * Hp - 3) * Wp + W
    out_flat = _taps_conv_call(xs, w_t, b2, offsets, L,
                               apply_act=apply_act,
                               negative_slope=negative_slope)
    pad_tail = D * Hp * Wp - L                      # = 2*Wp + 2
    out = jnp.pad(out_flat, ((0, 0), (0, 0), (0, pad_tail)))
    out = out.reshape(N, C_out, D, Hp, Wp)[:, :, :, :H, :W]
    return out


def conv1x1_leaky_pallas(x, weight, bias, *, negative_slope=0.01,
                         apply_act=True):
    """x: (N,C_in,D,H,W) f32, weight: (C_out,C_in), bias: (C_out,)."""
    N, C_in, D, H, W = x.shape
    C_out = weight.shape[0]
    P = D * H * W
    xs = x.reshape(N, C_in, P).astype(jnp.bfloat16)
    w_t = weight.reshape(1, C_out, C_in).astype(jnp.bfloat16)
    b2 = bias.reshape(C_out, 1).astype(jnp.float32)
    out = _taps_conv_call(xs, w_t, b2, (0,), P, apply_act=apply_act,
                          negative_slope=negative_slope)
    return out.reshape(N, C_out, D, H, W)


# ----------------------------------------------------------------------------
# Reference conv implementations (same bf16-in / f32-accumulate policy)
# ----------------------------------------------------------------------------
def conv3x3_leaky_ref(x, weight, bias, *, negative_slope=0.01, apply_act=True):
    y = lax.conv_general_dilated(
        x.astype(jnp.bfloat16), weight.astype(jnp.bfloat16),
        window_strides=(1, 1, 1), padding=((1, 1), (1, 1), (1, 1)),
        dimension_numbers=("NCDHW", "OIDHW", "NCDHW"),
        preferred_element_type=jnp.float32)
    y = y + bias.reshape(1, -1, 1, 1, 1)
    if apply_act:
        y = jnp.where(y > 0.0, y, negative_slope * y)
    return y


def conv1x1_leaky_ref(x, weight, bias, *, negative_slope=0.01, apply_act=True):
    w5 = weight[:, :, None, None, None]
    y = lax.conv_general_dilated(
        x.astype(jnp.bfloat16), w5.astype(jnp.bfloat16),
        window_strides=(1, 1, 1), padding=((0, 0), (0, 0), (0, 0)),
        dimension_numbers=("NCDHW", "OIDHW", "NCDHW"),
        preferred_element_type=jnp.float32)
    y = y + bias.reshape(1, -1, 1, 1, 1)
    if apply_act:
        y = jnp.where(y > 0.0, y, negative_slope * y)
    return y


# ----------------------------------------------------------------------------
# Non-conv glue ops (plain XLA)
# ----------------------------------------------------------------------------
def maxpool3d_2x2x2(x):
    n, c, d, h, w = x.shape
    x = x.reshape(n, c, d // 2, 2, h // 2, 2, w // 2, 2)
    return jnp.max(x, axis=(3, 5, 7))


def upsample_trilinear_2x(x):
    # torch.nn.Upsample(scale_factor=2, mode='trilinear', align_corners=True)
    def up_axis(v, axis):
        s = v.shape[axis]
        o = 2 * s
        if s == 1:
            return jnp.repeat(v, 2, axis=axis)
        pos = jnp.arange(o, dtype=jnp.float32) * ((s - 1) / (o - 1))
        lo = jnp.floor(pos).astype(jnp.int32)
        hi = jnp.minimum(lo + 1, s - 1)
        frac = pos - lo.astype(jnp.float32)
        vlo = jnp.take(v, lo, axis=axis)
        vhi = jnp.take(v, hi, axis=axis)
        bshape = [1] * v.ndim
        bshape[axis] = o
        frac = frac.reshape(bshape)
        return vlo * (1.0 - frac) + vhi * frac

    for ax in (2, 3, 4):
        x = up_axis(x, ax)
    return x


# ----------------------------------------------------------------------------
# Full unet forward (conv impls are pluggable: Pallas vs. XLA reference)
# ----------------------------------------------------------------------------
def unet_forward(x, p, conv3, conv1):
    h = conv1(x, *p["in_box"])
    b1 = conv3(conv3(h, *p["box1a"]), *p["box1b"])
    d1 = maxpool3d_2x2x2(b1)
    b2 = conv3(conv3(d1, *p["box2a"]), *p["box2b"])
    d2 = maxpool3d_2x2x2(b2)
    b3 = conv3(conv3(d2, *p["box3a"]), *p["box3b"])
    d3 = maxpool3d_2x2x2(b3)
    bn = conv3(d3, *p["bottleneck"])
    u1 = upsample_trilinear_2x(bn)
    b4 = conv3(conv3(jnp.concatenate((b3, u1), axis=1), *p["box4a"]),
               *p["box4b"])
    u2 = upsample_trilinear_2x(b4)
    b5 = conv3(conv3(jnp.concatenate((b2, u2), axis=1), *p["box5a"]),
               *p["box5b"])
    u3 = upsample_trilinear_2x(b5)
    b6 = conv3(conv3(jnp.concatenate((b1, u3), axis=1), *p["box6a"]),
               *p["box6b"])
    o = conv1(b6, *p["out1"])
    o = conv1(o, *p["out2"], apply_act=False)
    return o


def _conv_params(key, c_in, c_out, ksize):
    kw_, kb_ = jax.random.split(key)
    fan_in = c_in * ksize ** 3
    bound = (6.0 / fan_in) ** 0.5
    if ksize == 1:
        w = jax.random.uniform(kw_, (c_out, c_in), jnp.float32, -bound, bound)
    else:
        w = jax.random.uniform(kw_, (c_out, c_in, ksize, ksize, ksize),
                               jnp.float32, -bound, bound)
    b = jax.random.uniform(kb_, (c_out,), jnp.float32, -0.1, 0.1)
    return w, b


if __name__ == "__main__":
    sfs, ich, och = 4, 1, 1           # start_filter_size=4, in/out channels 1
    N, D, H, W = 2, 16, 16, 16

    key = jax.random.PRNGKey(0)
    keys = jax.random.split(key, 20)
    params = {
        "in_box":     _conv_params(keys[0],  ich,      sfs,      1),
        "box1a":      _conv_params(keys[1],  sfs,      sfs * 4,  3),
        "box1b":      _conv_params(keys[2],  sfs * 4,  sfs * 4,  3),
        "box2a":      _conv_params(keys[3],  sfs * 4,  sfs * 8,  3),
        "box2b":      _conv_params(keys[4],  sfs * 8,  sfs * 8,  3),
        "box3a":      _conv_params(keys[5],  sfs * 8,  sfs * 16, 3),
        "box3b":      _conv_params(keys[6],  sfs * 16, sfs * 16, 3),
        "bottleneck": _conv_params(keys[7],  sfs * 16, sfs * 16, 3),
        "box4a":      _conv_params(keys[8],  sfs * 32, sfs * 8,  3),
        "box4b":      _conv_params(keys[9],  sfs * 8,  sfs * 8,  3),
        "box5a":      _conv_params(keys[10], sfs * 16, sfs * 4,  3),
        "box5b":      _conv_params(keys[11], sfs * 4,  sfs * 4,  3),
        "box6a":      _conv_params(keys[12], sfs * 8,  sfs * 4,  3),
        "box6b":      _conv_params(keys[13], sfs * 4,  sfs * 4,  3),
        "out1":       _conv_params(keys[14], sfs * 4,  sfs * 2,  1),
        "out2":       _conv_params(keys[15], sfs * 2,  och,      1),
    }
    x = jax.random.normal(keys[16], (N, ich, D, H, W), dtype=jnp.float32)

    # --- unit check of the fused 3x3x3 conv kernel ---
    xu = jax.random.normal(keys[17], (2, 4, 8, 8, 8), dtype=jnp.float32)
    wu, bu = _conv_params(keys[18], 4, 8, 3)
    out_u = jax.block_until_ready(jax.jit(conv3x3_leaky_pallas)(xu, wu, bu))
    ref_u = jax.block_until_ready(jax.jit(conv3x3_leaky_ref)(xu, wu, bu))
    assert out_u.shape == (2, 8, 8, 8, 8)
    assert jnp.allclose(out_u, ref_u, atol=2e-2, rtol=2e-2), (
        f"conv3x3 max err {float(jnp.max(jnp.abs(out_u - ref_u)))}")

    # --- full unet forward: Pallas convs vs. XLA reference convs ---
    pallas_fwd = jax.jit(lambda v: unet_forward(
        v, params, conv3x3_leaky_pallas, conv1x1_leaky_pallas))
    ref_fwd = jax.jit(lambda v: unet_forward(
        v, params, conv3x3_leaky_ref, conv1x1_leaky_ref))

    out = jax.block_until_ready(pallas_fwd(x))
    ref = jax.block_until_ready(ref_fwd(x))

    assert out.shape == (N, och, D, H, W), out.shape
    assert jnp.allclose(out, ref, atol=2e-2, rtol=2e-2), (
        f"unet max err {float(jnp.max(jnp.abs(out - ref)))}")

    print("KERNEL_OK")
</pallas_src>

<mosaic_0001>
module attributes {stable_mosaic.version = 11 : i64} {
  func.func @_taps_gemm_kernel(%arg0: i32, %arg1: memref<1x4x1000xbf16, #tpu.memory_space<vmem>>, %arg2: memref<27x8x4xbf16, #tpu.memory_space<vmem>>, %arg3: memref<8x1xf32, #tpu.memory_space<vmem>>, %arg4: memref<1x8x778xf32, #tpu.memory_space<vmem>>) attributes {dimension_semantics = [#tpu.dimension_semantics<parallel>], iteration_bounds = array<i64: 2>, scalar_prefetch = 0 : i64, scratch_operands = 0 : i64, tpu.core_type = #tpu.core_type<tc>, window_params = [{transform_indices = @transform_0, window_bounds = array<i64: 1, 4, 1000>}, {pipeline_mode = #tpu.pipeline_mode<synchronous>, transform_indices = @transform_1, window_bounds = array<i64: 27, 8, 4>}, {pipeline_mode = #tpu.pipeline_mode<synchronous>, transform_indices = @transform_2, window_bounds = array<i64: 8, 1>}, {transform_indices = @transform_3, window_bounds = array<i64: 1, 8, 778>}]} {
    %cst = arith.constant 0.000000e+00 : f32
    %0 = vector.broadcast %cst : f32 to vector<8x778xf32>
    %c0 = arith.constant 0 : index
    %c0_0 = arith.constant 0 : index
    %c0_1 = arith.constant 0 : index
    %1 = vector.load %arg2[%c0, %c0_0, %c0_1] : memref<27x8x4xbf16, #tpu.memory_space<vmem>>, vector<1x8x4xbf16>
    %2 = vector.shape_cast %1 : vector<1x8x4xbf16> to vector<8x4xbf16>
    %c0_2 = arith.constant 0 : index
    %c0_3 = arith.constant 0 : index
    %c0_4 = arith.constant 0 : index
    %3 = vector.load %arg1[%c0_2, %c0_3, %c0_4] : memref<1x4x1000xbf16, #tpu.memory_space<vmem>>, vector<1x4x778xbf16>
    %4 = vector.shape_cast %3 : vector<1x4x778xbf16> to vector<4x778xbf16>
    %cst_5 = arith.constant dense<0.000000e+00> : vector<8x778xf32>
    %5 = tpu.matmul %2, %4, %cst_5 {dimension_numbers = #tpu.dot_dimension_numbers<[1], [0], [0], [1], [0, 0, 1, 1], [], []>} : vector<8x4xbf16>, vector<4x778xbf16>, vector<8x778xf32> -> vector<8x778xf32>
    %6 = arith.addf %0, %5 : vector<8x778xf32>
    %c1 = arith.constant 1 : index
    %c0_6 = arith.constant 0 : index
    %c0_7 = arith.constant 0 : index
    %7 = vector.load %arg2[%c1, %c0_6, %c0_7] : memref<27x8x4xbf16, #tpu.memory_space<vmem>>, vector<1x8x4xbf16>
    %8 = vector.shape_cast %7 : vector<1x8x4xbf16> to vector<8x4xbf16>
    %c0_8 = arith.constant 0 : index
    %c0_9 = arith.constant 0 : index
    %c1_10 = arith.constant 1 : index
    %9 = vector.load %arg1[%c0_8, %c0_9, %c1_10] : memref<1x4x1000xbf16, #tpu.memory_space<vmem>>, vector<1x4x778xbf16>
    %10 = vector.shape_cast %9 : vector<1x4x778xbf16> to vector<4x778xbf16>
    %cst_11 = arith.constant dense<0.000000e+00> : vector<8x778xf32>
    %11 = tpu.matmul %8, %10, %cst_11 {dimension_numbers = #tpu.dot_dimension_numbers<[1], [0], [0], [1], [0, 0, 1, 1], [], []>} : vector<8x4xbf16>, vector<4x778xbf16>, vector<8x778xf32> -> vector<8x778xf32>
    %12 = arith.addf %6, %11 : vector<8x778xf32>
    %c2 = arith.constant 2 : index
    %c0_12 = arith.constant 0 : index
    %c0_13 = arith.constant 0 : index
    %13 = vector.load %arg2[%c2, %c0_12, %c0_13] : memref<27x8x4xbf16, #tpu.memory_space<vmem>>, vector<1x8x4xbf16>
    %14 = vector.shape_cast %13 : vector<1x8x4xbf16> to vector<8x4xbf16>
    %c0_14 = arith.constant 0 : index
    %c0_15 = arith.constant 0 : index
    %c2_16 = arith.constant 2 : index
    %15 = vector.load %arg1[%c0_14, %c0_15, %c2_16] : memref<1x4x1000xbf16, #tpu.memory_space<vmem>>, vector<1x4x778xbf16>
    %16 = vector.shape_cast %15 : vector<1x4x778xbf16> to vector<4x778xbf16>
    %cst_17 = arith.constant dense<0.000000e+00> : vector<8x778xf32>
    %17 = tpu.matmul %14, %16, %cst_17 {dimension_numbers = #tpu.dot_dimension_numbers<[1], [0], [0], [1], [0, 0, 1, 1], [], []>} : vector<8x4xbf16>, vector<4x778xbf16>, vector<8x778xf32> -> vector<8x778xf32>
    %18 = arith.addf %12, %17 : vector<8x778xf32>
    %c3 = arith.constant 3 : index
    %c0_18 = arith.constant 0 : index
    %c0_19 = arith.constant 0 : index
    %19 = vector.load %arg2[%c3, %c0_18, %c0_19] : memref<27x8x4xbf16, #tpu.memory_space<vmem>>, vector<1x8x4xbf16>
    %20 = vector.shape_cast %19 : vector<1x8x4xbf16> to vector<8x4xbf16>
    %c0_20 = arith.constant 0 : index
    %c0_21 = arith.constant 0 : index
    %c10 = arith.constant 10 : index
    %21 = vector.load %arg1[%c0_20, %c0_21, %c10] : memref<1x4x1000xbf16, #tpu.memory_space<vmem>>, vector<1x4x778xbf16>
    %22 = vector.shape_cast %21 : vector<1x4x778xbf16> to vector<4x778xbf16>
    %cst_22 = arith.constant dense<0.000000e+00> : vector<8x778xf32>
    %23 = tpu.matmul %20, %22, %cst_22 {dimension_numbers = #tpu.dot_dimension_numbers<[1], [0], [0], [1], [0, 0, 1, 1], [], []>} : vector<8x4xbf16>, vector<4x778xbf16>, vector<8x778xf32> -> vector<8x778xf32>
    %24 = arith.addf %18, %23 : vector<8x778xf32>
    %c4 = arith.constant 4 : index
    %c0_23 = arith.constant 0 : index
    %c0_24 = arith.constant 0 : index
    %25 = vector.load %arg2[%c4, %c0_23, %c0_24] : memref<27x8x4xbf16, #tpu.memory_space<vmem>>, vector<1x8x4xbf16>
    %26 = vector.shape_cast %25 : vector<1x8x4xbf16> to vector<8x4xbf16>
    %c0_25 = arith.constant 0 : index
    %c0_26 = arith.constant 0 : index
    %c11 = arith.constant 11 : index
    %27 = vector.load %arg1[%c0_25, %c0_26, %c11] : memref<1x4x1000xbf16, #tpu.memory_space<vmem>>, vector<1x4x778xbf16>
    %28 = vector.shape_cast %27 : vector<1x4x778xbf16> to vector<4x778xbf16>
    %cst_27 = arith.constant dense<0.000000e+00> : vector<8x778xf32>
    %29 = tpu.matmul %26, %28, %cst_27 {dimension_numbers = #tpu.dot_dimension_numbers<[1], [0], [0], [1], [0, 0, 1, 1], [], []>} : vector<8x4xbf16>, vector<4x778xbf16>, vector<8x778xf32> -> vector<8x778xf32>
    %30 = arith.addf %24, %29 : vector<8x778xf32>
    %c5 = arith.constant 5 : index
    %c0_28 = arith.constant 0 : index
    %c0_29 = arith.constant 0 : index
    %31 = vector.load %arg2[%c5, %c0_28, %c0_29] : memref<27x8x4xbf16, #tpu.memory_space<vmem>>, vector<1x8x4xbf16>
    %32 = vector.shape_cast %31 : vector<1x8x4xbf16> to vector<8x4xbf16>
    %c0_30 = arith.constant 0 : index
    %c0_31 = arith.constant 0 : index
    %c12 = arith.constant 12 : index
    %33 = vector.load %arg1[%c0_30, %c0_31, %c12] : memref<1x4x1000xbf16, #tpu.memory_space<vmem>>, vector<1x4x778xbf16>
    %34 = vector.shape_cast %33 : vector<1x4x778xbf16> to vector<4x778xbf16>
    %cst_32 = arith.constant dense<0.000000e+00> : vector<8x778xf32>
    %35 = tpu.matmul %32, %34, %cst_32 {dimension_numbers = #tpu.dot_dimension_numbers<[1], [0], [0], [1], [0, 0, 1, 1], [], []>} : vector<8x4xbf16>, vector<4x778xbf16>, vector<8x778xf32> -> vector<8x778xf32>
    %36 = arith.addf %30, %35 : vector<8x778xf32>
    %c6 = arith.constant 6 : index
    %c0_33 = arith.constant 0 : index
    %c0_34 = arith.constant 0 : index
    %37 = vector.load %arg2[%c6, %c0_33, %c0_34] : memref<27x8x4xbf16, #tpu.memory_space<vmem>>, vector<1x8x4xbf16>
    %38 = vector.shape_cast %37 : vector<1x8x4xbf16> to vector<8x4xbf16>
    %c0_35 = arith.constant 0 : index
    %c0_36 = arith.constant 0 : index
    %c20 = arith.constant 20 : index
    %39 = vector.load %arg1[%c0_35, %c0_36, %c20] : memref<1x4x1000xbf16, #tpu.memory_space<vmem>>, vector<1x4x778xbf16>
    %40 = vector.shape_cast %39 : vector<1x4x778xbf16> to vector<4x778xbf16>
    %cst_37 = arith.constant dense<0.000000e+00> : vector<8x778xf32>
    %41 = tpu.matmul %38, %40, %cst_37 {dimension_numbers = #tpu.dot_dimension_numbers<[1], [0], [0], [1], [0, 0, 1, 1], [], []>} : vector<8x4xbf16>, vector<4x778xbf16>, vector<8x778xf32> -> vector<8x778xf32>
    %42 = arith.addf %36, %41 : vector<8x778xf32>
    %c7 = arith.constant 7 : index
    %c0_38 = arith.constant 0 : index
    %c0_39 = arith.constant 0 : index
    %43 = vector.load %arg2[%c7, %c0_38, %c0_39] : memref<27x8x4xbf16, #tpu.memory_space<vmem>>, vector<1x8x4xbf16>
    %44 = vector.shape_cast %43 : vector<1x8x4xbf16> to vector<8x4xbf16>
    %c0_40 = arith.constant 0 : index
    %c0_41 = arith.constant 0 : index
    %c21 = arith.constant 21 : index
    %45 = vector.load %arg1[%c0_40, %c0_41, %c21] : memref<1x4x1000xbf16, #tpu.memory_space<vmem>>, vector<1x4x778xbf16>
    %46 = vector.shape_cast %45 : vector<1x4x778xbf16> to vector<4x778xbf16>
    %cst_42 = arith.constant dense<0.000000e+00> : vector<8x778xf32>
    %47 = tpu.matmul %44, %46, %cst_42 {dimension_numbers = #tpu.dot_dimension_numbers<[1], [0], [0], [1], [0, 0, 1, 1], [], []>} : vector<8x4xbf16>, vector<4x778xbf16>, vector<8x778xf32> -> vector<8x778xf32>
    %48 = arith.addf %42, %47 : vector<8x778xf32>
    %c8 = arith.constant 8 : index
    %c0_43 = arith.constant 0 : index
    %c0_44 = arith.constant 0 : index
    %49 = vector.load %arg2[%c8, %c0_43, %c0_44] : memref<27x8x4xbf16, #tpu.memory_space<vmem>>, vector<1x8x4xbf16>
    %50 = vector.shape_cast %49 : vector<1x8x4xbf16> to vector<8x4xbf16>
    %c0_45 = arith.constant 0 : index
    %c0_46 = arith.constant 0 : index
    %c22 = arith.constant 22 : index
    %51 = vector.load %arg1[%c0_45, %c0_46, %c22] : memref<1x4x1000xbf16, #tpu.memory_space<vmem>>, vector<1x4x778xbf16>
    %52 = vector.shape_cast %51 : vector<1x4x778xbf16> to vector<4x778xbf16>
    %cst_47 = arith.constant dense<0.000000e+00> : vector<8x778xf32>
    %53 = tpu.matmul %50, %52, %cst_47 {dimension_numbers = #tpu.dot_dimension_numbers<[1], [0], [0], [1], [0, 0, 1, 1], [], []>} : vector<8x4xbf16>, vector<4x778xbf16>, vector<8x778xf32> -> vector<8x778xf32>
    %54 = arith.addf %48, %53 : vector<8x778xf32>
    %c9 = arith.constant 9 : index
    %c0_48 = arith.constant 0 : index
    %c0_49 = arith.constant 0 : index
    %55 = vector.load %arg2[%c9, %c0_48, %c0_49] : memref<27x8x4xbf16, #tpu.memory_space<vmem>>, vector<1x8x4xbf16>
    %56 = vector.shape_cast %55 : vector<1x8x4xbf16> to vector<8x4xbf16>
    %c0_50 = arith.constant 0 : index
    %c0_51 = arith.constant 0 : index
    %c100 = arith.constant 100 : index
    %57 = vector.load %arg1[%c0_50, %c0_51, %c100] : memref<1x4x1000xbf16, #tpu.memory_space<vmem>>, vector<1x4x778xbf16>
    %58 = vector.shape_cast %57 : vector<1x4x778xbf16> to vector<4x778xbf16>
    %cst_52 = arith.constant dense<0.000000e+00> : vector<8x778xf32>
    %59 = tpu.matmul %56, %58, %cst_52 {dimension_numbers = #tpu.dot_dimension_numbers<[1], [0], [0], [1], [0, 0, 1, 1], [], []>} : vector<8x4xbf16>, vector<4x778xbf16>, vector<8x778xf32> -> vector<8x778xf32>
    %60 = arith.addf %54, %59 : vector<8x778xf32>
    %c10_53 = arith.constant 10 : index
    %c0_54 = arith.constant 0 : index
    %c0_55 = arith.constant 0 : index
    %61 = vector.load %arg2[%c10_53, %c0_54, %c0_55] : memref<27x8x4xbf16, #tpu.memory_space<vmem>>, vector<1x8x4xbf16>
    %62 = vector.shape_cast %61 : vector<1x8x4xbf16> to vector<8x4xbf16>
    %c0_56 = arith.constant 0 : index
    %c0_57 = arith.constant 0 : index
    %c101 = arith.constant 101 : index
    %63 = vector.load %arg1[%c0_56, %c0_57, %c101] : memref<1x4x1000xbf16, #tpu.memory_space<vmem>>, vector<1x4x778xbf16>
    %64 = vector.shape_cast %63 : vector<1x4x778xbf16> to vector<4x778xbf16>
    %cst_58 = arith.constant dense<0.000000e+00> : vector<8x778xf32>
    %65 = tpu.matmul %62, %64, %cst_58 {dimension_numbers = #tpu.dot_dimension_numbers<[1], [0], [0], [1], [0, 0, 1, 1], [], []>} : vector<8x4xbf16>, vector<4x778xbf16>, vector<8x778xf32> -> vector<8x778xf32>
    %66 = arith.addf %60, %65 : vector<8x778xf32>
    %c11_59 = arith.constant 11 : index
    %c0_60 = arith.constant 0 : index
    %c0_61 = arith.constant 0 : index
    %67 = vector.load %arg2[%c11_59, %c0_60, %c0_61] : memref<27x8x4xbf16, #tpu.memory_space<vmem>>, vector<1x8x4xbf16>
    %68 = vector.shape_cast %67 : vector<1x8x4xbf16> to vector<8x4xbf16>
    %c0_62 = arith.constant 0 : index
    %c0_63 = arith.constant 0 : index
    %c102 = arith.constant 102 : index
    %69 = vector.load %arg1[%c0_62, %c0_63, %c102] : memref<1x4x1000xbf16, #tpu.memory_space<vmem>>, vector<1x4x778xbf16>
    %70 = vector.shape_cast %69 : vector<1x4x778xbf16> to vector<4x778xbf16>
    %cst_64 = arith.constant dense<0.000000e+00> : vector<8x778xf32>
    %71 = tpu.matmul %68, %70, %cst_64 {dimension_numbers = #tpu.dot_dimension_numbers<[1], [0], [0], [1], [0, 0, 1, 1], [], []>} : vector<8x4xbf16>, vector<4x778xbf16>, vector<8x778xf32> -> vector<8x778xf32>
    %72 = arith.addf %66, %71 : vector<8x778xf32>
    %c12_65 = arith.constant 12 : index
    %c0_66 = arith.constant 0 : index
    %c0_67 = arith.constant 0 : index
    %73 = vector.load %arg2[%c12_65, %c0_66, %c0_67] : memref<27x8x4xbf16, #tpu.memory_space<vmem>>, vector<1x8x4xbf16>
    %74 = vector.shape_cast %73 : vector<1x8x4xbf16> to vector<8x4xbf16>
    %c0_68 = arith.constant 0 : index
    %c0_69 = arith.constant 0 : index
    %c110 = arith.constant 110 : index
    %75 = vector.load %arg1[%c0_68, %c0_69, %c110] : memref<1x4x1000xbf16, #tpu.memory_space<vmem>>, vector<1x4x778xbf16>
    %76 = vector.shape_cast %75 : vector<1x4x778xbf16> to vector<4x778xbf16>
    %cst_70 = arith.constant dense<0.000000e+00> : vector<8x778xf32>
    %77 = tpu.matmul %74, %76, %cst_70 {dimension_numbers = #tpu.dot_dimension_numbers<[1], [0], [0], [1], [0, 0, 1, 1], [], []>} : vector<8x4xbf16>, vector<4x778xbf16>, vector<8x778xf32> -> vector<8x778xf32>
    %78 = arith.addf %72, %77 : vector<8x778xf32>
    %c13 = arith.constant 13 : index
    %c0_71 = arith.constant 0 : index
    %c0_72 = arith.constant 0 : index
    %79 = vector.load %arg2[%c13, %c0_71, %c0_72] : memref<27x8x4xbf16, #tpu.memory_space<vmem>>, vector<1x8x4xbf16>
    %80 = vector.shape_cast %79 : vector<1x8x4xbf16> to vector<8x4xbf16>
    %c0_73 = arith.constant 0 : index
    %c0_74 = arith.constant 0 : index
    %c111 = arith.constant 111 : index
    %81 = vector.load %arg1[%c0_73, %c0_74, %c111] : memref<1x4x1000xbf16, #tpu.memory_space<vmem>>, vector<1x4x778xbf16>
    %82 = vector.shape_cast %81 : vector<1x4x778xbf16> to vector<4x778xbf16>
    %cst_75 = arith.constant dense<0.000000e+00> : vector<8x778xf32>
    %83 = tpu.matmul %80, %82, %cst_75 {dimension_numbers = #tpu.dot_dimension_numbers<[1], [0], [0], [1], [0, 0, 1, 1], [], []>} : vector<8x4xbf16>, vector<4x778xbf16>, vector<8x778xf32> -> vector<8x778xf32>
    %84 = arith.addf %78, %83 : vector<8x778xf32>
    %c14 = arith.constant 14 : index
    %c0_76 = arith.constant 0 : index
    %c0_77 = arith.constant 0 : index
    %85 = vector.load %arg2[%c14, %c0_76, %c0_77] : memref<27x8x4xbf16, #tpu.memory_space<vmem>>, vector<1x8x4xbf16>
    %86 = vector.shape_cast %85 : vector<1x8x4xbf16> to vector<8x4xbf16>
    %c0_78 = arith.constant 0 : index
    %c0_79 = arith.constant 0 : index
    %c112 = arith.constant 112 : index
    %87 = vector.load %arg1[%c0_78, %c0_79, %c112] : memref<1x4x1000xbf16, #tpu.memory_space<vmem>>, vector<1x4x778xbf16>
    %88 = vector.shape_cast %87 : vector<1x4x778xbf16> to vector<4x778xbf16>
    %cst_80 = arith.constant dense<0.000000e+00> : vector<8x778xf32>
    %89 = tpu.matmul %86, %88, %cst_80 {dimension_numbers = #tpu.dot_dimension_numbers<[1], [0], [0], [1], [0, 0, 1, 1], [], []>} : vector<8x4xbf16>, vector<4x778xbf16>, vector<8x778xf32> -> vector<8x778xf32>
    %90 = arith.addf %84, %89 : vector<8x778xf32>
    %c15 = arith.constant 15 : index
    %c0_81 = arith.constant 0 : index
    %c0_82 = arith.constant 0 : index
    %91 = vector.load %arg2[%c15, %c0_81, %c0_82] : memref<27x8x4xbf16, #tpu.memory_space<vmem>>, vector<1x8x4xbf16>
    %92 = vector.shape_cast %91 : vector<1x8x4xbf16> to vector<8x4xbf16>
    %c0_83 = arith.constant 0 : index
    %c0_84 = arith.constant 0 : index
    %c120 = arith.constant 120 : index
    %93 = vector.load %arg1[%c0_83, %c0_84, %c120] : memref<1x4x1000xbf16, #tpu.memory_space<vmem>>, vector<1x4x778xbf16>
    %94 = vector.shape_cast %93 : vector<1x4x778xbf16> to vector<4x778xbf16>
    %cst_85 = arith.constant dense<0.000000e+00> : vector<8x778xf32>
    %95 = tpu.matmul %92, %94, %cst_85 {dimension_numbers = #tpu.dot_dimension_numbers<[1], [0], [0], [1], [0, 0, 1, 1], [], []>} : vector<8x4xbf16>, vector<4x778xbf16>, vector<8x778xf32> -> vector<8x778xf32>
    %96 = arith.addf %90, %95 : vector<8x778xf32>
    %c16 = arith.constant 16 : index
    %c0_86 = arith.constant 0 : index
    %c0_87 = arith.constant 0 : index
    %97 = vector.load %arg2[%c16, %c0_86, %c0_87] : memref<27x8x4xbf16, #tpu.memory_space<vmem>>, vector<1x8x4xbf16>
    %98 = vector.shape_cast %97 : vector<1x8x4xbf16> to vector<8x4xbf16>
    %c0_88 = arith.constant 0 : index
    %c0_89 = arith.constant 0 : index
    %c121 = arith.constant 121 : index
    %99 = vector.load %arg1[%c0_88, %c0_89, %c121] : memref<1x4x1000xbf16, #tpu.memory_space<vmem>>, vector<1x4x778xbf16>
    %100 = vector.shape_cast %99 : vector<1x4x778xbf16> to vector<4x778xbf16>
    %cst_90 = arith.constant dense<0.000000e+00> : vector<8x778xf32>
    %101 = tpu.matmul %98, %100, %cst_90 {dimension_numbers = #tpu.dot_dimension_numbers<[1], [0], [0], [1], [0, 0, 1, 1], [], []>} : vector<8x4xbf16>, vector<4x778xbf16>, vector<8x778xf32> -> vector<8x778xf32>
    %102 = arith.addf %96, %101 : vector<8x778xf32>
    %c17 = arith.constant 17 : index
    %c0_91 = arith.constant 0 : index
    %c0_92 = arith.constant 0 : index
    %103 = vector.load %arg2[%c17, %c0_91, %c0_92] : memref<27x8x4xbf16, #tpu.memory_space<vmem>>, vector<1x8x4xbf16>
    %104 = vector.shape_cast %103 : vector<1x8x4xbf16> to vector<8x4xbf16>
    %c0_93 = arith.constant 0 : index
    %c0_94 = arith.constant 0 : index
    %c122 = arith.constant 122 : index
    %105 = vector.load %arg1[%c0_93, %c0_94, %c122] : memref<1x4x1000xbf16, #tpu.memory_space<vmem>>, vector<1x4x778xbf16>
    %106 = vector.shape_cast %105 : vector<1x4x778xbf16> to vector<4x778xbf16>
    %cst_95 = arith.constant dense<0.000000e+00> : vector<8x778xf32>
    %107 = tpu.matmul %104, %106, %cst_95 {dimension_numbers = #tpu.dot_dimension_numbers<[1], [0], [0], [1], [0, 0, 1, 1], [], []>} : vector<8x4xbf16>, vector<4x778xbf16>, vector<8x778xf32> -> vector<8x778xf32>
    %108 = arith.addf %102, %107 : vector<8x778xf32>
    %c18 = arith.constant 18 : index
    %c0_96 = arith.constant 0 : index
    %c0_97 = arith.constant 0 : index
    %109 = vector.load %arg2[%c18, %c0_96, %c0_97] : memref<27x8x4xbf16, #tpu.memory_space<vmem>>, vector<1x8x4xbf16>
    %110 = vector.shape_cast %109 : vector<1x8x4xbf16> to vector<8x4xbf16>
    %c0_98 = arith.constant 0 : index
    %c0_99 = arith.constant 0 : index
    %c200 = arith.constant 200 : index
    %111 = vector.load %arg1[%c0_98, %c0_99, %c200] : memref<1x4x1000xbf16, #tpu.memory_space<vmem>>, vector<1x4x778xbf16>
    %112 = vector.shape_cast %111 : vector<1x4x778xbf16> to vector<4x778xbf16>
    %cst_100 = arith.constant dense<0.000000e+00> : vector<8x778xf32>
    %113 = tpu.matmul %110, %112, %cst_100 {dimension_numbers = #tpu.dot_dimension_numbers<[1], [0], [0], [1], [0, 0, 1, 1], [], []>} : vector<8x4xbf16>, vector<4x778xbf16>, vector<8x778xf32> -> vector<8x778xf32>
    %114 = arith.addf %108, %113 : vector<8x778xf32>
    %c19 = arith.constant 19 : index
    %c0_101 = arith.constant 0 : index
    %c0_102 = arith.constant 0 : index
    %115 = vector.load %arg2[%c19, %c0_101, %c0_102] : memref<27x8x4xbf16, #tpu.memory_space<vmem>>, vector<1x8x4xbf16>
    %116 = vector.shape_cast %115 : vector<1x8x4xbf16> to vector<8x4xbf16>
    %c0_103 = arith.constant 0 : index
    %c0_104 = arith.constant 0 : index
    %c201 = arith.constant 201 : index
    %117 = vector.load %arg1[%c0_103, %c0_104, %c201] : memref<1x4x1000xbf16, #tpu.memory_space<vmem>>, vector<1x4x778xbf16>
    %118 = vector.shape_cast %117 : vector<1x4x778xbf16> to vector<4x778xbf16>
    %cst_105 = arith.constant dense<0.000000e+00> : vector<8x778xf32>
    %119 = tpu.matmul %116, %118, %cst_105 {dimension_numbers = #tpu.dot_dimension_numbers<[1], [0], [0], [1], [0, 0, 1, 1], [], []>} : vector<8x4xbf16>, vector<4x778xbf16>, vector<8x778xf32> -> vector<8x778xf32>
    %120 = arith.addf %114, %119 : vector<8x778xf32>
    %c20_106 = arith.constant 20 : index
    %c0_107 = arith.constant 0 : index
    %c0_108 = arith.constant 0 : index
    %121 = vector.load %arg2[%c20_106, %c0_107, %c0_108] : memref<27x8x4xbf16, #tpu.memory_space<vmem>>, vector<1x8x4xbf16>
    %122 = vector.shape_cast %121 : vector<1x8x4xbf16> to vector<8x4xbf16>
    %c0_109 = arith.constant 0 : index
    %c0_110 = arith.constant 0 : index
    %c202 = arith.constant 202 : index
    %123 = vector.load %arg1[%c0_109, %c0_110, %c202] : memref<1x4x1000xbf16, #tpu.memory_space<vmem>>, vector<1x4x778xbf16>
    %124 = vector.shape_cast %123 : vector<1x4x778xbf16> to vector<4x778xbf16>
    %cst_111 = arith.constant dense<0.000000e+00> : vector<8x778xf32>
    %125 = tpu.matmul %122, %124, %cst_111 {dimension_numbers = #tpu.dot_dimension_numbers<[1], [0], [0], [1], [0, 0, 1, 1], [], []>} : vector<8x4xbf16>, vector<4x778xbf16>, vector<8x778xf32> -> vector<8x778xf32>
    %126 = arith.addf %120, %125 : vector<8x778xf32>
    %c21_112 = arith.constant 21 : index
    %c0_113 = arith.constant 0 : index
    %c0_114 = arith.constant 0 : index
    %127 = vector.load %arg2[%c21_112, %c0_113, %c0_114] : memref<27x8x4xbf16, #tpu.memory_space<vmem>>, vector<1x8x4xbf16>
    %128 = vector.shape_cast %127 : vector<1x8x4xbf16> to vector<8x4xbf16>
    %c0_115 = arith.constant 0 : index
    %c0_116 = arith.constant 0 : index
    %c210 = arith.constant 210 : index
    %129 = vector.load %arg1[%c0_115, %c0_116, %c210] : memref<1x4x1000xbf16, #tpu.memory_space<vmem>>, vector<1x4x778xbf16>
    %130 = vector.shape_cast %129 : vector<1x4x778xbf16> to vector<4x778xbf16>
    %cst_117 = arith.constant dense<0.000000e+00> : vector<8x778xf32>
    %131 = tpu.matmul %128, %130, %cst_117 {dimension_numbers = #tpu.dot_dimension_numbers<[1], [0], [0], [1], [0, 0, 1, 1], [], []>} : vector<8x4xbf16>, vector<4x778xbf16>, vector<8x778xf32> -> vector<8x778xf32>
    %132 = arith.addf %126, %131 : vector<8x778xf32>
    %c22_118 = arith.constant 22 : index
    %c0_119 = arith.constant 0 : index
    %c0_120 = arith.constant 0 : index
    %133 = vector.load %arg2[%c22_118, %c0_119, %c0_120] : memref<27x8x4xbf16, #tpu.memory_space<vmem>>, vector<1x8x4xbf16>
    %134 = vector.shape_cast %133 : vector<1x8x4xbf16> to vector<8x4xbf16>
    %c0_121 = arith.constant 0 : index
    %c0_122 = arith.constant 0 : index
    %c211 = arith.constant 211 : index
    %135 = vector.load %arg1[%c0_121, %c0_122, %c211] : memref<1x4x1000xbf16, #tpu.memory_space<vmem>>, vector<1x4x778xbf16>
    %136 = vector.shape_cast %135 : vector<1x4x778xbf16> to vector<4x778xbf16>
    %cst_123 = arith.constant dense<0.000000e+00> : vector<8x778xf32>
    %137 = tpu.matmul %134, %136, %cst_123 {dimension_numbers = #tpu.dot_dimension_numbers<[1], [0], [0], [1], [0, 0, 1, 1], [], []>} : vector<8x4xbf16>, vector<4x778xbf16>, vector<8x778xf32> -> vector<8x778xf32>
    %138 = arith.addf %132, %137 : vector<8x778xf32>
    %c23 = arith.constant 23 : index
    %c0_124 = arith.constant 0 : index
    %c0_125 = arith.constant 0 : index
    %139 = vector.load %arg2[%c23, %c0_124, %c0_125] : memref<27x8x4xbf16, #tpu.memory_space<vmem>>, vector<1x8x4xbf16>
    %140 = vector.shape_cast %139 : vector<1x8x4xbf16> to vector<8x4xbf16>
    %c0_126 = arith.constant 0 : index
    %c0_127 = arith.constant 0 : index
    %c212 = arith.constant 212 : index
    %141 = vector.load %arg1[%c0_126, %c0_127, %c212] : memref<1x4x1000xbf16, #tpu.memory_space<vmem>>, vector<1x4x778xbf16>
    %142 = vector.shape_cast %141 : vector<1x4x778xbf16> to vector<4x778xbf16>
    %cst_128 = arith.constant dense<0.000000e+00> : vector<8x778xf32>
    %143 = tpu.matmul %140, %142, %cst_128 {dimension_numbers = #tpu.dot_dimension_numbers<[1], [0], [0], [1], [0, 0, 1, 1], [], []>} : vector<8x4xbf16>, vector<4x778xbf16>, vector<8x778xf32> -> vector<8x778xf32>
    %144 = arith.addf %138, %143 : vector<8x778xf32>
    %c24 = arith.constant 24 : index
    %c0_129 = arith.constant 0 : index
    %c0_130 = arith.constant 0 : index
    %145 = vector.load %arg2[%c24, %c0_129, %c0_130] : memref<27x8x4xbf16, #tpu.memory_space<vmem>>, vector<1x8x4xbf16>
    %146 = vector.shape_cast %145 : vector<1x8x4xbf16> to vector<8x4xbf16>
    %c0_131 = arith.constant 0 : index
    %c0_132 = arith.constant 0 : index
    %c220 = arith.constant 220 : index
    %147 = vector.load %arg1[%c0_131, %c0_132, %c220] : memref<1x4x1000xbf16, #tpu.memory_space<vmem>>, vector<1x4x778xbf16>
    %148 = vector.shape_cast %147 : vector<1x4x778xbf16> to vector<4x778xbf16>
    %cst_133 = arith.constant dense<0.000000e+00> : vector<8x778xf32>
    %149 = tpu.matmul %146, %148, %cst_133 {dimension_numbers = #tpu.dot_dimension_numbers<[1], [0], [0], [1], [0, 0, 1, 1], [], []>} : vector<8x4xbf16>, vector<4x778xbf16>, vector<8x778xf32> -> vector<8x778xf32>
    %150 = arith.addf %144, %149 : vector<8x778xf32>
    %c25 = arith.constant 25 : index
    %c0_134 = arith.constant 0 : index
    %c0_135 = arith.constant 0 : index
    %151 = vector.load %arg2[%c25, %c0_134, %c0_135] : memref<27x8x4xbf16, #tpu.memory_space<vmem>>, vector<1x8x4xbf16>
    %152 = vector.shape_cast %151 : vector<1x8x4xbf16> to vector<8x4xbf16>
    %c0_136 = arith.constant 0 : index
    %c0_137 = arith.constant 0 : index
    %c221 = arith.constant 221 : index
    %153 = vector.load %arg1[%c0_136, %c0_137, %c221] : memref<1x4x1000xbf16, #tpu.memory_space<vmem>>, vector<1x4x778xbf16>
    %154 = vector.shape_cast %153 : vector<1x4x778xbf16> to vector<4x778xbf16>
    %cst_138 = arith.constant dense<0.000000e+00> : vector<8x778xf32>
    %155 = tpu.matmul %152, %154, %cst_138 {dimension_numbers = #tpu.dot_dimension_numbers<[1], [0], [0], [1], [0, 0, 1, 1], [], []>} : vector<8x4xbf16>, vector<4x778xbf16>, vector<8x778xf32> -> vector<8x778xf32>
    %156 = arith.addf %150, %155 : vector<8x778xf32>
    %c26 = arith.constant 26 : index
    %c0_139 = arith.constant 0 : index
    %c0_140 = arith.constant 0 : index
    %157 = vector.load %arg2[%c26, %c0_139, %c0_140] : memref<27x8x4xbf16, #tpu.memory_space<vmem>>, vector<1x8x4xbf16>
    %158 = vector.shape_cast %157 : vector<1x8x4xbf16> to vector<8x4xbf16>
    %c0_141 = arith.constant 0 : index
    %c0_142 = arith.constant 0 : index
    %c222 = arith.constant 222 : index
    %159 = vector.load %arg1[%c0_141, %c0_142, %c222] : memref<1x4x1000xbf16, #tpu.memory_space<vmem>>, vector<1x4x778xbf16>
    %160 = vector.shape_cast %159 : vector<1x4x778xbf16> to vector<4x778xbf16>
    %cst_143 = arith.constant dense<0.000000e+00> : vector<8x778xf32>
    %161 = tpu.matmul %158, %160, %cst_143 {dimension_numbers = #tpu.dot_dimension_numbers<[1], [0], [0], [1], [0, 0, 1, 1], [], []>} : vector<8x4xbf16>, vector<4x778xbf16>, vector<8x778xf32> -> vector<8x778xf32>
    %162 = arith.addf %156, %161 : vector<8x778xf32>
    %c0_144 = arith.constant 0 : index
    %c0_145 = arith.constant 0 : index
    %163 = vector.load %arg3[%c0_144, %c0_145] : memref<8x1xf32, #tpu.memory_space<vmem>>, vector<8x1xf32>
    %164 = vector.broadcast %163 : vector<8x1xf32> to vector<8x778xf32>
    %165 = arith.addf %162, %164 : vector<8x778xf32>
    %cst_146 = arith.constant 0.000000e+00 : f32
    %166 = vector.broadcast %cst_146 : f32 to vector<8x778xf32>
    %167 = arith.cmpf ogt, %165, %166 : vector<8x778xf32>
    %cst_147 = arith.constant 0.00999999977 : f32
    %168 = vector.broadcast %cst_147 : f32 to vector<8x778xf32>
    %169 = arith.mulf %168, %165 : vector<8x778xf32>
    %170 = arith.select %167, %165, %169 : vector<8x778xi1>, vector<8x778xf32>
    %c0_148 = arith.constant 0 : index
    %c0_149 = arith.constant 0 : index
    %c0_150 = arith.constant 0 : index
    %171 = vector.load %arg4[%c0_148, %c0_149, %c0_150] : memref<1x8x778xf32, #tpu.memory_space<vmem>>, vector<1x8x778xf32>
    %172 = vector.shape_cast %171 : vector<1x8x778xf32> to vector<8x778xf32>
    %173 = vector.shape_cast %170 : vector<8x778xf32> to vector<1x8x778xf32>
    tpu.vector_store %arg4[%c0_148, %c0_149, %c0_150], %173 {strides = array<i32>} : memref<1x8x778xf32, #tpu.memory_space<vmem>>, vector<1x8x778xf32>,
    return
  }
  func.func @transform_0(%arg0: i32) -> (i32, i32, i32) {
    %c0_i32 = arith.constant 0 : i32
    %c0_i32_0 = arith.constant 0 : i32
    %c0_i32_1 = arith.constant 0 : i32
    return %arg0, %c0_i32, %c0_i32_0 : i32, i32, i32
  }
  func.func @transform_1(%arg0: i32) -> (i32, i32, i32) {
    %c0_i32 = arith.constant 0 : i32
    %c0_i32_0 = arith.constant 0 : i32
    %c0_i32_1 = arith.constant 0 : i32
    %c0_i32_2 = arith.constant 0 : i32
    return %c0_i32, %c0_i32_0, %c0_i32_1 : i32, i32, i32
  }
  func.func @transform_2(%arg0: i32) -> (i32, i32) {
    %c0_i32 = arith.constant 0 : i32
    %c0_i32_0 = arith.constant 0 : i32
    %c0_i32_1 = arith.constant 0 : i32
    return %c0_i32, %c0_i32_0 : i32, i32
  }
  func.func @transform_3(%arg0: i32) -> (i32, i32, i32) {
    %c0_i32 = arith.constant 0 : i32
    %c0_i32_0 = arith.constant 0 : i32
    %c0_i32_1 = arith.constant 0 : i32
    return %arg0, %c0_i32, %c0_i32_0 : i32, i32, i32
  }
}

</mosaic_0001>

<llo_original>
// kernel: conv3x3_leaky_pallas.1
$region0: #{conv3x3_leaky_pallas.1}
  #allocation0 [shape = 'u32[]', space=smem, size = 0x4, offset = 0x4, fixed_abs, tag = 'smem constant byte address 0x4 - core index']
  #allocation1 [shape = 'u32[144,128]{1,0:T(1,128)}', space=vmem, size = 0x12000, scoped, tag = 'internal scratch']
  %s0 = inlined_call_operand.hbm [shape: bf16[2,4,1000], index: 0, kind: input, shape index: {}]
  %s1 = inlined_call_operand.hbm [shape: bf16[27,8,4], index: 1, kind: input, shape index: {}]
  %s2 = inlined_call_operand.hbm [shape: f32[8,1], index: 2, kind: input, shape index: {}]
  %s3 = inlined_call_operand.hbm [shape: f32[2,8,778], index: 3, kind: output, shape index: {}]
  %s4 = sld [smem:[#allocation0]]
  $region57: #{conv3x3_leaky_pallas.1} parent=0
    _
  %s6 = ssub.s32 1, %s4
  %s7 = scalar_select 0, %s6, %s4
  $region1: #{conv3x3_leaky_pallas.1} parent=0
    #allocation2 [shape = 'u8[16384]{0}', space=vmem, size = 0x4000, scoped, tag = 'input window, operand 0']
    #allocation3 [shape = 's32[2]{0}', space=sflag, size = 0x8, scoped, tag = 'scoped memory for conv3x3_leaky_pallas.1']
    #allocation4 [shape = 's32[2]{0}', space=sflag, size = 0x8, scoped, tag = 'scoped memory for conv3x3_leaky_pallas.1']
    #allocation5 [shape = 'u8[55296]{0}', space=vmem, size = 0xd800, scoped, tag = 'input window, operand 1, single buffered']
    #allocation6 [shape = 's32[1]{0}', space=sflag, size = 0x4, scoped, tag = 'scoped memory for conv3x3_leaky_pallas.1']
    #allocation7 [shape = 'u8[4096]{0}', space=vmem, size = 0x1000, scoped, tag = 'input window, operand 2, single buffered']
    #allocation8 [shape = 'u8[57344]{0}', space=vmem, size = 0xe000, scoped, tag = 'output window, operand 0']
    %8 = vsyncpa [#allocation3], 0
    %s9 = scalar_lea.sflag [#allocation3], 1
    %10 = vsyncpa %s9, 0
    %11 = vsyncpa [#allocation6], 0
    %12 = vsyncpa [#allocation4], 0
    %s13 = scalar_lea.sflag [#allocation4], 1
    %14 = vsyncpa %s13, 0
    loop: start=0, step=1, limit=4
    $region2: #{conv3x3_leaky_pallas.1} parent=1 // loop_pre_header
      _
    $region3: #{conv3x3_leaky_pallas.1} parent=1 // loop_header
      %s16 = sphi 0, %s20
      %p17 = scmp.ge.s32.totalorder %s16, 4
      %s26 = sphi 0, %s28
      %s29 = sphi 0, %s26
      %s30 = sphi 0, %s29
      %s46 = sphi 0, %s30
      %s50 = sphi 0, %s50
      %s52 = sphi 0, %s50
      %s53 = sphi 0, %s52
      %s67 = sphi 0, %s53
      %s71 = sphi 0, %s71
      %s73 = sphi 0, %s71
      %s74 = sphi 0, %s73
      %s88 = sphi 0, %s74
      %s94 = sphi 0, %s96
      %s97 = sphi 0, %s94
      %s98 = sphi 0, %s97
      %s114 = sphi 0, %s98
    $region4: #{conv3x3_leaky_pallas.1} parent=1 // loop_header_branch
      %19 = sbr.rel (%p17) target = $region8
    $region5: #{conv3x3_leaky_pallas.1} parent=1 // loop_body
      %s21 = ssub.s32 %s16, 1
      %s22 = ssub.s32 %s16, 2
      %s23 = sadd.s32 %s16, 1
      %s24 = ssub.s32 %s16, %s23
      %p25 = scmp.eq.s32.totalorder %s24, 0
      %s27 = sadd.s32 %s26, 1
      %s28 = scalar_select %p25, %s26, %s27
      %p31 = pneg %p25
      %p32 = scmp.eq.s32.totalorder %s16, 1
      %p33 = por %p31, %p32
      %p34 = scmp.ne.s32.totalorder %s26, %s29
      %p35 = scmp.eq.s32.totalorder %s16, 0
      %p36 = por %p34, %p35
      %p37 = scmp.ne.s32.totalorder %s26, %s29
      %p38 = scmp.eq.s32.totalorder %s21, 1
      %p39 = por %p37, %p38
      %p40 = scmp.ne.s32.totalorder %s29, %s30
      %p41 = scmp.eq.s32.totalorder %s21, 0
      %p42 = por %p40, %p41
      %p43 = scmp.ne.s32.totalorder %s29, %s30
      %p44 = scmp.eq.s32.totalorder %s22, 1
      %p45 = por %p43, %p44
      %p47 = scmp.ne.s32.totalorder %s30, %s46
      %p48 = scmp.eq.s32.totalorder %s22, 0
      %p49 = por %p47, %p48
      %s51 = sadd.s32 %s50, 1
      %p54 = scmp.eq.s32.totalorder %s16, 1
      %p55 = scmp.ne.s32.totalorder %s50, %s52
      %p56 = scmp.eq.s32.totalorder %s16, 0
      %p57 = por %p55, %p56
      %p58 = scmp.ne.s32.totalorder %s50, %s52
      %p59 = scmp.eq.s32.totalorder %s21, 1
      %p60 = por %p58, %p59
      %p61 = scmp.ne.s32.totalorder %s52, %s53
      %p62 = scmp.eq.s32.totalorder %s21, 0
      %p63 = por %p61, %p62
      %p64 = scmp.ne.s32.totalorder %s52, %s53
      %p65 = scmp.eq.s32.totalorder %s22, 1
      %p66 = por %p64, %p65
      %p68 = scmp.ne.s32.totalorder %s53, %s67
      %p69 = scmp.eq.s32.totalorder %s22, 0
      %p70 = por %p68, %p69
      %s72 = sadd.s32 %s71, 1
      %p75 = scmp.eq.s32.totalorder %s16, 1
      %p76 = scmp.ne.s32.totalorder %s71, %s73
      %p77 = scmp.eq.s32.totalorder %s16, 0
      %p78 = por %p76, %p77
      %p79 = scmp.ne.s32.totalorder %s71, %s73
      %p80 = scmp.eq.s32.totalorder %s21, 1
      %p81 = por %p79, %p80
      %p82 = scmp.ne.s32.totalorder %s73, %s74
      %p83 = scmp.eq.s32.totalorder %s21, 0
      %p84 = por %p82, %p83
      %p85 = scmp.ne.s32.totalorder %s73, %s74
      %p86 = scmp.eq.s32.totalorder %s22, 1
      %p87 = por %p85, %p86
      %p89 = scmp.ne.s32.totalorder %s74, %s88
      %p90 = scmp.eq.s32.totalorder %s22, 0
      %p91 = por %p89, %p90
      %s92 = ssub.s32 %s16, %s23
      %p93 = scmp.eq.s32.totalorder %s92, 0
      %s95 = sadd.s32 %s94, 1
      %s96 = scalar_select %p93, %s94, %s95
      %p99 = pneg %p93
      %p100 = scmp.eq.s32.totalorder %s16, 1
      %p101 = por %p99, %p100
      %p102 = scmp.ne.s32.totalorder %s94, %s97
      %p103 = scmp.eq.s32.totalorder %s16, 0
      %p104 = por %p102, %p103
      %p105 = scmp.ne.s32.totalorder %s94, %s97
      %p106 = scmp.eq.s32.totalorder %s21, 1
      %p107 = por %p105, %p106
      %p108 = scmp.ne.s32.totalorder %s97, %s98
      %p109 = scmp.eq.s32.totalorder %s21, 0
      %p110 = por %p108, %p109
      %p111 = scmp.ne.s32.totalorder %s97, %s98
      %p112 = scmp.eq.s32.totalorder %s22, 1
      %p113 = por %p111, %p112
      %p115 = scmp.ne.s32.totalorder %s98, %s114
      %p116 = scmp.eq.s32.totalorder %s22, 0
      %p117 = por %p115, %p116
      %p118 = scmp.le.s32.totalorder 1, %s16
      %p119 = scmp.lt.s32.totalorder %s16, 3
      %p120 = pnand %p118, %p119
      %p121 = pneg %p120
      // Predicated region
      $region9: #{conv3x3_leaky_pallas.1} parent=5 // pred_check
        _
      $region10: #{conv3x3_leaky_pallas.1} parent=5 // pred_check_branch
        %123 = sbr.rel (%p120) target = $region12
      $region11: #{conv3x3_leaky_pallas.1} parent=5 // pred_region
        %s124 = ssub.s32 %s16, 1
        // Predicated region
        $region13: #{conv3x3_leaky_pallas.1} parent=11 // pred_check
          %p125 = pneg %p63
        $region14: #{conv3x3_leaky_pallas.1} parent=11 // pred_check_branch
          %127 = sbr.rel (%p125) target = $region16
        $region15: #{conv3x3_leaky_pallas.1} parent=11 // pred_region
          %s129 = ssub.s32 1728, 1728
          %130 = vsyncadd [#allocation6], %s129
          %s131 = sshll.u32 [#allocation5], 4
          %s132 = int_to_ptr.vmem [resolvable:$true] %s131
          %137 = dma.hbm_to_vmem [thread:$0]  %s1, 1728, %s132, [#allocation6], 64, 64, 4
        $region16: #{conv3x3_leaky_pallas.1} parent=11 // pred_fallthru
          _
        // Predicated region
        $region17: #{conv3x3_leaky_pallas.1} parent=11 // pred_check
          %p138 = pneg %p84
        $region18: #{conv3x3_leaky_pallas.1} parent=11 // pred_check_branch
          %140 = sbr.rel (%p138) target = $region20
        $region19: #{conv3x3_leaky_pallas.1} parent=11 // pred_region
          %s142 = ssub.s32 128, 128
          %143 = vsyncadd [#allocation6], %s142
          %s145 = sshll.u32 [#allocation7], 4
          %s146 = int_to_ptr.vmem [resolvable:$true] %s145
          %148 = dma.hbm_to_vmem [thread:$0]  %s2, 128, %s146, [#allocation6]
        $region20: #{conv3x3_leaky_pallas.1} parent=11 // pred_fallthru
          _
      $region12: #{conv3x3_leaky_pallas.1} parent=5 // pred_fallthru
        _
      %p149 = scmp.lt.s32.totalorder %s16, 2
      // Predicated region
      $region21: #{conv3x3_leaky_pallas.1} parent=5 // pred_check
        %p150 = pneg %p149
      $region22: #{conv3x3_leaky_pallas.1} parent=5 // pred_check_branch
        %152 = sbr.rel (%p150) target = $region24
      $region23: #{conv3x3_leaky_pallas.1} parent=5 // pred_region
        // Predicated region
        $region25: #{conv3x3_leaky_pallas.1} parent=23 // pred_check
          %p153 = pneg %p36
        $region26: #{conv3x3_leaky_pallas.1} parent=23 // pred_check_branch
          %155 = sbr.rel (%p153) target = $region28
        $region27: #{conv3x3_leaky_pallas.1} parent=23 // pred_region
          %s156 = sand.u32 %s26, 1
          %s157 = scalar_lea.sflag [#allocation3], %s156
          %s158 = sand.u32 %s26, 1
          %s159 = smul.addr %s158, 16
          %s160 = scalar_lea.vmem [#allocation2], %s159
          %s162 = ssub.s32 256, 256
          %163 = vsyncadd %s157, %s162
          %s164 = smul.addr %s16, 8
          %s165 = smul.addr %s164, 32
          %s166 = scalar_lea.hbm %s0, %s165
          %s168 = sshll.u32 %s160, 4
          %s169 = int_to_ptr.vmem [resolvable:$true] %s168
          %171 = dma.hbm_to_vmem [thread:$0]  %s166, 256, %s169, %s157
        $region28: #{conv3x3_leaky_pallas.1} parent=23 // pred_fallthru
          _
      $region24: #{conv3x3_leaky_pallas.1} parent=5 // pred_fallthru
        _
      %p172 = scmp.le.s32.totalorder 1, %s16
      %p173 = scmp.lt.s32.totalorder %s16, 3
      %p174 = pnand %p172, %p173
      %p175 = pneg %p174
      // Predicated region
      $region29: #{conv3x3_leaky_pallas.1} parent=5 // pred_check
        _
      $region30: #{conv3x3_leaky_pallas.1} parent=5 // pred_check_branch
        %177 = sbr.rel (%p174) target = $region32
      $region31: #{conv3x3_leaky_pallas.1} parent=5 // pred_region
        %s178 = ssub.s32 %s16, 1
        %s179 = sand.u32 %s29, 1
        %s180 = scalar_lea.sflag [#allocation3], %s179
        %s181 = sand.u32 %s29, 1
        %s182 = smul.addr %s181, 16
        %s183 = scalar_lea.vmem [#allocation2], %s182
        // Predicated region
        $region33: #{conv3x3_leaky_pallas.1} parent=31 // pred_check
          %p184 = pneg %p42
        $region34: #{conv3x3_leaky_pallas.1} parent=31 // pred_check_branch
          %186 = sbr.rel (%p184) target = $region36
        $region35: #{conv3x3_leaky_pallas.1} parent=31 // pred_region
          %187 = dma.done %s180, 256
        $region36: #{conv3x3_leaky_pallas.1} parent=31 // pred_fallthru
          _
        // Predicated region
        $region37: #{conv3x3_leaky_pallas.1} parent=31 // pred_check
          %p188 = pneg %p63
        $region38: #{conv3x3_leaky_pallas.1} parent=31 // pred_check_branch
          %190 = sbr.rel (%p188) target = $region40
        $region39: #{conv3x3_leaky_pallas.1} parent=31 // pred_region
          %191 = dma.done [#allocation6], 1728
        $region40: #{conv3x3_leaky_pallas.1} parent=31 // pred_fallthru
          _
        // Predicated region
        $region41: #{conv3x3_leaky_pallas.1} parent=31 // pred_check
          %p192 = pneg %p84
        $region42: #{conv3x3_leaky_pallas.1} parent=31 // pred_check_branch
          %194 = sbr.rel (%p192) target = $region44
        $region43: #{conv3x3_leaky_pallas.1} parent=31 // pred_region
          %195 = dma.done [#allocation6], 128
        $region44: #{conv3x3_leaky_pallas.1} parent=31 // pred_fallthru
          _
        %s196 = sand.u32 %s29, 1
        %s197 = scalar_lea.sflag [#allocation3], %s196
        %s198 = sand.u32 %s29, 1
        %s199 = smul.addr %s198, 16
        %s200 = scalar_lea.vmem [#allocation2], %s199
        %p201 = pneg %p42
        %p202 = pneg %p39
        %p203 = pneg %p63
        %p204 = pneg %p60
        %p205 = pneg %p84
        %p206 = pneg %p81
        %p207 = pneg %p110
        %p208 = pneg %p107
        %s209 = sand.u32 %s97, 1
        %s210 = scalar_lea.sflag [#allocation4], %s209
        %s211 = sand.u32 %s97, 1
        %s212 = smul.addr %s211, 56
        %s213 = scalar_lea.vmem [#allocation8], %s212
        %v215 = vld [vmem:[#allocation5] sm:$0xf]
        %v216 = vld [vmem:[%s183] sm:$0xff]
        %v217 = vld [vmem:[%s183 + $0x8] sm:$0x3f]
        %s218 = scalar_lea.vmem [#allocation5], 4
        %v219 = vld [vmem:[%s218] sm:$0xf]
        %v222 = vcombine.high %v216, %v216
        %v224 = vunpack.c.l.s4 1983009808
        %v225 = vunpack.c.0.s8 %v224
        %v226 = vlaneseq
        %v227 = vshrl.u32 %v226, 7
        %v228 = vsub.s32 %v225, %v227
        %v229 = vrot.slane %v216, %v228
        %v231 = vunpack.c.l.s4 1983009808
        %v232 = vunpack.c.0.s8 %v231
        %v233 = vlaneseq
        %v234 = vshrl.u32 %v233, 7
        %v235 = vsub.s32 %v232, %v234
        %v236 = vrot.slane %v222, %v235
        %v237 = vcombine.high %v229, %v229
        %v238 = vcombine.high %v236, %v236
        %v239 = vcombine.high %v217, %v217
        %v241 = vunpack.c.l.s4 1983009808
        %v242 = vunpack.c.0.s8 %v241
        %v243 = vlaneseq
        %v244 = vshrl.u32 %v243, 7
        %v245 = vsub.s32 %v242, %v244
        %v246 = vrot.slane %v217, %v245
        %v248 = vunpack.c.l.s4 1983009808
        %v249 = vunpack.c.0.s8 %v248
        %v250 = vlaneseq
        %v251 = vshrl.u32 %v250, 7
        %v252 = vsub.s32 %v249, %v251
        %v253 = vrot.slane %v239, %v252
        %v254 = vcombine.high %v246, %v246
        %255 = vrot.lane.b32.xlu0 %v229, 127
        %v256 = vpop.permute.xlu0 %255
        %257 = vrot.lane.b32.xlu0 %v237, 127
        %v258 = vpop.permute.xlu0 %257
        %259 = vrot.lane.b32.xlu0 %v236, 127
        %v260 = vpop.permute.xlu0 %259
        %261 = vrot.lane.b32.xlu0 %v238, 127
        %v262 = vpop.permute.xlu0 %261
        %263 = vrot.lane.b32.xlu0 %v246, 127
        %v264 = vpop.permute.xlu0 %263
        %265 = vrot.lane.b32.xlu0 %v254, 127
        %v266 = vpop.permute.xlu0 %265
        %267 = vrot.lane.b32.xlu0 %v253, 127
        %v268 = vpop.permute.xlu0 %267
        %vm269 = vcmask 1039360
        %v270 = vsel %vm269, %v256, %v258
        %v271 = vsel %vm269, %v258, %v260
        %v272 = vsel %vm269, %v260, %v262
        %v273 = vsel %vm269, %v262, %v264
        %v274 = vsel %vm269, %v264, %v266
        %v275 = vsel %vm269, %v266, %v268
        %vm276 = vcmask 31744
        %v278 = vsel %vm276, %v219, 0
        %vm280 = vcmask 1041408
        %v282 = vsel %vm280, %v270, 0
        %v285 = vsel %vm280, %v271, 0
        %v288 = vsel %vm280, %v272, 0
        %v291 = vsel %vm280, %v273, 0
        %v294 = vsel %vm280, %v274, 0
        %v297 = vsel %vm280, %v275, 0
        %v300 = vsel %vm280, %v268, 0
        %302 = vmatprep.subr.bf16.mxu0 %v285
        %303 = vmatpush1.bf16.msra.mxu0 %v282
        %304 = vmatprep.subr.bf16.mxu0 0
        %305 = vmatpush1.bf16.msra.mxu0 0
        %306 = vmatprep.subr.bf16.mxu0 0
        %307 = vmatpush1.bf16.msra.mxu0 0
        %308 = vmatprep.subr.bf16.mxu0 0
        %309 = vmatpush1.bf16.msra.mxu0 0
        %310 = vmatprep.subr.bf16.mxu0 0
        %311 = vmatpush1.bf16.msra.mxu0 0
        %312 = vmatprep.subr.bf16.mxu0 0
        %313 = vmatpush1.bf16.msra.mxu0 0
        %314 = vmatprep.subr.bf16.mxu0 0
        %315 = vmatpush1.bf16.msra.mxu0 0
        %316 = vmatprep.subr.bf16.mxu0 0
        %317 = vmatpush1.bf16.msra.mxu0 0
        %318 = vmatprep.subr.bf16.mxu0 0
        %319 = vmatpush1.bf16.msra.mxu0 0
        %320 = vmatprep.subr.bf16.mxu0 0
        %321 = vmatpush1.bf16.msra.mxu0 0
        %322 = vmatprep.subr.bf16.mxu0 0
        %323 = vmatpush1.bf16.msra.mxu0 0
        %324 = vmatprep.subr.bf16.mxu0 0
        %325 = vmatpush1.bf16.msra.mxu0 0
        %326 = vmatprep.subr.bf16.mxu0 0
        %327 = vmatpush1.bf16.msra.mxu0 0
        %328 = vmatprep.subr.bf16.mxu0 0
        %329 = vmatpush1.bf16.msra.mxu0 0
        %330 = vmatprep.subr.bf16.mxu0 0
        %331 = vmatpush1.bf16.msra.mxu0 0
        %332 = vmatprep.subr.bf16.mxu0 0
        %333 = vmatpush1.bf16.msra.mxu0 0
        %334 = vmatprep.mubr.bf16.mxu0 0
        %335 = vmatmul.mubr.bf16.gmra.mrb[0].mxu0 %v278
        %v336 = vpop.f32.mrb[0].mxu0
        %v337 = vadd.f32 0.0, %v336
        %v338 = vpop.f32.mrb[0].mxu0
        %v339 = vadd.f32 0.0, %v338
        %v340 = vpop.f32.mrb[0].mxu0
        %v341 = vpop.f32.mrb[0].mxu0
        %342 = vdwg.mxu0
        %343 = vmatprep.subr.bf16.mxu0 %v291
        %344 = vmatpush1.bf16.msra.mxu0 %v288
        %345 = vmatprep.subr.bf16.mxu0 0
        %346 = vmatpush1.bf16.msra.mxu0 0
        %347 = vmatprep.subr.bf16.mxu0 0
        %348 = vmatpush1.bf16.msra.mxu0 0
        %349 = vmatprep.subr.bf16.mxu0 0
        %350 = vmatpush1.bf16.msra.mxu0 0
        %351 = vmatprep.subr.bf16.mxu0 0
        %352 = vmatpush1.bf16.msra.mxu0 0
        %353 = vmatprep.subr.bf16.mxu0 0
        %354 = vmatpush1.bf16.msra.mxu0 0
        %355 = vmatprep.subr.bf16.mxu0 0
        %356 = vmatpush1.bf16.msra.mxu0 0
        %357 = vmatprep.subr.bf16.mxu0 0
        %358 = vmatpush1.bf16.msra.mxu0 0
        %359 = vmatprep.subr.bf16.mxu0 0
        %360 = vmatpush1.bf16.msra.mxu0 0
        %361 = vmatprep.subr.bf16.mxu0 0
        %362 = vmatpush1.bf16.msra.mxu0 0
        %363 = vmatprep.subr.bf16.mxu0 0
        %364 = vmatpush1.bf16.msra.mxu0 0
        %365 = vmatprep.subr.bf16.mxu0 0
        %366 = vmatpush1.bf16.msra.mxu0 0
        %367 = vmatprep.subr.bf16.mxu0 0
        %368 = vmatpush1.bf16.msra.mxu0 0
        %369 = vmatprep.subr.bf16.mxu0 0
        %370 = vmatpush1.bf16.msra.mxu0 0
        %371 = vmatprep.subr.bf16.mxu0 0
        %372 = vmatpush1.bf16.msra.mxu0 0
        %373 = vmatprep.subr.bf16.mxu0 0
        %374 = vmatpush1.bf16.msra.mxu0 0
        %375 = vmatprep.mubr.bf16.mxu0 0
        %376 = vmatmul.mubr.bf16.gmra.mrb[0].mxu0 %v278
        %v377 = vpop.f32.mrb[0].mxu0
        %v378 = vadd.f32 0.0, %v377
        %v379 = vpop.f32.mrb[0].mxu0
        %v380 = vadd.f32 0.0, %v379
        %v381 = vpop.f32.mrb[0].mxu0
        %v382 = vpop.f32.mrb[0].mxu0
        %383 = vdwg.mxu0
        %384 = vmatprep.subr.bf16.mxu0 %v297
        %385 = vmatpush1.bf16.msra.mxu0 %v294
        %386 = vmatprep.subr.bf16.mxu0 0
        %387 = vmatpush1.bf16.msra.mxu0 0
        %388 = vmatprep.subr.bf16.mxu0 0
        %389 = vmatpush1.bf16.msra.mxu0 0
        %390 = vmatprep.subr.bf16.mxu0 0
        %391 = vmatpush1.bf16.msra.mxu0 0
        %392 = vmatprep.subr.bf16.mxu0 0
        %393 = vmatpush1.bf16.msra.mxu0 0
        %394 = vmatprep.subr.bf16.mxu0 0
        %395 = vmatpush1.bf16.msra.mxu0 0
        %396 = vmatprep.subr.bf16.mxu0 0
        %397 = vmatpush1.bf16.msra.mxu0 0
        %398 = vmatprep.subr.bf16.mxu0 0
        %399 = vmatpush1.bf16.msra.mxu0 0
        %400 = vmatprep.subr.bf16.mxu0 0
        %401 = vmatpush1.bf16.msra.mxu0 0
        %402 = vmatprep.subr.bf16.mxu0 0
        %403 = vmatpush1.bf16.msra.mxu0 0
        %404 = vmatprep.subr.bf16.mxu0 0
        %405 = vmatpush1.bf16.msra.mxu0 0
        %406 = vmatprep.subr.bf16.mxu0 0
        %407 = vmatpush1.bf16.msra.mxu0 0
        %408 = vmatprep.subr.bf16.mxu0 0
        %409 = vmatpush1.bf16.msra.mxu0 0
        %410 = vmatprep.subr.bf16.mxu0 0
        %411 = vmatpush1.bf16.msra.mxu0 0
        %412 = vmatprep.subr.bf16.mxu0 0
        %413 = vmatpush1.bf16.msra.mxu0 0
        %414 = vmatprep.subr.bf16.mxu0 0
        %415 = vmatpush1.bf16.msra.mxu0 0
        %416 = vmatprep.mubr.bf16.mxu0 0
        %417 = vmatmul.mubr.bf16.gmra.mrb[0].mxu0 %v278
        %v418 = vpop.f32.mrb[0].mxu0
        %v419 = vadd.f32 0.0, %v418
        %v420 = vpop.f32.mrb[0].mxu0
        %v421 = vadd.f32 0.0, %v420
        %v422 = vpop.f32.mrb[0].mxu0
        %v423 = vpop.f32.mrb[0].mxu0
        %424 = vdwg.mxu0
        %425 = vmatprep.subr.bf16.mxu0 0
        %426 = vmatpush1.bf16.msra.mxu0 %v300
        %427 = vmatprep.subr.bf16.mxu0 0
        %428 = vmatpush1.bf16.msra.mxu0 0
        %429 = vmatprep.subr.bf16.mxu0 0
        %430 = vmatpush1.bf16.msra.mxu0 0
        %431 = vmatprep.subr.bf16.mxu0 0
        %432 = vmatpush1.bf16.msra.mxu0 0
        %433 = vmatprep.subr.bf16.mxu0 0
        %434 = vmatpush1.bf16.msra.mxu0 0
        %435 = vmatprep.subr.bf16.mxu0 0
        %436 = vmatpush1.bf16.msra.mxu0 0
        %437 = vmatprep.subr.bf16.mxu0 0
        %438 = vmatpush1.bf16.msra.mxu0 0
        %439 = vmatprep.subr.bf16.mxu0 0
        %440 = vmatpush1.bf16.msra.mxu0 0
        %441 = vmatprep.subr.bf16.mxu0 0
        %442 = vmatpush1.bf16.msra.mxu0 0
        %443 = vmatprep.subr.bf16.mxu0 0
        %444 = vmatpush1.bf16.msra.mxu0 0
        %445 = vmatprep.subr.bf16.mxu0 0
        %446 = vmatpush1.bf16.msra.mxu0 0
        %447 = vmatprep.subr.bf16.mxu0 0
        %448 = vmatpush1.bf16.msra.mxu0 0
        %449 = vmatprep.subr.bf16.mxu0 0
        %450 = vmatpush1.bf16.msra.mxu0 0
        %451 = vmatprep.subr.bf16.mxu0 0
        %452 = vmatpush1.bf16.msra.mxu0 0
        %453 = vmatprep.subr.bf16.mxu0 0
        %454 = vmatpush1.bf16.msra.mxu0 0
        %455 = vmatprep.subr.bf16.mxu0 0
        %456 = vmatpush1.bf16.msra.mxu0 0
        %457 = vmatprep.mubr.bf16.mxu0 0
        %458 = vmatmul.mubr.bf16.gmra.mrb[0].mxu0 %v278
        %v459 = vpop.f32.mrb[0].mxu0
        %v460 = vadd.f32 0.0, %v459
        %v461 = vpop.f32.mrb[0].mxu0
        %v462 = vpop.f32.mrb[0].mxu0
        %v463 = vpop.f32.mrb[0].mxu0
        %464 = vdwg.mxu0
        %v466 = vsel %vm276, %v215, 0
        %v469 = vsel %vm280, %v229, 0
        %v472 = vsel %vm280, %v237, 0
        %v475 = vsel %vm280, %v236, 0
        %v478 = vsel %vm280, %v238, 0
        %v481 = vsel %vm280, %v246, 0
        %v484 = vsel %vm280, %v254, 0
        %v487 = vsel %vm280, %v253, 0
        %489 = vmatprep.subr.bf16.mxu0 %v472
        %490 = vmatpush1.bf16.msra.mxu0 %v469
        %491 = vmatprep.subr.bf16.mxu0 0
        %492 = vmatpush1.bf16.msra.mxu0 0
        %493 = vmatprep.subr.bf16.mxu0 0
        %494 = vmatpush1.bf16.msra.mxu0 0
        %495 = vmatprep.subr.bf16.mxu0 0
        %496 = vmatpush1.bf16.msra.mxu0 0
        %497 = vmatprep.subr.bf16.mxu0 0
        %498 = vmatpush1.bf16.msra.mxu0 0
        %499 = vmatprep.subr.bf16.mxu0 0
        %500 = vmatpush1.bf16.msra.mxu0 0
        %501 = vmatprep.subr.bf16.mxu0 0
        %502 = vmatpush1.bf16.msra.mxu0 0
        %503 = vmatprep.subr.bf16.mxu0 0
        %504 = vmatpush1.bf16.msra.mxu0 0
        %505 = vmatprep.subr.bf16.mxu0 0
        %506 = vmatpush1.bf16.msra.mxu0 0
        %507 = vmatprep.subr.bf16.mxu0 0
        %508 = vmatpush1.bf16.msra.mxu0 0
        %509 = vmatprep.subr.bf16.mxu0 0
        %510 = vmatpush1.bf16.msra.mxu0 0
        %511 = vmatprep.subr.bf16.mxu0 0
        %512 = vmatpush1.bf16.msra.mxu0 0
        %513 = vmatprep.subr.bf16.mxu0 0
        %514 = vmatpush1.bf16.msra.mxu0 0
        %515 = vmatprep.subr.bf16.mxu0 0
        %516 = vmatpush1.bf16.msra.mxu0 0
        %517 = vmatprep.subr.bf16.mxu0 0
        %518 = vmatpush1.bf16.msra.mxu0 0
        %519 = vmatprep.subr.bf16.mxu0 0
        %520 = vmatpush1.bf16.msra.mxu0 0
        %521 = vmatprep.mubr.bf16.mxu0 0
        %522 = vmatmul.mubr.bf16.gmra.mrb[0].mxu0 %v466
        %v523 = vpop.f32.mrb[0].mxu0
        %v524 = vadd.f32 %v337, %v523
        %v525 = vpop.f32.mrb[0].mxu0
        %v526 = vadd.f32 %v339, %v525
        %v527 = vpop.f32.mrb[0].mxu0
        %v528 = vpop.f32.mrb[0].mxu0
        %529 = vdwg.mxu0
        %530 = vmatprep.subr.bf16.mxu0 %v478
        %531 = vmatpush1.bf16.msra.mxu0 %v475
        %532 = vmatprep.subr.bf16.mxu0 0
        %533 = vmatpush1.bf16.msra.mxu0 0
        %534 = vmatprep.subr.bf16.mxu0 0
        %535 = vmatpush1.bf16.msra.mxu0 0
        %536 = vmatprep.subr.bf16.mxu0 0
        %537 = vmatpush1.bf16.msra.mxu0 0
        %538 = vmatprep.subr.bf16.mxu0 0
        %539 = vmatpush1.bf16.msra.mxu0 0
        %540 = vmatprep.subr.bf16.mxu0 0
        %541 = vmatpush1.bf16.msra.mxu0 0
        %542 = vmatprep.subr.bf16.mxu0 0
        %543 = vmatpush1.bf16.msra.mxu0 0
        %544 = vmatprep.subr.bf16.mxu0 0
        %545 = vmatpush1.bf16.msra.mxu0 0
        %546 = vmatprep.subr.bf16.mxu0 0
        %547 = vmatpush1.bf16.msra.mxu0 0
        %548 = vmatprep.subr.bf16.mxu0 0
        %549 = vmatpush1.bf16.msra.mxu0 0
        %550 = vmatprep.subr.bf16.mxu0 0
        %551 = vmatpush1.bf16.msra.mxu0 0
        %552 = vmatprep.subr.bf16.mxu0 0
        %553 = vmatpush1.bf16.msra.mxu0 0
        %554 = vmatprep.subr.bf16.mxu0 0
        %555 = vmatpush1.bf16.msra.mxu0 0
        %556 = vmatprep.subr.bf16.mxu0 0
        %557 = vmatpush1.bf16.msra.mxu0 0
        %558 = vmatprep.subr.bf16.mxu0 0
        %559 = vmatpush1.bf16.msra.mxu0 0
        %560 = vmatprep.subr.bf16.mxu0 0
        %561 = vmatpush1.bf16.msra.mxu0 0
        %562 = vmatprep.mubr.bf16.mxu0 0
        %563 = vmatmul.mubr.bf16.gmra.mrb[0].mxu0 %v466
        %v564 = vpop.f32.mrb[0].mxu0
        %v565 = vadd.f32 %v378, %v564
        %v566 = vpop.f32.mrb[0].mxu0
        %v567 = vadd.f32 %v380, %v566
        %v568 = vpop.f32.mrb[0].mxu0
        %v569 = vpop.f32.mrb[0].mxu0
        %570 = vdwg.mxu0
        %571 = vmatprep.subr.bf16.mxu0 %v484
        %572 = vmatpush1.bf16.msra.mxu0 %v481
        %573 = vmatprep.subr.bf16.mxu0 0
        %574 = vmatpush1.bf16.msra.mxu0 0
        %575 = vmatprep.subr.bf16.mxu0 0
        %576 = vmatpush1.bf16.msra.mxu0 0
        %577 = vmatprep.subr.bf16.mxu0 0
        %578 = vmatpush1.bf16.msra.mxu0 0
        %579 = vmatprep.subr.bf16.mxu0 0
        %580 = vmatpush1.bf16.msra.mxu0 0
        %581 = vmatprep.subr.bf16.mxu0 0
        %582 = vmatpush1.bf16.msra.mxu0 0
        %583 = vmatprep.subr.bf16.mxu0 0
        %584 = vmatpush1.bf16.msra.mxu0 0
        %585 = vmatprep.subr.bf16.mxu0 0
        %586 = vmatpush1.bf16.msra.mxu0 0
        %587 = vmatprep.subr.bf16.mxu0 0
        %588 = vmatpush1.bf16.msra.mxu0 0
        %589 = vmatprep.subr.bf16.mxu0 0
        %590 = vmatpush1.bf16.msra.mxu0 0
        %591 = vmatprep.subr.bf16.mxu0 0
        %592 = vmatpush1.bf16.msra.mxu0 0
        %593 = vmatprep.subr.bf16.mxu0 0
        %594 = vmatpush1.bf16.msra.mxu0 0
        %595 = vmatprep.subr.bf16.mxu0 0
        %596 = vmatpush1.bf16.msra.mxu0 0
        %597 = vmatprep.subr.bf16.mxu0 0
        %598 = vmatpush1.bf16.msra.mxu0 0
        %599 = vmatprep.subr.bf16.mxu0 0
        %600 = vmatpush1.bf16.msra.mxu0 0
        %601 = vmatprep.subr.bf16.mxu0 0
        %602 = vmatpush1.bf16.msra.mxu0 0
        %603 = vmatprep.mubr.bf16.mxu0 0
        %604 = vmatmul.mubr.bf16.gmra.mrb[0].mxu0 %v466
        %v605 = vpop.f32.mrb[0].mxu0
        %v606 = vadd.f32 %v419, %v605
        %v607 = vpop.f32.mrb[0].mxu0
        %v608 = vadd.f32 %v421, %v607
        %v609 = vpop.f32.mrb[0].mxu0
        %v610 = vpop.f32.mrb[0].mxu0
        %611 = vdwg.mxu0
        %612 = vmatprep.subr.bf16.mxu0 0
        %613 = vmatpush1.bf16.msra.mxu0 %v487
        %614 = vmatprep.subr.bf16.mxu0 0
        %615 = vmatpush1.bf16.msra.mxu0 0
        %616 = vmatprep.subr.bf16.mxu0 0
        %617 = vmatpush1.bf16.msra.mxu0 0
        %618 = vmatprep.subr.bf16.mxu0 0
        %619 = vmatpush1.bf16.msra.mxu0 0
        %620 = vmatprep.subr.bf16.mxu0 0
        %621 = vmatpush1.bf16.msra.mxu0 0
        %622 = vmatprep.subr.bf16.mxu0 0
        %623 = vmatpush1.bf16.msra.mxu0 0
        %624 = vmatprep.subr.bf16.mxu0 0
        %625 = vmatpush1.bf16.msra.mxu0 0
        %626 = vmatprep.subr.bf16.mxu0 0
        %627 = vmatpush1.bf16.msra.mxu0 0
        %628 = vmatprep.subr.bf16.mxu0 0
        %629 = vmatpush1.bf16.msra.mxu0 0
        %630 = vmatprep.subr.bf16.mxu0 0
        %631 = vmatpush1.bf16.msra.mxu0 0
        %632 = vmatprep.subr.bf16.mxu0 0
        %633 = vmatpush1.bf16.msra.mxu0 0
        %634 = vmatprep.subr.bf16.mxu0 0
        %635 = vmatpush1.bf16.msra.mxu0 0
        %636 = vmatprep.subr.bf16.mxu0 0
        %637 = vmatpush1.bf16.msra.mxu0 0
        %638 = vmatprep.subr.bf16.mxu0 0
        %639 = vmatpush1.bf16.msra.mxu0 0
        %640 = vmatprep.subr.bf16.mxu0 0
        %641 = vmatpush1.bf16.msra.mxu0 0
        %642 = vmatprep.subr.bf16.mxu0 0
        %643 = vmatpush1.bf16.msra.mxu0 0
        %644 = vmatprep.mubr.bf16.mxu0 0
        %645 = vmatmul.mubr.bf16.gmra.mrb[0].mxu0 %v466
        %v646 = vpop.f32.mrb[0].mxu0
        %v647 = vadd.f32 %v460, %v646
        %v648 = vpop.f32.mrb[0].mxu0
        %v649 = vpop.f32.mrb[0].mxu0
        %v650 = vpop.f32.mrb[0].mxu0
        %651 = vdwg.mxu0
        %s652 = scalar_lea.vmem [#allocation5], 8
        %v653 = vld [vmem:[%s652] sm:$0xf]
        %v654 = vld [vmem:[%s183] sm:$0xff]
        %v655 = vld [vmem:[%s183 + $0x8] sm:$0x3f]
        %v658 = vcombine.high %v654, %v654
        %v660 = vunpack.c.l.s4 1983009808
        %v661 = vunpack.c.0.s8 %v660
        %v662 = vlaneseq
        %v663 = vshrl.u32 %v662, 7
        %v664 = vsub.s32 %v661, %v663
        %v665 = vrot.slane %v654, %v664
        %v667 = vunpack.c.l.s4 1983009808
        %v668 = vunpack.c.0.s8 %v667
        %v669 = vlaneseq
        %v670 = vshrl.u32 %v669, 7
        %v671 = vsub.s32 %v668, %v670
        %v672 = vrot.slane %v658, %v671
        %v673 = vcombine.high %v665, %v665
        %v674 = vcombine.high %v672, %v672
        %v675 = vcombine.high %v655, %v655
        %v677 = vunpack.c.l.s4 1983009808
        %v678 = vunpack.c.0.s8 %v677
        %v679 = vlaneseq
        %v680 = vshrl.u32 %v679, 7
        %v681 = vsub.s32 %v678, %v680
        %v682 = vrot.slane %v655, %v681
        %v684 = vunpack.c.l.s4 1983009808
        %v685 = vunpack.c.0.s8 %v684
        %v686 = vlaneseq
        %v687 = vshrl.u32 %v686, 7
        %v688 = vsub.s32 %v685, %v687
        %v689 = vrot.slane %v675, %v688
        %v690 = vcombine.high %v682, %v682
        %691 = vrot.lane.b32.xlu0 %v665, 126
        %v692 = vpop.permute.xlu0 %691
        %693 = vrot.lane.b32.xlu0 %v673, 126
        %v694 = vpop.permute.xlu0 %693
        %695 = vrot.lane.b32.xlu0 %v672, 126
        %v696 = vpop.permute.xlu0 %695
        %697 = vrot.lane.b32.xlu0 %v674, 126
        %v698 = vpop.permute.xlu0 %697
        %699 = vrot.lane.b32.xlu0 %v682, 126
        %v700 = vpop.permute.xlu0 %699
        %701 = vrot.lane.b32.xlu0 %v690, 126
        %v702 = vpop.permute.xlu0 %701
        %703 = vrot.lane.b32.xlu0 %v689, 126
        %v704 = vpop.permute.xlu0 %703
        %vm705 = vcmask 1031168
        %v706 = vsel %vm705, %v692, %v694
        %v707 = vsel %vm705, %v694, %v696
        %v708 = vsel %vm705, %v696, %v698
        %v709 = vsel %vm705, %v698, %v700
        %v710 = vsel %vm705, %v700, %v702
        %v711 = vsel %vm705, %v702, %v704
        %v713 = vsel %vm276, %v653, 0
        %v716 = vsel %vm280, %v706, 0
        %v719 = vsel %vm280, %v707, 0
        %v722 = vsel %vm280, %v708, 0
        %v725 = vsel %vm280, %v709, 0
        %v728 = vsel %vm280, %v710, 0
        %v731 = vsel %vm280, %v711, 0
        %v734 = vsel %vm280, %v704, 0
        %736 = vmatprep.subr.bf16.mxu0 %v719
        %737 = vmatpush1.bf16.msra.mxu0 %v716
        %738 = vmatprep.subr.bf16.mxu0 0
        %739 = vmatpush1.bf16.msra.mxu0 0
        %740 = vmatprep.subr.bf16.mxu0 0
        %741 = vmatpush1.bf16.msra.mxu0 0
        %742 = vmatprep.subr.bf16.mxu0 0
        %743 = vmatpush1.bf16.msra.mxu0 0
        %744 = vmatprep.subr.bf16.mxu0 0
        %745 = vmatpush1.bf16.msra.mxu0 0
        %746 = vmatprep.subr.bf16.mxu0 0
        %747 = vmatpush1.bf16.msra.mxu0 0
        %748 = vmatprep.subr.bf16.mxu0 0
        %749 = vmatpush1.bf16.msra.mxu0 0
        %750 = vmatprep.subr.bf16.mxu0 0
        %751 = vmatpush1.bf16.msra.mxu0 0
        %752 = vmatprep.subr.bf16.mxu0 0
        %753 = vmatpush1.bf16.msra.mxu0 0
        %754 = vmatprep.subr.bf16.mxu0 0
        %755 = vmatpush1.bf16.msra.mxu0 0
        %756 = vmatprep.subr.bf16.mxu0 0
        %757 = vmatpush1.bf16.msra.mxu0 0
        %758 = vmatprep.subr.bf16.mxu0 0
        %759 = vmatpush1.bf16.msra.mxu0 0
        %760 = vmatprep.subr.bf16.mxu0 0
        %761 = vmatpush1.bf16.msra.mxu0 0
        %762 = vmatprep.subr.bf16.mxu0 0
        %763 = vmatpush1.bf16.msra.mxu0 0
        %764 = vmatprep.subr.bf16.mxu0 0
        %765 = vmatpush1.bf16.msra.mxu0 0
        %766 = vmatprep.subr.bf16.mxu0 0
        %767 = vmatpush1.bf16.msra.mxu0 0
        %768 = vmatprep.mubr.bf16.mxu0 0
        %769 = vmatmul.mubr.bf16.gmra.mrb[0].mxu0 %v713
        %v770 = vpop.f32.mrb[0].mxu0
        %v771 = vadd.f32 0.0, %v770
        %v772 = vpop.f32.mrb[0].mxu0
        %v773 = vadd.f32 0.0, %v772
        %v774 = vpop.f32.mrb[0].mxu0
        %v775 = vpop.f32.mrb[0].mxu0
        %776 = vdwg.mxu0
        %777 = vmatprep.subr.bf16.mxu0 %v725
        %778 = vmatpush1.bf16.msra.mxu0 %v722
        %779 = vmatprep.subr.bf16.mxu0 0
        %780 = vmatpush1.bf16.msra.mxu0 0
        %781 = vmatprep.subr.bf16.mxu0 0
        %782 = vmatpush1.bf16.msra.mxu0 0
        %783 = vmatprep.subr.bf16.mxu0 0
        %784 = vmatpush1.bf16.msra.mxu0 0
        %785 = vmatprep.subr.bf16.mxu0 0
        %786 = vmatpush1.bf16.msra.mxu0 0
        %787 = vmatprep.subr.bf16.mxu0 0
        %788 = vmatpush1.bf16.msra.mxu0 0
        %789 = vmatprep.subr.bf16.mxu0 0
        %790 = vmatpush1.bf16.msra.mxu0 0
        %791 = vmatprep.subr.bf16.mxu0 0
        %792 = vmatpush1.bf16.msra.mxu0 0
        %793 = vmatprep.subr.bf16.mxu0 0
        %794 = vmatpush1.bf16.msra.mxu0 0
        %795 = vmatprep.subr.bf16.mxu0 0
        %796 = vmatpush1.bf16.msra.mxu0 0
        %797 = vmatprep.subr.bf16.mxu0 0
        %798 = vmatpush1.bf16.msra.mxu0 0
        %799 = vmatprep.subr.bf16.mxu0 0
        %800 = vmatpush1.bf16.msra.mxu0 0
        %801 = vmatprep.subr.bf16.mxu0 0
        %802 = vmatpush1.bf16.msra.mxu0 0
        %803 = vmatprep.subr.bf16.mxu0 0
        %804 = vmatpush1.bf16.msra.mxu0 0
        %805 = vmatprep.subr.bf16.mxu0 0
        %806 = vmatpush1.bf16.msra.mxu0 0
        %807 = vmatprep.subr.bf16.mxu0 0
        %808 = vmatpush1.bf16.msra.mxu0 0
        %809 = vmatprep.mubr.bf16.mxu0 0
        %810 = vmatmul.mubr.bf16.gmra.mrb[0].mxu0 %v713
        %v811 = vpop.f32.mrb[0].mxu0
        %v812 = vadd.f32 0.0, %v811
        %v813 = vpop.f32.mrb[0].mxu0
        %v814 = vadd.f32 0.0, %v813
        %v815 = vpop.f32.mrb[0].mxu0
        %v816 = vpop.f32.mrb[0].mxu0
        %817 = vdwg.mxu0
        %818 = vmatprep.subr.bf16.mxu0 %v731
        %819 = vmatpush1.bf16.msra.mxu0 %v728
        %820 = vmatprep.subr.bf16.mxu0 0
        %821 = vmatpush1.bf16.msra.mxu0 0
        %822 = vmatprep.subr.bf16.mxu0 0
        %823 = vmatpush1.bf16.msra.mxu0 0
        %824 = vmatprep.subr.bf16.mxu0 0
        %825 = vmatpush1.bf16.msra.mxu0 0
        %826 = vmatprep.subr.bf16.mxu0 0
        %827 = vmatpush1.bf16.msra.mxu0 0
        %828 = vmatprep.subr.bf16.mxu0 0
        %829 = vmatpush1.bf16.msra.mxu0 0
        %830 = vmatprep.subr.bf16.mxu0 0
        %831 = vmatpush1.bf16.msra.mxu0 0
        %832 = vmatprep.subr.bf16.mxu0 0
        %833 = vmatpush1.bf16.msra.mxu0 0
        %834 = vmatprep.subr.bf16.mxu0 0
        %835 = vmatpush1.bf16.msra.mxu0 0
        %836 = vmatprep.subr.bf16.mxu0 0
        %837 = vmatpush1.bf16.msra.mxu0 0
        %838 = vmatprep.subr.bf16.mxu0 0
        %839 = vmatpush1.bf16.msra.mxu0 0
        %840 = vmatprep.subr.bf16.mxu0 0
        %841 = vmatpush1.bf16.msra.mxu0 0
        %842 = vmatprep.subr.bf16.mxu0 0
        %843 = vmatpush1.bf16.msra.mxu0 0
        %844 = vmatprep.subr.bf16.mxu0 0
        %845 = vmatpush1.bf16.msra.mxu0 0
        %846 = vmatprep.subr.bf16.mxu0 0
        %847 = vmatpush1.bf16.msra.mxu0 0
        %848 = vmatprep.subr.bf16.mxu0 0
        %849 = vmatpush1.bf16.msra.mxu0 0
        %850 = vmatprep.mubr.bf16.mxu0 0
        %851 = vmatmul.mubr.bf16.gmra.mrb[0].mxu0 %v713
        %v852 = vpop.f32.mrb[0].mxu0
        %v853 = vadd.f32 0.0, %v852
        %v854 = vpop.f32.mrb[0].mxu0
        %v855 = vadd.f32 0.0, %v854
        %v856 = vpop.f32.mrb[0].mxu0
        %v857 = vpop.f32.mrb[0].mxu0
        %858 = vdwg.mxu0
        %859 = vmatprep.subr.bf16.mxu0 0
        %860 = vmatpush1.bf16.msra.mxu0 %v734
        %861 = vmatprep.subr.bf16.mxu0 0
        %862 = vmatpush1.bf16.msra.mxu0 0
        %863 = vmatprep.subr.bf16.mxu0 0
        %864 = vmatpush1.bf16.msra.mxu0 0
        %865 = vmatprep.subr.bf16.mxu0 0
        %866 = vmatpush1.bf16.msra.mxu0 0
        %867 = vmatprep.subr.bf16.mxu0 0
        %868 = vmatpush1.bf16.msra.mxu0 0
        %869 = vmatprep.subr.bf16.mxu0 0
        %870 = vmatpush1.bf16.msra.mxu0 0
        %871 = vmatprep.subr.bf16.mxu0 0
        %872 = vmatpush1.bf16.msra.mxu0 0
        %873 = vmatprep.subr.bf16.mxu0 0
        %874 = vmatpush1.bf16.msra.mxu0 0
        %875 = vmatprep.subr.bf16.mxu0 0
        %876 = vmatpush1.bf16.msra.mxu0 0
        %877 = vmatprep.subr.bf16.mxu0 0
        %878 = vmatpush1.bf16.msra.mxu0 0
        %879 = vmatprep.subr.bf16.mxu0 0
        %880 = vmatpush1.bf16.msra.mxu0 0
        %881 = vmatprep.subr.bf16.mxu0 0
        %882 = vmatpush1.bf16.msra.mxu0 0
        %883 = vmatprep.subr.bf16.mxu0 0
        %884 = vmatpush1.bf16.msra.mxu0 0
        %885 = vmatprep.subr.bf16.mxu0 0
        %886 = vmatpush1.bf16.msra.mxu0 0
        %887 = vmatprep.subr.bf16.mxu0 0
        %888 = vmatpush1.bf16.msra.mxu0 0
        %889 = vmatprep.subr.bf16.mxu0 0
        %890 = vmatpush1.bf16.msra.mxu0 0
        %891 = vmatprep.mubr.bf16.mxu0 0
        %892 = vmatmul.mubr.bf16.gmra.mrb[0].mxu0 %v713
        %v893 = vpop.f32.mrb[0].mxu0
        %v894 = vadd.f32 0.0, %v893
        %v895 = vpop.f32.mrb[0].mxu0
        %v896 = vpop.f32.mrb[0].mxu0
        %v897 = vpop.f32.mrb[0].mxu0
        %898 = vdwg.mxu0
        %v899 = vadd.f32 %v524, %v771
        %v900 = vadd.f32 %v526, %v773
        %v901 = vadd.f32 %v565, %v812
        %v902 = vadd.f32 %v567, %v814
        %v903 = vadd.f32 %v606, %v853
        %v904 = vadd.f32 %v608, %v855
        %v905 = vadd.f32 %v647, %v894
        %s906 = scalar_lea.vmem [#allocation5], 12
        %v907 = vld [vmem:[%s906] sm:$0xf]
        %v908 = vld [vmem:[%s183] sm:$0xff]
        %v909 = vld [vmem:[%s183 + $0x8] sm:$0x3f]
        %v912 = vcombine.high %v908, %v908
        %v914 = vunpack.c.l.s4 1983009808
        %v915 = vunpack.c.0.s8 %v914
        %v916 = vlaneseq
        %v917 = vshrl.u32 %v916, 7
        %v918 = vsub.s32 %v915, %v917
        %v919 = vrot.slane %v908, %v918
        %v921 = vunpack.c.l.s4 1983009808
        %v922 = vunpack.c.0.s8 %v921
        %v923 = vlaneseq
        %v924 = vshrl.u32 %v923, 7
        %v925 = vsub.s32 %v922, %v924
        %v926 = vrot.slane %v912, %v925
        %v927 = vcombine.high %v919, %v919
        %v928 = vcombine.high %v926, %v926
        %v929 = vcombine.high %v909, %v909
        %v931 = vunpack.c.l.s4 1983009808
        %v932 = vunpack.c.0.s8 %v931
        %v933 = vlaneseq
        %v934 = vshrl.u32 %v933, 7
        %v935 = vsub.s32 %v932, %v934
        %v936 = vrot.slane %v909, %v935
        %v938 = vunpack.c.l.s4 1983009808
        %v939 = vunpack.c.0.s8 %v938
        %v940 = vlaneseq
        %v941 = vshrl.u32 %v940, 7
        %v942 = vsub.s32 %v939, %v941
        %v943 = vrot.slane %v929, %v942
        %v944 = vcombine.high %v936, %v936
        %945 = vrot.lane.b32.xlu0 %v919, 118
        %v946 = vpop.permute.xlu0 %945
        %947 = vrot.lane.b32.xlu0 %v927, 118
        %v948 = vpop.permute.xlu0 %947
        %949 = vrot.lane.b32.xlu0 %v926, 118
        %v950 = vpop.permute.xlu0 %949
        %951 = vrot.lane.b32.xlu0 %v928, 118
        %v952 = vpop.permute.xlu0 %951
        %953 = vrot.lane.b32.xlu0 %v936, 118
        %v954 = vpop.permute.xlu0 %953
        %955 = vrot.lane.b32.xlu0 %v944, 118
        %v956 = vpop.permute.xlu0 %955
        %957 = vrot.lane.b32.xlu0 %v943, 118
        %v958 = vpop.permute.xlu0 %957
        %vm959 = vcmask 965632
        %v960 = vsel %vm959, %v946, %v948
        %v961 = vsel %vm959, %v948, %v950
        %v962 = vsel %vm959, %v950, %v952
        %v963 = vsel %vm959, %v952, %v954
        %v964 = vsel %vm959, %v954, %v956
        %v965 = vsel %vm959, %v956, %v958
        %v967 = vsel %vm276, %v907, 0
        %v970 = vsel %vm280, %v960, 0
        %v973 = vsel %vm280, %v961, 0
        %v976 = vsel %vm280, %v962, 0
        %v979 = vsel %vm280, %v963, 0
        %v982 = vsel %vm280, %v964, 0
        %v985 = vsel %vm280, %v965, 0
        %v988 = vsel %vm280, %v958, 0
        %990 = vmatprep.subr.bf16.mxu0 %v973
        %991 = vmatpush1.bf16.msra.mxu0 %v970
        %992 = vmatprep.subr.bf16.mxu0 0
        %993 = vmatpush1.bf16.msra.mxu0 0
        %994 = vmatprep.subr.bf16.mxu0 0
        %995 = vmatpush1.bf16.msra.mxu0 0
        %996 = vmatprep.subr.bf16.mxu0 0
        %997 = vmatpush1.bf16.msra.mxu0 0
        %998 = vmatprep.subr.bf16.mxu0 0
        %999 = vmatpush1.bf16.msra.mxu0 0
        %1000 = vmatprep.subr.bf16.mxu0 0
        %1001 = vmatpush1.bf16.msra.mxu0 0
        %1002 = vmatprep.subr.bf16.mxu0 0
        %1003 = vmatpush1.bf16.msra.mxu0 0
        %1004 = vmatprep.subr.bf16.mxu0 0
        %1005 = vmatpush1.bf16.msra.mxu0 0
        %1006 = vmatprep.subr.bf16.mxu0 0
        %1007 = vmatpush1.bf16.msra.mxu0 0
        %1008 = vmatprep.subr.bf16.mxu0 0
        %1009 = vmatpush1.bf16.msra.mxu0 0
        %1010 = vmatprep.subr.bf16.mxu0 0
        %1011 = vmatpush1.bf16.msra.mxu0 0
        %1012 = vmatprep.subr.bf16.mxu0 0
        %1013 = vmatpush1.bf16.msra.mxu0 0
        %1014 = vmatprep.subr.bf16.mxu0 0
        %1015 = vmatpush1.bf16.msra.mxu0 0
        %1016 = vmatprep.subr.bf16.mxu0 0
        %1017 = vmatpush1.bf16.msra.mxu0 0
        %1018 = vmatprep.subr.bf16.mxu0 0
        %1019 = vmatpush1.bf16.msra.mxu0 0
        %1020 = vmatprep.subr.bf16.mxu0 0
        %1021 = vmatpush1.bf16.msra.mxu0 0
        %1022 = vmatprep.mubr.bf16.mxu0 0
        %1023 = vmatmul.mubr.bf16.gmra.mrb[0].mxu0 %v967
        %v1024 = vpop.f32.mrb[0].mxu0
        %v1025 = vadd.f32 0.0, %v1024
        %v1026 = vpop.f32.mrb[0].mxu0
        %v1027 = vadd.f32 0.0, %v1026
        %v1028 = vpop.f32.mrb[0].mxu0
        %v1029 = vpop.f32.mrb[0].mxu0
        %1030 = vdwg.mxu0
        %1031 = vmatprep.subr.bf16.mxu0 %v979
        %1032 = vmatpush1.bf16.msra.mxu0 %v976
        %1033 = vmatprep.subr.bf16.mxu0 0
        %1034 = vmatpush1.bf16.msra.mxu0 0
        %1035 = vmatprep.subr.bf16.mxu0 0
        %1036 = vmatpush1.bf16.msra.mxu0 0
        %1037 = vmatprep.subr.bf16.mxu0 0
        %1038 = vmatpush1.bf16.msra.mxu0 0
        %1039 = vmatprep.subr.bf16.mxu0 0
        %1040 = vmatpush1.bf16.msra.mxu0 0
        %1041 = vmatprep.subr.bf16.mxu0 0
        %1042 = vmatpush1.bf16.msra.mxu0 0
        %1043 = vmatprep.subr.bf16.mxu0 0
        %1044 = vmatpush1.bf16.msra.mxu0 0
        %1045 = vmatprep.subr.bf16.mxu0 0
        %1046 = vmatpush1.bf16.msra.mxu0 0
        %1047 = vmatprep.subr.bf16.mxu0 0
        %1048 = vmatpush1.bf16.msra.mxu0 0
        %1049 = vmatprep.subr.bf16.mxu0 0
        %1050 = vmatpush1.bf16.msra.mxu0 0
        %1051 = vmatprep.subr.bf16.mxu0 0
        %1052 = vmatpush1.bf16.msra.mxu0 0
        %1053 = vmatprep.subr.bf16.mxu0 0
        %1054 = vmatpush1.bf16.msra.mxu0 0
        %1055 = vmatprep.subr.bf16.mxu0 0
        %1056 = vmatpush1.bf16.msra.mxu0 0
        %1057 = vmatprep.subr.bf16.mxu0 0
        %1058 = vmatpush1.bf16.msra.mxu0 0
        %1059 = vmatprep.subr.bf16.mxu0 0
        %1060 = vmatpush1.bf16.msra.mxu0 0
        %1061 = vmatprep.subr.bf16.mxu0 0
        %1062 = vmatpush1.bf16.msra.mxu0 0
        %1063 = vmatprep.mubr.bf16.mxu0 0
        %1064 = vmatmul.mubr.bf16.gmra.mrb[0].mxu0 %v967
        %v1065 = vpop.f32.mrb[0].mxu0
        %v1066 = vadd.f32 0.0, %v1065
        %v1067 = vpop.f32.mrb[0].mxu0
        %v1068 = vadd.f32 0.0, %v1067
        %v1069 = vpop.f32.mrb[0].mxu0
        %v1070 = vpop.f32.mrb[0].mxu0
        %1071 = vdwg.mxu0
        %1072 = vmatprep.subr.bf16.mxu0 %v985
        %1073 = vmatpush1.bf16.msra.mxu0 %v982
        %1074 = vmatprep.subr.bf16.mxu0 0
        %1075 = vmatpush1.bf16.msra.mxu0 0
        %1076 = vmatprep.subr.bf16.mxu0 0
        %1077 = vmatpush1.bf16.msra.mxu0 0
        %1078 = vmatprep.subr.bf16.mxu0 0
        %1079 = vmatpush1.bf16.msra.mxu0 0
        %1080 = vmatprep.subr.bf16.mxu0 0
        %1081 = vmatpush1.bf16.msra.mxu0 0
        %1082 = vmatprep.subr.bf16.mxu0 0
        %1083 = vmatpush1.bf16.msra.mxu0 0
        %1084 = vmatprep.subr.bf16.mxu0 0
        %1085 = vmatpush1.bf16.msra.mxu0 0
        %1086 = vmatprep.subr.bf16.mxu0 0
        %1087 = vmatpush1.bf16.msra.mxu0 0
        %1088 = vmatprep.subr.bf16.mxu0 0
        %1089 = vmatpush1.bf16.msra.mxu0 0
        %1090 = vmatprep.subr.bf16.mxu0 0
        %1091 = vmatpush1.bf16.msra.mxu0 0
        %1092 = vmatprep.subr.bf16.mxu0 0
        %1093 = vmatpush1.bf16.msra.mxu0 0
        %1094 = vmatprep.subr.bf16.mxu0 0
        %1095 = vmatpush1.bf16.msra.mxu0 0
        %1096 = vmatprep.subr.bf16.mxu0 0
        %1097 = vmatpush1.bf16.msra.mxu0 0
        %1098 = vmatprep.subr.bf16.mxu0 0
        %1099 = vmatpush1.bf16.msra.mxu0 0
        %1100 = vmatprep.subr.bf16.mxu0 0
        %1101 = vmatpush1.bf16.msra.mxu0 0
        %1102 = vmatprep.subr.bf16.mxu0 0
        %1103 = vmatpush1.bf16.msra.mxu0 0
        %1104 = vmatprep.mubr.bf16.mxu0 0
        %1105 = vmatmul.mubr.bf16.gmra.mrb[0].mxu0 %v967
        %v1106 = vpop.f32.mrb[0].mxu0
        %v1107 = vadd.f32 0.0, %v1106
        %v1108 = vpop.f32.mrb[0].mxu0
        %v1109 = vadd.f32 0.0, %v1108
        %v1110 = vpop.f32.mrb[0].mxu0
        %v1111 = vpop.f32.mrb[0].mxu0
        %1112 = vdwg.mxu0
        %1113 = vmatprep.subr.bf16.mxu0 0
        %1114 = vmatpush1.bf16.msra.mxu0 %v988
        %1115 = vmatprep.subr.bf16.mxu0 0
        %1116 = vmatpush1.bf16.msra.mxu0 0
        %1117 = vmatprep.subr.bf16.mxu0 0
        %1118 = vmatpush1.bf16.msra.mxu0 0
        %1119 = vmatprep.subr.bf16.mxu0 0
        %1120 = vmatpush1.bf16.msra.mxu0 0
        %1121 = vmatprep.subr.bf16.mxu0 0
        %1122 = vmatpush1.bf16.msra.mxu0 0
        %1123 = vmatprep.subr.bf16.mxu0 0
        %1124 = vmatpush1.bf16.msra.mxu0 0
        %1125 = vmatprep.subr.bf16.mxu0 0
        %1126 = vmatpush1.bf16.msra.mxu0 0
        %1127 = vmatprep.subr.bf16.mxu0 0
        %1128 = vmatpush1.bf16.msra.mxu0 0
        %1129 = vmatprep.subr.bf16.mxu0 0
        %1130 = vmatpush1.bf16.msra.mxu0 0
        %1131 = vmatprep.subr.bf16.mxu0 0
        %1132 = vmatpush1.bf16.msra.mxu0 0
        %1133 = vmatprep.subr.bf16.mxu0 0
        %1134 = vmatpush1.bf16.msra.mxu0 0
        %1135 = vmatprep.subr.bf16.mxu0 0
        %1136 = vmatpush1.bf16.msra.mxu0 0
        %1137 = vmatprep.subr.bf16.mxu0 0
        %1138 = vmatpush1.bf16.msra.mxu0 0
        %1139 = vmatprep.subr.bf16.mxu0 0
        %1140 = vmatpush1.bf16.msra.mxu0 0
        %1141 = vmatprep.subr.bf16.mxu0 0
        %1142 = vmatpush1.bf16.msra.mxu0 0
        %1143 = vmatprep.subr.bf16.mxu0 0
        %1144 = vmatpush1.bf16.msra.mxu0 0
        %1145 = vmatprep.mubr.bf16.mxu0 0
        %1146 = vmatmul.mubr.bf16.gmra.mrb[0].mxu0 %v967
        %v1147 = vpop.f32.mrb[0].mxu0
        %v1148 = vadd.f32 0.0, %v1147
        %v1149 = vpop.f32.mrb[0].mxu0
        %v1150 = vpop.f32.mrb[0].mxu0
        %v1151 = vpop.f32.mrb[0].mxu0
        %1152 = vdwg.mxu0
        %v1153 = vadd.f32 %v899, %v1025
        %v1154 = vadd.f32 %v900, %v1027
        %v1155 = vadd.f32 %v901, %v1066
        %v1156 = vadd.f32 %v902, %v1068
        %v1157 = vadd.f32 %v903, %v1107
        %v1158 = vadd.f32 %v904, %v1109
        %v1159 = vadd.f32 %v905, %v1148
        %s1160 = scalar_lea.vmem [#allocation5], 16
        %v1161 = vld [vmem:[%s1160] sm:$0xf]
        %v1162 = vld [vmem:[%s183] sm:$0xff]
        %v1163 = vld [vmem:[%s183 + $0x8] sm:$0x3f]
        %v1166 = vcombine.high %v1162, %v1162
        %v1168 = vunpack.c.l.s4 1983009808
        %v1169 = vunpack.c.0.s8 %v1168
        %v1170 = vlaneseq
        %v1171 = vshrl.u32 %v1170, 7
        %v1172 = vsub.s32 %v1169, %v1171
        %v1173 = vrot.slane %v1162, %v1172
        %v1175 = vunpack.c.l.s4 1983009808
        %v1176 = vunpack.c.0.s8 %v1175
        %v1177 = vlaneseq
        %v1178 = vshrl.u32 %v1177, 7
        %v1179 = vsub.s32 %v1176, %v1178
        %v1180 = vrot.slane %v1166, %v1179
        %v1181 = vcombine.high %v1173, %v1173
        %v1182 = vcombine.high %v1180, %v1180
        %v1183 = vcombine.high %v1163, %v1163
        %v1185 = vunpack.c.l.s4 1983009808
        %v1186 = vunpack.c.0.s8 %v1185
        %v1187 = vlaneseq
        %v1188 = vshrl.u32 %v1187, 7
        %v1189 = vsub.s32 %v1186, %v1188
        %v1190 = vrot.slane %v1163, %v1189
        %v1192 = vunpack.c.l.s4 1983009808
        %v1193 = vunpack.c.0.s8 %v1192
        %v1194 = vlaneseq
        %v1195 = vshrl.u32 %v1194, 7
        %v1196 = vsub.s32 %v1193, %v1195
        %v1197 = vrot.slane %v1183, %v1196
        %v1198 = vcombine.high %v1190, %v1190
        %1199 = vrot.lane.b32.xlu0 %v1173, 117
        %v1200 = vpop.permute.xlu0 %1199
        %1201 = vrot.lane.b32.xlu0 %v1181, 117
        %v1202 = vpop.permute.xlu0 %1201
        %1203 = vrot.lane.b32.xlu0 %v1180, 117
        %v1204 = vpop.permute.xlu0 %1203
        %1205 = vrot.lane.b32.xlu0 %v1182, 117
        %v1206 = vpop.permute.xlu0 %1205
        %1207 = vrot.lane.b32.xlu0 %v1190, 117
        %v1208 = vpop.permute.xlu0 %1207
        %1209 = vrot.lane.b32.xlu0 %v1198, 117
        %v1210 = vpop.permute.xlu0 %1209
        %1211 = vrot.lane.b32.xlu0 %v1197, 117
        %v1212 = vpop.permute.xlu0 %1211
        %vm1213 = vcmask 957440
        %v1214 = vsel %vm1213, %v1200, %v1202
        %v1215 = vsel %vm1213, %v1202, %v1204
        %v1216 = vsel %vm1213, %v1204, %v1206
        %v1217 = vsel %vm1213, %v1206, %v1208
        %v1218 = vsel %vm1213, %v1208, %v1210
        %v1219 = vsel %vm1213, %v1210, %v1212
        %v1221 = vsel %vm276, %v1161, 0
        %v1224 = vsel %vm280, %v1214, 0
        %v1227 = vsel %vm280, %v1215, 0
        %v1230 = vsel %vm280, %v1216, 0
        %v1233 = vsel %vm280, %v1217, 0
        %v1236 = vsel %vm280, %v1218, 0
        %v1239 = vsel %vm280, %v1219, 0
        %v1242 = vsel %vm280, %v1212, 0
        %1244 = vmatprep.subr.bf16.mxu0 %v1227
        %1245 = vmatpush1.bf16.msra.mxu0 %v1224
        %1246 = vmatprep.subr.bf16.mxu0 0
        %1247 = vmatpush1.bf16.msra.mxu0 0
        %1248 = vmatprep.subr.bf16.mxu0 0
        %1249 = vmatpush1.bf16.msra.mxu0 0
        %1250 = vmatprep.subr.bf16.mxu0 0
        %1251 = vmatpush1.bf16.msra.mxu0 0
        %1252 = vmatprep.subr.bf16.mxu0 0
        %1253 = vmatpush1.bf16.msra.mxu0 0
        %1254 = vmatprep.subr.bf16.mxu0 0
        %1255 = vmatpush1.bf16.msra.mxu0 0
        %1256 = vmatprep.subr.bf16.mxu0 0
        %1257 = vmatpush1.bf16.msra.mxu0 0
        %1258 = vmatprep.subr.bf16.mxu0 0
        %1259 = vmatpush1.bf16.msra.mxu0 0
        %1260 = vmatprep.subr.bf16.mxu0 0
        %1261 = vmatpush1.bf16.msra.mxu0 0
        %1262 = vmatprep.subr.bf16.mxu0 0
        %1263 = vmatpush1.bf16.msra.mxu0 0
        %1264 = vmatprep.subr.bf16.mxu0 0
        %1265 = vmatpush1.bf16.msra.mxu0 0
        %1266 = vmatprep.subr.bf16.mxu0 0
        %1267 = vmatpush1.bf16.msra.mxu0 0
        %1268 = vmatprep.subr.bf16.mxu0 0
        %1269 = vmatpush1.bf16.msra.mxu0 0
        %1270 = vmatprep.subr.bf16.mxu0 0
        %1271 = vmatpush1.bf16.msra.mxu0 0
        %1272 = vmatprep.subr.bf16.mxu0 0
        %1273 = vmatpush1.bf16.msra.mxu0 0
        %1274 = vmatprep.subr.bf16.mxu0 0
        %1275 = vmatpush1.bf16.msra.mxu0 0
        %1276 = vmatprep.mubr.bf16.mxu0 0
        %1277 = vmatmul.mubr.bf16.gmra.mrb[0].mxu0 %v1221
        %v1278 = vpop.f32.mrb[0].mxu0
        %v1279 = vadd.f32 0.0, %v1278
        %v1280 = vpop.f32.mrb[0].mxu0
        %v1281 = vadd.f32 0.0, %v1280
        %v1282 = vpop.f32.mrb[0].mxu0
        %v1283 = vpop.f32.mrb[0].mxu0
        %1284 = vdwg.mxu0
        %1285 = vmatprep.subr.bf16.mxu0 %v1233
        %1286 = vmatpush1.bf16.msra.mxu0 %v1230
        %1287 = vmatprep.subr.bf16.mxu0 0
        %1288 = vmatpush1.bf16.msra.mxu0 0
        %1289 = vmatprep.subr.bf16.mxu0 0
        %1290 = vmatpush1.bf16.msra.mxu0 0
        %1291 = vmatprep.subr.bf16.mxu0 0
        %1292 = vmatpush1.bf16.msra.mxu0 0
        %1293 = vmatprep.subr.bf16.mxu0 0
        %1294 = vmatpush1.bf16.msra.mxu0 0
        %1295 = vmatprep.subr.bf16.mxu0 0
        %1296 = vmatpush1.bf16.msra.mxu0 0
        %1297 = vmatprep.subr.bf16.mxu0 0
        %1298 = vmatpush1.bf16.msra.mxu0 0
        %1299 = vmatprep.subr.bf16.mxu0 0
        %1300 = vmatpush1.bf16.msra.mxu0 0
        %1301 = vmatprep.subr.bf16.mxu0 0
        %1302 = vmatpush1.bf16.msra.mxu0 0
        %1303 = vmatprep.subr.bf16.mxu0 0
        %1304 = vmatpush1.bf16.msra.mxu0 0
        %1305 = vmatprep.subr.bf16.mxu0 0
        %1306 = vmatpush1.bf16.msra.mxu0 0
        %1307 = vmatprep.subr.bf16.mxu0 0
        %1308 = vmatpush1.bf16.msra.mxu0 0
        %1309 = vmatprep.subr.bf16.mxu0 0
        %1310 = vmatpush1.bf16.msra.mxu0 0
        %1311 = vmatprep.subr.bf16.mxu0 0
        %1312 = vmatpush1.bf16.msra.mxu0 0
        %1313 = vmatprep.subr.bf16.mxu0 0
        %1314 = vmatpush1.bf16.msra.mxu0 0
        %1315 = vmatprep.subr.bf16.mxu0 0
        %1316 = vmatpush1.bf16.msra.mxu0 0
        %1317 = vmatprep.mubr.bf16.mxu0 0
        %1318 = vmatmul.mubr.bf16.gmra.mrb[0].mxu0 %v1221
        %v1319 = vpop.f32.mrb[0].mxu0
        %v1320 = vadd.f32 0.0, %v1319
        %v1321 = vpop.f32.mrb[0].mxu0
        %v1322 = vadd.f32 0.0, %v1321
        %v1323 = vpop.f32.mrb[0].mxu0
        %v1324 = vpop.f32.mrb[0].mxu0
        %1325 = vdwg.mxu0
        %1326 = vmatprep.subr.bf16.mxu0 %v1239
        %1327 = vmatpush1.bf16.msra.mxu0 %v1236
        %1328 = vmatprep.subr.bf16.mxu0 0
        %1329 = vmatpush1.bf16.msra.mxu0 0
        %1330 = vmatprep.subr.bf16.mxu0 0
        %1331 = vmatpush1.bf16.msra.mxu0 0
        %1332 = vmatprep.subr.bf16.mxu0 0
        %1333 = vmatpush1.bf16.msra.mxu0 0
        %1334 = vmatprep.subr.bf16.mxu0 0
        %1335 = vmatpush1.bf16.msra.mxu0 0
        %1336 = vmatprep.subr.bf16.mxu0 0
        %1337 = vmatpush1.bf16.msra.mxu0 0
        %1338 = vmatprep.subr.bf16.mxu0 0
        %1339 = vmatpush1.bf16.msra.mxu0 0
        %1340 = vmatprep.subr.bf16.mxu0 0
        %1341 = vmatpush1.bf16.msra.mxu0 0
        %1342 = vmatprep.subr.bf16.mxu0 0
        %1343 = vmatpush1.bf16.msra.mxu0 0
        %1344 = vmatprep.subr.bf16.mxu0 0
        %1345 = vmatpush1.bf16.msra.mxu0 0
        %1346 = vmatprep.subr.bf16.mxu0 0
        %1347 = vmatpush1.bf16.msra.mxu0 0
        %1348 = vmatprep.subr.bf16.mxu0 0
        %1349 = vmatpush1.bf16.msra.mxu0 0
        %1350 = vmatprep.subr.bf16.mxu0 0
        %1351 = vmatpush1.bf16.msra.mxu0 0
        %1352 = vmatprep.subr.bf16.mxu0 0
        %1353 = vmatpush1.bf16.msra.mxu0 0
        %1354 = vmatprep.subr.bf16.mxu0 0
        %1355 = vmatpush1.bf16.msra.mxu0 0
        %1356 = vmatprep.subr.bf16.mxu0 0
        %1357 = vmatpush1.bf16.msra.mxu0 0
        %1358 = vmatprep.mubr.bf16.mxu0 0
        %1359 = vmatmul.mubr.bf16.gmra.mrb[0].mxu0 %v1221
        %v1360 = vpop.f32.mrb[0].mxu0
        %v1361 = vadd.f32 0.0, %v1360
        %v1362 = vpop.f32.mrb[0].mxu0
        %v1363 = vadd.f32 0.0, %v1362
        %v1364 = vpop.f32.mrb[0].mxu0
        %v1365 = vpop.f32.mrb[0].mxu0
        %1366 = vdwg.mxu0
        %1367 = vmatprep.subr.bf16.mxu0 0
        %1368 = vmatpush1.bf16.msra.mxu0 %v1242
        %1369 = vmatprep.subr.bf16.mxu0 0
        %1370 = vmatpush1.bf16.msra.mxu0 0
        %1371 = vmatprep.subr.bf16.mxu0 0
        %1372 = vmatpush1.bf16.msra.mxu0 0
        %1373 = vmatprep.subr.bf16.mxu0 0
        %1374 = vmatpush1.bf16.msra.mxu0 0
        %1375 = vmatprep.subr.bf16.mxu0 0
        %1376 = vmatpush1.bf16.msra.mxu0 0
        %1377 = vmatprep.subr.bf16.mxu0 0
        %1378 = vmatpush1.bf16.msra.mxu0 0
        %1379 = vmatprep.subr.bf16.mxu0 0
        %1380 = vmatpush1.bf16.msra.mxu0 0
        %1381 = vmatprep.subr.bf16.mxu0 0
        %1382 = vmatpush1.bf16.msra.mxu0 0
        %1383 = vmatprep.subr.bf16.mxu0 0
        %1384 = vmatpush1.bf16.msra.mxu0 0
        %1385 = vmatprep.subr.bf16.mxu0 0
        %1386 = vmatpush1.bf16.msra.mxu0 0
        %1387 = vmatprep.subr.bf16.mxu0 0
        %1388 = vmatpush1.bf16.msra.mxu0 0
        %1389 = vmatprep.subr.bf16.mxu0 0
        %1390 = vmatpush1.bf16.msra.mxu0 0
        %1391 = vmatprep.subr.bf16.mxu0 0
        %1392 = vmatpush1.bf16.msra.mxu0 0
        %1393 = vmatprep.subr.bf16.mxu0 0
        %1394 = vmatpush1.bf16.msra.mxu0 0
        %1395 = vmatprep.subr.bf16.mxu0 0
        %1396 = vmatpush1.bf16.msra.mxu0 0
        %1397 = vmatprep.subr.bf16.mxu0 0
        %1398 = vmatpush1.bf16.msra.mxu0 0
        %1399 = vmatprep.mubr.bf16.mxu0 0
        %1400 = vmatmul.mubr.bf16.gmra.mrb[0].mxu0 %v1221
        %v1401 = vpop.f32.mrb[0].mxu0
        %v1402 = vadd.f32 0.0, %v1401
        %v1403 = vpop.f32.mrb[0].mxu0
        %v1404 = vpop.f32.mrb[0].mxu0
        %v1405 = vpop.f32.mrb[0].mxu0
        %1406 = vdwg.mxu0
        %v1407 = vadd.f32 %v1153, %v1279
        %v1408 = vadd.f32 %v1154, %v1281
        %v1409 = vadd.f32 %v1155, %v1320
        %v1410 = vadd.f32 %v1156, %v1322
        %v1411 = vadd.f32 %v1157, %v1361
        %v1412 = vadd.f32 %v1158, %v1363
        %v1413 = vadd.f32 %v1159, %v1402
        %s1414 = scalar_lea.vmem [#allocation5], 20
        %v1415 = vld [vmem:[%s1414] sm:$0xf]
        %v1416 = vld [vmem:[%s183] sm:$0xff]
        %v1417 = vld [vmem:[%s183 + $0x8] sm:$0x3f]
        %v1420 = vcombine.high %v1416, %v1416
        %v1422 = vunpack.c.l.s4 1983009808
        %v1423 = vunpack.c.0.s8 %v1422
        %v1424 = vlaneseq
        %v1425 = vshrl.u32 %v1424, 7
        %v1426 = vsub.s32 %v1423, %v1425
        %v1427 = vrot.slane %v1416, %v1426
        %v1429 = vunpack.c.l.s4 1983009808
        %v1430 = vunpack.c.0.s8 %v1429
        %v1431 = vlaneseq
        %v1432 = vshrl.u32 %v1431, 7
        %v1433 = vsub.s32 %v1430, %v1432
        %v1434 = vrot.slane %v1420, %v1433
        %v1435 = vcombine.high %v1427, %v1427
        %v1436 = vcombine.high %v1434, %v1434
        %v1437 = vcombine.high %v1417, %v1417
        %v1439 = vunpack.c.l.s4 1983009808
        %v1440 = vunpack.c.0.s8 %v1439
        %v1441 = vlaneseq
        %v1442 = vshrl.u32 %v1441, 7
        %v1443 = vsub.s32 %v1440, %v1442
        %v1444 = vrot.slane %v1417, %v1443
        %v1446 = vunpack.c.l.s4 1983009808
        %v1447 = vunpack.c.0.s8 %v1446
        %v1448 = vlaneseq
        %v1449 = vshrl.u32 %v1448, 7
        %v1450 = vsub.s32 %v1447, %v1449
        %v1451 = vrot.slane %v1437, %v1450
        %v1452 = vcombine.high %v1444, %v1444
        %1453 = vrot.lane.b32.xlu0 %v1427, 116
        %v1454 = vpop.permute.xlu0 %1453
        %1455 = vrot.lane.b32.xlu0 %v1435, 116
        %v1456 = vpop.permute.xlu0 %1455
        %1457 = vrot.lane.b32.xlu0 %v1434, 116
        %v1458 = vpop.permute.xlu0 %1457
        %1459 = vrot.lane.b32.xlu0 %v1436, 116
        %v1460 = vpop.permute.xlu0 %1459
        %1461 = vrot.lane.b32.xlu0 %v1444, 116
        %v1462 = vpop.permute.xlu0 %1461
        %1463 = vrot.lane.b32.xlu0 %v1452, 116
        %v1464 = vpop.permute.xlu0 %1463
        %1465 = vrot.lane.b32.xlu0 %v1451, 116
        %v1466 = vpop.permute.xlu0 %1465
        %vm1467 = vcmask 949248
        %v1468 = vsel %vm1467, %v1454, %v1456
        %v1469 = vsel %vm1467, %v1456, %v1458
        %v1470 = vsel %vm1467, %v1458, %v1460
        %v1471 = vsel %vm1467, %v1460, %v1462
        %v1472 = vsel %vm1467, %v1462, %v1464
        %v1473 = vsel %vm1467, %v1464, %v1466
        %v1475 = vsel %vm276, %v1415, 0
        %v1478 = vsel %vm280, %v1468, 0
        %v1481 = vsel %vm280, %v1469, 0
        %v1484 = vsel %vm280, %v1470, 0
        %v1487 = vsel %vm280, %v1471, 0
        %v1490 = vsel %vm280, %v1472, 0
        %v1493 = vsel %vm280, %v1473, 0
        %v1496 = vsel %vm280, %v1466, 0
        %1498 = vmatprep.subr.bf16.mxu0 %v1481
        %1499 = vmatpush1.bf16.msra.mxu0 %v1478
        %1500 = vmatprep.subr.bf16.mxu0 0
        %1501 = vmatpush1.bf16.msra.mxu0 0
        %1502 = vmatprep.subr.bf16.mxu0 0
        %1503 = vmatpush1.bf16.msra.mxu0 0
        %1504 = vmatprep.subr.bf16.mxu0 0
        %1505 = vmatpush1.bf16.msra.mxu0 0
        %1506 = vmatprep.subr.bf16.mxu0 0
        %1507 = vmatpush1.bf16.msra.mxu0 0
        %1508 = vmatprep.subr.bf16.mxu0 0
        %1509 = vmatpush1.bf16.msra.mxu0 0
        %1510 = vmatprep.subr.bf16.mxu0 0
        %1511 = vmatpush1.bf16.msra.mxu0 0
        %1512 = vmatprep.subr.bf16.mxu0 0
        %1513 = vmatpush1.bf16.msra.mxu0 0
        %1514 = vmatprep.subr.bf16.mxu0 0
        %1515 = vmatpush1.bf16.msra.mxu0 0
        %1516 = vmatprep.subr.bf16.mxu0 0
        %1517 = vmatpush1.bf16.msra.mxu0 0
        %1518 = vmatprep.subr.bf16.mxu0 0
        %1519 = vmatpush1.bf16.msra.mxu0 0
        %1520 = vmatprep.subr.bf16.mxu0 0
        %1521 = vmatpush1.bf16.msra.mxu0 0
        %1522 = vmatprep.subr.bf16.mxu0 0
        %1523 = vmatpush1.bf16.msra.mxu0 0
        %1524 = vmatprep.subr.bf16.mxu0 0
        %1525 = vmatpush1.bf16.msra.mxu0 0
        %1526 = vmatprep.subr.bf16.mxu0 0
        %1527 = vmatpush1.bf16.msra.mxu0 0
        %1528 = vmatprep.subr.bf16.mxu0 0
        %1529 = vmatpush1.bf16.msra.mxu0 0
        %1530 = vmatprep.mubr.bf16.mxu0 0
        %1531 = vmatmul.mubr.bf16.gmra.mrb[0].mxu0 %v1475
        %v1532 = vpop.f32.mrb[0].mxu0
        %v1533 = vadd.f32 0.0, %v1532
        %v1534 = vpop.f32.mrb[0].mxu0
        %v1535 = vadd.f32 0.0, %v1534
        %v1536 = vpop.f32.mrb[0].mxu0
        %v1537 = vpop.f32.mrb[0].mxu0
        %1538 = vdwg.mxu0
        %1539 = vmatprep.subr.bf16.mxu0 %v1487
        %1540 = vmatpush1.bf16.msra.mxu0 %v1484
        %1541 = vmatprep.subr.bf16.mxu0 0
        %1542 = vmatpush1.bf16.msra.mxu0 0
        %1543 = vmatprep.subr.bf16.mxu0 0
        %1544 = vmatpush1.bf16.msra.mxu0 0
        %1545 = vmatprep.subr.bf16.mxu0 0
        %1546 = vmatpush1.bf16.msra.mxu0 0
        %1547 = vmatprep.subr.bf16.mxu0 0
        %1548 = vmatpush1.bf16.msra.mxu0 0
        %1549 = vmatprep.subr.bf16.mxu0 0
        %1550 = vmatpush1.bf16.msra.mxu0 0
        %1551 = vmatprep.subr.bf16.mxu0 0
        %1552 = vmatpush1.bf16.msra.mxu0 0
        %1553 = vmatprep.subr.bf16.mxu0 0
        %1554 = vmatpush1.bf16.msra.mxu0 0
        %1555 = vmatprep.subr.bf16.mxu0 0
        %1556 = vmatpush1.bf16.msra.mxu0 0
        %1557 = vmatprep.subr.bf16.mxu0 0
        %1558 = vmatpush1.bf16.msra.mxu0 0
        %1559 = vmatprep.subr.bf16.mxu0 0
        %1560 = vmatpush1.bf16.msra.mxu0 0
        %1561 = vmatprep.subr.bf16.mxu0 0
        %1562 = vmatpush1.bf16.msra.mxu0 0
        %1563 = vmatprep.subr.bf16.mxu0 0
        %1564 = vmatpush1.bf16.msra.mxu0 0
        %1565 = vmatprep.subr.bf16.mxu0 0
        %1566 = vmatpush1.bf16.msra.mxu0 0
        %1567 = vmatprep.subr.bf16.mxu0 0
        %1568 = vmatpush1.bf16.msra.mxu0 0
        %1569 = vmatprep.subr.bf16.mxu0 0
        %1570 = vmatpush1.bf16.msra.mxu0 0
        %1571 = vmatprep.mubr.bf16.mxu0 0
        %1572 = vmatmul.mubr.bf16.gmra.mrb[0].mxu0 %v1475
        %v1573 = vpop.f32.mrb[0].mxu0
        %v1574 = vadd.f32 0.0, %v1573
        %v1575 = vpop.f32.mrb[0].mxu0
        %v1576 = vadd.f32 0.0, %v1575
        %v1577 = vpop.f32.mrb[0].mxu0
        %v1578 = vpop.f32.mrb[0].mxu0
        %1579 = vdwg.mxu0
        %1580 = vmatprep.subr.bf16.mxu0 %v1493
        %1581 = vmatpush1.bf16.msra.mxu0 %v1490
        %1582 = vmatprep.subr.bf16.mxu0 0
        %1583 = vmatpush1.bf16.msra.mxu0 0
        %1584 = vmatprep.subr.bf16.mxu0 0
        %1585 = vmatpush1.bf16.msra.mxu0 0
        %1586 = vmatprep.subr.bf16.mxu0 0
        %1587 = vmatpush1.bf16.msra.mxu0 0
        %1588 = vmatprep.subr.bf16.mxu0 0
        %1589 = vmatpush1.bf16.msra.mxu0 0
        %1590 = vmatprep.subr.bf16.mxu0 0
        %1591 = vmatpush1.bf16.msra.mxu0 0
        %1592 = vmatprep.subr.bf16.mxu0 0
        %1593 = vmatpush1.bf16.msra.mxu0 0
        %1594 = vmatprep.subr.bf16.mxu0 0
        %1595 = vmatpush1.bf16.msra.mxu0 0
        %1596 = vmatprep.subr.bf16.mxu0 0
        %1597 = vmatpush1.bf16.msra.mxu0 0
        %1598 = vmatprep.subr.bf16.mxu0 0
        %1599 = vmatpush1.bf16.msra.mxu0 0
        %1600 = vmatprep.subr.bf16.mxu0 0
        %1601 = vmatpush1.bf16.msra.mxu0 0
        %1602 = vmatprep.subr.bf16.mxu0 0
        %1603 = vmatpush1.bf16.msra.mxu0 0
        %1604 = vmatprep.subr.bf16.mxu0 0
        %1605 = vmatpush1.bf16.msra.mxu0 0
        %1606 = vmatprep.subr.bf16.mxu0 0
        %1607 = vmatpush1.bf16.msra.mxu0 0
        %1608 = vmatprep.subr.bf16.mxu0 0
        %1609 = vmatpush1.bf16.msra.mxu0 0
        %1610 = vmatprep.subr.bf16.mxu0 0
        %1611 = vmatpush1.bf16.msra.mxu0 0
        %1612 = vmatprep.mubr.bf16.mxu0 0
        %1613 = vmatmul.mubr.bf16.gmra.mrb[0].mxu0 %v1475
        %v1614 = vpop.f32.mrb[0].mxu0
        %v1615 = vadd.f32 0.0, %v1614
        %v1616 = vpop.f32.mrb[0].mxu0
        %v1617 = vadd.f32 0.0, %v1616
        %v1618 = vpop.f32.mrb[0].mxu0
        %v1619 = vpop.f32.mrb[0].mxu0
        %1620 = vdwg.mxu0
        %1621 = vmatprep.subr.bf16.mxu0 0
        %1622 = vmatpush1.bf16.msra.mxu0 %v1496
        %1623 = vmatprep.subr.bf16.mxu0 0
        %1624 = vmatpush1.bf16.msra.mxu0 0
        %1625 = vmatprep.subr.bf16.mxu0 0
        %1626 = vmatpush1.bf16.msra.mxu0 0
        %1627 = vmatprep.subr.bf16.mxu0 0
        %1628 = vmatpush1.bf16.msra.mxu0 0
        %1629 = vmatprep.subr.bf16.mxu0 0
        %1630 = vmatpush1.bf16.msra.mxu0 0
        %1631 = vmatprep.subr.bf16.mxu0 0
        %1632 = vmatpush1.bf16.msra.mxu0 0
        %1633 = vmatprep.subr.bf16.mxu0 0
        %1634 = vmatpush1.bf16.msra.mxu0 0
        %1635 = vmatprep.subr.bf16.mxu0 0
        %1636 = vmatpush1.bf16.msra.mxu0 0
        %1637 = vmatprep.subr.bf16.mxu0 0
        %1638 = vmatpush1.bf16.msra.mxu0 0
        %1639 = vmatprep.subr.bf16.mxu0 0
        %1640 = vmatpush1.bf16.msra.mxu0 0
        %1641 = vmatprep.subr.bf16.mxu0 0
        %1642 = vmatpush1.bf16.msra.mxu0 0
        %1643 = vmatprep.subr.bf16.mxu0 0
        %1644 = vmatpush1.bf16.msra.mxu0 0
        %1645 = vmatprep.subr.bf16.mxu0 0
        %1646 = vmatpush1.bf16.msra.mxu0 0
        %1647 = vmatprep.subr.bf16.mxu0 0
        %1648 = vmatpush1.bf16.msra.mxu0 0
        %1649 = vmatprep.subr.bf16.mxu0 0
        %1650 = vmatpush1.bf16.msra.mxu0 0
        %1651 = vmatprep.subr.bf16.mxu0 0
        %1652 = vmatpush1.bf16.msra.mxu0 0
        %1653 = vmatprep.mubr.bf16.mxu0 0
        %1654 = vmatmul.mubr.bf16.gmra.mrb[0].mxu0 %v1475
        %v1655 = vpop.f32.mrb[0].mxu0
        %v1656 = vadd.f32 0.0, %v1655
        %v1657 = vpop.f32.mrb[0].mxu0
        %v1658 = vpop.f32.mrb[0].mxu0
        %v1659 = vpop.f32.mrb[0].mxu0
        %1660 = vdwg.mxu0
        %v1661 = vadd.f32 %v1407, %v1533
        %v1662 = vadd.f32 %v1408, %v1535
        %v1663 = vadd.f32 %v1409, %v1574
        %v1664 = vadd.f32 %v1410, %v1576
        %v1665 = vadd.f32 %v1411, %v1615
        %v1666 = vadd.f32 %v1412, %v1617
        %v1667 = vadd.f32 %v1413, %v1656
        %s1668 = scalar_lea.vmem [#allocation5], 24
        %v1669 = vld [vmem:[%s1668] sm:$0xf]
        %v1670 = vld [vmem:[%s183] sm:$0xff]
        %v1671 = vld [vmem:[%s183 + $0x8] sm:$0x3f]
        %v1674 = vcombine.high %v1670, %v1670
        %v1676 = vunpack.c.l.s4 1983009808
        %v1677 = vunpack.c.0.s8 %v1676
        %v1678 = vlaneseq
        %v1679 = vshrl.u32 %v1678, 7
        %v1680 = vsub.s32 %v1677, %v1679
        %v1681 = vrot.slane %v1670, %v1680
        %v1683 = vunpack.c.l.s4 1983009808
        %v1684 = vunpack.c.0.s8 %v1683
        %v1685 = vlaneseq
        %v1686 = vshrl.u32 %v1685, 7
        %v1687 = vsub.s32 %v1684, %v1686
        %v1688 = vrot.slane %v1674, %v1687
        %v1689 = vcombine.high %v1681, %v1681
        %v1690 = vcombine.high %v1688, %v1688
        %v1691 = vcombine.high %v1671, %v1671
        %v1693 = vunpack.c.l.s4 1983009808
        %v1694 = vunpack.c.0.s8 %v1693
        %v1695 = vlaneseq
        %v1696 = vshrl.u32 %v1695, 7
        %v1697 = vsub.s32 %v1694, %v1696
        %v1698 = vrot.slane %v1671, %v1697
        %v1700 = vunpack.c.l.s4 1983009808
        %v1701 = vunpack.c.0.s8 %v1700
        %v1702 = vlaneseq
        %v1703 = vshrl.u32 %v1702, 7
        %v1704 = vsub.s32 %v1701, %v1703
        %v1705 = vrot.slane %v1691, %v1704
        %v1706 = vcombine.high %v1698, %v1698
        %1707 = vrot.lane.b32.xlu0 %v1681, 108
        %v1708 = vpop.permute.xlu0 %1707
        %1709 = vrot.lane.b32.xlu0 %v1689, 108
        %v1710 = vpop.permute.xlu0 %1709
        %1711 = vrot.lane.b32.xlu0 %v1688, 108
        %v1712 = vpop.permute.xlu0 %1711
        %1713 = vrot.lane.b32.xlu0 %v1690, 108
        %v1714 = vpop.permute.xlu0 %1713
        %1715 = vrot.lane.b32.xlu0 %v1698, 108
        %v1716 = vpop.permute.xlu0 %1715
        %1717 = vrot.lane.b32.xlu0 %v1706, 108
        %v1718 = vpop.permute.xlu0 %1717
        %1719 = vrot.lane.b32.xlu0 %v1705, 108
        %v1720 = vpop.permute.xlu0 %1719
        %vm1721 = vcmask 883712
        %v1722 = vsel %vm1721, %v1708, %v1710
        %v1723 = vsel %vm1721, %v1710, %v1712
        %v1724 = vsel %vm1721, %v1712, %v1714
        %v1725 = vsel %vm1721, %v1714, %v1716
        %v1726 = vsel %vm1721, %v1716, %v1718
        %v1727 = vsel %vm1721, %v1718, %v1720
        %v1729 = vsel %vm276, %v1669, 0
        %v1732 = vsel %vm280, %v1722, 0
        %v1735 = vsel %vm280, %v1723, 0
        %v1738 = vsel %vm280, %v1724, 0
        %v1741 = vsel %vm280, %v1725, 0
        %v1744 = vsel %vm280, %v1726, 0
        %v1747 = vsel %vm280, %v1727, 0
        %v1750 = vsel %vm280, %v1720, 0
        %1752 = vmatprep.subr.bf16.mxu0 %v1735
        %1753 = vmatpush1.bf16.msra.mxu0 %v1732
        %1754 = vmatprep.subr.bf16.mxu0 0
        %1755 = vmatpush1.bf16.msra.mxu0 0
        %1756 = vmatprep.subr.bf16.mxu0 0
        %1757 = vmatpush1.bf16.msra.mxu0 0
        %1758 = vmatprep.subr.bf16.mxu0 0
        %1759 = vmatpush1.bf16.msra.mxu0 0
        %1760 = vmatprep.subr.bf16.mxu0 0
        %1761 = vmatpush1.bf16.msra.mxu0 0
        %1762 = vmatprep.subr.bf16.mxu0 0
        %1763 = vmatpush1.bf16.msra.mxu0 0
        %1764 = vmatprep.subr.bf16.mxu0 0
        %1765 = vmatpush1.bf16.msra.mxu0 0
        %1766 = vmatprep.subr.bf16.mxu0 0
        %1767 = vmatpush1.bf16.msra.mxu0 0
        %1768 = vmatprep.subr.bf16.mxu0 0
        %1769 = vmatpush1.bf16.msra.mxu0 0
        %1770 = vmatprep.subr.bf16.mxu0 0
        %1771 = vmatpush1.bf16.msra.mxu0 0
        %1772 = vmatprep.subr.bf16.mxu0 0
        %1773 = vmatpush1.bf16.msra.mxu0 0
        %1774 = vmatprep.subr.bf16.mxu0 0
        %1775 = vmatpush1.bf16.msra.mxu0 0
        %1776 = vmatprep.subr.bf16.mxu0 0
        %1777 = vmatpush1.bf16.msra.mxu0 0
        %1778 = vmatprep.subr.bf16.mxu0 0
        %1779 = vmatpush1.bf16.msra.mxu0 0
        %1780 = vmatprep.subr.bf16.mxu0 0
        %1781 = vmatpush1.bf16.msra.mxu0 0
        %1782 = vmatprep.subr.bf16.mxu0 0
        %1783 = vmatpush1.bf16.msra.mxu0 0
        %1784 = vmatprep.mubr.bf16.mxu0 0
        %1785 = vmatmul.mubr.bf16.gmra.mrb[0].mxu0 %v1729
        %v1786 = vpop.f32.mrb[0].mxu0
        %v1787 = vadd.f32 0.0, %v1786
        %v1788 = vpop.f32.mrb[0].mxu0
        %v1789 = vadd.f32 0.0, %v1788
        %v1790 = vpop.f32.mrb[0].mxu0
        %v1791 = vpop.f32.mrb[0].mxu0
        %1792 = vdwg.mxu0
        %1793 = vmatprep.subr.bf16.mxu0 %v1741
        %1794 = vmatpush1.bf16.msra.mxu0 %v1738
        %1795 = vmatprep.subr.bf16.mxu0 0
        %1796 = vmatpush1.bf16.msra.mxu0 0
        %1797 = vmatprep.subr.bf16.mxu0 0
        %1798 = vmatpush1.bf16.msra.mxu0 0
        %1799 = vmatprep.subr.bf16.mxu0 0
        %1800 = vmatpush1.bf16.msra.mxu0 0
        %1801 = vmatprep.subr.bf16.mxu0 0
        %1802 = vmatpush1.bf16.msra.mxu0 0
        %1803 = vmatprep.subr.bf16.mxu0 0
        %1804 = vmatpush1.bf16.msra.mxu0 0
        %1805 = vmatprep.subr.bf16.mxu0 0
        %1806 = vmatpush1.bf16.msra.mxu0 0
        %1807 = vmatprep.subr.bf16.mxu0 0
        %1808 = vmatpush1.bf16.msra.mxu0 0
        %1809 = vmatprep.subr.bf16.mxu0 0
        %1810 = vmatpush1.bf16.msra.mxu0 0
        %1811 = vmatprep.subr.bf16.mxu0 0
        %1812 = vmatpush1.bf16.msra.mxu0 0
        %1813 = vmatprep.subr.bf16.mxu0 0
        %1814 = vmatpush1.bf16.msra.mxu0 0
        %1815 = vmatprep.subr.bf16.mxu0 0
        %1816 = vmatpush1.bf16.msra.mxu0 0
        %1817 = vmatprep.subr.bf16.mxu0 0
        %1818 = vmatpush1.bf16.msra.mxu0 0
        %1819 = vmatprep.subr.bf16.mxu0 0
        %1820 = vmatpush1.bf16.msra.mxu0 0
        %1821 = vmatprep.subr.bf16.mxu0 0
        %1822 = vmatpush1.bf16.msra.mxu0 0
        %1823 = vmatprep.subr.bf16.mxu0 0
        %1824 = vmatpush1.bf16.msra.mxu0 0
        %1825 = vmatprep.mubr.bf16.mxu0 0
        %1826 = vmatmul.mubr.bf16.gmra.mrb[0].mxu0 %v1729
        %v1827 = vpop.f32.mrb[0].mxu0
        %v1828 = vadd.f32 0.0, %v1827
        %v1829 = vpop.f32.mrb[0].mxu0
        %v1830 = vadd.f32 0.0, %v1829
        %v1831 = vpop.f32.mrb[0].mxu0
        %v1832 = vpop.f32.mrb[0].mxu0
        %1833 = vdwg.mxu0
        %1834 = vmatprep.subr.bf16.mxu0 %v1747
        %1835 = vmatpush1.bf16.msra.mxu0 %v1744
        %1836 = vmatprep.subr.bf16.mxu0 0
        %1837 = vmatpush1.bf16.msra.mxu0 0
        %1838 = vmatprep.subr.bf16.mxu0 0
        %1839 = vmatpush1.bf16.msra.mxu0 0
        %1840 = vmatprep.subr.bf16.mxu0 0
        %1841 = vmatpush1.bf16.msra.mxu0 0
        %1842 = vmatprep.subr.bf16.mxu0 0
        %1843 = vmatpush1.bf16.msra.mxu0 0
        %1844 = vmatprep.subr.bf16.mxu0 0
        %1845 = vmatpush1.bf16.msra.mxu0 0
        %1846 = vmatprep.subr.bf16.mxu0 0
        %1847 = vmatpush1.bf16.msra.mxu0 0
        %1848 = vmatprep.subr.bf16.mxu0 0
        %1849 = vmatpush1.bf16.msra.mxu0 0
        %1850 = vmatprep.subr.bf16.mxu0 0
        %1851 = vmatpush1.bf16.msra.mxu0 0
        %1852 = vmatprep.subr.bf16.mxu0 0
        %1853 = vmatpush1.bf16.msra.mxu0 0
        %1854 = vmatprep.subr.bf16.mxu0 0
        %1855 = vmatpush1.bf16.msra.mxu0 0
        %1856 = vmatprep.subr.bf16.mxu0 0
        %1857 = vmatpush1.bf16.msra.mxu0 0
        %1858 = vmatprep.subr.bf16.mxu0 0
        %1859 = vmatpush1.bf16.msra.mxu0 0
        %1860 = vmatprep.subr.bf16.mxu0 0
        %1861 = vmatpush1.bf16.msra.mxu0 0
        %1862 = vmatprep.subr.bf16.mxu0 0
        %1863 = vmatpush1.bf16.msra.mxu0 0
        %1864 = vmatprep.subr.bf16.mxu0 0
        %1865 = vmatpush1.bf16.msra.mxu0 0
        %1866 = vmatprep.mubr.bf16.mxu0 0
        %1867 = vmatmul.mubr.bf16.gmra.mrb[0].mxu0 %v1729
        %v1868 = vpop.f32.mrb[0].mxu0
        %v1869 = vadd.f32 0.0, %v1868
        %v1870 = vpop.f32.mrb[0].mxu0
        %v1871 = vadd.f32 0.0, %v1870
        %v1872 = vpop.f32.mrb[0].mxu0
        %v1873 = vpop.f32.mrb[0].mxu0
        %1874 = vdwg.mxu0
        %1875 = vmatprep.subr.bf16.mxu0 0
        %1876 = vmatpush1.bf16.msra.mxu0 %v1750
        %1877 = vmatprep.subr.bf16.mxu0 0
        %1878 = vmatpush1.bf16.msra.mxu0 0
        %1879 = vmatprep.subr.bf16.mxu0 0
        %1880 = vmatpush1.bf16.msra.mxu0 0
        %1881 = vmatprep.subr.bf16.mxu0 0
        %1882 = vmatpush1.bf16.msra.mxu0 0
        %1883 = vmatprep.subr.bf16.mxu0 0
        %1884 = vmatpush1.bf16.msra.mxu0 0
        %1885 = vmatprep.subr.bf16.mxu0 0
        %1886 = vmatpush1.bf16.msra.mxu0 0
        %1887 = vmatprep.subr.bf16.mxu0 0
        %1888 = vmatpush1.bf16.msra.mxu0 0
        %1889 = vmatprep.subr.bf16.mxu0 0
        %1890 = vmatpush1.bf16.msra.mxu0 0
        %1891 = vmatprep.subr.bf16.mxu0 0
        %1892 = vmatpush1.bf16.msra.mxu0 0
        %1893 = vmatprep.subr.bf16.mxu0 0
        %1894 = vmatpush1.bf16.msra.mxu0 0
        %1895 = vmatprep.subr.bf16.mxu0 0
        %1896 = vmatpush1.bf16.msra.mxu0 0
        %1897 = vmatprep.subr.bf16.mxu0 0
        %1898 = vmatpush1.bf16.msra.mxu0 0
        %1899 = vmatprep.subr.bf16.mxu0 0
        %1900 = vmatpush1.bf16.msra.mxu0 0
        %1901 = vmatprep.subr.bf16.mxu0 0
        %1902 = vmatpush1.bf16.msra.mxu0 0
        %1903 = vmatprep.subr.bf16.mxu0 0
        %1904 = vmatpush1.bf16.msra.mxu0 0
        %1905 = vmatprep.subr.bf16.mxu0 0
        %1906 = vmatpush1.bf16.msra.mxu0 0
        %1907 = vmatprep.mubr.bf16.mxu0 0
        %1908 = vmatmul.mubr.bf16.gmra.mrb[0].mxu0 %v1729
        %v1909 = vpop.f32.mrb[0].mxu0
        %v1910 = vadd.f32 0.0, %v1909
        %v1911 = vpop.f32.mrb[0].mxu0
        %v1912 = vpop.f32.mrb[0].mxu0
        %v1913 = vpop.f32.mrb[0].mxu0
        %1914 = vdwg.mxu0
        %v1915 = vadd.f32 %v1661, %v1787
        %v1916 = vadd.f32 %v1662, %v1789
        %v1917 = vadd.f32 %v1663, %v1828
        %v1918 = vadd.f32 %v1664, %v1830
        %v1919 = vadd.f32 %v1665, %v1869
        %v1920 = vadd.f32 %v1666, %v1871
        %v1921 = vadd.f32 %v1667, %v1910
        %s1922 = scalar_lea.vmem [#allocation5], 28
        %v1923 = vld [vmem:[%s1922] sm:$0xf]
        %v1924 = vld [vmem:[%s183] sm:$0xff]
        %v1925 = vld [vmem:[%s183 + $0x8] sm:$0x3f]
        %v1928 = vcombine.high %v1924, %v1924
        %v1930 = vunpack.c.l.s4 1983009808
        %v1931 = vunpack.c.0.s8 %v1930
        %v1932 = vlaneseq
        %v1933 = vshrl.u32 %v1932, 7
        %v1934 = vsub.s32 %v1931, %v1933
        %v1935 = vrot.slane %v1924, %v1934
        %v1937 = vunpack.c.l.s4 1983009808
        %v1938 = vunpack.c.0.s8 %v1937
        %v1939 = vlaneseq
        %v1940 = vshrl.u32 %v1939, 7
        %v1941 = vsub.s32 %v1938, %v1940
        %v1942 = vrot.slane %v1928, %v1941
        %v1943 = vcombine.high %v1935, %v1935
        %v1944 = vcombine.high %v1942, %v1942
        %v1945 = vcombine.high %v1925, %v1925
        %v1947 = vunpack.c.l.s4 1983009808
        %v1948 = vunpack.c.0.s8 %v1947
        %v1949 = vlaneseq
        %v1950 = vshrl.u32 %v1949, 7
        %v1951 = vsub.s32 %v1948, %v1950
        %v1952 = vrot.slane %v1925, %v1951
        %v1954 = vunpack.c.l.s4 1983009808
        %v1955 = vunpack.c.0.s8 %v1954
        %v1956 = vlaneseq
        %v1957 = vshrl.u32 %v1956, 7
        %v1958 = vsub.s32 %v1955, %v1957
        %v1959 = vrot.slane %v1945, %v1958
        %v1960 = vcombine.high %v1952, %v1952
        %1961 = vrot.lane.b32.xlu0 %v1935, 107
        %v1962 = vpop.permute.xlu0 %1961
        %1963 = vrot.lane.b32.xlu0 %v1943, 107
        %v1964 = vpop.permute.xlu0 %1963
        %1965 = vrot.lane.b32.xlu0 %v1942, 107
        %v1966 = vpop.permute.xlu0 %1965
        %1967 = vrot.lane.b32.xlu0 %v1944, 107
        %v1968 = vpop.permute.xlu0 %1967
        %1969 = vrot.lane.b32.xlu0 %v1952, 107
        %v1970 = vpop.permute.xlu0 %1969
        %1971 = vrot.lane.b32.xlu0 %v1960, 107
        %v1972 = vpop.permute.xlu0 %1971
        %1973 = vrot.lane.b32.xlu0 %v1959, 107
        %v1974 = vpop.permute.xlu0 %1973
        %vm1975 = vcmask 875520
        %v1976 = vsel %vm1975, %v1962, %v1964
        %v1977 = vsel %vm1975, %v1964, %v1966
        %v1978 = vsel %vm1975, %v1966, %v1968
        %v1979 = vsel %vm1975, %v1968, %v1970
        %v1980 = vsel %vm1975, %v1970, %v1972
        %v1981 = vsel %vm1975, %v1972, %v1974
        %v1983 = vsel %vm276, %v1923, 0
        %v1986 = vsel %vm280, %v1976, 0
        %v1989 = vsel %vm280, %v1977, 0
        %v1992 = vsel %vm280, %v1978, 0
        %v1995 = vsel %vm280, %v1979, 0
        %v1998 = vsel %vm280, %v1980, 0
        %v2001 = vsel %vm280, %v1981, 0
        %v2004 = vsel %vm280, %v1974, 0
        %2006 = vmatprep.subr.bf16.mxu0 %v1989
        %2007 = vmatpush1.bf16.msra.mxu0 %v1986
        %2008 = vmatprep.subr.bf16.mxu0 0
        %2009 = vmatpush1.bf16.msra.mxu0 0
        %2010 = vmatprep.subr.bf16.mxu0 0
        %2011 = vmatpush1.bf16.msra.mxu0 0
        %2012 = vmatprep.subr.bf16.mxu0 0
        %2013 = vmatpush1.bf16.msra.mxu0 0
        %2014 = vmatprep.subr.bf16.mxu0 0
        %2015 = vmatpush1.bf16.msra.mxu0 0
        %2016 = vmatprep.subr.bf16.mxu0 0
        %2017 = vmatpush1.bf16.msra.mxu0 0
        %2018 = vmatprep.subr.bf16.mxu0 0
        %2019 = vmatpush1.bf16.msra.mxu0 0
        %2020 = vmatprep.subr.bf16.mxu0 0
        %2021 = vmatpush1.bf16.msra.mxu0 0
        %2022 = vmatprep.subr.bf16.mxu0 0
        %2023 = vmatpush1.bf16.msra.mxu0 0
        %2024 = vmatprep.subr.bf16.mxu0 0
        %2025 = vmatpush1.bf16.msra.mxu0 0
        %2026 = vmatprep.subr.bf16.mxu0 0
        %2027 = vmatpush1.bf16.msra.mxu0 0
        %2028 = vmatprep.subr.bf16.mxu0 0
        %2029 = vmatpush1.bf16.msra.mxu0 0
        %2030 = vmatprep.subr.bf16.mxu0 0
        %2031 = vmatpush1.bf16.msra.mxu0 0
        %2032 = vmatprep.subr.bf16.mxu0 0
        %2033 = vmatpush1.bf16.msra.mxu0 0
        %2034 = vmatprep.subr.bf16.mxu0 0
        %2035 = vmatpush1.bf16.msra.mxu0 0
        %2036 = vmatprep.subr.bf16.mxu0 0
        %2037 = vmatpush1.bf16.msra.mxu0 0
        %2038 = vmatprep.mubr.bf16.mxu0 0
        %2039 = vmatmul.mubr.bf16.gmra.mrb[0].mxu0 %v1983
        %v2040 = vpop.f32.mrb[0].mxu0
        %v2041 = vadd.f32 0.0, %v2040
        %v2042 = vpop.f32.mrb[0].mxu0
        %v2043 = vadd.f32 0.0, %v2042
        %v2044 = vpop.f32.mrb[0].mxu0
        %v2045 = vpop.f32.mrb[0].mxu0
        %2046 = vdwg.mxu0
        %2047 = vmatprep.subr.bf16.mxu0 %v1995
        %2048 = vmatpush1.bf16.msra.mxu0 %v1992
        %2049 = vmatprep.subr.bf16.mxu0 0
        %2050 = vmatpush1.bf16.msra.mxu0 0
        %2051 = vmatprep.subr.bf16.mxu0 0
        %2052 = vmatpush1.bf16.msra.mxu0 0
        %2053 = vmatprep.subr.bf16.mxu0 0
        %2054 = vmatpush1.bf16.msra.mxu0 0
        %2055 = vmatprep.subr.bf16.mxu0 0
        %2056 = vmatpush1.bf16.msra.mxu0 0
        %2057 = vmatprep.subr.bf16.mxu0 0
        %2058 = vmatpush1.bf16.msra.mxu0 0
        %2059 = vmatprep.subr.bf16.mxu0 0
        %2060 = vmatpush1.bf16.msra.mxu0 0
        %2061 = vmatprep.subr.bf16.mxu0 0
        %2062 = vmatpush1.bf16.msra.mxu0 0
        %2063 = vmatprep.subr.bf16.mxu0 0
        %2064 = vmatpush1.bf16.msra.mxu0 0
        %2065 = vmatprep.subr.bf16.mxu0 0
        %2066 = vmatpush1.bf16.msra.mxu0 0
        %2067 = vmatprep.subr.bf16.mxu0 0
        %2068 = vmatpush1.bf16.msra.mxu0 0
        %2069 = vmatprep.subr.bf16.mxu0 0
        %2070 = vmatpush1.bf16.msra.mxu0 0
        %2071 = vmatprep.subr.bf16.mxu0 0
        %2072 = vmatpush1.bf16.msra.mxu0 0
        %2073 = vmatprep.subr.bf16.mxu0 0
        %2074 = vmatpush1.bf16.msra.mxu0 0
        %2075 = vmatprep.subr.bf16.mxu0 0
        %2076 = vmatpush1.bf16.msra.mxu0 0
        %2077 = vmatprep.subr.bf16.mxu0 0
        %2078 = vmatpush1.bf16.msra.mxu0 0
        %2079 = vmatprep.mubr.bf16.mxu0 0
        %2080 = vmatmul.mubr.bf16.gmra.mrb[0].mxu0 %v1983
        %v2081 = vpop.f32.mrb[0].mxu0
        %v2082 = vadd.f32 0.0, %v2081
        %v2083 = vpop.f32.mrb[0].mxu0
        %v2084 = vadd.f32 0.0, %v2083
        %v2085 = vpop.f32.mrb[0].mxu0
        %v2086 = vpop.f32.mrb[0].mxu0
        %2087 = vdwg.mxu0
        %2088 = vmatprep.subr.bf16.mxu0 %v2001
        %2089 = vmatpush1.bf16.msra.mxu0 %v1998
        %2090 = vmatprep.subr.bf16.mxu0 0
        %2091 = vmatpush1.bf16.msra.mxu0 0
        %2092 = vmatprep.subr.bf16.mxu0 0
        %2093 = vmatpush1.bf16.msra.mxu0 0
        %2094 = vmatprep.subr.bf16.mxu0 0
        %2095 = vmatpush1.bf16.msra.mxu0 0
        %2096 = vmatprep.subr.bf16.mxu0 0
        %2097 = vmatpush1.bf16.msra.mxu0 0
        %2098 = vmatprep.subr.bf16.mxu0 0
        %2099 = vmatpush1.bf16.msra.mxu0 0
        %2100 = vmatprep.subr.bf16.mxu0 0
        %2101 = vmatpush1.bf16.msra.mxu0 0
        %2102 = vmatprep.subr.bf16.mxu0 0
        %2103 = vmatpush1.bf16.msra.mxu0 0
        %2104 = vmatprep.subr.bf16.mxu0 0
        %2105 = vmatpush1.bf16.msra.mxu0 0
        %2106 = vmatprep.subr.bf16.mxu0 0
        %2107 = vmatpush1.bf16.msra.mxu0 0
        %2108 = vmatprep.subr.bf16.mxu0 0
        %2109 = vmatpush1.bf16.msra.mxu0 0
        %2110 = vmatprep.subr.bf16.mxu0 0
        %2111 = vmatpush1.bf16.msra.mxu0 0
        %2112 = vmatprep.subr.bf16.mxu0 0
        %2113 = vmatpush1.bf16.msra.mxu0 0
        %2114 = vmatprep.subr.bf16.mxu0 0
        %2115 = vmatpush1.bf16.msra.mxu0 0
        %2116 = vmatprep.subr.bf16.mxu0 0
        %2117 = vmatpush1.bf16.msra.mxu0 0
        %2118 = vmatprep.subr.bf16.mxu0 0
        %2119 = vmatpush1.bf16.msra.mxu0 0
        %2120 = vmatprep.mubr.bf16.mxu0 0
        %2121 = vmatmul.mubr.bf16.gmra.mrb[0].mxu0 %v1983
        %v2122 = vpop.f32.mrb[0].mxu0
        %v2123 = vadd.f32 0.0, %v2122
        %v2124 = vpop.f32.mrb[0].mxu0
        %v2125 = vadd.f32 0.0, %v2124
        %v2126 = vpop.f32.mrb[0].mxu0
        %v2127 = vpop.f32.mrb[0].mxu0
        %2128 = vdwg.mxu0
        %2129 = vmatprep.subr.bf16.mxu0 0
        %2130 = vmatpush1.bf16.msra.mxu0 %v2004
        %2131 = vmatprep.subr.bf16.mxu0 0
        %2132 = vmatpush1.bf16.msra.mxu0 0
        %2133 = vmatprep.subr.bf16.mxu0 0
        %2134 = vmatpush1.bf16.msra.mxu0 0
        %2135 = vmatprep.subr.bf16.mxu0 0
        %2136 = vmatpush1.bf16.msra.mxu0 0
        %2137 = vmatprep.subr.bf16.mxu0 0
        %2138 = vmatpush1.bf16.msra.mxu0 0
        %2139 = vmatprep.subr.bf16.mxu0 0
        %2140 = vmatpush1.bf16.msra.mxu0 0
        %2141 = vmatprep.subr.bf16.mxu0 0
        %2142 = vmatpush1.bf16.msra.mxu0 0
        %2143 = vmatprep.subr.bf16.mxu0 0
        %2144 = vmatpush1.bf16.msra.mxu0 0
        %2145 = vmatprep.subr.bf16.mxu0 0
        %2146 = vmatpush1.bf16.msra.mxu0 0
        %2147 = vmatprep.subr.bf16.mxu0 0
        %2148 = vmatpush1.bf16.msra.mxu0 0
        %2149 = vmatprep.subr.bf16.mxu0 0
        %2150 = vmatpush1.bf16.msra.mxu0 0
        %2151 = vmatprep.subr.bf16.mxu0 0
        %2152 = vmatpush1.bf16.msra.mxu0 0
        %2153 = vmatprep.subr.bf16.mxu0 0
        %2154 = vmatpush1.bf16.msra.mxu0 0
        %2155 = vmatprep.subr.bf16.mxu0 0
        %2156 = vmatpush1.bf16.msra.mxu0 0
        %2157 = vmatprep.subr.bf16.mxu0 0
        %2158 = vmatpush1.bf16.msra.mxu0 0
        %2159 = vmatprep.subr.bf16.mxu0 0
        %2160 = vmatpush1.bf16.msra.mxu0 0
        %2161 = vmatprep.mubr.bf16.mxu0 0
        %2162 = vmatmul.mubr.bf16.gmra.mrb[0].mxu0 %v1983
        %v2163 = vpop.f32.mrb[0].mxu0
        %v2164 = vadd.f32 0.0, %v2163
        %v2165 = vpop.f32.mrb[0].mxu0
        %v2166 = vpop.f32.mrb[0].mxu0
        %v2167 = vpop.f32.mrb[0].mxu0
        %2168 = vdwg.mxu0
        %v2169 = vadd.f32 %v1915, %v2041
        %v2170 = vadd.f32 %v1916, %v2043
        %v2171 = vadd.f32 %v1917, %v2082
        %v2172 = vadd.f32 %v1918, %v2084
        %v2173 = vadd.f32 %v1919, %v2123
        %v2174 = vadd.f32 %v1920, %v2125
        %v2175 = vadd.f32 %v1921, %v2164
        %s2176 = scalar_lea.vmem [#allocation5], 32
        %v2177 = vld [vmem:[%s2176] sm:$0xf]
        %v2178 = vld [vmem:[%s183] sm:$0xff]
        %v2179 = vld [vmem:[%s183 + $0x8] sm:$0x3f]
        %v2182 = vcombine.high %v2178, %v2178
        %v2184 = vunpack.c.l.s4 1983009808
        %v2185 = vunpack.c.0.s8 %v2184
        %v2186 = vlaneseq
        %v2187 = vshrl.u32 %v2186, 7
        %v2188 = vsub.s32 %v2185, %v2187
        %v2189 = vrot.slane %v2178, %v2188
        %v2191 = vunpack.c.l.s4 1983009808
        %v2192 = vunpack.c.0.s8 %v2191
        %v2193 = vlaneseq
        %v2194 = vshrl.u32 %v2193, 7
        %v2195 = vsub.s32 %v2192, %v2194
        %v2196 = vrot.slane %v2182, %v2195
        %v2197 = vcombine.high %v2189, %v2189
        %v2198 = vcombine.high %v2196, %v2196
        %v2199 = vcombine.high %v2179, %v2179
        %v2201 = vunpack.c.l.s4 1983009808
        %v2202 = vunpack.c.0.s8 %v2201
        %v2203 = vlaneseq
        %v2204 = vshrl.u32 %v2203, 7
        %v2205 = vsub.s32 %v2202, %v2204
        %v2206 = vrot.slane %v2179, %v2205
        %v2208 = vunpack.c.l.s4 1983009808
        %v2209 = vunpack.c.0.s8 %v2208
        %v2210 = vlaneseq
        %v2211 = vshrl.u32 %v2210, 7
        %v2212 = vsub.s32 %v2209, %v2211
        %v2213 = vrot.slane %v2199, %v2212
        %v2214 = vcombine.high %v2206, %v2206
        %2215 = vrot.lane.b32.xlu0 %v2189, 106
        %v2216 = vpop.permute.xlu0 %2215
        %2217 = vrot.lane.b32.xlu0 %v2197, 106
        %v2218 = vpop.permute.xlu0 %2217
        %2219 = vrot.lane.b32.xlu0 %v2196, 106
        %v2220 = vpop.permute.xlu0 %2219
        %2221 = vrot.lane.b32.xlu0 %v2198, 106
        %v2222 = vpop.permute.xlu0 %2221
        %2223 = vrot.lane.b32.xlu0 %v2206, 106
        %v2224 = vpop.permute.xlu0 %2223
        %2225 = vrot.lane.b32.xlu0 %v2214, 106
        %v2226 = vpop.permute.xlu0 %2225
        %2227 = vrot.lane.b32.xlu0 %v2213, 106
        %v2228 = vpop.permute.xlu0 %2227
        %vm2229 = vcmask 867328
        %v2230 = vsel %vm2229, %v2216, %v2218
        %v2231 = vsel %vm2229, %v2218, %v2220
        %v2232 = vsel %vm2229, %v2220, %v2222
        %v2233 = vsel %vm2229, %v2222, %v2224
        %v2234 = vsel %vm2229, %v2224, %v2226
        %v2235 = vsel %vm2229, %v2226, %v2228
        %v2237 = vsel %vm276, %v2177, 0
        %v2240 = vsel %vm280, %v2230, 0
        %v2243 = vsel %vm280, %v2231, 0
        %v2246 = vsel %vm280, %v2232, 0
        %v2249 = vsel %vm280, %v2233, 0
        %v2252 = vsel %vm280, %v2234, 0
        %v2255 = vsel %vm280, %v2235, 0
        %v2258 = vsel %vm280, %v2228, 0
        %2260 = vmatprep.subr.bf16.mxu0 %v2243
        %2261 = vmatpush1.bf16.msra.mxu0 %v2240
        %2262 = vmatprep.subr.bf16.mxu0 0
        %2263 = vmatpush1.bf16.msra.mxu0 0
        %2264 = vmatprep.subr.bf16.mxu0 0
        %2265 = vmatpush1.bf16.msra.mxu0 0
        %2266 = vmatprep.subr.bf16.mxu0 0
        %2267 = vmatpush1.bf16.msra.mxu0 0
        %2268 = vmatprep.subr.bf16.mxu0 0
        %2269 = vmatpush1.bf16.msra.mxu0 0
        %2270 = vmatprep.subr.bf16.mxu0 0
        %2271 = vmatpush1.bf16.msra.mxu0 0
        %2272 = vmatprep.subr.bf16.mxu0 0
        %2273 = vmatpush1.bf16.msra.mxu0 0
        %2274 = vmatprep.subr.bf16.mxu0 0
        %2275 = vmatpush1.bf16.msra.mxu0 0
        %2276 = vmatprep.subr.bf16.mxu0 0
        %2277 = vmatpush1.bf16.msra.mxu0 0
        %2278 = vmatprep.subr.bf16.mxu0 0
        %2279 = vmatpush1.bf16.msra.mxu0 0
        %2280 = vmatprep.subr.bf16.mxu0 0
        %2281 = vmatpush1.bf16.msra.mxu0 0
        %2282 = vmatprep.subr.bf16.mxu0 0
        %2283 = vmatpush1.bf16.msra.mxu0 0
        %2284 = vmatprep.subr.bf16.mxu0 0
        %2285 = vmatpush1.bf16.msra.mxu0 0
        %2286 = vmatprep.subr.bf16.mxu0 0
        %2287 = vmatpush1.bf16.msra.mxu0 0
        %2288 = vmatprep.subr.bf16.mxu0 0
        %2289 = vmatpush1.bf16.msra.mxu0 0
        %2290 = vmatprep.subr.bf16.mxu0 0
        %2291 = vmatpush1.bf16.msra.mxu0 0
        %2292 = vmatprep.mubr.bf16.mxu0 0
        %2293 = vmatmul.mubr.bf16.gmra.mrb[0].mxu0 %v2237
        %v2294 = vpop.f32.mrb[0].mxu0
        %v2295 = vadd.f32 0.0, %v2294
        %v2296 = vpop.f32.mrb[0].mxu0
        %v2297 = vadd.f32 0.0, %v2296
        %v2298 = vpop.f32.mrb[0].mxu0
        %v2299 = vpop.f32.mrb[0].mxu0
        %2300 = vdwg.mxu0
        %2301 = vmatprep.subr.bf16.mxu0 %v2249
        %2302 = vmatpush1.bf16.msra.mxu0 %v2246
        %2303 = vmatprep.subr.bf16.mxu0 0
        %2304 = vmatpush1.bf16.msra.mxu0 0
        %2305 = vmatprep.subr.bf16.mxu0 0
        %2306 = vmatpush1.bf16.msra.mxu0 0
        %2307 = vmatprep.subr.bf16.mxu0 0
        %2308 = vmatpush1.bf16.msra.mxu0 0
        %2309 = vmatprep.subr.bf16.mxu0 0
        %2310 = vmatpush1.bf16.msra.mxu0 0
        %2311 = vmatprep.subr.bf16.mxu0 0
        %2312 = vmatpush1.bf16.msra.mxu0 0
        %2313 = vmatprep.subr.bf16.mxu0 0
        %2314 = vmatpush1.bf16.msra.mxu0 0
        %2315 = vmatprep.subr.bf16.mxu0 0
        %2316 = vmatpush1.bf16.msra.mxu0 0
        %2317 = vmatprep.subr.bf16.mxu0 0
        %2318 = vmatpush1.bf16.msra.mxu0 0
        %2319 = vmatprep.subr.bf16.mxu0 0
        %2320 = vmatpush1.bf16.msra.mxu0 0
        %2321 = vmatprep.subr.bf16.mxu0 0
        %2322 = vmatpush1.bf16.msra.mxu0 0
        %2323 = vmatprep.subr.bf16.mxu0 0
        %2324 = vmatpush1.bf16.msra.mxu0 0
        %2325 = vmatprep.subr.bf16.mxu0 0
        %2326 = vmatpush1.bf16.msra.mxu0 0
        %2327 = vmatprep.subr.bf16.mxu0 0
        %2328 = vmatpush1.bf16.msra.mxu0 0
        %2329 = vmatprep.subr.bf16.mxu0 0
        %2330 = vmatpush1.bf16.msra.mxu0 0
        %2331 = vmatprep.subr.bf16.mxu0 0
        %2332 = vmatpush1.bf16.msra.mxu0 0
        %2333 = vmatprep.mubr.bf16.mxu0 0
        %2334 = vmatmul.mubr.bf16.gmra.mrb[0].mxu0 %v2237
        %v2335 = vpop.f32.mrb[0].mxu0
        %v2336 = vadd.f32 0.0, %v2335
        %v2337 = vpop.f32.mrb[0].mxu0
        %v2338 = vadd.f32 0.0, %v2337
        %v2339 = vpop.f32.mrb[0].mxu0
        %v2340 = vpop.f32.mrb[0].mxu0
        %2341 = vdwg.mxu0
        %2342 = vmatprep.subr.bf16.mxu0 %v2255
        %2343 = vmatpush1.bf16.msra.mxu0 %v2252
        %2344 = vmatprep.subr.bf16.mxu0 0
        %2345 = vmatpush1.bf16.msra.mxu0 0
        %2346 = vmatprep.subr.bf16.mxu0 0
        %2347 = vmatpush1.bf16.msra.mxu0 0
        %2348 = vmatprep.subr.bf16.mxu0 0
        %2349 = vmatpush1.bf16.msra.mxu0 0
        %2350 = vmatprep.subr.bf16.mxu0 0
        %2351 = vmatpush1.bf16.msra.mxu0 0
        %2352 = vmatprep.subr.bf16.mxu0 0
        %2353 = vmatpush1.bf16.msra.mxu0 0
        %2354 = vmatprep.subr.bf16.mxu0 0
        %2355 = vmatpush1.bf16.msra.mxu0 0
        %2356 = vmatprep.subr.bf16.mxu0 0
        %2357 = vmatpush1.bf16.msra.mxu0 0
        %2358 = vmatprep.subr.bf16.mxu0 0
        %2359 = vmatpush1.bf16.msra.mxu0 0
        %2360 = vmatprep.subr.bf16.mxu0 0
        %2361 = vmatpush1.bf16.msra.mxu0 0
        %2362 = vmatprep.subr.bf16.mxu0 0
        %2363 = vmatpush1.bf16.msra.mxu0 0
        %2364 = vmatprep.subr.bf16.mxu0 0
        %2365 = vmatpush1.bf16.msra.mxu0 0
        %2366 = vmatprep.subr.bf16.mxu0 0
        %2367 = vmatpush1.bf16.msra.mxu0 0
        %2368 = vmatprep.subr.bf16.mxu0 0
        %2369 = vmatpush1.bf16.msra.mxu0 0
        %2370 = vmatprep.subr.bf16.mxu0 0
        %2371 = vmatpush1.bf16.msra.mxu0 0
        %2372 = vmatprep.subr.bf16.mxu0 0
        %2373 = vmatpush1.bf16.msra.mxu0 0
        %2374 = vmatprep.mubr.bf16.mxu0 0
        %2375 = vmatmul.mubr.bf16.gmra.mrb[0].mxu0 %v2237
        %v2376 = vpop.f32.mrb[0].mxu0
        %v2377 = vadd.f32 0.0, %v2376
        %v2378 = vpop.f32.mrb[0].mxu0
        %v2379 = vadd.f32 0.0, %v2378
        %v2380 = vpop.f32.mrb[0].mxu0
        %v2381 = vpop.f32.mrb[0].mxu0
        %2382 = vdwg.mxu0
        %2383 = vmatprep.subr.bf16.mxu0 0
        %2384 = vmatpush1.bf16.msra.mxu0 %v2258
        %2385 = vmatprep.subr.bf16.mxu0 0
        %2386 = vmatpush1.bf16.msra.mxu0 0
        %2387 = vmatprep.subr.bf16.mxu0 0
        %2388 = vmatpush1.bf16.msra.mxu0 0
        %2389 = vmatprep.subr.bf16.mxu0 0
        %2390 = vmatpush1.bf16.msra.mxu0 0
        %2391 = vmatprep.subr.bf16.mxu0 0
        %2392 = vmatpush1.bf16.msra.mxu0 0
        %2393 = vmatprep.subr.bf16.mxu0 0
        %2394 = vmatpush1.bf16.msra.mxu0 0
        %2395 = vmatprep.subr.bf16.mxu0 0
        %2396 = vmatpush1.bf16.msra.mxu0 0
        %2397 = vmatprep.subr.bf16.mxu0 0
        %2398 = vmatpush1.bf16.msra.mxu0 0
        %2399 = vmatprep.subr.bf16.mxu0 0
        %2400 = vmatpush1.bf16.msra.mxu0 0
        %2401 = vmatprep.subr.bf16.mxu0 0
        %2402 = vmatpush1.bf16.msra.mxu0 0
        %2403 = vmatprep.subr.bf16.mxu0 0
        %2404 = vmatpush1.bf16.msra.mxu0 0
        %2405 = vmatprep.subr.bf16.mxu0 0
        %2406 = vmatpush1.bf16.msra.mxu0 0
        %2407 = vmatprep.subr.bf16.mxu0 0
        %2408 = vmatpush1.bf16.msra.mxu0 0
        %2409 = vmatprep.subr.bf16.mxu0 0
        %2410 = vmatpush1.bf16.msra.mxu0 0
        %2411 = vmatprep.subr.bf16.mxu0 0
        %2412 = vmatpush1.bf16.msra.mxu0 0
        %2413 = vmatprep.subr.bf16.mxu0 0
        %2414 = vmatpush1.bf16.msra.mxu0 0
        %2415 = vmatprep.mubr.bf16.mxu0 0
        %2416 = vmatmul.mubr.bf16.gmra.mrb[0].mxu0 %v2237
        %v2417 = vpop.f32.mrb[0].mxu0
        %v2418 = vadd.f32 0.0, %v2417
        %v2419 = vpop.f32.mrb[0].mxu0
        %v2420 = vpop.f32.mrb[0].mxu0
        %v2421 = vpop.f32.mrb[0].mxu0
        %2422 = vdwg.mxu0
        %v2423 = vadd.f32 %v2169, %v2295
        %v2424 = vadd.f32 %v2170, %v2297
        %v2425 = vadd.f32 %v2171, %v2336
        %v2426 = vadd.f32 %v2172, %v2338
        %v2427 = vadd.f32 %v2173, %v2377
        %v2428 = vadd.f32 %v2174, %v2379
        %v2429 = vadd.f32 %v2175, %v2418
        %s2430 = scalar_lea.vmem [#allocation5], 36
        %v2431 = vld [vmem:[%s2430] sm:$0xf]
        %v2432 = vld [vmem:[%s183] sm:$0xff]
        %v2433 = vld [vmem:[%s183 + $0x8] sm:$0x3f]
        %v2436 = vcombine.high %v2432, %v2432
        %v2438 = vunpack.c.l.s4 1983009808
        %v2439 = vunpack.c.0.s8 %v2438
        %v2440 = vlaneseq
        %v2441 = vshrl.u32 %v2440, 7
        %v2442 = vsub.s32 %v2439, %v2441
        %v2443 = vrot.slane %v2432, %v2442
        %v2445 = vunpack.c.l.s4 1983009808
        %v2446 = vunpack.c.0.s8 %v2445
        %v2447 = vlaneseq
        %v2448 = vshrl.u32 %v2447, 7
        %v2449 = vsub.s32 %v2446, %v2448
        %v2450 = vrot.slane %v2436, %v2449
        %v2451 = vcombine.high %v2443, %v2443
        %v2452 = vcombine.high %v2450, %v2450
        %v2453 = vcombine.high %v2433, %v2433
        %v2455 = vunpack.c.l.s4 1983009808
        %v2456 = vunpack.c.0.s8 %v2455
        %v2457 = vlaneseq
        %v2458 = vshrl.u32 %v2457, 7
        %v2459 = vsub.s32 %v2456, %v2458
        %v2460 = vrot.slane %v2433, %v2459
        %v2462 = vunpack.c.l.s4 1983009808
        %v2463 = vunpack.c.0.s8 %v2462
        %v2464 = vlaneseq
        %v2465 = vshrl.u32 %v2464, 7
        %v2466 = vsub.s32 %v2463, %v2465
        %v2467 = vrot.slane %v2453, %v2466
        %v2468 = vcombine.high %v2460, %v2460
        %2469 = vrot.lane.b32.xlu0 %v2443, 28
        %v2470 = vpop.permute.xlu0 %2469
        %2471 = vrot.lane.b32.xlu0 %v2451, 28
        %v2472 = vpop.permute.xlu0 %2471
        %2473 = vrot.lane.b32.xlu0 %v2450, 28
        %v2474 = vpop.permute.xlu0 %2473
        %2475 = vrot.lane.b32.xlu0 %v2452, 28
        %v2476 = vpop.permute.xlu0 %2475
        %2477 = vrot.lane.b32.xlu0 %v2460, 28
        %v2478 = vpop.permute.xlu0 %2477
        %2479 = vrot.lane.b32.xlu0 %v2468, 28
        %v2480 = vpop.permute.xlu0 %2479
        %2481 = vrot.lane.b32.xlu0 %v2467, 28
        %v2482 = vpop.permute.xlu0 %2481
        %vm2483 = vcmask 228352
        %v2484 = vsel %vm2483, %v2470, %v2472
        %v2485 = vsel %vm2483, %v2472, %v2474
        %v2486 = vsel %vm2483, %v2474, %v2476
        %v2487 = vsel %vm2483, %v2476, %v2478
        %v2488 = vsel %vm2483, %v2478, %v2480
        %v2489 = vsel %vm2483, %v2480, %v2482
        %v2491 = vsel %vm276, %v2431, 0
        %v2494 = vsel %vm280, %v2484, 0
        %v2497 = vsel %vm280, %v2485, 0
        %v2500 = vsel %vm280, %v2486, 0
        %v2503 = vsel %vm280, %v2487, 0
        %v2506 = vsel %vm280, %v2488, 0
        %v2509 = vsel %vm280, %v2489, 0
        %v2512 = vsel %vm280, %v2482, 0
        %2514 = vmatprep.subr.bf16.mxu0 %v2497
        %2515 = vmatpush1.bf16.msra.mxu0 %v2494
        %2516 = vmatprep.subr.bf16.mxu0 0
        %2517 = vmatpush1.bf16.msra.mxu0 0
        %2518 = vmatprep.subr.bf16.mxu0 0
        %2519 = vmatpush1.bf16.msra.mxu0 0
        %2520 = vmatprep.subr.bf16.mxu0 0
        %2521 = vmatpush1.bf16.msra.mxu0 0
        %2522 = vmatprep.subr.bf16.mxu0 0
        %2523 = vmatpush1.bf16.msra.mxu0 0
        %2524 = vmatprep.subr.bf16.mxu0 0
        %2525 = vmatpush1.bf16.msra.mxu0 0
        %2526 = vmatprep.subr.bf16.mxu0 0
        %2527 = vmatpush1.bf16.msra.mxu0 0
        %2528 = vmatprep.subr.bf16.mxu0 0
        %2529 = vmatpush1.bf16.msra.mxu0 0
        %2530 = vmatprep.subr.bf16.mxu0 0
        %2531 = vmatpush1.bf16.msra.mxu0 0
        %2532 = vmatprep.subr.bf16.mxu0 0
        %2533 = vmatpush1.bf16.msra.mxu0 0
        %2534 = vmatprep.subr.bf16.mxu0 0
        %2535 = vmatpush1.bf16.msra.mxu0 0
        %2536 = vmatprep.subr.bf16.mxu0 0
        %2537 = vmatpush1.bf16.msra.mxu0 0
        %2538 = vmatprep.subr.bf16.mxu0 0
        %2539 = vmatpush1.bf16.msra.mxu0 0
        %2540 = vmatprep.subr.bf16.mxu0 0
        %2541 = vmatpush1.bf16.msra.mxu0 0
        %2542 = vmatprep.subr.bf16.mxu0 0
        %2543 = vmatpush1.bf16.msra.mxu0 0
        %2544 = vmatprep.subr.bf16.mxu0 0
        %2545 = vmatpush1.bf16.msra.mxu0 0
        %2546 = vmatprep.mubr.bf16.mxu0 0
        %2547 = vmatmul.mubr.bf16.gmra.mrb[0].mxu0 %v2491
        %v2548 = vpop.f32.mrb[0].mxu0
        %v2549 = vadd.f32 0.0, %v2548
        %v2550 = vpop.f32.mrb[0].mxu0
        %v2551 = vadd.f32 0.0, %v2550
        %v2552 = vpop.f32.mrb[0].mxu0
        %v2553 = vpop.f32.mrb[0].mxu0
        %2554 = vdwg.mxu0
        %2555 = vmatprep.subr.bf16.mxu0 %v2503
        %2556 = vmatpush1.bf16.msra.mxu0 %v2500
        %2557 = vmatprep.subr.bf16.mxu0 0
        %2558 = vmatpush1.bf16.msra.mxu0 0
        %2559 = vmatprep.subr.bf16.mxu0 0
        %2560 = vmatpush1.bf16.msra.mxu0 0
        %2561 = vmatprep.subr.bf16.mxu0 0
        %2562 = vmatpush1.bf16.msra.mxu0 0
        %2563 = vmatprep.subr.bf16.mxu0 0
        %2564 = vmatpush1.bf16.msra.mxu0 0
        %2565 = vmatprep.subr.bf16.mxu0 0
        %2566 = vmatpush1.bf16.msra.mxu0 0
        %2567 = vmatprep.subr.bf16.mxu0 0
        %2568 = vmatpush1.bf16.msra.mxu0 0
        %2569 = vmatprep.subr.bf16.mxu0 0
        %2570 = vmatpush1.bf16.msra.mxu0 0
        %2571 = vmatprep.subr.bf16.mxu0 0
        %2572 = vmatpush1.bf16.msra.mxu0 0
        %2573 = vmatprep.subr.bf16.mxu0 0
        %2574 = vmatpush1.bf16.msra.mxu0 0
        %2575 = vmatprep.subr.bf16.mxu0 0
        %2576 = vmatpush1.bf16.msra.mxu0 0
        %2577 = vmatprep.subr.bf16.mxu0 0
        %2578 = vmatpush1.bf16.msra.mxu0 0
        %2579 = vmatprep.subr.bf16.mxu0 0
        %2580 = vmatpush1.bf16.msra.mxu0 0
        %2581 = vmatprep.subr.bf16.mxu0 0
        %2582 = vmatpush1.bf16.msra.mxu0 0
        %2583 = vmatprep.subr.bf16.mxu0 0
        %2584 = vmatpush1.bf16.msra.mxu0 0
        %2585 = vmatprep.subr.bf16.mxu0 0
        %2586 = vmatpush1.bf16.msra.mxu0 0
        %2587 = vmatprep.mubr.bf16.mxu0 0
        %2588 = vmatmul.mubr.bf16.gmra.mrb[0].mxu0 %v2491
        %v2589 = vpop.f32.mrb[0].mxu0
        %v2590 = vadd.f32 0.0, %v2589
        %v2591 = vpop.f32.mrb[0].mxu0
        %v2592 = vadd.f32 0.0, %v2591
        %v2593 = vpop.f32.mrb[0].mxu0
        %v2594 = vpop.f32.mrb[0].mxu0
        %2595 = vdwg.mxu0
        %2596 = vmatprep.subr.bf16.mxu0 %v2509
        %2597 = vmatpush1.bf16.msra.mxu0 %v2506
        %2598 = vmatprep.subr.bf16.mxu0 0
        %2599 = vmatpush1.bf16.msra.mxu0 0
        %2600 = vmatprep.subr.bf16.mxu0 0
        %2601 = vmatpush1.bf16.msra.mxu0 0
        %2602 = vmatprep.subr.bf16.mxu0 0
        %2603 = vmatpush1.bf16.msra.mxu0 0
        %2604 = vmatprep.subr.bf16.mxu0 0
        %2605 = vmatpush1.bf16.msra.mxu0 0
        %2606 = vmatprep.subr.bf16.mxu0 0
        %2607 = vmatpush1.bf16.msra.mxu0 0
        %2608 = vmatprep.subr.bf16.mxu0 0
        %2609 = vmatpush1.bf16.msra.mxu0 0
        %2610 = vmatprep.subr.bf16.mxu0 0
        %2611 = vmatpush1.bf16.msra.mxu0 0
        %2612 = vmatprep.subr.bf16.mxu0 0
        %2613 = vmatpush1.bf16.msra.mxu0 0
        %2614 = vmatprep.subr.bf16.mxu0 0
        %2615 = vmatpush1.bf16.msra.mxu0 0
        %2616 = vmatprep.subr.bf16.mxu0 0
        %2617 = vmatpush1.bf16.msra.mxu0 0
        %2618 = vmatprep.subr.bf16.mxu0 0
        %2619 = vmatpush1.bf16.msra.mxu0 0
        %2620 = vmatprep.subr.bf16.mxu0 0
        %2621 = vmatpush1.bf16.msra.mxu0 0
        %2622 = vmatprep.subr.bf16.mxu0 0
        %2623 = vmatpush1.bf16.msra.mxu0 0
        %2624 = vmatprep.subr.bf16.mxu0 0
        %2625 = vmatpush1.bf16.msra.mxu0 0
        %2626 = vmatprep.subr.bf16.mxu0 0
        %2627 = vmatpush1.bf16.msra.mxu0 0
        %2628 = vmatprep.mubr.bf16.mxu0 0
        %2629 = vmatmul.mubr.bf16.gmra.mrb[0].mxu0 %v2491
        %v2630 = vpop.f32.mrb[0].mxu0
        %v2631 = vadd.f32 0.0, %v2630
        %v2632 = vpop.f32.mrb[0].mxu0
        %v2633 = vadd.f32 0.0, %v2632
        %v2634 = vpop.f32.mrb[0].mxu0
        %v2635 = vpop.f32.mrb[0].mxu0
        %2636 = vdwg.mxu0
        %2637 = vmatprep.subr.bf16.mxu0 0
        %2638 = vmatpush1.bf16.msra.mxu0 %v2512
        %2639 = vmatprep.subr.bf16.mxu0 0
        %2640 = vmatpush1.bf16.msra.mxu0 0
        %2641 = vmatprep.subr.bf16.mxu0 0
        %2642 = vmatpush1.bf16.msra.mxu0 0
        %2643 = vmatprep.subr.bf16.mxu0 0
        %2644 = vmatpush1.bf16.msra.mxu0 0
        %2645 = vmatprep.subr.bf16.mxu0 0
        %2646 = vmatpush1.bf16.msra.mxu0 0
        %2647 = vmatprep.subr.bf16.mxu0 0
        %2648 = vmatpush1.bf16.msra.mxu0 0
        %2649 = vmatprep.subr.bf16.mxu0 0
        %2650 = vmatpush1.bf16.msra.mxu0 0
        %2651 = vmatprep.subr.bf16.mxu0 0
        %2652 = vmatpush1.bf16.msra.mxu0 0
        %2653 = vmatprep.subr.bf16.mxu0 0
        %2654 = vmatpush1.bf16.msra.mxu0 0
        %2655 = vmatprep.subr.bf16.mxu0 0
        %2656 = vmatpush1.bf16.msra.mxu0 0
        %2657 = vmatprep.subr.bf16.mxu0 0
        %2658 = vmatpush1.bf16.msra.mxu0 0
        %2659 = vmatprep.subr.bf16.mxu0 0
        %2660 = vmatpush1.bf16.msra.mxu0 0
        %2661 = vmatprep.subr.bf16.mxu0 0
        %2662 = vmatpush1.bf16.msra.mxu0 0
        %2663 = vmatprep.subr.bf16.mxu0 0
        %2664 = vmatpush1.bf16.msra.mxu0 0
        %2665 = vmatprep.subr.bf16.mxu0 0
        %2666 = vmatpush1.bf16.msra.mxu0 0
        %2667 = vmatprep.subr.bf16.mxu0 0
        %2668 = vmatpush1.bf16.msra.mxu0 0
        %2669 = vmatprep.mubr.bf16.mxu0 0
        %2670 = vmatmul.mubr.bf16.gmra.mrb[0].mxu0 %v2491
        %v2671 = vpop.f32.mrb[0].mxu0
        %v2672 = vadd.f32 0.0, %v2671
        %v2673 = vpop.f32.mrb[0].mxu0
        %v2674 = vpop.f32.mrb[0].mxu0
        %v2675 = vpop.f32.mrb[0].mxu0
        %2676 = vdwg.mxu0
        %v2677 = vadd.f32 %v2423, %v2549
        %v2678 = vadd.f32 %v2424, %v2551
        %v2679 = vadd.f32 %v2425, %v2590
        %v2680 = vadd.f32 %v2426, %v2592
        %v2681 = vadd.f32 %v2427, %v2631
        %v2682 = vadd.f32 %v2428, %v2633
        %v2683 = vadd.f32 %v2429, %v2672
        %s2684 = scalar_lea.vmem [#allocation5], 40
        %v2685 = vld [vmem:[%s2684] sm:$0xf]
        %v2686 = vld [vmem:[%s183] sm:$0xff]
        %v2687 = vld [vmem:[%s183 + $0x8] sm:$0x3f]
        %v2690 = vcombine.high %v2686, %v2686
        %v2692 = vunpack.c.l.s4 1983009808
        %v2693 = vunpack.c.0.s8 %v2692
        %v2694 = vlaneseq
        %v2695 = vshrl.u32 %v2694, 7
        %v2696 = vsub.s32 %v2693, %v2695
        %v2697 = vrot.slane %v2686, %v2696
        %v2699 = vunpack.c.l.s4 1983009808
        %v2700 = vunpack.c.0.s8 %v2699
        %v2701 = vlaneseq
        %v2702 = vshrl.u32 %v2701, 7
        %v2703 = vsub.s32 %v2700, %v2702
        %v2704 = vrot.slane %v2690, %v2703
        %v2705 = vcombine.high %v2697, %v2697
        %v2706 = vcombine.high %v2704, %v2704
        %v2707 = vcombine.high %v2687, %v2687
        %v2709 = vunpack.c.l.s4 1983009808
        %v2710 = vunpack.c.0.s8 %v2709
        %v2711 = vlaneseq
        %v2712 = vshrl.u32 %v2711, 7
        %v2713 = vsub.s32 %v2710, %v2712
        %v2714 = vrot.slane %v2687, %v2713
        %v2716 = vunpack.c.l.s4 1983009808
        %v2717 = vunpack.c.0.s8 %v2716
        %v2718 = vlaneseq
        %v2719 = vshrl.u32 %v2718, 7
        %v2720 = vsub.s32 %v2717, %v2719
        %v2721 = vrot.slane %v2707, %v2720
        %v2722 = vcombine.high %v2714, %v2714
        %2723 = vrot.lane.b32.xlu0 %v2697, 27
        %v2724 = vpop.permute.xlu0 %2723
        %2725 = vrot.lane.b32.xlu0 %v2705, 27
        %v2726 = vpop.permute.xlu0 %2725
        %2727 = vrot.lane.b32.xlu0 %v2704, 27
        %v2728 = vpop.permute.xlu0 %2727
        %2729 = vrot.lane.b32.xlu0 %v2706, 27
        %v2730 = vpop.permute.xlu0 %2729
        %2731 = vrot.lane.b32.xlu0 %v2714, 27
        %v2732 = vpop.permute.xlu0 %2731
        %2733 = vrot.lane.b32.xlu0 %v2722, 27
        %v2734 = vpop.permute.xlu0 %2733
        %2735 = vrot.lane.b32.xlu0 %v2721, 27
        %v2736 = vpop.permute.xlu0 %2735
        %vm2737 = vcmask 220160
        %v2738 = vsel %vm2737, %v2724, %v2726
        %v2739 = vsel %vm2737, %v2726, %v2728
        %v2740 = vsel %vm2737, %v2728, %v2730
        %v2741 = vsel %vm2737, %v2730, %v2732
        %v2742 = vsel %vm2737, %v2732, %v2734
        %v2743 = vsel %vm2737, %v2734, %v2736
        %v2745 = vsel %vm276, %v2685, 0
        %v2748 = vsel %vm280, %v2738, 0
        %v2751 = vsel %vm280, %v2739, 0
        %v2754 = vsel %vm280, %v2740, 0
        %v2757 = vsel %vm280, %v2741, 0
        %v2760 = vsel %vm280, %v2742, 0
        %v2763 = vsel %vm280, %v2743, 0
        %v2766 = vsel %vm280, %v2736, 0
        %2768 = vmatprep.subr.bf16.mxu0 %v2751
        %2769 = vmatpush1.bf16.msra.mxu0 %v2748
        %2770 = vmatprep.subr.bf16.mxu0 0
        %2771 = vmatpush1.bf16.msra.mxu0 0
        %2772 = vmatprep.subr.bf16.mxu0 0
        %2773 = vmatpush1.bf16.msra.mxu0 0
        %2774 = vmatprep.subr.bf16.mxu0 0
        %2775 = vmatpush1.bf16.msra.mxu0 0
        %2776 = vmatprep.subr.bf16.mxu0 0
        %2777 = vmatpush1.bf16.msra.mxu0 0
        %2778 = vmatprep.subr.bf16.mxu0 0
        %2779 = vmatpush1.bf16.msra.mxu0 0
        %2780 = vmatprep.subr.bf16.mxu0 0
        %2781 = vmatpush1.bf16.msra.mxu0 0
        %2782 = vmatprep.subr.bf16.mxu0 0
        %2783 = vmatpush1.bf16.msra.mxu0 0
        %2784 = vmatprep.subr.bf16.mxu0 0
        %2785 = vmatpush1.bf16.msra.mxu0 0
        %2786 = vmatprep.subr.bf16.mxu0 0
        %2787 = vmatpush1.bf16.msra.mxu0 0
        %2788 = vmatprep.subr.bf16.mxu0 0
        %2789 = vmatpush1.bf16.msra.mxu0 0
        %2790 = vmatprep.subr.bf16.mxu0 0
        %2791 = vmatpush1.bf16.msra.mxu0 0
        %2792 = vmatprep.subr.bf16.mxu0 0
        %2793 = vmatpush1.bf16.msra.mxu0 0
        %2794 = vmatprep.subr.bf16.mxu0 0
        %2795 = vmatpush1.bf16.msra.mxu0 0
        %2796 = vmatprep.subr.bf16.mxu0 0
        %2797 = vmatpush1.bf16.msra.mxu0 0
        %2798 = vmatprep.subr.bf16.mxu0 0
        %2799 = vmatpush1.bf16.msra.mxu0 0
        %2800 = vmatprep.mubr.bf16.mxu0 0
        %2801 = vmatmul.mubr.bf16.gmra.mrb[0].mxu0 %v2745
        %v2802 = vpop.f32.mrb[0].mxu0
        %v2803 = vadd.f32 0.0, %v2802
        %v2804 = vpop.f32.mrb[0].mxu0
        %v2805 = vadd.f32 0.0, %v2804
        %v2806 = vpop.f32.mrb[0].mxu0
        %v2807 = vpop.f32.mrb[0].mxu0
        %2808 = vdwg.mxu0
        %2809 = vmatprep.subr.bf16.mxu0 %v2757
        %2810 = vmatpush1.bf16.msra.mxu0 %v2754
        %2811 = vmatprep.subr.bf16.mxu0 0
        %2812 = vmatpush1.bf16.msra.mxu0 0
        %2813 = vmatprep.subr.bf16.mxu0 0
        %2814 = vmatpush1.bf16.msra.mxu0 0
        %2815 = vmatprep.subr.bf16.mxu0 0
        %2816 = vmatpush1.bf16.msra.mxu0 0
        %2817 = vmatprep.subr.bf16.mxu0 0
        %2818 = vmatpush1.bf16.msra.mxu0 0
        %2819 = vmatprep.subr.bf16.mxu0 0
        %2820 = vmatpush1.bf16.msra.mxu0 0
        %2821 = vmatprep.subr.bf16.mxu0 0
        %2822 = vmatpush1.bf16.msra.mxu0 0
        %2823 = vmatprep.subr.bf16.mxu0 0
        %2824 = vmatpush1.bf16.msra.mxu0 0
        %2825 = vmatprep.subr.bf16.mxu0 0
        %2826 = vmatpush1.bf16.msra.mxu0 0
        %2827 = vmatprep.subr.bf16.mxu0 0
        %2828 = vmatpush1.bf16.msra.mxu0 0
        %2829 = vmatprep.subr.bf16.mxu0 0
        %2830 = vmatpush1.bf16.msra.mxu0 0
        %2831 = vmatprep.subr.bf16.mxu0 0
        %2832 = vmatpush1.bf16.msra.mxu0 0
        %2833 = vmatprep.subr.bf16.mxu0 0
        %2834 = vmatpush1.bf16.msra.mxu0 0
        %2835 = vmatprep.subr.bf16.mxu0 0
        %2836 = vmatpush1.bf16.msra.mxu0 0
        %2837 = vmatprep.subr.bf16.mxu0 0
        %2838 = vmatpush1.bf16.msra.mxu0 0
        %2839 = vmatprep.subr.bf16.mxu0 0
        %2840 = vmatpush1.bf16.msra.mxu0 0
        %2841 = vmatprep.mubr.bf16.mxu0 0
        %2842 = vmatmul.mubr.bf16.gmra.mrb[0].mxu0 %v2745
        %v2843 = vpop.f32.mrb[0].mxu0
        %v2844 = vadd.f32 0.0, %v2843
        %v2845 = vpop.f32.mrb[0].mxu0
        %v2846 = vadd.f32 0.0, %v2845
        %v2847 = vpop.f32.mrb[0].mxu0
        %v2848 = vpop.f32.mrb[0].mxu0
        %2849 = vdwg.mxu0
        %2850 = vmatprep.subr.bf16.mxu0 %v2763
        %2851 = vmatpush1.bf16.msra.mxu0 %v2760
        %2852 = vmatprep.subr.bf16.mxu0 0
        %2853 = vmatpush1.bf16.msra.mxu0 0
        %2854 = vmatprep.subr.bf16.mxu0 0
        %2855 = vmatpush1.bf16.msra.mxu0 0
        %2856 = vmatprep.subr.bf16.mxu0 0
        %2857 = vmatpush1.bf16.msra.mxu0 0
        %2858 = vmatprep.subr.bf16.mxu0 0
        %2859 = vmatpush1.bf16.msra.mxu0 0
        %2860 = vmatprep.subr.bf16.mxu0 0
        %2861 = vmatpush1.bf16.msra.mxu0 0
        %2862 = vmatprep.subr.bf16.mxu0 0
        %2863 = vmatpush1.bf16.msra.mxu0 0
        %2864 = vmatprep.subr.bf16.mxu0 0
        %2865 = vmatpush1.bf16.msra.mxu0 0
        %2866 = vmatprep.subr.bf16.mxu0 0
        %2867 = vmatpush1.bf16.msra.mxu0 0
        %2868 = vmatprep.subr.bf16.mxu0 0
        %2869 = vmatpush1.bf16.msra.mxu0 0
        %2870 = vmatprep.subr.bf16.mxu0 0
        %2871 = vmatpush1.bf16.msra.mxu0 0
        %2872 = vmatprep.subr.bf16.mxu0 0
        %2873 = vmatpush1.bf16.msra.mxu0 0
        %2874 = vmatprep.subr.bf16.mxu0 0
        %2875 = vmatpush1.bf16.msra.mxu0 0
        %2876 = vmatprep.subr.bf16.mxu0 0
        %2877 = vmatpush1.bf16.msra.mxu0 0
        %2878 = vmatprep.subr.bf16.mxu0 0
        %2879 = vmatpush1.bf16.msra.mxu0 0
        %2880 = vmatprep.subr.bf16.mxu0 0
        %2881 = vmatpush1.bf16.msra.mxu0 0
        %2882 = vmatprep.mubr.bf16.mxu0 0
        %2883 = vmatmul.mubr.bf16.gmra.mrb[0].mxu0 %v2745
        %v2884 = vpop.f32.mrb[0].mxu0
        %v2885 = vadd.f32 0.0, %v2884
        %v2886 = vpop.f32.mrb[0].mxu0
        %v2887 = vadd.f32 0.0, %v2886
        %v2888 = vpop.f32.mrb[0].mxu0
        %v2889 = vpop.f32.mrb[0].mxu0
        %2890 = vdwg.mxu0
        %2891 = vmatprep.subr.bf16.mxu0 0
        %2892 = vmatpush1.bf16.msra.mxu0 %v2766
        %2893 = vmatprep.subr.bf16.mxu0 0
        %2894 = vmatpush1.bf16.msra.mxu0 0
        %2895 = vmatprep.subr.bf16.mxu0 0
        %2896 = vmatpush1.bf16.msra.mxu0 0
        %2897 = vmatprep.subr.bf16.mxu0 0
        %2898 = vmatpush1.bf16.msra.mxu0 0
        %2899 = vmatprep.subr.bf16.mxu0 0
        %2900 = vmatpush1.bf16.msra.mxu0 0
        %2901 = vmatprep.subr.bf16.mxu0 0
        %2902 = vmatpush1.bf16.msra.mxu0 0
        %2903 = vmatprep.subr.bf16.mxu0 0
        %2904 = vmatpush1.bf16.msra.mxu0 0
        %2905 = vmatprep.subr.bf16.mxu0 0
        %2906 = vmatpush1.bf16.msra.mxu0 0
        %2907 = vmatprep.subr.bf16.mxu0 0
        %2908 = vmatpush1.bf16.msra.mxu0 0
        %2909 = vmatprep.subr.bf16.mxu0 0
        %2910 = vmatpush1.bf16.msra.mxu0 0
        %2911 = vmatprep.subr.bf16.mxu0 0
        %2912 = vmatpush1.bf16.msra.mxu0 0
        %2913 = vmatprep.subr.bf16.mxu0 0
        %2914 = vmatpush1.bf16.msra.mxu0 0
        %2915 = vmatprep.subr.bf16.mxu0 0
        %2916 = vmatpush1.bf16.msra.mxu0 0
        %2917 = vmatprep.subr.bf16.mxu0 0
        %2918 = vmatpush1.bf16.msra.mxu0 0
        %2919 = vmatprep.subr.bf16.mxu0 0
        %2920 = vmatpush1.bf16.msra.mxu0 0
        %2921 = vmatprep.subr.bf16.mxu0 0
        %2922 = vmatpush1.bf16.msra.mxu0 0
        %2923 = vmatprep.mubr.bf16.mxu0 0
        %2924 = vmatmul.mubr.bf16.gmra.mrb[0].mxu0 %v2745
        %v2925 = vpop.f32.mrb[0].mxu0
        %v2926 = vadd.f32 0.0, %v2925
        %v2927 = vpop.f32.mrb[0].mxu0
        %v2928 = vpop.f32.mrb[0].mxu0
        %v2929 = vpop.f32.mrb[0].mxu0
        %2930 = vdwg.mxu0
        %v2931 = vadd.f32 %v2677, %v2803
        %v2932 = vadd.f32 %v2678, %v2805
        %v2933 = vadd.f32 %v2679, %v2844
        %v2934 = vadd.f32 %v2680, %v2846
        %v2935 = vadd.f32 %v2681, %v2885
        %v2936 = vadd.f32 %v2682, %v2887
        %v2937 = vadd.f32 %v2683, %v2926
        %s2938 = scalar_lea.vmem [#allocation5], 44
        %v2939 = vld [vmem:[%s2938] sm:$0xf]
        %v2940 = vld [vmem:[%s183] sm:$0xff]
        %v2941 = vld [vmem:[%s183 + $0x8] sm:$0x3f]
        %v2944 = vcombine.high %v2940, %v2940
        %v2946 = vunpack.c.l.s4 1983009808
        %v2947 = vunpack.c.0.s8 %v2946
        %v2948 = vlaneseq
        %v2949 = vshrl.u32 %v2948, 7
        %v2950 = vsub.s32 %v2947, %v2949
        %v2951 = vrot.slane %v2940, %v2950
        %v2953 = vunpack.c.l.s4 1983009808
        %v2954 = vunpack.c.0.s8 %v2953
        %v2955 = vlaneseq
        %v2956 = vshrl.u32 %v2955, 7
        %v2957 = vsub.s32 %v2954, %v2956
        %v2958 = vrot.slane %v2944, %v2957
        %v2959 = vcombine.high %v2951, %v2951
        %v2960 = vcombine.high %v2958, %v2958
        %v2961 = vcombine.high %v2941, %v2941
        %v2963 = vunpack.c.l.s4 1983009808
        %v2964 = vunpack.c.0.s8 %v2963
        %v2965 = vlaneseq
        %v2966 = vshrl.u32 %v2965, 7
        %v2967 = vsub.s32 %v2964, %v2966
        %v2968 = vrot.slane %v2941, %v2967
        %v2970 = vunpack.c.l.s4 1983009808
        %v2971 = vunpack.c.0.s8 %v2970
        %v2972 = vlaneseq
        %v2973 = vshrl.u32 %v2972, 7
        %v2974 = vsub.s32 %v2971, %v2973
        %v2975 = vrot.slane %v2961, %v2974
        %v2976 = vcombine.high %v2968, %v2968
        %2977 = vrot.lane.b32.xlu0 %v2951, 26
        %v2978 = vpop.permute.xlu0 %2977
        %2979 = vrot.lane.b32.xlu0 %v2959, 26
        %v2980 = vpop.permute.xlu0 %2979
        %2981 = vrot.lane.b32.xlu0 %v2958, 26
        %v2982 = vpop.permute.xlu0 %2981
        %2983 = vrot.lane.b32.xlu0 %v2960, 26
        %v2984 = vpop.permute.xlu0 %2983
        %2985 = vrot.lane.b32.xlu0 %v2968, 26
        %v2986 = vpop.permute.xlu0 %2985
        %2987 = vrot.lane.b32.xlu0 %v2976, 26
        %v2988 = vpop.permute.xlu0 %2987
        %2989 = vrot.lane.b32.xlu0 %v2975, 26
        %v2990 = vpop.permute.xlu0 %2989
        %vm2991 = vcmask 211968
        %v2992 = vsel %vm2991, %v2978, %v2980
        %v2993 = vsel %vm2991, %v2980, %v2982
        %v2994 = vsel %vm2991, %v2982, %v2984
        %v2995 = vsel %vm2991, %v2984, %v2986
        %v2996 = vsel %vm2991, %v2986, %v2988
        %v2997 = vsel %vm2991, %v2988, %v2990
        %v2999 = vsel %vm276, %v2939, 0
        %v3002 = vsel %vm280, %v2992, 0
        %v3005 = vsel %vm280, %v2993, 0
        %v3008 = vsel %vm280, %v2994, 0
        %v3011 = vsel %vm280, %v2995, 0
        %v3014 = vsel %vm280, %v2996, 0
        %v3017 = vsel %vm280, %v2997, 0
        %v3020 = vsel %vm280, %v2990, 0
        %3022 = vmatprep.subr.bf16.mxu0 %v3005
        %3023 = vmatpush1.bf16.msra.mxu0 %v3002
        %3024 = vmatprep.subr.bf16.mxu0 0
        %3025 = vmatpush1.bf16.msra.mxu0 0
        %3026 = vmatprep.subr.bf16.mxu0 0
        %3027 = vmatpush1.bf16.msra.mxu0 0
        %3028 = vmatprep.subr.bf16.mxu0 0
        %3029 = vmatpush1.bf16.msra.mxu0 0
        %3030 = vmatprep.subr.bf16.mxu0 0
        %3031 = vmatpush1.bf16.msra.mxu0 0
        %3032 = vmatprep.subr.bf16.mxu0 0
        %3033 = vmatpush1.bf16.msra.mxu0 0
        %3034 = vmatprep.subr.bf16.mxu0 0
        %3035 = vmatpush1.bf16.msra.mxu0 0
        %3036 = vmatprep.subr.bf16.mxu0 0
        %3037 = vmatpush1.bf16.msra.mxu0 0
        %3038 = vmatprep.subr.bf16.mxu0 0
        %3039 = vmatpush1.bf16.msra.mxu0 0
        %3040 = vmatprep.subr.bf16.mxu0 0
        %3041 = vmatpush1.bf16.msra.mxu0 0
        %3042 = vmatprep.subr.bf16.mxu0 0
        %3043 = vmatpush1.bf16.msra.mxu0 0
        %3044 = vmatprep.subr.bf16.mxu0 0
        %3045 = vmatpush1.bf16.msra.mxu0 0
        %3046 = vmatprep.subr.bf16.mxu0 0
        %3047 = vmatpush1.bf16.msra.mxu0 0
        %3048 = vmatprep.subr.bf16.mxu0 0
        %3049 = vmatpush1.bf16.msra.mxu0 0
        %3050 = vmatprep.subr.bf16.mxu0 0
        %3051 = vmatpush1.bf16.msra.mxu0 0
        %3052 = vmatprep.subr.bf16.mxu0 0
        %3053 = vmatpush1.bf16.msra.mxu0 0
        %3054 = vmatprep.mubr.bf16.mxu0 0
        %3055 = vmatmul.mubr.bf16.gmra.mrb[0].mxu0 %v2999
        %v3056 = vpop.f32.mrb[0].mxu0
        %v3057 = vadd.f32 0.0, %v3056
        %v3058 = vpop.f32.mrb[0].mxu0
        %v3059 = vadd.f32 0.0, %v3058
        %v3060 = vpop.f32.mrb[0].mxu0
        %v3061 = vpop.f32.mrb[0].mxu0
        %3062 = vdwg.mxu0
        %3063 = vmatprep.subr.bf16.mxu0 %v3011
        %3064 = vmatpush1.bf16.msra.mxu0 %v3008
        %3065 = vmatprep.subr.bf16.mxu0 0
        %3066 = vmatpush1.bf16.msra.mxu0 0
        %3067 = vmatprep.subr.bf16.mxu0 0
        %3068 = vmatpush1.bf16.msra.mxu0 0
        %3069 = vmatprep.subr.bf16.mxu0 0
        %3070 = vmatpush1.bf16.msra.mxu0 0
        %3071 = vmatprep.subr.bf16.mxu0 0
        %3072 = vmatpush1.bf16.msra.mxu0 0
        %3073 = vmatprep.subr.bf16.mxu0 0
        %3074 = vmatpush1.bf16.msra.mxu0 0
        %3075 = vmatprep.subr.bf16.mxu0 0
        %3076 = vmatpush1.bf16.msra.mxu0 0
        %3077 = vmatprep.subr.bf16.mxu0 0
        %3078 = vmatpush1.bf16.msra.mxu0 0
        %3079 = vmatprep.subr.bf16.mxu0 0
        %3080 = vmatpush1.bf16.msra.mxu0 0
        %3081 = vmatprep.subr.bf16.mxu0 0
        %3082 = vmatpush1.bf16.msra.mxu0 0
        %3083 = vmatprep.subr.bf16.mxu0 0
        %3084 = vmatpush1.bf16.msra.mxu0 0
        %3085 = vmatprep.subr.bf16.mxu0 0
        %3086 = vmatpush1.bf16.msra.mxu0 0
        %3087 = vmatprep.subr.bf16.mxu0 0
        %3088 = vmatpush1.bf16.msra.mxu0 0
        %3089 = vmatprep.subr.bf16.mxu0 0
        %3090 = vmatpush1.bf16.msra.mxu0 0
        %3091 = vmatprep.subr.bf16.mxu0 0
        %3092 = vmatpush1.bf16.msra.mxu0 0
        %3093 = vmatprep.subr.bf16.mxu0 0
        %3094 = vmatpush1.bf16.msra.mxu0 0
        %3095 = vmatprep.mubr.bf16.mxu0 0
        %3096 = vmatmul.mubr.bf16.gmra.mrb[0].mxu0 %v2999
        %v3097 = vpop.f32.mrb[0].mxu0
        %v3098 = vadd.f32 0.0, %v3097
        %v3099 = vpop.f32.mrb[0].mxu0
        %v3100 = vadd.f32 0.0, %v3099
        %v3101 = vpop.f32.mrb[0].mxu0
        %v3102 = vpop.f32.mrb[0].mxu0
        %3103 = vdwg.mxu0
        %3104 = vmatprep.subr.bf16.mxu0 %v3017
        %3105 = vmatpush1.bf16.msra.mxu0 %v3014
        %3106 = vmatprep.subr.bf16.mxu0 0
        %3107 = vmatpush1.bf16.msra.mxu0 0
        %3108 = vmatprep.subr.bf16.mxu0 0
        %3109 = vmatpush1.bf16.msra.mxu0 0
        %3110 = vmatprep.subr.bf16.mxu0 0
        %3111 = vmatpush1.bf16.msra.mxu0 0
        %3112 = vmatprep.subr.bf16.mxu0 0
        %3113 = vmatpush1.bf16.msra.mxu0 0
        %3114 = vmatprep.subr.bf16.mxu0 0
        %3115 = vmatpush1.bf16.msra.mxu0 0
        %3116 = vmatprep.subr.bf16.mxu0 0
        %3117 = vmatpush1.bf16.msra.mxu0 0
        %3118 = vmatprep.subr.bf16.mxu0 0
        %3119 = vmatpush1.bf16.msra.mxu0 0
        %3120 = vmatprep.subr.bf16.mxu0 0
        %3121 = vmatpush1.bf16.msra.mxu0 0
        %3122 = vmatprep.subr.bf16.mxu0 0
        %3123 = vmatpush1.bf16.msra.mxu0 0
        %3124 = vmatprep.subr.bf16.mxu0 0
        %3125 = vmatpush1.bf16.msra.mxu0 0
        %3126 = vmatprep.subr.bf16.mxu0 0
        %3127 = vmatpush1.bf16.msra.mxu0 0
        %3128 = vmatprep.subr.bf16.mxu0 0
        %3129 = vmatpush1.bf16.msra.mxu0 0
        %3130 = vmatprep.subr.bf16.mxu0 0
        %3131 = vmatpush1.bf16.msra.mxu0 0
        %3132 = vmatprep.subr.bf16.mxu0 0
        %3133 = vmatpush1.bf16.msra.mxu0 0
        %3134 = vmatprep.subr.bf16.mxu0 0
        %3135 = vmatpush1.bf16.msra.mxu0 0
        %3136 = vmatprep.mubr.bf16.mxu0 0
        %3137 = vmatmul.mubr.bf16.gmra.mrb[0].mxu0 %v2999
        %v3138 = vpop.f32.mrb[0].mxu0
        %v3139 = vadd.f32 0.0, %v3138
        %v3140 = vpop.f32.mrb[0].mxu0
        %v3141 = vadd.f32 0.0, %v3140
        %v3142 = vpop.f32.mrb[0].mxu0
        %v3143 = vpop.f32.mrb[0].mxu0
        %3144 = vdwg.mxu0
        %3145 = vmatprep.subr.bf16.mxu0 0
        %3146 = vmatpush1.bf16.msra.mxu0 %v3020
        %3147 = vmatprep.subr.bf16.mxu0 0
        %3148 = vmatpush1.bf16.msra.mxu0 0
        %3149 = vmatprep.subr.bf16.mxu0 0
        %3150 = vmatpush1.bf16.msra.mxu0 0
        %3151 = vmatprep.subr.bf16.mxu0 0
        %3152 = vmatpush1.bf16.msra.mxu0 0
        %3153 = vmatprep.subr.bf16.mxu0 0
        %3154 = vmatpush1.bf16.msra.mxu0 0
        %3155 = vmatprep.subr.bf16.mxu0 0
        %3156 = vmatpush1.bf16.msra.mxu0 0
        %3157 = vmatprep.subr.bf16.mxu0 0
        %3158 = vmatpush1.bf16.msra.mxu0 0
        %3159 = vmatprep.subr.bf16.mxu0 0
        %3160 = vmatpush1.bf16.msra.mxu0 0
        %3161 = vmatprep.subr.bf16.mxu0 0
        %3162 = vmatpush1.bf16.msra.mxu0 0
        %3163 = vmatprep.subr.bf16.mxu0 0
        %3164 = vmatpush1.bf16.msra.mxu0 0
        %3165 = vmatprep.subr.bf16.mxu0 0
        %3166 = vmatpush1.bf16.msra.mxu0 0
        %3167 = vmatprep.subr.bf16.mxu0 0
        %3168 = vmatpush1.bf16.msra.mxu0 0
        %3169 = vmatprep.subr.bf16.mxu0 0
        %3170 = vmatpush1.bf16.msra.mxu0 0
        %3171 = vmatprep.subr.bf16.mxu0 0
        %3172 = vmatpush1.bf16.msra.mxu0 0
        %3173 = vmatprep.subr.bf16.mxu0 0
        %3174 = vmatpush1.bf16.msra.mxu0 0
        %3175 = vmatprep.subr.bf16.mxu0 0
        %3176 = vmatpush1.bf16.msra.mxu0 0
        %3177 = vmatprep.mubr.bf16.mxu0 0
        %3178 = vmatmul.mubr.bf16.gmra.mrb[0].mxu0 %v2999
        %v3179 = vpop.f32.mrb[0].mxu0
        %v3180 = vadd.f32 0.0, %v3179
        %v3181 = vpop.f32.mrb[0].mxu0
        %v3182 = vpop.f32.mrb[0].mxu0
        %v3183 = vpop.f32.mrb[0].mxu0
        %3184 = vdwg.mxu0
        %v3185 = vadd.f32 %v2931, %v3057
        %v3186 = vadd.f32 %v2932, %v3059
        %v3187 = vadd.f32 %v2933, %v3098
        %v3188 = vadd.f32 %v2934, %v3100
        %v3189 = vadd.f32 %v2935, %v3139
        %v3190 = vadd.f32 %v2936, %v3141
        %v3191 = vadd.f32 %v2937, %v3180
        %s3192 = scalar_lea.vmem [#allocation5], 48
        %v3193 = vld [vmem:[%s3192] sm:$0xf]
        %v3194 = vld [vmem:[%s183] sm:$0xff]
        %v3195 = vld [vmem:[%s183 + $0x8] sm:$0x3f]
        %v3198 = vcombine.high %v3194, %v3194
        %v3200 = vunpack.c.l.s4 1983009808
        %v3201 = vunpack.c.0.s8 %v3200
        %v3202 = vlaneseq
        %v3203 = vshrl.u32 %v3202, 7
        %v3204 = vsub.s32 %v3201, %v3203
        %v3205 = vrot.slane %v3194, %v3204
        %v3207 = vunpack.c.l.s4 1983009808
        %v3208 = vunpack.c.0.s8 %v3207
        %v3209 = vlaneseq
        %v3210 = vshrl.u32 %v3209, 7
        %v3211 = vsub.s32 %v3208, %v3210
        %v3212 = vrot.slane %v3198, %v3211
        %v3213 = vcombine.high %v3205, %v3205
        %v3214 = vcombine.high %v3212, %v3212
        %v3215 = vcombine.high %v3195, %v3195
        %v3217 = vunpack.c.l.s4 1983009808
        %v3218 = vunpack.c.0.s8 %v3217
        %v3219 = vlaneseq
        %v3220 = vshrl.u32 %v3219, 7
        %v3221 = vsub.s32 %v3218, %v3220
        %v3222 = vrot.slane %v3195, %v3221
        %v3224 = vunpack.c.l.s4 1983009808
        %v3225 = vunpack.c.0.s8 %v3224
        %v3226 = vlaneseq
        %v3227 = vshrl.u32 %v3226, 7
        %v3228 = vsub.s32 %v3225, %v3227
        %v3229 = vrot.slane %v3215, %v3228
        %v3230 = vcombine.high %v3222, %v3222
        %3231 = vrot.lane.b32.xlu0 %v3205, 18
        %v3232 = vpop.permute.xlu0 %3231
        %3233 = vrot.lane.b32.xlu0 %v3213, 18
        %v3234 = vpop.permute.xlu0 %3233
        %3235 = vrot.lane.b32.xlu0 %v3212, 18
        %v3236 = vpop.permute.xlu0 %3235
        %3237 = vrot.lane.b32.xlu0 %v3214, 18
        %v3238 = vpop.permute.xlu0 %3237
        %3239 = vrot.lane.b32.xlu0 %v3222, 18
        %v3240 = vpop.permute.xlu0 %3239
        %3241 = vrot.lane.b32.xlu0 %v3230, 18
        %v3242 = vpop.permute.xlu0 %3241
        %3243 = vrot.lane.b32.xlu0 %v3229, 18
        %v3244 = vpop.permute.xlu0 %3243
        %vm3245 = vcmask 146432
        %v3246 = vsel %vm3245, %v3232, %v3234
        %v3247 = vsel %vm3245, %v3234, %v3236
        %v3248 = vsel %vm3245, %v3236, %v3238
        %v3249 = vsel %vm3245, %v3238, %v3240
        %v3250 = vsel %vm3245, %v3240, %v3242
        %v3251 = vsel %vm3245, %v3242, %v3244
        %v3253 = vsel %vm276, %v3193, 0
        %v3256 = vsel %vm280, %v3246, 0
        %v3259 = vsel %vm280, %v3247, 0
        %v3262 = vsel %vm280, %v3248, 0
        %v3265 = vsel %vm280, %v3249, 0
        %v3268 = vsel %vm280, %v3250, 0
        %v3271 = vsel %vm280, %v3251, 0
        %v3274 = vsel %vm280, %v3244, 0
        %3276 = vmatprep.subr.bf16.mxu0 %v3259
        %3277 = vmatpush1.bf16.msra.mxu0 %v3256
        %3278 = vmatprep.subr.bf16.mxu0 0
        %3279 = vmatpush1.bf16.msra.mxu0 0
        %3280 = vmatprep.subr.bf16.mxu0 0
        %3281 = vmatpush1.bf16.msra.mxu0 0
        %3282 = vmatprep.subr.bf16.mxu0 0
        %3283 = vmatpush1.bf16.msra.mxu0 0
        %3284 = vmatprep.subr.bf16.mxu0 0
        %3285 = vmatpush1.bf16.msra.mxu0 0
        %3286 = vmatprep.subr.bf16.mxu0 0
        %3287 = vmatpush1.bf16.msra.mxu0 0
        %3288 = vmatprep.subr.bf16.mxu0 0
        %3289 = vmatpush1.bf16.msra.mxu0 0
        %3290 = vmatprep.subr.bf16.mxu0 0
        %3291 = vmatpush1.bf16.msra.mxu0 0
        %3292 = vmatprep.subr.bf16.mxu0 0
        %3293 = vmatpush1.bf16.msra.mxu0 0
        %3294 = vmatprep.subr.bf16.mxu0 0
        %3295 = vmatpush1.bf16.msra.mxu0 0
        %3296 = vmatprep.subr.bf16.mxu0 0
        %3297 = vmatpush1.bf16.msra.mxu0 0
        %3298 = vmatprep.subr.bf16.mxu0 0
        %3299 = vmatpush1.bf16.msra.mxu0 0
        %3300 = vmatprep.subr.bf16.mxu0 0
        %3301 = vmatpush1.bf16.msra.mxu0 0
        %3302 = vmatprep.subr.bf16.mxu0 0
        %3303 = vmatpush1.bf16.msra.mxu0 0
        %3304 = vmatprep.subr.bf16.mxu0 0
        %3305 = vmatpush1.bf16.msra.mxu0 0
        %3306 = vmatprep.subr.bf16.mxu0 0
        %3307 = vmatpush1.bf16.msra.mxu0 0
        %3308 = vmatprep.mubr.bf16.mxu0 0
        %3309 = vmatmul.mubr.bf16.gmra.mrb[0].mxu0 %v3253
        %v3310 = vpop.f32.mrb[0].mxu0
        %v3311 = vadd.f32 0.0, %v3310
        %v3312 = vpop.f32.mrb[0].mxu0
        %v3313 = vadd.f32 0.0, %v3312
        %v3314 = vpop.f32.mrb[0].mxu0
        %v3315 = vpop.f32.mrb[0].mxu0
        %3316 = vdwg.mxu0
        %3317 = vmatprep.subr.bf16.mxu0 %v3265
        %3318 = vmatpush1.bf16.msra.mxu0 %v3262
        %3319 = vmatprep.subr.bf16.mxu0 0
        %3320 = vmatpush1.bf16.msra.mxu0 0
        %3321 = vmatprep.subr.bf16.mxu0 0
        %3322 = vmatpush1.bf16.msra.mxu0 0
        %3323 = vmatprep.subr.bf16.mxu0 0
        %3324 = vmatpush1.bf16.msra.mxu0 0
        %3325 = vmatprep.subr.bf16.mxu0 0
        %3326 = vmatpush1.bf16.msra.mxu0 0
        %3327 = vmatprep.subr.bf16.mxu0 0
        %3328 = vmatpush1.bf16.msra.mxu0 0
        %3329 = vmatprep.subr.bf16.mxu0 0
        %3330 = vmatpush1.bf16.msra.mxu0 0
        %3331 = vmatprep.subr.bf16.mxu0 0
        %3332 = vmatpush1.bf16.msra.mxu0 0
        %3333 = vmatprep.subr.bf16.mxu0 0
        %3334 = vmatpush1.bf16.msra.mxu0 0
        %3335 = vmatprep.subr.bf16.mxu0 0
        %3336 = vmatpush1.bf16.msra.mxu0 0
        %3337 = vmatprep.subr.bf16.mxu0 0
        %3338 = vmatpush1.bf16.msra.mxu0 0
        %3339 = vmatprep.subr.bf16.mxu0 0
        %3340 = vmatpush1.bf16.msra.mxu0 0
        %3341 = vmatprep.subr.bf16.mxu0 0
        %3342 = vmatpush1.bf16.msra.mxu0 0
        %3343 = vmatprep.subr.bf16.mxu0 0
        %3344 = vmatpush1.bf16.msra.mxu0 0
        %3345 = vmatprep.subr.bf16.mxu0 0
        %3346 = vmatpush1.bf16.msra.mxu0 0
        %3347 = vmatprep.subr.bf16.mxu0 0
        %3348 = vmatpush1.bf16.msra.mxu0 0
        %3349 = vmatprep.mubr.bf16.mxu0 0
        %3350 = vmatmul.mubr.bf16.gmra.mrb[0].mxu0 %v3253
        %v3351 = vpop.f32.mrb[0].mxu0
        %v3352 = vadd.f32 0.0, %v3351
        %v3353 = vpop.f32.mrb[0].mxu0
        %v3354 = vadd.f32 0.0, %v3353
        %v3355 = vpop.f32.mrb[0].mxu0
        %v3356 = vpop.f32.mrb[0].mxu0
        %3357 = vdwg.mxu0
        %3358 = vmatprep.subr.bf16.mxu0 %v3271
        %3359 = vmatpush1.bf16.msra.mxu0 %v3268
        %3360 = vmatprep.subr.bf16.mxu0 0
        %3361 = vmatpush1.bf16.msra.mxu0 0
        %3362 = vmatprep.subr.bf16.mxu0 0
        %3363 = vmatpush1.bf16.msra.mxu0 0
        %3364 = vmatprep.subr.bf16.mxu0 0
        %3365 = vmatpush1.bf16.msra.mxu0 0
        %3366 = vmatprep.subr.bf16.mxu0 0
        %3367 = vmatpush1.bf16.msra.mxu0 0
        %3368 = vmatprep.subr.bf16.mxu0 0
        %3369 = vmatpush1.bf16.msra.mxu0 0
        %3370 = vmatprep.subr.bf16.mxu0 0
        %3371 = vmatpush1.bf16.msra.mxu0 0
        %3372 = vmatprep.subr.bf16.mxu0 0
        %3373 = vmatpush1.bf16.msra.mxu0 0
        %3374 = vmatprep.subr.bf16.mxu0 0
        %3375 = vmatpush1.bf16.msra.mxu0 0
        %3376 = vmatprep.subr.bf16.mxu0 0
        %3377 = vmatpush1.bf16.msra.mxu0 0
        %3378 = vmatprep.subr.bf16.mxu0 0
        %3379 = vmatpush1.bf16.msra.mxu0 0
        %3380 = vmatprep.subr.bf16.mxu0 0
        %3381 = vmatpush1.bf16.msra.mxu0 0
        %3382 = vmatprep.subr.bf16.mxu0 0
        %3383 = vmatpush1.bf16.msra.mxu0 0
        %3384 = vmatprep.subr.bf16.mxu0 0
        %3385 = vmatpush1.bf16.msra.mxu0 0
        %3386 = vmatprep.subr.bf16.mxu0 0
        %3387 = vmatpush1.bf16.msra.mxu0 0
        %3388 = vmatprep.subr.bf16.mxu0 0
        %3389 = vmatpush1.bf16.msra.mxu0 0
        %3390 = vmatprep.mubr.bf16.mxu0 0
        %3391 = vmatmul.mubr.bf16.gmra.mrb[0].mxu0 %v3253
        %v3392 = vpop.f32.mrb[0].mxu0
        %v3393 = vadd.f32 0.0, %v3392
        %v3394 = vpop.f32.mrb[0].mxu0
        %v3395 = vadd.f32 0.0, %v3394
        %v3396 = vpop.f32.mrb[0].mxu0
        %v3397 = vpop.f32.mrb[0].mxu0
        %3398 = vdwg.mxu0
        %3399 = vmatprep.subr.bf16.mxu0 0
        %3400 = vmatpush1.bf16.msra.mxu0 %v3274
        %3401 = vmatprep.subr.bf16.mxu0 0
        %3402 = vmatpush1.bf16.msra.mxu0 0
        %3403 = vmatprep.subr.bf16.mxu0 0
        %3404 = vmatpush1.bf16.msra.mxu0 0
        %3405 = vmatprep.subr.bf16.mxu0 0
        %3406 = vmatpush1.bf16.msra.mxu0 0
        %3407 = vmatprep.subr.bf16.mxu0 0
        %3408 = vmatpush1.bf16.msra.mxu0 0
        %3409 = vmatprep.subr.bf16.mxu0 0
        %3410 = vmatpush1.bf16.msra.mxu0 0
        %3411 = vmatprep.subr.bf16.mxu0 0
        %3412 = vmatpush1.bf16.msra.mxu0 0
        %3413 = vmatprep.subr.bf16.mxu0 0
        %3414 = vmatpush1.bf16.msra.mxu0 0
        %3415 = vmatprep.subr.bf16.mxu0 0
        %3416 = vmatpush1.bf16.msra.mxu0 0
        %3417 = vmatprep.subr.bf16.mxu0 0
        %3418 = vmatpush1.bf16.msra.mxu0 0
        %3419 = vmatprep.subr.bf16.mxu0 0
        %3420 = vmatpush1.bf16.msra.mxu0 0
        %3421 = vmatprep.subr.bf16.mxu0 0
        %3422 = vmatpush1.bf16.msra.mxu0 0
        %3423 = vmatprep.subr.bf16.mxu0 0
        %3424 = vmatpush1.bf16.msra.mxu0 0
        %3425 = vmatprep.subr.bf16.mxu0 0
        %3426 = vmatpush1.bf16.msra.mxu0 0
        %3427 = vmatprep.subr.bf16.mxu0 0
        %3428 = vmatpush1.bf16.msra.mxu0 0
        %3429 = vmatprep.subr.bf16.mxu0 0
        %3430 = vmatpush1.bf16.msra.mxu0 0
        %3431 = vmatprep.mubr.bf16.mxu0 0
        %3432 = vmatmul.mubr.bf16.gmra.mrb[0].mxu0 %v3253
        %v3433 = vpop.f32.mrb[0].mxu0
        %v3434 = vadd.f32 0.0, %v3433
        %v3435 = vpop.f32.mrb[0].mxu0
        %v3436 = vpop.f32.mrb[0].mxu0
        %v3437 = vpop.f32.mrb[0].mxu0
        %3438 = vdwg.mxu0
        %v3439 = vadd.f32 %v3185, %v3311
        %v3440 = vadd.f32 %v3186, %v3313
        %v3441 = vadd.f32 %v3187, %v3352
        %v3442 = vadd.f32 %v3188, %v3354
        %v3443 = vadd.f32 %v3189, %v3393
        %v3444 = vadd.f32 %v3190, %v3395
        %v3445 = vadd.f32 %v3191, %v3434
        %s3446 = scalar_lea.vmem [#allocation5], 52
        %v3447 = vld [vmem:[%s3446] sm:$0xf]
        %v3448 = vld [vmem:[%s183] sm:$0xff]
        %v3449 = vld [vmem:[%s183 + $0x8] sm:$0x3f]
        %v3452 = vcombine.high %v3448, %v3448
        %v3454 = vunpack.c.l.s4 1983009808
        %v3455 = vunpack.c.0.s8 %v3454
        %v3456 = vlaneseq
        %v3457 = vshrl.u32 %v3456, 7
        %v3458 = vsub.s32 %v3455, %v3457
        %v3459 = vrot.slane %v3448, %v3458
        %v3461 = vunpack.c.l.s4 1983009808
        %v3462 = vunpack.c.0.s8 %v3461
        %v3463 = vlaneseq
        %v3464 = vshrl.u32 %v3463, 7
        %v3465 = vsub.s32 %v3462, %v3464
        %v3466 = vrot.slane %v3452, %v3465
        %v3467 = vcombine.high %v3459, %v3459
        %v3468 = vcombine.high %v3466, %v3466
        %v3469 = vcombine.high %v3449, %v3449
        %v3471 = vunpack.c.l.s4 1983009808
        %v3472 = vunpack.c.0.s8 %v3471
        %v3473 = vlaneseq
        %v3474 = vshrl.u32 %v3473, 7
        %v3475 = vsub.s32 %v3472, %v3474
        %v3476 = vrot.slane %v3449, %v3475
        %v3478 = vunpack.c.l.s4 1983009808
        %v3479 = vunpack.c.0.s8 %v3478
        %v3480 = vlaneseq
        %v3481 = vshrl.u32 %v3480, 7
        %v3482 = vsub.s32 %v3479, %v3481
        %v3483 = vrot.slane %v3469, %v3482
        %v3484 = vcombine.high %v3476, %v3476
        %3485 = vrot.lane.b32.xlu0 %v3459, 17
        %v3486 = vpop.permute.xlu0 %3485
        %3487 = vrot.lane.b32.xlu0 %v3467, 17
        %v3488 = vpop.permute.xlu0 %3487
        %3489 = vrot.lane.b32.xlu0 %v3466, 17
        %v3490 = vpop.permute.xlu0 %3489
        %3491 = vrot.lane.b32.xlu0 %v3468, 17
        %v3492 = vpop.permute.xlu0 %3491
        %3493 = vrot.lane.b32.xlu0 %v3476, 17
        %v3494 = vpop.permute.xlu0 %3493
        %3495 = vrot.lane.b32.xlu0 %v3484, 17
        %v3496 = vpop.permute.xlu0 %3495
        %3497 = vrot.lane.b32.xlu0 %v3483, 17
        %v3498 = vpop.permute.xlu0 %3497
        %vm3499 = vcmask 138240
        %v3500 = vsel %vm3499, %v3486, %v3488
        %v3501 = vsel %vm3499, %v3488, %v3490
        %v3502 = vsel %vm3499, %v3490, %v3492
        %v3503 = vsel %vm3499, %v3492, %v3494
        %v3504 = vsel %vm3499, %v3494, %v3496
        %v3505 = vsel %vm3499, %v3496, %v3498
        %v3507 = vsel %vm276, %v3447, 0
        %v3510 = vsel %vm280, %v3500, 0
        %v3513 = vsel %vm280, %v3501, 0
        %v3516 = vsel %vm280, %v3502, 0
        %v3519 = vsel %vm280, %v3503, 0
        %v3522 = vsel %vm280, %v3504, 0
        %v3525 = vsel %vm280, %v3505, 0
        %v3528 = vsel %vm280, %v3498, 0
        %3530 = vmatprep.subr.bf16.mxu0 %v3513
        %3531 = vmatpush1.bf16.msra.mxu0 %v3510
        %3532 = vmatprep.subr.bf16.mxu0 0
        %3533 = vmatpush1.bf16.msra.mxu0 0
        %3534 = vmatprep.subr.bf16.mxu0 0
        %3535 = vmatpush1.bf16.msra.mxu0 0
        %3536 = vmatprep.subr.bf16.mxu0 0
        %3537 = vmatpush1.bf16.msra.mxu0 0
        %3538 = vmatprep.subr.bf16.mxu0 0
        %3539 = vmatpush1.bf16.msra.mxu0 0
        %3540 = vmatprep.subr.bf16.mxu0 0
        %3541 = vmatpush1.bf16.msra.mxu0 0
        %3542 = vmatprep.subr.bf16.mxu0 0
        %3543 = vmatpush1.bf16.msra.mxu0 0
        %3544 = vmatprep.subr.bf16.mxu0 0
        %3545 = vmatpush1.bf16.msra.mxu0 0
        %3546 = vmatprep.subr.bf16.mxu0 0
        %3547 = vmatpush1.bf16.msra.mxu0 0
        %3548 = vmatprep.subr.bf16.mxu0 0
        %3549 = vmatpush1.bf16.msra.mxu0 0
        %3550 = vmatprep.subr.bf16.mxu0 0
        %3551 = vmatpush1.bf16.msra.mxu0 0
        %3552 = vmatprep.subr.bf16.mxu0 0
        %3553 = vmatpush1.bf16.msra.mxu0 0
        %3554 = vmatprep.subr.bf16.mxu0 0
        %3555 = vmatpush1.bf16.msra.mxu0 0
        %3556 = vmatprep.subr.bf16.mxu0 0
        %3557 = vmatpush1.bf16.msra.mxu0 0
        %3558 = vmatprep.subr.bf16.mxu0 0
        %3559 = vmatpush1.bf16.msra.mxu0 0
        %3560 = vmatprep.subr.bf16.mxu0 0
        %3561 = vmatpush1.bf16.msra.mxu0 0
        %3562 = vmatprep.mubr.bf16.mxu0 0
        %3563 = vmatmul.mubr.bf16.gmra.mrb[0].mxu0 %v3507
        %v3564 = vpop.f32.mrb[0].mxu0
        %v3565 = vadd.f32 0.0, %v3564
        %v3566 = vpop.f32.mrb[0].mxu0
        %v3567 = vadd.f32 0.0, %v3566
        %v3568 = vpop.f32.mrb[0].mxu0
        %v3569 = vpop.f32.mrb[0].mxu0
        %3570 = vdwg.mxu0
        %3571 = vmatprep.subr.bf16.mxu0 %v3519
        %3572 = vmatpush1.bf16.msra.mxu0 %v3516
        %3573 = vmatprep.subr.bf16.mxu0 0
        %3574 = vmatpush1.bf16.msra.mxu0 0
        %3575 = vmatprep.subr.bf16.mxu0 0
        %3576 = vmatpush1.bf16.msra.mxu0 0
        %3577 = vmatprep.subr.bf16.mxu0 0
        %3578 = vmatpush1.bf16.msra.mxu0 0
        %3579 = vmatprep.subr.bf16.mxu0 0
        %3580 = vmatpush1.bf16.msra.mxu0 0
        %3581 = vmatprep.subr.bf16.mxu0 0
        %3582 = vmatpush1.bf16.msra.mxu0 0
        %3583 = vmatprep.subr.bf16.mxu0 0
        %3584 = vmatpush1.bf16.msra.mxu0 0
        %3585 = vmatprep.subr.bf16.mxu0 0
        %3586 = vmatpush1.bf16.msra.mxu0 0
        %3587 = vmatprep.subr.bf16.mxu0 0
        %3588 = vmatpush1.bf16.msra.mxu0 0
        %3589 = vmatprep.subr.bf16.mxu0 0
        %3590 = vmatpush1.bf16.msra.mxu0 0
        %3591 = vmatprep.subr.bf16.mxu0 0
        %3592 = vmatpush1.bf16.msra.mxu0 0
        %3593 = vmatprep.subr.bf16.mxu0 0
        %3594 = vmatpush1.bf16.msra.mxu0 0
        %3595 = vmatprep.subr.bf16.mxu0 0
        %3596 = vmatpush1.bf16.msra.mxu0 0
        %3597 = vmatprep.subr.bf16.mxu0 0
        %3598 = vmatpush1.bf16.msra.mxu0 0
        %3599 = vmatprep.subr.bf16.mxu0 0
        %3600 = vmatpush1.bf16.msra.mxu0 0
        %3601 = vmatprep.subr.bf16.mxu0 0
        %3602 = vmatpush1.bf16.msra.mxu0 0
        %3603 = vmatprep.mubr.bf16.mxu0 0
        %3604 = vmatmul.mubr.bf16.gmra.mrb[0].mxu0 %v3507
        %v3605 = vpop.f32.mrb[0].mxu0
        %v3606 = vadd.f32 0.0, %v3605
        %v3607 = vpop.f32.mrb[0].mxu0
        %v3608 = vadd.f32 0.0, %v3607
        %v3609 = vpop.f32.mrb[0].mxu0
        %v3610 = vpop.f32.mrb[0].mxu0
        %3611 = vdwg.mxu0
        %3612 = vmatprep.subr.bf16.mxu0 %v3525
        %3613 = vmatpush1.bf16.msra.mxu0 %v3522
        %3614 = vmatprep.subr.bf16.mxu0 0
        %3615 = vmatpush1.bf16.msra.mxu0 0
        %3616 = vmatprep.subr.bf16.mxu0 0
        %3617 = vmatpush1.bf16.msra.mxu0 0
        %3618 = vmatprep.subr.bf16.mxu0 0
        %3619 = vmatpush1.bf16.msra.mxu0 0
        %3620 = vmatprep.subr.bf16.mxu0 0
        %3621 = vmatpush1.bf16.msra.mxu0 0
        %3622 = vmatprep.subr.bf16.mxu0 0
        %3623 = vmatpush1.bf16.msra.mxu0 0
        %3624 = vmatprep.subr.bf16.mxu0 0
        %3625 = vmatpush1.bf16.msra.mxu0 0
        %3626 = vmatprep.subr.bf16.mxu0 0
        %3627 = vmatpush1.bf16.msra.mxu0 0
        %3628 = vmatprep.subr.bf16.mxu0 0
        %3629 = vmatpush1.bf16.msra.mxu0 0
        %3630 = vmatprep.subr.bf16.mxu0 0
        %3631 = vmatpush1.bf16.msra.mxu0 0
        %3632 = vmatprep.subr.bf16.mxu0 0
        %3633 = vmatpush1.bf16.msra.mxu0 0
        %3634 = vmatprep.subr.bf16.mxu0 0
        %3635 = vmatpush1.bf16.msra.mxu0 0
        %3636 = vmatprep.subr.bf16.mxu0 0
        %3637 = vmatpush1.bf16.msra.mxu0 0
        %3638 = vmatprep.subr.bf16.mxu0 0
        %3639 = vmatpush1.bf16.msra.mxu0 0
        %3640 = vmatprep.subr.bf16.mxu0 0
        %3641 = vmatpush1.bf16.msra.mxu0 0
        %3642 = vmatprep.subr.bf16.mxu0 0
        %3643 = vmatpush1.bf16.msra.mxu0 0
        %3644 = vmatprep.mubr.bf16.mxu0 0
        %3645 = vmatmul.mubr.bf16.gmra.mrb[0].mxu0 %v3507
        %v3646 = vpop.f32.mrb[0].mxu0
        %v3647 = vadd.f32 0.0, %v3646
        %v3648 = vpop.f32.mrb[0].mxu0
        %v3649 = vadd.f32 0.0, %v3648
        %v3650 = vpop.f32.mrb[0].mxu0
        %v3651 = vpop.f32.mrb[0].mxu0
        %3652 = vdwg.mxu0
        %3653 = vmatprep.subr.bf16.mxu0 0
        %3654 = vmatpush1.bf16.msra.mxu0 %v3528
        %3655 = vmatprep.subr.bf16.mxu0 0
        %3656 = vmatpush1.bf16.msra.mxu0 0
        %3657 = vmatprep.subr.bf16.mxu0 0
        %3658 = vmatpush1.bf16.msra.mxu0 0
        %3659 = vmatprep.subr.bf16.mxu0 0
        %3660 = vmatpush1.bf16.msra.mxu0 0
        %3661 = vmatprep.subr.bf16.mxu0 0
        %3662 = vmatpush1.bf16.msra.mxu0 0
        %3663 = vmatprep.subr.bf16.mxu0 0
        %3664 = vmatpush1.bf16.msra.mxu0 0
        %3665 = vmatprep.subr.bf16.mxu0 0
        %3666 = vmatpush1.bf16.msra.mxu0 0
        %3667 = vmatprep.subr.bf16.mxu0 0
        %3668 = vmatpush1.bf16.msra.mxu0 0
        %3669 = vmatprep.subr.bf16.mxu0 0
        %3670 = vmatpush1.bf16.msra.mxu0 0
        %3671 = vmatprep.subr.bf16.mxu0 0
        %3672 = vmatpush1.bf16.msra.mxu0 0
        %3673 = vmatprep.subr.bf16.mxu0 0
        %3674 = vmatpush1.bf16.msra.mxu0 0
        %3675 = vmatprep.subr.bf16.mxu0 0
        %3676 = vmatpush1.bf16.msra.mxu0 0
        %3677 = vmatprep.subr.bf16.mxu0 0
        %3678 = vmatpush1.bf16.msra.mxu0 0
        %3679 = vmatprep.subr.bf16.mxu0 0
        %3680 = vmatpush1.bf16.msra.mxu0 0
        %3681 = vmatprep.subr.bf16.mxu0 0
        %3682 = vmatpush1.bf16.msra.mxu0 0
        %3683 = vmatprep.subr.bf16.mxu0 0
        %3684 = vmatpush1.bf16.msra.mxu0 0
        %3685 = vmatprep.mubr.bf16.mxu0 0
        %3686 = vmatmul.mubr.bf16.gmra.mrb[0].mxu0 %v3507
        %v3687 = vpop.f32.mrb[0].mxu0
        %v3688 = vadd.f32 0.0, %v3687
        %v3689 = vpop.f32.mrb[0].mxu0
        %v3690 = vpop.f32.mrb[0].mxu0
        %v3691 = vpop.f32.mrb[0].mxu0
        %3692 = vdwg.mxu0
        %v3693 = vadd.f32 %v3439, %v3565
        %v3694 = vadd.f32 %v3440, %v3567
        %v3695 = vadd.f32 %v3441, %v3606
        %v3696 = vadd.f32 %v3442, %v3608
        %v3697 = vadd.f32 %v3443, %v3647
        %v3698 = vadd.f32 %v3444, %v3649
        %v3699 = vadd.f32 %v3445, %v3688
        %s3700 = scalar_lea.vmem [#allocation5], 56
        %v3701 = vld [vmem:[%s3700] sm:$0xf]
        %v3702 = vld [vmem:[%s183] sm:$0xff]
        %v3703 = vld [vmem:[%s183 + $0x8] sm:$0x3f]
        %v3706 = vcombine.high %v3702, %v3702
        %v3708 = vunpack.c.l.s4 1983009808
        %v3709 = vunpack.c.0.s8 %v3708
        %v3710 = vlaneseq
        %v3711 = vshrl.u32 %v3710, 7
        %v3712 = vsub.s32 %v3709, %v3711
        %v3713 = vrot.slane %v3702, %v3712
        %v3715 = vunpack.c.l.s4 1983009808
        %v3716 = vunpack.c.0.s8 %v3715
        %v3717 = vlaneseq
        %v3718 = vshrl.u32 %v3717, 7
        %v3719 = vsub.s32 %v3716, %v3718
        %v3720 = vrot.slane %v3706, %v3719
        %v3721 = vcombine.high %v3713, %v3713
        %v3722 = vcombine.high %v3720, %v3720
        %v3723 = vcombine.high %v3703, %v3703
        %v3725 = vunpack.c.l.s4 1983009808
        %v3726 = vunpack.c.0.s8 %v3725
        %v3727 = vlaneseq
        %v3728 = vshrl.u32 %v3727, 7
        %v3729 = vsub.s32 %v3726, %v3728
        %v3730 = vrot.slane %v3703, %v3729
        %v3732 = vunpack.c.l.s4 1983009808
        %v3733 = vunpack.c.0.s8 %v3732
        %v3734 = vlaneseq
        %v3735 = vshrl.u32 %v3734, 7
        %v3736 = vsub.s32 %v3733, %v3735
        %v3737 = vrot.slane %v3723, %v3736
        %v3738 = vcombine.high %v3730, %v3730
        %3739 = vrot.lane.b32.xlu0 %v3713, 16
        %v3740 = vpop.permute.xlu0 %3739
        %3741 = vrot.lane.b32.xlu0 %v3721, 16
        %v3742 = vpop.permute.xlu0 %3741
        %3743 = vrot.lane.b32.xlu0 %v3720, 16
        %v3744 = vpop.permute.xlu0 %3743
        %3745 = vrot.lane.b32.xlu0 %v3722, 16
        %v3746 = vpop.permute.xlu0 %3745
        %3747 = vrot.lane.b32.xlu0 %v3730, 16
        %v3748 = vpop.permute.xlu0 %3747
        %3749 = vrot.lane.b32.xlu0 %v3738, 16
        %v3750 = vpop.permute.xlu0 %3749
        %3751 = vrot.lane.b32.xlu0 %v3737, 16
        %v3752 = vpop.permute.xlu0 %3751
        %vm3753 = vcmask 130048
        %v3754 = vsel %vm3753, %v3740, %v3742
        %v3755 = vsel %vm3753, %v3742, %v3744
        %v3756 = vsel %vm3753, %v3744, %v3746
        %v3757 = vsel %vm3753, %v3746, %v3748
        %v3758 = vsel %vm3753, %v3748, %v3750
        %v3759 = vsel %vm3753, %v3750, %v3752
        %v3761 = vsel %vm276, %v3701, 0
        %v3764 = vsel %vm280, %v3754, 0
        %v3767 = vsel %vm280, %v3755, 0
        %v3770 = vsel %vm280, %v3756, 0
        %v3773 = vsel %vm280, %v3757, 0
        %v3776 = vsel %vm280, %v3758, 0
        %v3779 = vsel %vm280, %v3759, 0
        %v3782 = vsel %vm280, %v3752, 0
        %3784 = vmatprep.subr.bf16.mxu0 %v3767
        %3785 = vmatpush1.bf16.msra.mxu0 %v3764
        %3786 = vmatprep.subr.bf16.mxu0 0
        %3787 = vmatpush1.bf16.msra.mxu0 0
        %3788 = vmatprep.subr.bf16.mxu0 0
        %3789 = vmatpush1.bf16.msra.mxu0 0
        %3790 = vmatprep.subr.bf16.mxu0 0
        %3791 = vmatpush1.bf16.msra.mxu0 0
        %3792 = vmatprep.subr.bf16.mxu0 0
        %3793 = vmatpush1.bf16.msra.mxu0 0
        %3794 = vmatprep.subr.bf16.mxu0 0
        %3795 = vmatpush1.bf16.msra.mxu0 0
        %3796 = vmatprep.subr.bf16.mxu0 0
        %3797 = vmatpush1.bf16.msra.mxu0 0
        %3798 = vmatprep.subr.bf16.mxu0 0
        %3799 = vmatpush1.bf16.msra.mxu0 0
        %3800 = vmatprep.subr.bf16.mxu0 0
        %3801 = vmatpush1.bf16.msra.mxu0 0
        %3802 = vmatprep.subr.bf16.mxu0 0
        %3803 = vmatpush1.bf16.msra.mxu0 0
        %3804 = vmatprep.subr.bf16.mxu0 0
        %3805 = vmatpush1.bf16.msra.mxu0 0
        %3806 = vmatprep.subr.bf16.mxu0 0
        %3807 = vmatpush1.bf16.msra.mxu0 0
        %3808 = vmatprep.subr.bf16.mxu0 0
        %3809 = vmatpush1.bf16.msra.mxu0 0
        %3810 = vmatprep.subr.bf16.mxu0 0
        %3811 = vmatpush1.bf16.msra.mxu0 0
        %3812 = vmatprep.subr.bf16.mxu0 0
        %3813 = vmatpush1.bf16.msra.mxu0 0
        %3814 = vmatprep.subr.bf16.mxu0 0
        %3815 = vmatpush1.bf16.msra.mxu0 0
        %3816 = vmatprep.mubr.bf16.mxu0 0
        %3817 = vmatmul.mubr.bf16.gmra.mrb[0].mxu0 %v3761
        %v3818 = vpop.f32.mrb[0].mxu0
        %v3819 = vadd.f32 0.0, %v3818
        %v3820 = vpop.f32.mrb[0].mxu0
        %v3821 = vadd.f32 0.0, %v3820
        %v3822 = vpop.f32.mrb[0].mxu0
        %v3823 = vpop.f32.mrb[0].mxu0
        %3824 = vdwg.mxu0
        %3825 = vmatprep.subr.bf16.mxu0 %v3773
        %3826 = vmatpush1.bf16.msra.mxu0 %v3770
        %3827 = vmatprep.subr.bf16.mxu0 0
        %3828 = vmatpush1.bf16.msra.mxu0 0
        %3829 = vmatprep.subr.bf16.mxu0 0
        %3830 = vmatpush1.bf16.msra.mxu0 0
        %3831 = vmatprep.subr.bf16.mxu0 0
        %3832 = vmatpush1.bf16.msra.mxu0 0
        %3833 = vmatprep.subr.bf16.mxu0 0
        %3834 = vmatpush1.bf16.msra.mxu0 0
        %3835 = vmatprep.subr.bf16.mxu0 0
        %3836 = vmatpush1.bf16.msra.mxu0 0
        %3837 = vmatprep.subr.bf16.mxu0 0
        %3838 = vmatpush1.bf16.msra.mxu0 0
        %3839 = vmatprep.subr.bf16.mxu0 0
        %3840 = vmatpush1.bf16.msra.mxu0 0
        %3841 = vmatprep.subr.bf16.mxu0 0
        %3842 = vmatpush1.bf16.msra.mxu0 0
        %3843 = vmatprep.subr.bf16.mxu0 0
        %3844 = vmatpush1.bf16.msra.mxu0 0
        %3845 = vmatprep.subr.bf16.mxu0 0
        %3846 = vmatpush1.bf16.msra.mxu0 0
        %3847 = vmatprep.subr.bf16.mxu0 0
        %3848 = vmatpush1.bf16.msra.mxu0 0
        %3849 = vmatprep.subr.bf16.mxu0 0
        %3850 = vmatpush1.bf16.msra.mxu0 0
        %3851 = vmatprep.subr.bf16.mxu0 0
        %3852 = vmatpush1.bf16.msra.mxu0 0
        %3853 = vmatprep.subr.bf16.mxu0 0
        %3854 = vmatpush1.bf16.msra.mxu0 0
        %3855 = vmatprep.subr.bf16.mxu0 0
        %3856 = vmatpush1.bf16.msra.mxu0 0
        %3857 = vmatprep.mubr.bf16.mxu0 0
        %3858 = vmatmul.mubr.bf16.gmra.mrb[0].mxu0 %v3761
        %v3859 = vpop.f32.mrb[0].mxu0
        %v3860 = vadd.f32 0.0, %v3859
        %v3861 = vpop.f32.mrb[0].mxu0
        %v3862 = vadd.f32 0.0, %v3861
        %v3863 = vpop.f32.mrb[0].mxu0
        %v3864 = vpop.f32.mrb[0].mxu0
        %3865 = vdwg.mxu0
        %3866 = vmatprep.subr.bf16.mxu0 %v3779
        %3867 = vmatpush1.bf16.msra.mxu0 %v3776
        %3868 = vmatprep.subr.bf16.mxu0 0
        %3869 = vmatpush1.bf16.msra.mxu0 0
        %3870 = vmatprep.subr.bf16.mxu0 0
        %3871 = vmatpush1.bf16.msra.mxu0 0
        %3872 = vmatprep.subr.bf16.mxu0 0
        %3873 = vmatpush1.bf16.msra.mxu0 0
        %3874 = vmatprep.subr.bf16.mxu0 0
        %3875 = vmatpush1.bf16.msra.mxu0 0
        %3876 = vmatprep.subr.bf16.mxu0 0
        %3877 = vmatpush1.bf16.msra.mxu0 0
        %3878 = vmatprep.subr.bf16.mxu0 0
        %3879 = vmatpush1.bf16.msra.mxu0 0
        %3880 = vmatprep.subr.bf16.mxu0 0
        %3881 = vmatpush1.bf16.msra.mxu0 0
        %3882 = vmatprep.subr.bf16.mxu0 0
        %3883 = vmatpush1.bf16.msra.mxu0 0
        %3884 = vmatprep.subr.bf16.mxu0 0
        %3885 = vmatpush1.bf16.msra.mxu0 0
        %3886 = vmatprep.subr.bf16.mxu0 0
        %3887 = vmatpush1.bf16.msra.mxu0 0
        %3888 = vmatprep.subr.bf16.mxu0 0
        %3889 = vmatpush1.bf16.msra.mxu0 0
        %3890 = vmatprep.subr.bf16.mxu0 0
        %3891 = vmatpush1.bf16.msra.mxu0 0
        %3892 = vmatprep.subr.bf16.mxu0 0
        %3893 = vmatpush1.bf16.msra.mxu0 0
        %3894 = vmatprep.subr.bf16.mxu0 0
        %3895 = vmatpush1.bf16.msra.mxu0 0
        %3896 = vmatprep.subr.bf16.mxu0 0
        %3897 = vmatpush1.bf16.msra.mxu0 0
        %3898 = vmatprep.mubr.bf16.mxu0 0
        %3899 = vmatmul.mubr.bf16.gmra.mrb[0].mxu0 %v3761
        %v3900 = vpop.f32.mrb[0].mxu0
        %v3901 = vadd.f32 0.0, %v3900
        %v3902 = vpop.f32.mrb[0].mxu0
        %v3903 = vadd.f32 0.0, %v3902
        %v3904 = vpop.f32.mrb[0].mxu0
        %v3905 = vpop.f32.mrb[0].mxu0
        %3906 = vdwg.mxu0
        %3907 = vmatprep.subr.bf16.mxu0 0
        %3908 = vmatpush1.bf16.msra.mxu0 %v3782
        %3909 = vmatprep.subr.bf16.mxu0 0
        %3910 = vmatpush1.bf16.msra.mxu0 0
        %3911 = vmatprep.subr.bf16.mxu0 0
        %3912 = vmatpush1.bf16.msra.mxu0 0
        %3913 = vmatprep.subr.bf16.mxu0 0
        %3914 = vmatpush1.bf16.msra.mxu0 0
        %3915 = vmatprep.subr.bf16.mxu0 0
        %3916 = vmatpush1.bf16.msra.mxu0 0
        %3917 = vmatprep.subr.bf16.mxu0 0
        %3918 = vmatpush1.bf16.msra.mxu0 0
        %3919 = vmatprep.subr.bf16.mxu0 0
        %3920 = vmatpush1.bf16.msra.mxu0 0
        %3921 = vmatprep.subr.bf16.mxu0 0
        %3922 = vmatpush1.bf16.msra.mxu0 0
        %3923 = vmatprep.subr.bf16.mxu0 0
        %3924 = vmatpush1.bf16.msra.mxu0 0
        %3925 = vmatprep.subr.bf16.mxu0 0
        %3926 = vmatpush1.bf16.msra.mxu0 0
        %3927 = vmatprep.subr.bf16.mxu0 0
        %3928 = vmatpush1.bf16.msra.mxu0 0
        %3929 = vmatprep.subr.bf16.mxu0 0
        %3930 = vmatpush1.bf16.msra.mxu0 0
        %3931 = vmatprep.subr.bf16.mxu0 0
        %3932 = vmatpush1.bf16.msra.mxu0 0
        %3933 = vmatprep.subr.bf16.mxu0 0
        %3934 = vmatpush1.bf16.msra.mxu0 0
        %3935 = vmatprep.subr.bf16.mxu0 0
        %3936 = vmatpush1.bf16.msra.mxu0 0
        %3937 = vmatprep.subr.bf16.mxu0 0
        %3938 = vmatpush1.bf16.msra.mxu0 0
        %3939 = vmatprep.mubr.bf16.mxu0 0
        %3940 = vmatmul.mubr.bf16.gmra.mrb[0].mxu0 %v3761
        %v3941 = vpop.f32.mrb[0].mxu0
        %v3942 = vadd.f32 0.0, %v3941
        %v3943 = vpop.f32.mrb[0].mxu0
        %v3944 = vpop.f32.mrb[0].mxu0
        %v3945 = vpop.f32.mrb[0].mxu0
        %3946 = vdwg.mxu0
        %v3947 = vadd.f32 %v3693, %v3819
        %v3948 = vadd.f32 %v3694, %v3821
        %v3949 = vadd.f32 %v3695, %v3860
        %v3950 = vadd.f32 %v3696, %v3862
        %v3951 = vadd.f32 %v3697, %v3901
        %v3952 = vadd.f32 %v3698, %v3903
        %v3953 = vadd.f32 %v3699, %v3942
        %s3954 = scalar_lea.vmem [#allocation5], 60
        %v3955 = vld [vmem:[%s3954] sm:$0xf]
        %v3956 = vld [vmem:[%s183] sm:$0xff]
        %v3957 = vld [vmem:[%s183 + $0x8] sm:$0xff]
        %v3960 = vcombine.high %v3956, %v3956
        %v3962 = vunpack.c.l.s4 1983009808
        %v3963 = vunpack.c.0.s8 %v3962
        %v3964 = vlaneseq
        %v3965 = vshrl.u32 %v3964, 7
        %v3966 = vsub.s32 %v3963, %v3965
        %v3967 = vrot.slane %v3956, %v3966
        %v3969 = vunpack.c.l.s4 1983009808
        %v3970 = vunpack.c.0.s8 %v3969
        %v3971 = vlaneseq
        %v3972 = vshrl.u32 %v3971, 7
        %v3973 = vsub.s32 %v3970, %v3972
        %v3974 = vrot.slane %v3960, %v3973
        %v3975 = vcombine.high %v3967, %v3967
        %v3976 = vcombine.high %v3974, %v3974
        %v3977 = vcombine.high %v3957, %v3957
        %v3979 = vunpack.c.l.s4 1983009808
        %v3980 = vunpack.c.0.s8 %v3979
        %v3981 = vlaneseq
        %v3982 = vshrl.u32 %v3981, 7
        %v3983 = vsub.s32 %v3980, %v3982
        %v3984 = vrot.slane %v3957, %v3983
        %v3986 = vunpack.c.l.s4 1983009808
        %v3987 = vunpack.c.0.s8 %v3986
        %v3988 = vlaneseq
        %v3989 = vshrl.u32 %v3988, 7
        %v3990 = vsub.s32 %v3987, %v3989
        %v3991 = vrot.slane %v3977, %v3990
        %v3992 = vcombine.high %v3984, %v3984
        %v3993 = vcombine.high %v3991, %v3991
        %3994 = vrot.lane.b32.xlu0 %v3967, 8
        %v3995 = vpop.permute.xlu0 %3994
        %3996 = vrot.lane.b32.xlu0 %v3975, 8
        %v3997 = vpop.permute.xlu0 %3996
        %3998 = vrot.lane.b32.xlu0 %v3974, 8
        %v3999 = vpop.permute.xlu0 %3998
        %4000 = vrot.lane.b32.xlu0 %v3976, 8
        %v4001 = vpop.permute.xlu0 %4000
        %4002 = vrot.lane.b32.xlu0 %v3984, 8
        %v4003 = vpop.permute.xlu0 %4002
        %4004 = vrot.lane.b32.xlu0 %v3992, 8
        %v4005 = vpop.permute.xlu0 %4004
        %4006 = vrot.lane.b32.xlu0 %v3991, 8
        %v4007 = vpop.permute.xlu0 %4006
        %4008 = vrot.lane.b32.xlu0 %v3993, 8
        %v4009 = vpop.permute.xlu0 %4008
        %vm4010 = vcmask 64512
        %v4011 = vsel %vm4010, %v3995, %v3997
        %v4012 = vsel %vm4010, %v3997, %v3999
        %v4013 = vsel %vm4010, %v3999, %v4001
        %v4014 = vsel %vm4010, %v4001, %v4003
        %v4015 = vsel %vm4010, %v4003, %v4005
        %v4016 = vsel %vm4010, %v4005, %v4007
        %v4017 = vsel %vm4010, %v4007, %v4009
        %v4019 = vsel %vm276, %v3955, 0
        %v4022 = vsel %vm280, %v4011, 0
        %v4025 = vsel %vm280, %v4012, 0
        %v4028 = vsel %vm280, %v4013, 0
        %v4031 = vsel %vm280, %v4014, 0
        %v4034 = vsel %vm280, %v4015, 0
        %v4037 = vsel %vm280, %v4016, 0
        %v4040 = vsel %vm280, %v4017, 0
        %4042 = vmatprep.subr.bf16.mxu0 %v4025
        %4043 = vmatpush1.bf16.msra.mxu0 %v4022
        %4044 = vmatprep.subr.bf16.mxu0 0
        %4045 = vmatpush1.bf16.msra.mxu0 0
        %4046 = vmatprep.subr.bf16.mxu0 0
        %4047 = vmatpush1.bf16.msra.mxu0 0
        %4048 = vmatprep.subr.bf16.mxu0 0
        %4049 = vmatpush1.bf16.msra.mxu0 0
        %4050 = vmatprep.subr.bf16.mxu0 0
        %4051 = vmatpush1.bf16.msra.mxu0 0
        %4052 = vmatprep.subr.bf16.mxu0 0
        %4053 = vmatpush1.bf16.msra.mxu0 0
        %4054 = vmatprep.subr.bf16.mxu0 0
        %4055 = vmatpush1.bf16.msra.mxu0 0
        %4056 = vmatprep.subr.bf16.mxu0 0
        %4057 = vmatpush1.bf16.msra.mxu0 0
        %4058 = vmatprep.subr.bf16.mxu0 0
        %4059 = vmatpush1.bf16.msra.mxu0 0
        %4060 = vmatprep.subr.bf16.mxu0 0
        %4061 = vmatpush1.bf16.msra.mxu0 0
        %4062 = vmatprep.subr.bf16.mxu0 0
        %4063 = vmatpush1.bf16.msra.mxu0 0
        %4064 = vmatprep.subr.bf16.mxu0 0
        %4065 = vmatpush1.bf16.msra.mxu0 0
        %4066 = vmatprep.subr.bf16.mxu0 0
        %4067 = vmatpush1.bf16.msra.mxu0 0
        %4068 = vmatprep.subr.bf16.mxu0 0
        %4069 = vmatpush1.bf16.msra.mxu0 0
        %4070 = vmatprep.subr.bf16.mxu0 0
        %4071 = vmatpush1.bf16.msra.mxu0 0
        %4072 = vmatprep.subr.bf16.mxu0 0
        %4073 = vmatpush1.bf16.msra.mxu0 0
        %4074 = vmatprep.mubr.bf16.mxu0 0
        %4075 = vmatmul.mubr.bf16.gmra.mrb[0].mxu0 %v4019
        %v4076 = vpop.f32.mrb[0].mxu0
        %v4077 = vadd.f32 0.0, %v4076
        %v4078 = vpop.f32.mrb[0].mxu0
        %v4079 = vadd.f32 0.0, %v4078
        %v4080 = vpop.f32.mrb[0].mxu0
        %v4081 = vpop.f32.mrb[0].mxu0
        %4082 = vdwg.mxu0
        %4083 = vmatprep.subr.bf16.mxu0 %v4031
        %4084 = vmatpush1.bf16.msra.mxu0 %v4028
        %4085 = vmatprep.subr.bf16.mxu0 0
        %4086 = vmatpush1.bf16.msra.mxu0 0
        %4087 = vmatprep.subr.bf16.mxu0 0
        %4088 = vmatpush1.bf16.msra.mxu0 0
        %4089 = vmatprep.subr.bf16.mxu0 0
        %4090 = vmatpush1.bf16.msra.mxu0 0
        %4091 = vmatprep.subr.bf16.mxu0 0
        %4092 = vmatpush1.bf16.msra.mxu0 0
        %4093 = vmatprep.subr.bf16.mxu0 0
        %4094 = vmatpush1.bf16.msra.mxu0 0
        %4095 = vmatprep.subr.bf16.mxu0 0
        %4096 = vmatpush1.bf16.msra.mxu0 0
        %4097 = vmatprep.subr.bf16.mxu0 0
        %4098 = vmatpush1.bf16.msra.mxu0 0
        %4099 = vmatprep.subr.bf16.mxu0 0
        %4100 = vmatpush1.bf16.msra.mxu0 0
        %4101 = vmatprep.subr.bf16.mxu0 0
        %4102 = vmatpush1.bf16.msra.mxu0 0
        %4103 = vmatprep.subr.bf16.mxu0 0
        %4104 = vmatpush1.bf16.msra.mxu0 0
        %4105 = vmatprep.subr.bf16.mxu0 0
        %4106 = vmatpush1.bf16.msra.mxu0 0
        %4107 = vmatprep.subr.bf16.mxu0 0
        %4108 = vmatpush1.bf16.msra.mxu0 0
        %4109 = vmatprep.subr.bf16.mxu0 0
        %4110 = vmatpush1.bf16.msra.mxu0 0
        %4111 = vmatprep.subr.bf16.mxu0 0
        %4112 = vmatpush1.bf16.msra.mxu0 0
        %4113 = vmatprep.subr.bf16.mxu0 0
        %4114 = vmatpush1.bf16.msra.mxu0 0
        %4115 = vmatprep.mubr.bf16.mxu0 0
        %4116 = vmatmul.mubr.bf16.gmra.mrb[0].mxu0 %v4019
        %v4117 = vpop.f32.mrb[0].mxu0
        %v4118 = vadd.f32 0.0, %v4117
        %v4119 = vpop.f32.mrb[0].mxu0
        %v4120 = vadd.f32 0.0, %v4119
        %v4121 = vpop.f32.mrb[0].mxu0
        %v4122 = vpop.f32.mrb[0].mxu0
        %4123 = vdwg.mxu0
        %4124 = vmatprep.subr.bf16.mxu0 %v4037
        %4125 = vmatpush1.bf16.msra.mxu0 %v4034
        %4126 = vmatprep.subr.bf16.mxu0 0
        %4127 = vmatpush1.bf16.msra.mxu0 0
        %4128 = vmatprep.subr.bf16.mxu0 0
        %4129 = vmatpush1.bf16.msra.mxu0 0
        %4130 = vmatprep.subr.bf16.mxu0 0
        %4131 = vmatpush1.bf16.msra.mxu0 0
        %4132 = vmatprep.subr.bf16.mxu0 0
        %4133 = vmatpush1.bf16.msra.mxu0 0
        %4134 = vmatprep.subr.bf16.mxu0 0
        %4135 = vmatpush1.bf16.msra.mxu0 0
        %4136 = vmatprep.subr.bf16.mxu0 0
        %4137 = vmatpush1.bf16.msra.mxu0 0
        %4138 = vmatprep.subr.bf16.mxu0 0
        %4139 = vmatpush1.bf16.msra.mxu0 0
        %4140 = vmatprep.subr.bf16.mxu0 0
        %4141 = vmatpush1.bf16.msra.mxu0 0
        %4142 = vmatprep.subr.bf16.mxu0 0
        %4143 = vmatpush1.bf16.msra.mxu0 0
        %4144 = vmatprep.subr.bf16.mxu0 0
        %4145 = vmatpush1.bf16.msra.mxu0 0
        %4146 = vmatprep.subr.bf16.mxu0 0
        %4147 = vmatpush1.bf16.msra.mxu0 0
        %4148 = vmatprep.subr.bf16.mxu0 0
        %4149 = vmatpush1.bf16.msra.mxu0 0
        %4150 = vmatprep.subr.bf16.mxu0 0
        %4151 = vmatpush1.bf16.msra.mxu0 0
        %4152 = vmatprep.subr.bf16.mxu0 0
        %4153 = vmatpush1.bf16.msra.mxu0 0
        %4154 = vmatprep.subr.bf16.mxu0 0
        %4155 = vmatpush1.bf16.msra.mxu0 0
        %4156 = vmatprep.mubr.bf16.mxu0 0
        %4157 = vmatmul.mubr.bf16.gmra.mrb[0].mxu0 %v4019
        %v4158 = vpop.f32.mrb[0].mxu0
        %v4159 = vadd.f32 0.0, %v4158
        %v4160 = vpop.f32.mrb[0].mxu0
        %v4161 = vadd.f32 0.0, %v4160
        %v4162 = vpop.f32.mrb[0].mxu0
        %v4163 = vpop.f32.mrb[0].mxu0
        %4164 = vdwg.mxu0
        %4165 = vmatprep.subr.bf16.mxu0 0
        %4166 = vmatpush1.bf16.msra.mxu0 %v4040
        %4167 = vmatprep.subr.bf16.mxu0 0
        %4168 = vmatpush1.bf16.msra.mxu0 0
        %4169 = vmatprep.subr.bf16.mxu0 0
        %4170 = vmatpush1.bf16.msra.mxu0 0
        %4171 = vmatprep.subr.bf16.mxu0 0
        %4172 = vmatpush1.bf16.msra.mxu0 0
        %4173 = vmatprep.subr.bf16.mxu0 0
        %4174 = vmatpush1.bf16.msra.mxu0 0
        %4175 = vmatprep.subr.bf16.mxu0 0
        %4176 = vmatpush1.bf16.msra.mxu0 0
        %4177 = vmatprep.subr.bf16.mxu0 0
        %4178 = vmatpush1.bf16.msra.mxu0 0
        %4179 = vmatprep.subr.bf16.mxu0 0
        %4180 = vmatpush1.bf16.msra.mxu0 0
        %4181 = vmatprep.subr.bf16.mxu0 0
        %4182 = vmatpush1.bf16.msra.mxu0 0
        %4183 = vmatprep.subr.bf16.mxu0 0
        %4184 = vmatpush1.bf16.msra.mxu0 0
        %4185 = vmatprep.subr.bf16.mxu0 0
        %4186 = vmatpush1.bf16.msra.mxu0 0
        %4187 = vmatprep.subr.bf16.mxu0 0
        %4188 = vmatpush1.bf16.msra.mxu0 0
        %4189 = vmatprep.subr.bf16.mxu0 0
        %4190 = vmatpush1.bf16.msra.mxu0 0
        %4191 = vmatprep.subr.bf16.mxu0 0
        %4192 = vmatpush1.bf16.msra.mxu0 0
        %4193 = vmatprep.subr.bf16.mxu0 0
        %4194 = vmatpush1.bf16.msra.mxu0 0
        %4195 = vmatprep.subr.bf16.mxu0 0
        %4196 = vmatpush1.bf16.msra.mxu0 0
        %4197 = vmatprep.mubr.bf16.mxu0 0
        %4198 = vmatmul.mubr.bf16.gmra.mrb[0].mxu0 %v4019
        %v4199 = vpop.f32.mrb[0].mxu0
        %v4200 = vadd.f32 0.0, %v4199
        %v4201 = vpop.f32.mrb[0].mxu0
        %v4202 = vpop.f32.mrb[0].mxu0
        %v4203 = vpop.f32.mrb[0].mxu0
        %4204 = vdwg.mxu0
        %v4205 = vadd.f32 %v3947, %v4077
        %v4206 = vadd.f32 %v3948, %v4079
        %v4207 = vadd.f32 %v3949, %v4118
        %v4208 = vadd.f32 %v3950, %v4120
        %v4209 = vadd.f32 %v3951, %v4159
        %v4210 = vadd.f32 %v3952, %v4161
        %v4211 = vadd.f32 %v3953, %v4200
        %s4212 = scalar_lea.vmem [#allocation5], 64
        %v4213 = vld [vmem:[%s4212] sm:$0xf]
        %v4214 = vld [vmem:[%s183] sm:$0xff]
        %v4215 = vld [vmem:[%s183 + $0x8] sm:$0xff]
        %v4218 = vcombine.high %v4214, %v4214
        %v4220 = vunpack.c.l.s4 1983009808
        %v4221 = vunpack.c.0.s8 %v4220
        %v4222 = vlaneseq
        %v4223 = vshrl.u32 %v4222, 7
        %v4224 = vsub.s32 %v4221, %v4223
        %v4225 = vrot.slane %v4214, %v4224
        %v4227 = vunpack.c.l.s4 1983009808
        %v4228 = vunpack.c.0.s8 %v4227
        %v4229 = vlaneseq
        %v4230 = vshrl.u32 %v4229, 7
        %v4231 = vsub.s32 %v4228, %v4230
        %v4232 = vrot.slane %v4218, %v4231
        %v4233 = vcombine.high %v4225, %v4225
        %v4234 = vcombine.high %v4232, %v4232
        %v4235 = vcombine.high %v4215, %v4215
        %v4237 = vunpack.c.l.s4 1983009808
        %v4238 = vunpack.c.0.s8 %v4237
        %v4239 = vlaneseq
        %v4240 = vshrl.u32 %v4239, 7
        %v4241 = vsub.s32 %v4238, %v4240
        %v4242 = vrot.slane %v4215, %v4241
        %v4244 = vunpack.c.l.s4 1983009808
        %v4245 = vunpack.c.0.s8 %v4244
        %v4246 = vlaneseq
        %v4247 = vshrl.u32 %v4246, 7
        %v4248 = vsub.s32 %v4245, %v4247
        %v4249 = vrot.slane %v4235, %v4248
        %v4250 = vcombine.high %v4242, %v4242
        %v4251 = vcombine.high %v4249, %v4249
        %4252 = vrot.lane.b32.xlu0 %v4225, 7
        %v4253 = vpop.permute.xlu0 %4252
        %4254 = vrot.lane.b32.xlu0 %v4233, 7
        %v4255 = vpop.permute.xlu0 %4254
        %4256 = vrot.lane.b32.xlu0 %v4232, 7
        %v4257 = vpop.permute.xlu0 %4256
        %4258 = vrot.lane.b32.xlu0 %v4234, 7
        %v4259 = vpop.permute.xlu0 %4258
        %4260 = vrot.lane.b32.xlu0 %v4242, 7
        %v4261 = vpop.permute.xlu0 %4260
        %4262 = vrot.lane.b32.xlu0 %v4250, 7
        %v4263 = vpop.permute.xlu0 %4262
        %4264 = vrot.lane.b32.xlu0 %v4249, 7
        %v4265 = vpop.permute.xlu0 %4264
        %4266 = vrot.lane.b32.xlu0 %v4251, 7
        %v4267 = vpop.permute.xlu0 %4266
        %vm4268 = vcmask 56320
        %v4269 = vsel %vm4268, %v4253, %v4255
        %v4270 = vsel %vm4268, %v4255, %v4257
        %v4271 = vsel %vm4268, %v4257, %v4259
        %v4272 = vsel %vm4268, %v4259, %v4261
        %v4273 = vsel %vm4268, %v4261, %v4263
        %v4274 = vsel %vm4268, %v4263, %v4265
        %v4275 = vsel %vm4268, %v4265, %v4267
        %v4277 = vsel %vm276, %v4213, 0
        %v4280 = vsel %vm280, %v4269, 0
        %v4283 = vsel %vm280, %v4270, 0
        %v4286 = vsel %vm280, %v4271, 0
        %v4289 = vsel %vm280, %v4272, 0
        %v4292 = vsel %vm280, %v4273, 0
        %v4295 = vsel %vm280, %v4274, 0
        %v4298 = vsel %vm280, %v4275, 0
        %4300 = vmatprep.subr.bf16.mxu0 %v4283
        %4301 = vmatpush1.bf16.msra.mxu0 %v4280
        %4302 = vmatprep.subr.bf16.mxu0 0
        %4303 = vmatpush1.bf16.msra.mxu0 0
        %4304 = vmatprep.subr.bf16.mxu0 0
        %4305 = vmatpush1.bf16.msra.mxu0 0
        %4306 = vmatprep.subr.bf16.mxu0 0
        %4307 = vmatpush1.bf16.msra.mxu0 0
        %4308 = vmatprep.subr.bf16.mxu0 0
        %4309 = vmatpush1.bf16.msra.mxu0 0
        %4310 = vmatprep.subr.bf16.mxu0 0
        %4311 = vmatpush1.bf16.msra.mxu0 0
        %4312 = vmatprep.subr.bf16.mxu0 0
        %4313 = vmatpush1.bf16.msra.mxu0 0
        %4314 = vmatprep.subr.bf16.mxu0 0
        %4315 = vmatpush1.bf16.msra.mxu0 0
        %4316 = vmatprep.subr.bf16.mxu0 0
        %4317 = vmatpush1.bf16.msra.mxu0 0
        %4318 = vmatprep.subr.bf16.mxu0 0
        %4319 = vmatpush1.bf16.msra.mxu0 0
        %4320 = vmatprep.subr.bf16.mxu0 0
        %4321 = vmatpush1.bf16.msra.mxu0 0
        %4322 = vmatprep.subr.bf16.mxu0 0
        %4323 = vmatpush1.bf16.msra.mxu0 0
        %4324 = vmatprep.subr.bf16.mxu0 0
        %4325 = vmatpush1.bf16.msra.mxu0 0
        %4326 = vmatprep.subr.bf16.mxu0 0
        %4327 = vmatpush1.bf16.msra.mxu0 0
        %4328 = vmatprep.subr.bf16.mxu0 0
        %4329 = vmatpush1.bf16.msra.mxu0 0
        %4330 = vmatprep.subr.bf16.mxu0 0
        %4331 = vmatpush1.bf16.msra.mxu0 0
        %4332 = vmatprep.mubr.bf16.mxu0 0
        %4333 = vmatmul.mubr.bf16.gmra.mrb[0].mxu0 %v4277
        %v4334 = vpop.f32.mrb[0].mxu0
        %v4335 = vadd.f32 0.0, %v4334
        %v4336 = vpop.f32.mrb[0].mxu0
        %v4337 = vadd.f32 0.0, %v4336
        %v4338 = vpop.f32.mrb[0].mxu0
        %v4339 = vpop.f32.mrb[0].mxu0
        %4340 = vdwg.mxu0
        %4341 = vmatprep.subr.bf16.mxu0 %v4289
        %4342 = vmatpush1.bf16.msra.mxu0 %v4286
        %4343 = vmatprep.subr.bf16.mxu0 0
        %4344 = vmatpush1.bf16.msra.mxu0 0
        %4345 = vmatprep.subr.bf16.mxu0 0
        %4346 = vmatpush1.bf16.msra.mxu0 0
        %4347 = vmatprep.subr.bf16.mxu0 0
        %4348 = vmatpush1.bf16.msra.mxu0 0
        %4349 = vmatprep.subr.bf16.mxu0 0
        %4350 = vmatpush1.bf16.msra.mxu0 0
        %4351 = vmatprep.subr.bf16.mxu0 0
        %4352 = vmatpush1.bf16.msra.mxu0 0
        %4353 = vmatprep.subr.bf16.mxu0 0
        %4354 = vmatpush1.bf16.msra.mxu0 0
        %4355 = vmatprep.subr.bf16.mxu0 0
        %4356 = vmatpush1.bf16.msra.mxu0 0
        %4357 = vmatprep.subr.bf16.mxu0 0
        %4358 = vmatpush1.bf16.msra.mxu0 0
        %4359 = vmatprep.subr.bf16.mxu0 0
        %4360 = vmatpush1.bf16.msra.mxu0 0
        %4361 = vmatprep.subr.bf16.mxu0 0
        %4362 = vmatpush1.bf16.msra.mxu0 0
        %4363 = vmatprep.subr.bf16.mxu0 0
        %4364 = vmatpush1.bf16.msra.mxu0 0
        %4365 = vmatprep.subr.bf16.mxu0 0
        %4366 = vmatpush1.bf16.msra.mxu0 0
        %4367 = vmatprep.subr.bf16.mxu0 0
        %4368 = vmatpush1.bf16.msra.mxu0 0
        %4369 = vmatprep.subr.bf16.mxu0 0
        %4370 = vmatpush1.bf16.msra.mxu0 0
        %4371 = vmatprep.subr.bf16.mxu0 0
        %4372 = vmatpush1.bf16.msra.mxu0 0
        %4373 = vmatprep.mubr.bf16.mxu0 0
        %4374 = vmatmul.mubr.bf16.gmra.mrb[0].mxu0 %v4277
        %v4375 = vpop.f32.mrb[0].mxu0
        %v4376 = vadd.f32 0.0, %v4375
        %v4377 = vpop.f32.mrb[0].mxu0
        %v4378 = vadd.f32 0.0, %v4377
        %v4379 = vpop.f32.mrb[0].mxu0
        %v4380 = vpop.f32.mrb[0].mxu0
        %4381 = vdwg.mxu0
        %4382 = vmatprep.subr.bf16.mxu0 %v4295
        %4383 = vmatpush1.bf16.msra.mxu0 %v4292
        %4384 = vmatprep.subr.bf16.mxu0 0
        %4385 = vmatpush1.bf16.msra.mxu0 0
        %4386 = vmatprep.subr.bf16.mxu0 0
        %4387 = vmatpush1.bf16.msra.mxu0 0
        %4388 = vmatprep.subr.bf16.mxu0 0
        %4389 = vmatpush1.bf16.msra.mxu0 0
        %4390 = vmatprep.subr.bf16.mxu0 0
        %4391 = vmatpush1.bf16.msra.mxu0 0
        %4392 = vmatprep.subr.bf16.mxu0 0
        %4393 = vmatpush1.bf16.msra.mxu0 0
        %4394 = vmatprep.subr.bf16.mxu0 0
        %4395 = vmatpush1.bf16.msra.mxu0 0
        %4396 = vmatprep.subr.bf16.mxu0 0
        %4397 = vmatpush1.bf16.msra.mxu0 0
        %4398 = vmatprep.subr.bf16.mxu0 0
        %4399 = vmatpush1.bf16.msra.mxu0 0
        %4400 = vmatprep.subr.bf16.mxu0 0
        %4401 = vmatpush1.bf16.msra.mxu0 0
        %4402 = vmatprep.subr.bf16.mxu0 0
        %4403 = vmatpush1.bf16.msra.mxu0 0
        %4404 = vmatprep.subr.bf16.mxu0 0
        %4405 = vmatpush1.bf16.msra.mxu0 0
        %4406 = vmatprep.subr.bf16.mxu0 0
        %4407 = vmatpush1.bf16.msra.mxu0 0
        %4408 = vmatprep.subr.bf16.mxu0 0
        %4409 = vmatpush1.bf16.msra.mxu0 0
        %4410 = vmatprep.subr.bf16.mxu0 0
        %4411 = vmatpush1.bf16.msra.mxu0 0
        %4412 = vmatprep.subr.bf16.mxu0 0
        %4413 = vmatpush1.bf16.msra.mxu0 0
        %4414 = vmatprep.mubr.bf16.mxu0 0
        %4415 = vmatmul.mubr.bf16.gmra.mrb[0].mxu0 %v4277
        %v4416 = vpop.f32.mrb[0].mxu0
        %v4417 = vadd.f32 0.0, %v4416
        %v4418 = vpop.f32.mrb[0].mxu0
        %v4419 = vadd.f32 0.0, %v4418
        %v4420 = vpop.f32.mrb[0].mxu0
        %v4421 = vpop.f32.mrb[0].mxu0
        %4422 = vdwg.mxu0
        %4423 = vmatprep.subr.bf16.mxu0 0
        %4424 = vmatpush1.bf16.msra.mxu0 %v4298
        %4425 = vmatprep.subr.bf16.mxu0 0
        %4426 = vmatpush1.bf16.msra.mxu0 0
        %4427 = vmatprep.subr.bf16.mxu0 0
        %4428 = vmatpush1.bf16.msra.mxu0 0
        %4429 = vmatprep.subr.bf16.mxu0 0
        %4430 = vmatpush1.bf16.msra.mxu0 0
        %4431 = vmatprep.subr.bf16.mxu0 0
        %4432 = vmatpush1.bf16.msra.mxu0 0
        %4433 = vmatprep.subr.bf16.mxu0 0
        %4434 = vmatpush1.bf16.msra.mxu0 0
        %4435 = vmatprep.subr.bf16.mxu0 0
        %4436 = vmatpush1.bf16.msra.mxu0 0
        %4437 = vmatprep.subr.bf16.mxu0 0
        %4438 = vmatpush1.bf16.msra.mxu0 0
        %4439 = vmatprep.subr.bf16.mxu0 0
        %4440 = vmatpush1.bf16.msra.mxu0 0
        %4441 = vmatprep.subr.bf16.mxu0 0
        %4442 = vmatpush1.bf16.msra.mxu0 0
        %4443 = vmatprep.subr.bf16.mxu0 0
        %4444 = vmatpush1.bf16.msra.mxu0 0
        %4445 = vmatprep.subr.bf16.mxu0 0
        %4446 = vmatpush1.bf16.msra.mxu0 0
        %4447 = vmatprep.subr.bf16.mxu0 0
        %4448 = vmatpush1.bf16.msra.mxu0 0
        %4449 = vmatprep.subr.bf16.mxu0 0
        %4450 = vmatpush1.bf16.msra.mxu0 0
        %4451 = vmatprep.subr.bf16.mxu0 0
        %4452 = vmatpush1.bf16.msra.mxu0 0
        %4453 = vmatprep.subr.bf16.mxu0 0
        %4454 = vmatpush1.bf16.msra.mxu0 0
        %4455 = vmatprep.mubr.bf16.mxu0 0
        %4456 = vmatmul.mubr.bf16.gmra.mrb[0].mxu0 %v4277
        %v4457 = vpop.f32.mrb[0].mxu0
        %v4458 = vadd.f32 0.0, %v4457
        %v4459 = vpop.f32.mrb[0].mxu0
        %v4460 = vpop.f32.mrb[0].mxu0
        %v4461 = vpop.f32.mrb[0].mxu0
        %4462 = vdwg.mxu0
        %v4463 = vadd.f32 %v4205, %v4335
        %v4464 = vadd.f32 %v4206, %v4337
        %v4465 = vadd.f32 %v4207, %v4376
        %v4466 = vadd.f32 %v4208, %v4378
        %v4467 = vadd.f32 %v4209, %v4417
        %v4468 = vadd.f32 %v4210, %v4419
        %v4469 = vadd.f32 %v4211, %v4458
        %s4470 = scalar_lea.vmem [#allocation5], 68
        %v4471 = vld [vmem:[%s4470] sm:$0xf]
        %v4472 = vld [vmem:[%s183] sm:$0xff]
        %v4473 = vld [vmem:[%s183 + $0x8] sm:$0xff]
        %v4476 = vcombine.high %v4472, %v4472
        %v4478 = vunpack.c.l.s4 1983009808
        %v4479 = vunpack.c.0.s8 %v4478
        %v4480 = vlaneseq
        %v4481 = vshrl.u32 %v4480, 7
        %v4482 = vsub.s32 %v4479, %v4481
        %v4483 = vrot.slane %v4472, %v4482
        %v4485 = vunpack.c.l.s4 1983009808
        %v4486 = vunpack.c.0.s8 %v4485
        %v4487 = vlaneseq
        %v4488 = vshrl.u32 %v4487, 7
        %v4489 = vsub.s32 %v4486, %v4488
        %v4490 = vrot.slane %v4476, %v4489
        %v4491 = vcombine.high %v4483, %v4483
        %v4492 = vcombine.high %v4490, %v4490
        %v4493 = vcombine.high %v4473, %v4473
        %v4495 = vunpack.c.l.s4 1983009808
        %v4496 = vunpack.c.0.s8 %v4495
        %v4497 = vlaneseq
        %v4498 = vshrl.u32 %v4497, 7
        %v4499 = vsub.s32 %v4496, %v4498
        %v4500 = vrot.slane %v4473, %v4499
        %v4502 = vunpack.c.l.s4 1983009808
        %v4503 = vunpack.c.0.s8 %v4502
        %v4504 = vlaneseq
        %v4505 = vshrl.u32 %v4504, 7
        %v4506 = vsub.s32 %v4503, %v4505
        %v4507 = vrot.slane %v4493, %v4506
        %v4508 = vcombine.high %v4500, %v4500
        %v4509 = vcombine.high %v4507, %v4507
        %4510 = vrot.lane.b32.xlu0 %v4483, 6
        %v4511 = vpop.permute.xlu0 %4510
        %4512 = vrot.lane.b32.xlu0 %v4491, 6
        %v4513 = vpop.permute.xlu0 %4512
        %4514 = vrot.lane.b32.xlu0 %v4490, 6
        %v4515 = vpop.permute.xlu0 %4514
        %4516 = vrot.lane.b32.xlu0 %v4492, 6
        %v4517 = vpop.permute.xlu0 %4516
        %4518 = vrot.lane.b32.xlu0 %v4500, 6
        %v4519 = vpop.permute.xlu0 %4518
        %4520 = vrot.lane.b32.xlu0 %v4508, 6
        %v4521 = vpop.permute.xlu0 %4520
        %4522 = vrot.lane.b32.xlu0 %v4507, 6
        %v4523 = vpop.permute.xlu0 %4522
        %4524 = vrot.lane.b32.xlu0 %v4509, 6
        %v4525 = vpop.permute.xlu0 %4524
        %vm4526 = vcmask 48128
        %v4527 = vsel %vm4526, %v4511, %v4513
        %v4528 = vsel %vm4526, %v4513, %v4515
        %v4529 = vsel %vm4526, %v4515, %v4517
        %v4530 = vsel %vm4526, %v4517, %v4519
        %v4531 = vsel %vm4526, %v4519, %v4521
        %v4532 = vsel %vm4526, %v4521, %v4523
        %v4533 = vsel %vm4526, %v4523, %v4525
        %v4535 = vsel %vm276, %v4471, 0
        %v4538 = vsel %vm280, %v4527, 0
        %v4541 = vsel %vm280, %v4528, 0
        %v4544 = vsel %vm280, %v4529, 0
        %v4547 = vsel %vm280, %v4530, 0
        %v4550 = vsel %vm280, %v4531, 0
        %v4553 = vsel %vm280, %v4532, 0
        %v4556 = vsel %vm280, %v4533, 0
        %4558 = vmatprep.subr.bf16.mxu0 %v4541
        %4559 = vmatpush1.bf16.msra.mxu0 %v4538
        %4560 = vmatprep.subr.bf16.mxu0 0
        %4561 = vmatpush1.bf16.msra.mxu0 0
        %4562 = vmatprep.subr.bf16.mxu0 0
        %4563 = vmatpush1.bf16.msra.mxu0 0
        %4564 = vmatprep.subr.bf16.mxu0 0
        %4565 = vmatpush1.bf16.msra.mxu0 0
        %4566 = vmatprep.subr.bf16.mxu0 0
        %4567 = vmatpush1.bf16.msra.mxu0 0
        %4568 = vmatprep.subr.bf16.mxu0 0
        %4569 = vmatpush1.bf16.msra.mxu0 0
        %4570 = vmatprep.subr.bf16.mxu0 0
        %4571 = vmatpush1.bf16.msra.mxu0 0
        %4572 = vmatprep.subr.bf16.mxu0 0
        %4573 = vmatpush1.bf16.msra.mxu0 0
        %4574 = vmatprep.subr.bf16.mxu0 0
        %4575 = vmatpush1.bf16.msra.mxu0 0
        %4576 = vmatprep.subr.bf16.mxu0 0
        %4577 = vmatpush1.bf16.msra.mxu0 0
        %4578 = vmatprep.subr.bf16.mxu0 0
        %4579 = vmatpush1.bf16.msra.mxu0 0
        %4580 = vmatprep.subr.bf16.mxu0 0
        %4581 = vmatpush1.bf16.msra.mxu0 0
        %4582 = vmatprep.subr.bf16.mxu0 0
        %4583 = vmatpush1.bf16.msra.mxu0 0
        %4584 = vmatprep.subr.bf16.mxu0 0
        %4585 = vmatpush1.bf16.msra.mxu0 0
        %4586 = vmatprep.subr.bf16.mxu0 0
        %4587 = vmatpush1.bf16.msra.mxu0 0
        %4588 = vmatprep.subr.bf16.mxu0 0
        %4589 = vmatpush1.bf16.msra.mxu0 0
        %4590 = vmatprep.mubr.bf16.mxu0 0
        %4591 = vmatmul.mubr.bf16.gmra.mrb[0].mxu0 %v4535
        %v4592 = vpop.f32.mrb[0].mxu0
        %v4593 = vadd.f32 0.0, %v4592
        %v4594 = vpop.f32.mrb[0].mxu0
        %v4595 = vadd.f32 0.0, %v4594
        %v4596 = vpop.f32.mrb[0].mxu0
        %v4597 = vpop.f32.mrb[0].mxu0
        %4598 = vdwg.mxu0
        %4599 = vmatprep.subr.bf16.mxu0 %v4547
        %4600 = vmatpush1.bf16.msra.mxu0 %v4544
        %4601 = vmatprep.subr.bf16.mxu0 0
        %4602 = vmatpush1.bf16.msra.mxu0 0
        %4603 = vmatprep.subr.bf16.mxu0 0
        %4604 = vmatpush1.bf16.msra.mxu0 0
        %4605 = vmatprep.subr.bf16.mxu0 0
        %4606 = vmatpush1.bf16.msra.mxu0 0
        %4607 = vmatprep.subr.bf16.mxu0 0
        %4608 = vmatpush1.bf16.msra.mxu0 0
        %4609 = vmatprep.subr.bf16.mxu0 0
        %4610 = vmatpush1.bf16.msra.mxu0 0
        %4611 = vmatprep.subr.bf16.mxu0 0
        %4612 = vmatpush1.bf16.msra.mxu0 0
        %4613 = vmatprep.subr.bf16.mxu0 0
        %4614 = vmatpush1.bf16.msra.mxu0 0
        %4615 = vmatprep.subr.bf16.mxu0 0
        %4616 = vmatpush1.bf16.msra.mxu0 0
        %4617 = vmatprep.subr.bf16.mxu0 0
        %4618 = vmatpush1.bf16.msra.mxu0 0
        %4619 = vmatprep.subr.bf16.mxu0 0
        %4620 = vmatpush1.bf16.msra.mxu0 0
        %4621 = vmatprep.subr.bf16.mxu0 0
        %4622 = vmatpush1.bf16.msra.mxu0 0
        %4623 = vmatprep.subr.bf16.mxu0 0
        %4624 = vmatpush1.bf16.msra.mxu0 0
        %4625 = vmatprep.subr.bf16.mxu0 0
        %4626 = vmatpush1.bf16.msra.mxu0 0
        %4627 = vmatprep.subr.bf16.mxu0 0
        %4628 = vmatpush1.bf16.msra.mxu0 0
        %4629 = vmatprep.subr.bf16.mxu0 0
        %4630 = vmatpush1.bf16.msra.mxu0 0
        %4631 = vmatprep.mubr.bf16.mxu0 0
        %4632 = vmatmul.mubr.bf16.gmra.mrb[0].mxu0 %v4535
        %v4633 = vpop.f32.mrb[0].mxu0
        %v4634 = vadd.f32 0.0, %v4633
        %v4635 = vpop.f32.mrb[0].mxu0
        %v4636 = vadd.f32 0.0, %v4635
        %v4637 = vpop.f32.mrb[0].mxu0
        %v4638 = vpop.f32.mrb[0].mxu0
        %4639 = vdwg.mxu0
        %4640 = vmatprep.subr.bf16.mxu0 %v4553
        %4641 = vmatpush1.bf16.msra.mxu0 %v4550
        %4642 = vmatprep.subr.bf16.mxu0 0
        %4643 = vmatpush1.bf16.msra.mxu0 0
        %4644 = vmatprep.subr.bf16.mxu0 0
        %4645 = vmatpush1.bf16.msra.mxu0 0
        %4646 = vmatprep.subr.bf16.mxu0 0
        %4647 = vmatpush1.bf16.msra.mxu0 0
        %4648 = vmatprep.subr.bf16.mxu0 0
        %4649 = vmatpush1.bf16.msra.mxu0 0
        %4650 = vmatprep.subr.bf16.mxu0 0
        %4651 = vmatpush1.bf16.msra.mxu0 0
        %4652 = vmatprep.subr.bf16.mxu0 0
        %4653 = vmatpush1.bf16.msra.mxu0 0
        %4654 = vmatprep.subr.bf16.mxu0 0
        %4655 = vmatpush1.bf16.msra.mxu0 0
        %4656 = vmatprep.subr.bf16.mxu0 0
        %4657 = vmatpush1.bf16.msra.mxu0 0
        %4658 = vmatprep.subr.bf16.mxu0 0
        %4659 = vmatpush1.bf16.msra.mxu0 0
        %4660 = vmatprep.subr.bf16.mxu0 0
        %4661 = vmatpush1.bf16.msra.mxu0 0
        %4662 = vmatprep.subr.bf16.mxu0 0
        %4663 = vmatpush1.bf16.msra.mxu0 0
        %4664 = vmatprep.subr.bf16.mxu0 0
        %4665 = vmatpush1.bf16.msra.mxu0 0
        %4666 = vmatprep.subr.bf16.mxu0 0
        %4667 = vmatpush1.bf16.msra.mxu0 0
        %4668 = vmatprep.subr.bf16.mxu0 0
        %4669 = vmatpush1.bf16.msra.mxu0 0
        %4670 = vmatprep.subr.bf16.mxu0 0
        %4671 = vmatpush1.bf16.msra.mxu0 0
        %4672 = vmatprep.mubr.bf16.mxu0 0
        %4673 = vmatmul.mubr.bf16.gmra.mrb[0].mxu0 %v4535
        %v4674 = vpop.f32.mrb[0].mxu0
        %v4675 = vadd.f32 0.0, %v4674
        %v4676 = vpop.f32.mrb[0].mxu0
        %v4677 = vadd.f32 0.0, %v4676
        %v4678 = vpop.f32.mrb[0].mxu0
        %v4679 = vpop.f32.mrb[0].mxu0
        %4680 = vdwg.mxu0
        %4681 = vmatprep.subr.bf16.mxu0 0
        %4682 = vmatpush1.bf16.msra.mxu0 %v4556
        %4683 = vmatprep.subr.bf16.mxu0 0
        %4684 = vmatpush1.bf16.msra.mxu0 0
        %4685 = vmatprep.subr.bf16.mxu0 0
        %4686 = vmatpush1.bf16.msra.mxu0 0
        %4687 = vmatprep.subr.bf16.mxu0 0
        %4688 = vmatpush1.bf16.msra.mxu0 0
        %4689 = vmatprep.subr.bf16.mxu0 0
        %4690 = vmatpush1.bf16.msra.mxu0 0
        %4691 = vmatprep.subr.bf16.mxu0 0
        %4692 = vmatpush1.bf16.msra.mxu0 0
        %4693 = vmatprep.subr.bf16.mxu0 0
        %4694 = vmatpush1.bf16.msra.mxu0 0
        %4695 = vmatprep.subr.bf16.mxu0 0
        %4696 = vmatpush1.bf16.msra.mxu0 0
        %4697 = vmatprep.subr.bf16.mxu0 0
        %4698 = vmatpush1.bf16.msra.mxu0 0
        %4699 = vmatprep.subr.bf16.mxu0 0
        %4700 = vmatpush1.bf16.msra.mxu0 0
        %4701 = vmatprep.subr.bf16.mxu0 0
        %4702 = vmatpush1.bf16.msra.mxu0 0
        %4703 = vmatprep.subr.bf16.mxu0 0
        %4704 = vmatpush1.bf16.msra.mxu0 0
        %4705 = vmatprep.subr.bf16.mxu0 0
        %4706 = vmatpush1.bf16.msra.mxu0 0
        %4707 = vmatprep.subr.bf16.mxu0 0
        %4708 = vmatpush1.bf16.msra.mxu0 0
        %4709 = vmatprep.subr.bf16.mxu0 0
        %4710 = vmatpush1.bf16.msra.mxu0 0
        %4711 = vmatprep.subr.bf16.mxu0 0
        %4712 = vmatpush1.bf16.msra.mxu0 0
        %4713 = vmatprep.mubr.bf16.mxu0 0
        %4714 = vmatmul.mubr.bf16.gmra.mrb[0].mxu0 %v4535
        %v4715 = vpop.f32.mrb[0].mxu0
        %v4716 = vadd.f32 0.0, %v4715
        %v4717 = vpop.f32.mrb[0].mxu0
        %v4718 = vpop.f32.mrb[0].mxu0
        %v4719 = vpop.f32.mrb[0].mxu0
        %4720 = vdwg.mxu0
        %v4721 = vadd.f32 %v4463, %v4593
        %v4722 = vadd.f32 %v4464, %v4595
        %v4723 = vadd.f32 %v4465, %v4634
        %v4724 = vadd.f32 %v4466, %v4636
        %v4725 = vadd.f32 %v4467, %v4675
        %v4726 = vadd.f32 %v4468, %v4677
        %v4727 = vadd.f32 %v4469, %v4716
        %s4728 = scalar_lea.vmem [#allocation5], 72
        %v4729 = vld [vmem:[%s4728] sm:$0xf]
        %v4730 = vld [vmem:[%s183 + $0x2] sm:$0xff]
        %v4731 = vld [vmem:[%s183 + $0xa] sm:$0x3f]
        %v4734 = vcombine.high %v4730, %v4730
        %v4736 = vunpack.c.l.s4 1983009808
        %v4737 = vunpack.c.0.s8 %v4736
        %v4738 = vlaneseq
        %v4739 = vshrl.u32 %v4738, 7
        %v4740 = vsub.s32 %v4737, %v4739
        %v4741 = vrot.slane %v4730, %v4740
        %v4743 = vunpack.c.l.s4 1983009808
        %v4744 = vunpack.c.0.s8 %v4743
        %v4745 = vlaneseq
        %v4746 = vshrl.u32 %v4745, 7
        %v4747 = vsub.s32 %v4744, %v4746
        %v4748 = vrot.slane %v4734, %v4747
        %v4749 = vcombine.high %v4741, %v4741
        %v4750 = vcombine.high %v4748, %v4748
        %v4751 = vcombine.high %v4731, %v4731
        %v4753 = vunpack.c.l.s4 1983009808
        %v4754 = vunpack.c.0.s8 %v4753
        %v4755 = vlaneseq
        %v4756 = vshrl.u32 %v4755, 7
        %v4757 = vsub.s32 %v4754, %v4756
        %v4758 = vrot.slane %v4731, %v4757
        %v4760 = vunpack.c.l.s4 1983009808
        %v4761 = vunpack.c.0.s8 %v4760
        %v4762 = vlaneseq
        %v4763 = vshrl.u32 %v4762, 7
        %v4764 = vsub.s32 %v4761, %v4763
        %v4765 = vrot.slane %v4751, %v4764
        %v4766 = vcombine.high %v4758, %v4758
        %4767 = vrot.lane.b32.xlu0 %v4741, 56
        %v4768 = vpop.permute.xlu0 %4767
        %4769 = vrot.lane.b32.xlu0 %v4749, 56
        %v4770 = vpop.permute.xlu0 %4769
        %4771 = vrot.lane.b32.xlu0 %v4748, 56
        %v4772 = vpop.permute.xlu0 %4771
        %4773 = vrot.lane.b32.xlu0 %v4750, 56
        %v4774 = vpop.permute.xlu0 %4773
        %4775 = vrot.lane.b32.xlu0 %v4758, 56
        %v4776 = vpop.permute.xlu0 %4775
        %4777 = vrot.lane.b32.xlu0 %v4766, 56
        %v4778 = vpop.permute.xlu0 %4777
        %4779 = vrot.lane.b32.xlu0 %v4765, 56
        %v4780 = vpop.permute.xlu0 %4779
        %vm4781 = vcmask 457728
        %v4782 = vsel %vm4781, %v4768, %v4770
        %v4783 = vsel %vm4781, %v4770, %v4772
        %v4784 = vsel %vm4781, %v4772, %v4774
        %v4785 = vsel %vm4781, %v4774, %v4776
        %v4786 = vsel %vm4781, %v4776, %v4778
        %v4787 = vsel %vm4781, %v4778, %v4780
        %v4789 = vsel %vm276, %v4729, 0
        %v4792 = vsel %vm280, %v4782, 0
        %v4795 = vsel %vm280, %v4783, 0
        %v4798 = vsel %vm280, %v4784, 0
        %v4801 = vsel %vm280, %v4785, 0
        %v4804 = vsel %vm280, %v4786, 0
        %v4807 = vsel %vm280, %v4787, 0
        %v4810 = vsel %vm280, %v4780, 0
        %4812 = vmatprep.subr.bf16.mxu0 %v4795
        %4813 = vmatpush1.bf16.msra.mxu0 %v4792
        %4814 = vmatprep.subr.bf16.mxu0 0
        %4815 = vmatpush1.bf16.msra.mxu0 0
        %4816 = vmatprep.subr.bf16.mxu0 0
        %4817 = vmatpush1.bf16.msra.mxu0 0
        %4818 = vmatprep.subr.bf16.mxu0 0
        %4819 = vmatpush1.bf16.msra.mxu0 0
        %4820 = vmatprep.subr.bf16.mxu0 0
        %4821 = vmatpush1.bf16.msra.mxu0 0
        %4822 = vmatprep.subr.bf16.mxu0 0
        %4823 = vmatpush1.bf16.msra.mxu0 0
        %4824 = vmatprep.subr.bf16.mxu0 0
        %4825 = vmatpush1.bf16.msra.mxu0 0
        %4826 = vmatprep.subr.bf16.mxu0 0
        %4827 = vmatpush1.bf16.msra.mxu0 0
        %4828 = vmatprep.subr.bf16.mxu0 0
        %4829 = vmatpush1.bf16.msra.mxu0 0
        %4830 = vmatprep.subr.bf16.mxu0 0
        %4831 = vmatpush1.bf16.msra.mxu0 0
        %4832 = vmatprep.subr.bf16.mxu0 0
        %4833 = vmatpush1.bf16.msra.mxu0 0
        %4834 = vmatprep.subr.bf16.mxu0 0
        %4835 = vmatpush1.bf16.msra.mxu0 0
        %4836 = vmatprep.subr.bf16.mxu0 0
        %4837 = vmatpush1.bf16.msra.mxu0 0
        %4838 = vmatprep.subr.bf16.mxu0 0
        %4839 = vmatpush1.bf16.msra.mxu0 0
        %4840 = vmatprep.subr.bf16.mxu0 0
        %4841 = vmatpush1.bf16.msra.mxu0 0
        %4842 = vmatprep.subr.bf16.mxu0 0
        %4843 = vmatpush1.bf16.msra.mxu0 0
        %4844 = vmatprep.mubr.bf16.mxu0 0
        %4845 = vmatmul.mubr.bf16.gmra.mrb[0].mxu0 %v4789
        %v4846 = vpop.f32.mrb[0].mxu0
        %v4847 = vadd.f32 0.0, %v4846
        %v4848 = vpop.f32.mrb[0].mxu0
        %v4849 = vadd.f32 0.0, %v4848
        %v4850 = vpop.f32.mrb[0].mxu0
        %v4851 = vpop.f32.mrb[0].mxu0
        %4852 = vdwg.mxu0
        %4853 = vmatprep.subr.bf16.mxu0 %v4801
        %4854 = vmatpush1.bf16.msra.mxu0 %v4798
        %4855 = vmatprep.subr.bf16.mxu0 0
        %4856 = vmatpush1.bf16.msra.mxu0 0
        %4857 = vmatprep.subr.bf16.mxu0 0
        %4858 = vmatpush1.bf16.msra.mxu0 0
        %4859 = vmatprep.subr.bf16.mxu0 0
        %4860 = vmatpush1.bf16.msra.mxu0 0
        %4861 = vmatprep.subr.bf16.mxu0 0
        %4862 = vmatpush1.bf16.msra.mxu0 0
        %4863 = vmatprep.subr.bf16.mxu0 0
        %4864 = vmatpush1.bf16.msra.mxu0 0
        %4865 = vmatprep.subr.bf16.mxu0 0
        %4866 = vmatpush1.bf16.msra.mxu0 0
        %4867 = vmatprep.subr.bf16.mxu0 0
        %4868 = vmatpush1.bf16.msra.mxu0 0
        %4869 = vmatprep.subr.bf16.mxu0 0
        %4870 = vmatpush1.bf16.msra.mxu0 0
        %4871 = vmatprep.subr.bf16.mxu0 0
        %4872 = vmatpush1.bf16.msra.mxu0 0
        %4873 = vmatprep.subr.bf16.mxu0 0
        %4874 = vmatpush1.bf16.msra.mxu0 0
        %4875 = vmatprep.subr.bf16.mxu0 0
        %4876 = vmatpush1.bf16.msra.mxu0 0
        %4877 = vmatprep.subr.bf16.mxu0 0
        %4878 = vmatpush1.bf16.msra.mxu0 0
        %4879 = vmatprep.subr.bf16.mxu0 0
        %4880 = vmatpush1.bf16.msra.mxu0 0
        %4881 = vmatprep.subr.bf16.mxu0 0
        %4882 = vmatpush1.bf16.msra.mxu0 0
        %4883 = vmatprep.subr.bf16.mxu0 0
        %4884 = vmatpush1.bf16.msra.mxu0 0
        %4885 = vmatprep.mubr.bf16.mxu0 0
        %4886 = vmatmul.mubr.bf16.gmra.mrb[0].mxu0 %v4789
        %v4887 = vpop.f32.mrb[0].mxu0
        %v4888 = vadd.f32 0.0, %v4887
        %v4889 = vpop.f32.mrb[0].mxu0
        %v4890 = vadd.f32 0.0, %v4889
        %v4891 = vpop.f32.mrb[0].mxu0
        %v4892 = vpop.f32.mrb[0].mxu0
        %4893 = vdwg.mxu0
        %4894 = vmatprep.subr.bf16.mxu0 %v4807
        %4895 = vmatpush1.bf16.msra.mxu0 %v4804
        %4896 = vmatprep.subr.bf16.mxu0 0
        %4897 = vmatpush1.bf16.msra.mxu0 0
        %4898 = vmatprep.subr.bf16.mxu0 0
        %4899 = vmatpush1.bf16.msra.mxu0 0
        %4900 = vmatprep.subr.bf16.mxu0 0
        %4901 = vmatpush1.bf16.msra.mxu0 0
        %4902 = vmatprep.subr.bf16.mxu0 0
        %4903 = vmatpush1.bf16.msra.mxu0 0
        %4904 = vmatprep.subr.bf16.mxu0 0
        %4905 = vmatpush1.bf16.msra.mxu0 0
        %4906 = vmatprep.subr.bf16.mxu0 0
        %4907 = vmatpush1.bf16.msra.mxu0 0
        %4908 = vmatprep.subr.bf16.mxu0 0
        %4909 = vmatpush1.bf16.msra.mxu0 0
        %4910 = vmatprep.subr.bf16.mxu0 0
        %4911 = vmatpush1.bf16.msra.mxu0 0
        %4912 = vmatprep.subr.bf16.mxu0 0
        %4913 = vmatpush1.bf16.msra.mxu0 0
        %4914 = vmatprep.subr.bf16.mxu0 0
        %4915 = vmatpush1.bf16.msra.mxu0 0
        %4916 = vmatprep.subr.bf16.mxu0 0
        %4917 = vmatpush1.bf16.msra.mxu0 0
        %4918 = vmatprep.subr.bf16.mxu0 0
        %4919 = vmatpush1.bf16.msra.mxu0 0
        %4920 = vmatprep.subr.bf16.mxu0 0
        %4921 = vmatpush1.bf16.msra.mxu0 0
        %4922 = vmatprep.subr.bf16.mxu0 0
        %4923 = vmatpush1.bf16.msra.mxu0 0
        %4924 = vmatprep.subr.bf16.mxu0 0
        %4925 = vmatpush1.bf16.msra.mxu0 0
        %4926 = vmatprep.mubr.bf16.mxu0 0
        %4927 = vmatmul.mubr.bf16.gmra.mrb[0].mxu0 %v4789
        %v4928 = vpop.f32.mrb[0].mxu0
        %v4929 = vadd.f32 0.0, %v4928
        %v4930 = vpop.f32.mrb[0].mxu0
        %v4931 = vadd.f32 0.0, %v4930
        %v4932 = vpop.f32.mrb[0].mxu0
        %v4933 = vpop.f32.mrb[0].mxu0
        %4934 = vdwg.mxu0
        %4935 = vmatprep.subr.bf16.mxu0 0
        %4936 = vmatpush1.bf16.msra.mxu0 %v4810
        %4937 = vmatprep.subr.bf16.mxu0 0
        %4938 = vmatpush1.bf16.msra.mxu0 0
        %4939 = vmatprep.subr.bf16.mxu0 0
        %4940 = vmatpush1.bf16.msra.mxu0 0
        %4941 = vmatprep.subr.bf16.mxu0 0
        %4942 = vmatpush1.bf16.msra.mxu0 0
        %4943 = vmatprep.subr.bf16.mxu0 0
        %4944 = vmatpush1.bf16.msra.mxu0 0
        %4945 = vmatprep.subr.bf16.mxu0 0
        %4946 = vmatpush1.bf16.msra.mxu0 0
        %4947 = vmatprep.subr.bf16.mxu0 0
        %4948 = vmatpush1.bf16.msra.mxu0 0
        %4949 = vmatprep.subr.bf16.mxu0 0
        %4950 = vmatpush1.bf16.msra.mxu0 0
        %4951 = vmatprep.subr.bf16.mxu0 0
        %4952 = vmatpush1.bf16.msra.mxu0 0
        %4953 = vmatprep.subr.bf16.mxu0 0
        %4954 = vmatpush1.bf16.msra.mxu0 0
        %4955 = vmatprep.subr.bf16.mxu0 0
        %4956 = vmatpush1.bf16.msra.mxu0 0
        %4957 = vmatprep.subr.bf16.mxu0 0
        %4958 = vmatpush1.bf16.msra.mxu0 0
        %4959 = vmatprep.subr.bf16.mxu0 0
        %4960 = vmatpush1.bf16.msra.mxu0 0
        %4961 = vmatprep.subr.bf16.mxu0 0
        %4962 = vmatpush1.bf16.msra.mxu0 0
        %4963 = vmatprep.subr.bf16.mxu0 0
        %4964 = vmatpush1.bf16.msra.mxu0 0
        %4965 = vmatprep.subr.bf16.mxu0 0
        %4966 = vmatpush1.bf16.msra.mxu0 0
        %4967 = vmatprep.mubr.bf16.mxu0 0
        %4968 = vmatmul.mubr.bf16.gmra.mrb[0].mxu0 %v4789
        %v4969 = vpop.f32.mrb[0].mxu0
        %v4970 = vadd.f32 0.0, %v4969
        %v4971 = vpop.f32.mrb[0].mxu0
        %v4972 = vpop.f32.mrb[0].mxu0
        %v4973 = vpop.f32.mrb[0].mxu0
        %4974 = vdwg.mxu0
        %v4975 = vadd.f32 %v4721, %v4847
        %v4976 = vadd.f32 %v4722, %v4849
        %v4977 = vadd.f32 %v4723, %v4888
        %v4978 = vadd.f32 %v4724, %v4890
        %v4979 = vadd.f32 %v4725, %v4929
        %v4980 = vadd.f32 %v4726, %v4931
        %v4981 = vadd.f32 %v4727, %v4970
        %s4982 = scalar_lea.vmem [#allocation5], 76
        %v4983 = vld [vmem:[%s4982] sm:$0xf]
        %v4984 = vld [vmem:[%s183 + $0x2] sm:$0xff]
        %v4985 = vld [vmem:[%s183 + $0xa] sm:$0x3f]
        %v4988 = vcombine.high %v4984, %v4984
        %v4990 = vunpack.c.l.s4 1983009808
        %v4991 = vunpack.c.0.s8 %v4990
        %v4992 = vlaneseq
        %v4993 = vshrl.u32 %v4992, 7
        %v4994 = vsub.s32 %v4991, %v4993
        %v4995 = vrot.slane %v4984, %v4994
        %v4997 = vunpack.c.l.s4 1983009808
        %v4998 = vunpack.c.0.s8 %v4997
        %v4999 = vlaneseq
        %v5000 = vshrl.u32 %v4999, 7
        %v5001 = vsub.s32 %v4998, %v5000
        %v5002 = vrot.slane %v4988, %v5001
        %v5003 = vcombine.high %v4995, %v4995
        %v5004 = vcombine.high %v5002, %v5002
        %v5005 = vcombine.high %v4985, %v4985
        %v5007 = vunpack.c.l.s4 1983009808
        %v5008 = vunpack.c.0.s8 %v5007
        %v5009 = vlaneseq
        %v5010 = vshrl.u32 %v5009, 7
        %v5011 = vsub.s32 %v5008, %v5010
        %v5012 = vrot.slane %v4985, %v5011
        %v5014 = vunpack.c.l.s4 1983009808
        %v5015 = vunpack.c.0.s8 %v5014
        %v5016 = vlaneseq
        %v5017 = vshrl.u32 %v5016, 7
        %v5018 = vsub.s32 %v5015, %v5017
        %v5019 = vrot.slane %v5005, %v5018
        %v5020 = vcombine.high %v5012, %v5012
        %5021 = vrot.lane.b32.xlu0 %v4995, 55
        %v5022 = vpop.permute.xlu0 %5021
        %5023 = vrot.lane.b32.xlu0 %v5003, 55
        %v5024 = vpop.permute.xlu0 %5023
        %5025 = vrot.lane.b32.xlu0 %v5002, 55
        %v5026 = vpop.permute.xlu0 %5025
        %5027 = vrot.lane.b32.xlu0 %v5004, 55
        %v5028 = vpop.permute.xlu0 %5027
        %5029 = vrot.lane.b32.xlu0 %v5012, 55
        %v5030 = vpop.permute.xlu0 %5029
        %5031 = vrot.lane.b32.xlu0 %v5020, 55
        %v5032 = vpop.permute.xlu0 %5031
        %5033 = vrot.lane.b32.xlu0 %v5019, 55
        %v5034 = vpop.permute.xlu0 %5033
        %vm5035 = vcmask 449536
        %v5036 = vsel %vm5035, %v5022, %v5024
        %v5037 = vsel %vm5035, %v5024, %v5026
        %v5038 = vsel %vm5035, %v5026, %v5028
        %v5039 = vsel %vm5035, %v5028, %v5030
        %v5040 = vsel %vm5035, %v5030, %v5032
        %v5041 = vsel %vm5035, %v5032, %v5034
        %v5043 = vsel %vm276, %v4983, 0
        %v5046 = vsel %vm280, %v5036, 0
        %v5049 = vsel %vm280, %v5037, 0
        %v5052 = vsel %vm280, %v5038, 0
        %v5055 = vsel %vm280, %v5039, 0
        %v5058 = vsel %vm280, %v5040, 0
        %v5061 = vsel %vm280, %v5041, 0
        %v5064 = vsel %vm280, %v5034, 0
        %5066 = vmatprep.subr.bf16.mxu0 %v5049
        %5067 = vmatpush1.bf16.msra.mxu0 %v5046
        %5068 = vmatprep.subr.bf16.mxu0 0
        %5069 = vmatpush1.bf16.msra.mxu0 0
        %5070 = vmatprep.subr.bf16.mxu0 0
        %5071 = vmatpush1.bf16.msra.mxu0 0
        %5072 = vmatprep.subr.bf16.mxu0 0
        %5073 = vmatpush1.bf16.msra.mxu0 0
        %5074 = vmatprep.subr.bf16.mxu0 0
        %5075 = vmatpush1.bf16.msra.mxu0 0
        %5076 = vmatprep.subr.bf16.mxu0 0
        %5077 = vmatpush1.bf16.msra.mxu0 0
        %5078 = vmatprep.subr.bf16.mxu0 0
        %5079 = vmatpush1.bf16.msra.mxu0 0
        %5080 = vmatprep.subr.bf16.mxu0 0
        %5081 = vmatpush1.bf16.msra.mxu0 0
        %5082 = vmatprep.subr.bf16.mxu0 0
        %5083 = vmatpush1.bf16.msra.mxu0 0
        %5084 = vmatprep.subr.bf16.mxu0 0
        %5085 = vmatpush1.bf16.msra.mxu0 0
        %5086 = vmatprep.subr.bf16.mxu0 0
        %5087 = vmatpush1.bf16.msra.mxu0 0
        %5088 = vmatprep.subr.bf16.mxu0 0
        %5089 = vmatpush1.bf16.msra.mxu0 0
        %5090 = vmatprep.subr.bf16.mxu0 0
        %5091 = vmatpush1.bf16.msra.mxu0 0
        %5092 = vmatprep.subr.bf16.mxu0 0
        %5093 = vmatpush1.bf16.msra.mxu0 0
        %5094 = vmatprep.subr.bf16.mxu0 0
        %5095 = vmatpush1.bf16.msra.mxu0 0
        %5096 = vmatprep.subr.bf16.mxu0 0
        %5097 = vmatpush1.bf16.msra.mxu0 0
        %5098 = vmatprep.mubr.bf16.mxu0 0
        %5099 = vmatmul.mubr.bf16.gmra.mrb[0].mxu0 %v5043
        %v5100 = vpop.f32.mrb[0].mxu0
        %v5101 = vadd.f32 0.0, %v5100
        %v5102 = vpop.f32.mrb[0].mxu0
        %v5103 = vadd.f32 0.0, %v5102
        %v5104 = vpop.f32.mrb[0].mxu0
        %v5105 = vpop.f32.mrb[0].mxu0
        %5106 = vdwg.mxu0
        %5107 = vmatprep.subr.bf16.mxu0 %v5055
        %5108 = vmatpush1.bf16.msra.mxu0 %v5052
        %5109 = vmatprep.subr.bf16.mxu0 0
        %5110 = vmatpush1.bf16.msra.mxu0 0
        %5111 = vmatprep.subr.bf16.mxu0 0
        %5112 = vmatpush1.bf16.msra.mxu0 0
        %5113 = vmatprep.subr.bf16.mxu0 0
        %5114 = vmatpush1.bf16.msra.mxu0 0
        %5115 = vmatprep.subr.bf16.mxu0 0
        %5116 = vmatpush1.bf16.msra.mxu0 0
        %5117 = vmatprep.subr.bf16.mxu0 0
        %5118 = vmatpush1.bf16.msra.mxu0 0
        %5119 = vmatprep.subr.bf16.mxu0 0
        %5120 = vmatpush1.bf16.msra.mxu0 0
        %5121 = vmatprep.subr.bf16.mxu0 0
        %5122 = vmatpush1.bf16.msra.mxu0 0
        %5123 = vmatprep.subr.bf16.mxu0 0
        %5124 = vmatpush1.bf16.msra.mxu0 0
        %5125 = vmatprep.subr.bf16.mxu0 0
        %5126 = vmatpush1.bf16.msra.mxu0 0
        %5127 = vmatprep.subr.bf16.mxu0 0
        %5128 = vmatpush1.bf16.msra.mxu0 0
        %5129 = vmatprep.subr.bf16.mxu0 0
        %5130 = vmatpush1.bf16.msra.mxu0 0
        %5131 = vmatprep.subr.bf16.mxu0 0
        %5132 = vmatpush1.bf16.msra.mxu0 0
        %5133 = vmatprep.subr.bf16.mxu0 0
        %5134 = vmatpush1.bf16.msra.mxu0 0
        %5135 = vmatprep.subr.bf16.mxu0 0
        %5136 = vmatpush1.bf16.msra.mxu0 0
        %5137 = vmatprep.subr.bf16.mxu0 0
        %5138 = vmatpush1.bf16.msra.mxu0 0
        %5139 = vmatprep.mubr.bf16.mxu0 0
        %5140 = vmatmul.mubr.bf16.gmra.mrb[0].mxu0 %v5043
        %v5141 = vpop.f32.mrb[0].mxu0
        %v5142 = vadd.f32 0.0, %v5141
        %v5143 = vpop.f32.mrb[0].mxu0
        %v5144 = vadd.f32 0.0, %v5143
        %v5145 = vpop.f32.mrb[0].mxu0
        %v5146 = vpop.f32.mrb[0].mxu0
        %5147 = vdwg.mxu0
        %5148 = vmatprep.subr.bf16.mxu0 %v5061
        %5149 = vmatpush1.bf16.msra.mxu0 %v5058
        %5150 = vmatprep.subr.bf16.mxu0 0
        %5151 = vmatpush1.bf16.msra.mxu0 0
        %5152 = vmatprep.subr.bf16.mxu0 0
        %5153 = vmatpush1.bf16.msra.mxu0 0
        %5154 = vmatprep.subr.bf16.mxu0 0
        %5155 = vmatpush1.bf16.msra.mxu0 0
        %5156 = vmatprep.subr.bf16.mxu0 0
        %5157 = vmatpush1.bf16.msra.mxu0 0
        %5158 = vmatprep.subr.bf16.mxu0 0
        %5159 = vmatpush1.bf16.msra.mxu0 0
        %5160 = vmatprep.subr.bf16.mxu0 0
        %5161 = vmatpush1.bf16.msra.mxu0 0
        %5162 = vmatprep.subr.bf16.mxu0 0
        %5163 = vmatpush1.bf16.msra.mxu0 0
        %5164 = vmatprep.subr.bf16.mxu0 0
        %5165 = vmatpush1.bf16.msra.mxu0 0
        %5166 = vmatprep.subr.bf16.mxu0 0
        %5167 = vmatpush1.bf16.msra.mxu0 0
        %5168 = vmatprep.subr.bf16.mxu0 0
        %5169 = vmatpush1.bf16.msra.mxu0 0
        %5170 = vmatprep.subr.bf16.mxu0 0
        %5171 = vmatpush1.bf16.msra.mxu0 0
        %5172 = vmatprep.subr.bf16.mxu0 0
        %5173 = vmatpush1.bf16.msra.mxu0 0
        %5174 = vmatprep.subr.bf16.mxu0 0
        %5175 = vmatpush1.bf16.msra.mxu0 0
        %5176 = vmatprep.subr.bf16.mxu0 0
        %5177 = vmatpush1.bf16.msra.mxu0 0
        %5178 = vmatprep.subr.bf16.mxu0 0
        %5179 = vmatpush1.bf16.msra.mxu0 0
        %5180 = vmatprep.mubr.bf16.mxu0 0
        %5181 = vmatmul.mubr.bf16.gmra.mrb[0].mxu0 %v5043
        %v5182 = vpop.f32.mrb[0].mxu0
        %v5183 = vadd.f32 0.0, %v5182
        %v5184 = vpop.f32.mrb[0].mxu0
        %v5185 = vadd.f32 0.0, %v5184
        %v5186 = vpop.f32.mrb[0].mxu0
        %v5187 = vpop.f32.mrb[0].mxu0
        %5188 = vdwg.mxu0
        %5189 = vmatprep.subr.bf16.mxu0 0
        %5190 = vmatpush1.bf16.msra.mxu0 %v5064
        %5191 = vmatprep.subr.bf16.mxu0 0
        %5192 = vmatpush1.bf16.msra.mxu0 0
        %5193 = vmatprep.subr.bf16.mxu0 0
        %5194 = vmatpush1.bf16.msra.mxu0 0
        %5195 = vmatprep.subr.bf16.mxu0 0
        %5196 = vmatpush1.bf16.msra.mxu0 0
        %5197 = vmatprep.subr.bf16.mxu0 0
        %5198 = vmatpush1.bf16.msra.mxu0 0
        %5199 = vmatprep.subr.bf16.mxu0 0
        %5200 = vmatpush1.bf16.msra.mxu0 0
        %5201 = vmatprep.subr.bf16.mxu0 0
        %5202 = vmatpush1.bf16.msra.mxu0 0
        %5203 = vmatprep.subr.bf16.mxu0 0
        %5204 = vmatpush1.bf16.msra.mxu0 0
        %5205 = vmatprep.subr.bf16.mxu0 0
        %5206 = vmatpush1.bf16.msra.mxu0 0
        %5207 = vmatprep.subr.bf16.mxu0 0
        %5208 = vmatpush1.bf16.msra.mxu0 0
        %5209 = vmatprep.subr.bf16.mxu0 0
        %5210 = vmatpush1.bf16.msra.mxu0 0
        %5211 = vmatprep.subr.bf16.mxu0 0
        %5212 = vmatpush1.bf16.msra.mxu0 0
        %5213 = vmatprep.subr.bf16.mxu0 0
        %5214 = vmatpush1.bf16.msra.mxu0 0
        %5215 = vmatprep.subr.bf16.mxu0 0
        %5216 = vmatpush1.bf16.msra.mxu0 0
        %5217 = vmatprep.subr.bf16.mxu0 0
        %5218 = vmatpush1.bf16.msra.mxu0 0
        %5219 = vmatprep.subr.bf16.mxu0 0
        %5220 = vmatpush1.bf16.msra.mxu0 0
        %5221 = vmatprep.mubr.bf16.mxu0 0
        %5222 = vmatmul.mubr.bf16.gmra.mrb[0].mxu0 %v5043
        %v5223 = vpop.f32.mrb[0].mxu0
        %v5224 = vadd.f32 0.0, %v5223
        %v5225 = vpop.f32.mrb[0].mxu0
        %v5226 = vpop.f32.mrb[0].mxu0
        %v5227 = vpop.f32.mrb[0].mxu0
        %5228 = vdwg.mxu0
        %v5229 = vadd.f32 %v4975, %v5101
        %v5230 = vadd.f32 %v4976, %v5103
        %v5231 = vadd.f32 %v4977, %v5142
        %v5232 = vadd.f32 %v4978, %v5144
        %v5233 = vadd.f32 %v4979, %v5183
        %v5234 = vadd.f32 %v4980, %v5185
        %v5235 = vadd.f32 %v4981, %v5224
        %s5236 = scalar_lea.vmem [#allocation5], 80
        %v5237 = vld [vmem:[%s5236] sm:$0xf]
        %v5238 = vld [vmem:[%s183 + $0x2] sm:$0xff]
        %v5239 = vld [vmem:[%s183 + $0xa] sm:$0x3f]
        %v5242 = vcombine.high %v5238, %v5238
        %v5244 = vunpack.c.l.s4 1983009808
        %v5245 = vunpack.c.0.s8 %v5244
        %v5246 = vlaneseq
        %v5247 = vshrl.u32 %v5246, 7
        %v5248 = vsub.s32 %v5245, %v5247
        %v5249 = vrot.slane %v5238, %v5248
        %v5251 = vunpack.c.l.s4 1983009808
        %v5252 = vunpack.c.0.s8 %v5251
        %v5253 = vlaneseq
        %v5254 = vshrl.u32 %v5253, 7
        %v5255 = vsub.s32 %v5252, %v5254
        %v5256 = vrot.slane %v5242, %v5255
        %v5257 = vcombine.high %v5249, %v5249
        %v5258 = vcombine.high %v5256, %v5256
        %v5259 = vcombine.high %v5239, %v5239
        %v5261 = vunpack.c.l.s4 1983009808
        %v5262 = vunpack.c.0.s8 %v5261
        %v5263 = vlaneseq
        %v5264 = vshrl.u32 %v5263, 7
        %v5265 = vsub.s32 %v5262, %v5264
        %v5266 = vrot.slane %v5239, %v5265
        %v5268 = vunpack.c.l.s4 1983009808
        %v5269 = vunpack.c.0.s8 %v5268
        %v5270 = vlaneseq
        %v5271 = vshrl.u32 %v5270, 7
        %v5272 = vsub.s32 %v5269, %v5271
        %v5273 = vrot.slane %v5259, %v5272
        %v5274 = vcombine.high %v5266, %v5266
        %5275 = vrot.lane.b32.xlu0 %v5249, 54
        %v5276 = vpop.permute.xlu0 %5275
        %5277 = vrot.lane.b32.xlu0 %v5257, 54
        %v5278 = vpop.permute.xlu0 %5277
        %5279 = vrot.lane.b32.xlu0 %v5256, 54
        %v5280 = vpop.permute.xlu0 %5279
        %5281 = vrot.lane.b32.xlu0 %v5258, 54
        %v5282 = vpop.permute.xlu0 %5281
        %5283 = vrot.lane.b32.xlu0 %v5266, 54
        %v5284 = vpop.permute.xlu0 %5283
        %5285 = vrot.lane.b32.xlu0 %v5274, 54
        %v5286 = vpop.permute.xlu0 %5285
        %5287 = vrot.lane.b32.xlu0 %v5273, 54
        %v5288 = vpop.permute.xlu0 %5287
        %vm5289 = vcmask 441344
        %v5290 = vsel %vm5289, %v5276, %v5278
        %v5291 = vsel %vm5289, %v5278, %v5280
        %v5292 = vsel %vm5289, %v5280, %v5282
        %v5293 = vsel %vm5289, %v5282, %v5284
        %v5294 = vsel %vm5289, %v5284, %v5286
        %v5295 = vsel %vm5289, %v5286, %v5288
        %v5297 = vsel %vm276, %v5237, 0
        %v5300 = vsel %vm280, %v5290, 0
        %v5303 = vsel %vm280, %v5291, 0
        %v5306 = vsel %vm280, %v5292, 0
        %v5309 = vsel %vm280, %v5293, 0
        %v5312 = vsel %vm280, %v5294, 0
        %v5315 = vsel %vm280, %v5295, 0
        %v5318 = vsel %vm280, %v5288, 0
        %5320 = vmatprep.subr.bf16.mxu0 %v5303
        %5321 = vmatpush1.bf16.msra.mxu0 %v5300
        %5322 = vmatprep.subr.bf16.mxu0 0
        %5323 = vmatpush1.bf16.msra.mxu0 0
        %5324 = vmatprep.subr.bf16.mxu0 0
        %5325 = vmatpush1.bf16.msra.mxu0 0
        %5326 = vmatprep.subr.bf16.mxu0 0
        %5327 = vmatpush1.bf16.msra.mxu0 0
        %5328 = vmatprep.subr.bf16.mxu0 0
        %5329 = vmatpush1.bf16.msra.mxu0 0
        %5330 = vmatprep.subr.bf16.mxu0 0
        %5331 = vmatpush1.bf16.msra.mxu0 0
        %5332 = vmatprep.subr.bf16.mxu0 0
        %5333 = vmatpush1.bf16.msra.mxu0 0
        %5334 = vmatprep.subr.bf16.mxu0 0
        %5335 = vmatpush1.bf16.msra.mxu0 0
        %5336 = vmatprep.subr.bf16.mxu0 0
        %5337 = vmatpush1.bf16.msra.mxu0 0
        %5338 = vmatprep.subr.bf16.mxu0 0
        %5339 = vmatpush1.bf16.msra.mxu0 0
        %5340 = vmatprep.subr.bf16.mxu0 0
        %5341 = vmatpush1.bf16.msra.mxu0 0
        %5342 = vmatprep.subr.bf16.mxu0 0
        %5343 = vmatpush1.bf16.msra.mxu0 0
        %5344 = vmatprep.subr.bf16.mxu0 0
        %5345 = vmatpush1.bf16.msra.mxu0 0
        %5346 = vmatprep.subr.bf16.mxu0 0
        %5347 = vmatpush1.bf16.msra.mxu0 0
        %5348 = vmatprep.subr.bf16.mxu0 0
        %5349 = vmatpush1.bf16.msra.mxu0 0
        %5350 = vmatprep.subr.bf16.mxu0 0
        %5351 = vmatpush1.bf16.msra.mxu0 0
        %5352 = vmatprep.mubr.bf16.mxu0 0
        %5353 = vmatmul.mubr.bf16.gmra.mrb[0].mxu0 %v5297
        %v5354 = vpop.f32.mrb[0].mxu0
        %v5355 = vadd.f32 0.0, %v5354
        %v5356 = vpop.f32.mrb[0].mxu0
        %v5357 = vadd.f32 0.0, %v5356
        %v5358 = vpop.f32.mrb[0].mxu0
        %v5359 = vpop.f32.mrb[0].mxu0
        %5360 = vdwg.mxu0
        %5361 = vmatprep.subr.bf16.mxu0 %v5309
        %5362 = vmatpush1.bf16.msra.mxu0 %v5306
        %5363 = vmatprep.subr.bf16.mxu0 0
        %5364 = vmatpush1.bf16.msra.mxu0 0
        %5365 = vmatprep.subr.bf16.mxu0 0
        %5366 = vmatpush1.bf16.msra.mxu0 0
        %5367 = vmatprep.subr.bf16.mxu0 0
        %5368 = vmatpush1.bf16.msra.mxu0 0
        %5369 = vmatprep.subr.bf16.mxu0 0
        %5370 = vmatpush1.bf16.msra.mxu0 0
        %5371 = vmatprep.subr.bf16.mxu0 0
        %5372 = vmatpush1.bf16.msra.mxu0 0
        %5373 = vmatprep.subr.bf16.mxu0 0
        %5374 = vmatpush1.bf16.msra.mxu0 0
        %5375 = vmatprep.subr.bf16.mxu0 0
        %5376 = vmatpush1.bf16.msra.mxu0 0
        %5377 = vmatprep.subr.bf16.mxu0 0
        %5378 = vmatpush1.bf16.msra.mxu0 0
        %5379 = vmatprep.subr.bf16.mxu0 0
        %5380 = vmatpush1.bf16.msra.mxu0 0
        %5381 = vmatprep.subr.bf16.mxu0 0
        %5382 = vmatpush1.bf16.msra.mxu0 0
        %5383 = vmatprep.subr.bf16.mxu0 0
        %5384 = vmatpush1.bf16.msra.mxu0 0
        %5385 = vmatprep.subr.bf16.mxu0 0
        %5386 = vmatpush1.bf16.msra.mxu0 0
        %5387 = vmatprep.subr.bf16.mxu0 0
        %5388 = vmatpush1.bf16.msra.mxu0 0
        %5389 = vmatprep.subr.bf16.mxu0 0
        %5390 = vmatpush1.bf16.msra.mxu0 0
        %5391 = vmatprep.subr.bf16.mxu0 0
        %5392 = vmatpush1.bf16.msra.mxu0 0
        %5393 = vmatprep.mubr.bf16.mxu0 0
        %5394 = vmatmul.mubr.bf16.gmra.mrb[0].mxu0 %v5297
        %v5395 = vpop.f32.mrb[0].mxu0
        %v5396 = vadd.f32 0.0, %v5395
        %v5397 = vpop.f32.mrb[0].mxu0
        %v5398 = vadd.f32 0.0, %v5397
        %v5399 = vpop.f32.mrb[0].mxu0
        %v5400 = vpop.f32.mrb[0].mxu0
        %5401 = vdwg.mxu0
        %5402 = vmatprep.subr.bf16.mxu0 %v5315
        %5403 = vmatpush1.bf16.msra.mxu0 %v5312
        %5404 = vmatprep.subr.bf16.mxu0 0
        %5405 = vmatpush1.bf16.msra.mxu0 0
        %5406 = vmatprep.subr.bf16.mxu0 0
        %5407 = vmatpush1.bf16.msra.mxu0 0
        %5408 = vmatprep.subr.bf16.mxu0 0
        %5409 = vmatpush1.bf16.msra.mxu0 0
        %5410 = vmatprep.subr.bf16.mxu0 0
        %5411 = vmatpush1.bf16.msra.mxu0 0
        %5412 = vmatprep.subr.bf16.mxu0 0
        %5413 = vmatpush1.bf16.msra.mxu0 0
        %5414 = vmatprep.subr.bf16.mxu0 0
        %5415 = vmatpush1.bf16.msra.mxu0 0
        %5416 = vmatprep.subr.bf16.mxu0 0
        %5417 = vmatpush1.bf16.msra.mxu0 0
        %5418 = vmatprep.subr.bf16.mxu0 0
        %5419 = vmatpush1.bf16.msra.mxu0 0
        %5420 = vmatprep.subr.bf16.mxu0 0
        %5421 = vmatpush1.bf16.msra.mxu0 0
        %5422 = vmatprep.subr.bf16.mxu0 0
        %5423 = vmatpush1.bf16.msra.mxu0 0
        %5424 = vmatprep.subr.bf16.mxu0 0
        %5425 = vmatpush1.bf16.msra.mxu0 0
        %5426 = vmatprep.subr.bf16.mxu0 0
        %5427 = vmatpush1.bf16.msra.mxu0 0
        %5428 = vmatprep.subr.bf16.mxu0 0
        %5429 = vmatpush1.bf16.msra.mxu0 0
        %5430 = vmatprep.subr.bf16.mxu0 0
        %5431 = vmatpush1.bf16.msra.mxu0 0
        %5432 = vmatprep.subr.bf16.mxu0 0
        %5433 = vmatpush1.bf16.msra.mxu0 0
        %5434 = vmatprep.mubr.bf16.mxu0 0
        %5435 = vmatmul.mubr.bf16.gmra.mrb[0].mxu0 %v5297
        %v5436 = vpop.f32.mrb[0].mxu0
        %v5437 = vadd.f32 0.0, %v5436
        %v5438 = vpop.f32.mrb[0].mxu0
        %v5439 = vadd.f32 0.0, %v5438
        %v5440 = vpop.f32.mrb[0].mxu0
        %v5441 = vpop.f32.mrb[0].mxu0
        %5442 = vdwg.mxu0
        %5443 = vmatprep.subr.bf16.mxu0 0
        %5444 = vmatpush1.bf16.msra.mxu0 %v5318
        %5445 = vmatprep.subr.bf16.mxu0 0
        %5446 = vmatpush1.bf16.msra.mxu0 0
        %5447 = vmatprep.subr.bf16.mxu0 0
        %5448 = vmatpush1.bf16.msra.mxu0 0
        %5449 = vmatprep.subr.bf16.mxu0 0
        %5450 = vmatpush1.bf16.msra.mxu0 0
        %5451 = vmatprep.subr.bf16.mxu0 0
        %5452 = vmatpush1.bf16.msra.mxu0 0
        %5453 = vmatprep.subr.bf16.mxu0 0
        %5454 = vmatpush1.bf16.msra.mxu0 0
        %5455 = vmatprep.subr.bf16.mxu0 0
        %5456 = vmatpush1.bf16.msra.mxu0 0
        %5457 = vmatprep.subr.bf16.mxu0 0
        %5458 = vmatpush1.bf16.msra.mxu0 0
        %5459 = vmatprep.subr.bf16.mxu0 0
        %5460 = vmatpush1.bf16.msra.mxu0 0
        %5461 = vmatprep.subr.bf16.mxu0 0
        %5462 = vmatpush1.bf16.msra.mxu0 0
        %5463 = vmatprep.subr.bf16.mxu0 0
        %5464 = vmatpush1.bf16.msra.mxu0 0
        %5465 = vmatprep.subr.bf16.mxu0 0
        %5466 = vmatpush1.bf16.msra.mxu0 0
        %5467 = vmatprep.subr.bf16.mxu0 0
        %5468 = vmatpush1.bf16.msra.mxu0 0
        %5469 = vmatprep.subr.bf16.mxu0 0
        %5470 = vmatpush1.bf16.msra.mxu0 0
        %5471 = vmatprep.subr.bf16.mxu0 0
        %5472 = vmatpush1.bf16.msra.mxu0 0
        %5473 = vmatprep.subr.bf16.mxu0 0
        %5474 = vmatpush1.bf16.msra.mxu0 0
        %5475 = vmatprep.mubr.bf16.mxu0 0
        %5476 = vmatmul.mubr.bf16.gmra.mrb[0].mxu0 %v5297
        %v5477 = vpop.f32.mrb[0].mxu0
        %v5478 = vadd.f32 0.0, %v5477
        %v5479 = vpop.f32.mrb[0].mxu0
        %v5480 = vpop.f32.mrb[0].mxu0
        %v5481 = vpop.f32.mrb[0].mxu0
        %5482 = vdwg.mxu0
        %v5483 = vadd.f32 %v5229, %v5355
        %v5484 = vadd.f32 %v5230, %v5357
        %v5485 = vadd.f32 %v5231, %v5396
        %v5486 = vadd.f32 %v5232, %v5398
        %v5487 = vadd.f32 %v5233, %v5437
        %v5488 = vadd.f32 %v5234, %v5439
        %v5489 = vadd.f32 %v5235, %v5478
        %s5490 = scalar_lea.vmem [#allocation5], 84
        %v5491 = vld [vmem:[%s5490] sm:$0xf]
        %v5492 = vld [vmem:[%s183 + $0x2] sm:$0xff]
        %v5493 = vld [vmem:[%s183 + $0xa] sm:$0x3f]
        %v5496 = vcombine.high %v5492, %v5492
        %v5498 = vunpack.c.l.s4 1983009808
        %v5499 = vunpack.c.0.s8 %v5498
        %v5500 = vlaneseq
        %v5501 = vshrl.u32 %v5500, 7
        %v5502 = vsub.s32 %v5499, %v5501
        %v5503 = vrot.slane %v5492, %v5502
        %v5505 = vunpack.c.l.s4 1983009808
        %v5506 = vunpack.c.0.s8 %v5505
        %v5507 = vlaneseq
        %v5508 = vshrl.u32 %v5507, 7
        %v5509 = vsub.s32 %v5506, %v5508
        %v5510 = vrot.slane %v5496, %v5509
        %v5511 = vcombine.high %v5503, %v5503
        %v5512 = vcombine.high %v5510, %v5510
        %v5513 = vcombine.high %v5493, %v5493
        %v5515 = vunpack.c.l.s4 1983009808
        %v5516 = vunpack.c.0.s8 %v5515
        %v5517 = vlaneseq
        %v5518 = vshrl.u32 %v5517, 7
        %v5519 = vsub.s32 %v5516, %v5518
        %v5520 = vrot.slane %v5493, %v5519
        %v5522 = vunpack.c.l.s4 1983009808
        %v5523 = vunpack.c.0.s8 %v5522
        %v5524 = vlaneseq
        %v5525 = vshrl.u32 %v5524, 7
        %v5526 = vsub.s32 %v5523, %v5525
        %v5527 = vrot.slane %v5513, %v5526
        %v5528 = vcombine.high %v5520, %v5520
        %5529 = vrot.lane.b32.xlu0 %v5503, 46
        %v5530 = vpop.permute.xlu0 %5529
        %5531 = vrot.lane.b32.xlu0 %v5511, 46
        %v5532 = vpop.permute.xlu0 %5531
        %5533 = vrot.lane.b32.xlu0 %v5510, 46
        %v5534 = vpop.permute.xlu0 %5533
        %5535 = vrot.lane.b32.xlu0 %v5512, 46
        %v5536 = vpop.permute.xlu0 %5535
        %5537 = vrot.lane.b32.xlu0 %v5520, 46
        %v5538 = vpop.permute.xlu0 %5537
        %5539 = vrot.lane.b32.xlu0 %v5528, 46
        %v5540 = vpop.permute.xlu0 %5539
        %5541 = vrot.lane.b32.xlu0 %v5527, 46
        %v5542 = vpop.permute.xlu0 %5541
        %vm5543 = vcmask 375808
        %v5544 = vsel %vm5543, %v5530, %v5532
        %v5545 = vsel %vm5543, %v5532, %v5534
        %v5546 = vsel %vm5543, %v5534, %v5536
        %v5547 = vsel %vm5543, %v5536, %v5538
        %v5548 = vsel %vm5543, %v5538, %v5540
        %v5549 = vsel %vm5543, %v5540, %v5542
        %v5551 = vsel %vm276, %v5491, 0
        %v5554 = vsel %vm280, %v5544, 0
        %v5557 = vsel %vm280, %v5545, 0
        %v5560 = vsel %vm280, %v5546, 0
        %v5563 = vsel %vm280, %v5547, 0
        %v5566 = vsel %vm280, %v5548, 0
        %v5569 = vsel %vm280, %v5549, 0
        %v5572 = vsel %vm280, %v5542, 0
        %5574 = vmatprep.subr.bf16.mxu0 %v5557
        %5575 = vmatpush1.bf16.msra.mxu0 %v5554
        %5576 = vmatprep.subr.bf16.mxu0 0
        %5577 = vmatpush1.bf16.msra.mxu0 0
        %5578 = vmatprep.subr.bf16.mxu0 0
        %5579 = vmatpush1.bf16.msra.mxu0 0
        %5580 = vmatprep.subr.bf16.mxu0 0
        %5581 = vmatpush1.bf16.msra.mxu0 0
        %5582 = vmatprep.subr.bf16.mxu0 0
        %5583 = vmatpush1.bf16.msra.mxu0 0
        %5584 = vmatprep.subr.bf16.mxu0 0
        %5585 = vmatpush1.bf16.msra.mxu0 0
        %5586 = vmatprep.subr.bf16.mxu0 0
        %5587 = vmatpush1.bf16.msra.mxu0 0
        %5588 = vmatprep.subr.bf16.mxu0 0
        %5589 = vmatpush1.bf16.msra.mxu0 0
        %5590 = vmatprep.subr.bf16.mxu0 0
        %5591 = vmatpush1.bf16.msra.mxu0 0
        %5592 = vmatprep.subr.bf16.mxu0 0
        %5593 = vmatpush1.bf16.msra.mxu0 0
        %5594 = vmatprep.subr.bf16.mxu0 0
        %5595 = vmatpush1.bf16.msra.mxu0 0
        %5596 = vmatprep.subr.bf16.mxu0 0
        %5597 = vmatpush1.bf16.msra.mxu0 0
        %5598 = vmatprep.subr.bf16.mxu0 0
        %5599 = vmatpush1.bf16.msra.mxu0 0
        %5600 = vmatprep.subr.bf16.mxu0 0
        %5601 = vmatpush1.bf16.msra.mxu0 0
        %5602 = vmatprep.subr.bf16.mxu0 0
        %5603 = vmatpush1.bf16.msra.mxu0 0
        %5604 = vmatprep.subr.bf16.mxu0 0
        %5605 = vmatpush1.bf16.msra.mxu0 0
        %5606 = vmatprep.mubr.bf16.mxu0 0
        %5607 = vmatmul.mubr.bf16.gmra.mrb[0].mxu0 %v5551
        %v5608 = vpop.f32.mrb[0].mxu0
        %v5609 = vadd.f32 0.0, %v5608
        %v5610 = vpop.f32.mrb[0].mxu0
        %v5611 = vadd.f32 0.0, %v5610
        %v5612 = vpop.f32.mrb[0].mxu0
        %v5613 = vpop.f32.mrb[0].mxu0
        %5614 = vdwg.mxu0
        %5615 = vmatprep.subr.bf16.mxu0 %v5563
        %5616 = vmatpush1.bf16.msra.mxu0 %v5560
        %5617 = vmatprep.subr.bf16.mxu0 0
        %5618 = vmatpush1.bf16.msra.mxu0 0
        %5619 = vmatprep.subr.bf16.mxu0 0
        %5620 = vmatpush1.bf16.msra.mxu0 0
        %5621 = vmatprep.subr.bf16.mxu0 0
        %5622 = vmatpush1.bf16.msra.mxu0 0
        %5623 = vmatprep.subr.bf16.mxu0 0
        %5624 = vmatpush1.bf16.msra.mxu0 0
        %5625 = vmatprep.subr.bf16.mxu0 0
        %5626 = vmatpush1.bf16.msra.mxu0 0
        %5627 = vmatprep.subr.bf16.mxu0 0
        %5628 = vmatpush1.bf16.msra.mxu0 0
        %5629 = vmatprep.subr.bf16.mxu0 0
        %5630 = vmatpush1.bf16.msra.mxu0 0
        %5631 = vmatprep.subr.bf16.mxu0 0
        %5632 = vmatpush1.bf16.msra.mxu0 0
        %5633 = vmatprep.subr.bf16.mxu0 0
        %5634 = vmatpush1.bf16.msra.mxu0 0
        %5635 = vmatprep.subr.bf16.mxu0 0
        %5636 = vmatpush1.bf16.msra.mxu0 0
        %5637 = vmatprep.subr.bf16.mxu0 0
        %5638 = vmatpush1.bf16.msra.mxu0 0
        %5639 = vmatprep.subr.bf16.mxu0 0
        %5640 = vmatpush1.bf16.msra.mxu0 0
        %5641 = vmatprep.subr.bf16.mxu0 0
        %5642 = vmatpush1.bf16.msra.mxu0 0
        %5643 = vmatprep.subr.bf16.mxu0 0
        %5644 = vmatpush1.bf16.msra.mxu0 0
        %5645 = vmatprep.subr.bf16.mxu0 0
        %5646 = vmatpush1.bf16.msra.mxu0 0
        %5647 = vmatprep.mubr.bf16.mxu0 0
        %5648 = vmatmul.mubr.bf16.gmra.mrb[0].mxu0 %v5551
        %v5649 = vpop.f32.mrb[0].mxu0
        %v5650 = vadd.f32 0.0, %v5649
        %v5651 = vpop.f32.mrb[0].mxu0
        %v5652 = vadd.f32 0.0, %v5651
        %v5653 = vpop.f32.mrb[0].mxu0
        %v5654 = vpop.f32.mrb[0].mxu0
        %5655 = vdwg.mxu0
        %5656 = vmatprep.subr.bf16.mxu0 %v5569
        %5657 = vmatpush1.bf16.msra.mxu0 %v5566
        %5658 = vmatprep.subr.bf16.mxu0 0
        %5659 = vmatpush1.bf16.msra.mxu0 0
        %5660 = vmatprep.subr.bf16.mxu0 0
        %5661 = vmatpush1.bf16.msra.mxu0 0
        %5662 = vmatprep.subr.bf16.mxu0 0
        %5663 = vmatpush1.bf16.msra.mxu0 0
        %5664 = vmatprep.subr.bf16.mxu0 0
        %5665 = vmatpush1.bf16.msra.mxu0 0
        %5666 = vmatprep.subr.bf16.mxu0 0
        %5667 = vmatpush1.bf16.msra.mxu0 0
        %5668 = vmatprep.subr.bf16.mxu0 0
        %5669 = vmatpush1.bf16.msra.mxu0 0
        %5670 = vmatprep.subr.bf16.mxu0 0
        %5671 = vmatpush1.bf16.msra.mxu0 0
        %5672 = vmatprep.subr.bf16.mxu0 0
        %5673 = vmatpush1.bf16.msra.mxu0 0
        %5674 = vmatprep.subr.bf16.mxu0 0
        %5675 = vmatpush1.bf16.msra.mxu0 0
        %5676 = vmatprep.subr.bf16.mxu0 0
        %5677 = vmatpush1.bf16.msra.mxu0 0
        %5678 = vmatprep.subr.bf16.mxu0 0
        %5679 = vmatpush1.bf16.msra.mxu0 0
        %5680 = vmatprep.subr.bf16.mxu0 0
        %5681 = vmatpush1.bf16.msra.mxu0 0
        %5682 = vmatprep.subr.bf16.mxu0 0
        %5683 = vmatpush1.bf16.msra.mxu0 0
        %5684 = vmatprep.subr.bf16.mxu0 0
        %5685 = vmatpush1.bf16.msra.mxu0 0
        %5686 = vmatprep.subr.bf16.mxu0 0
        %5687 = vmatpush1.bf16.msra.mxu0 0
        %5688 = vmatprep.mubr.bf16.mxu0 0
        %5689 = vmatmul.mubr.bf16.gmra.mrb[0].mxu0 %v5551
        %v5690 = vpop.f32.mrb[0].mxu0
        %v5691 = vadd.f32 0.0, %v5690
        %v5692 = vpop.f32.mrb[0].mxu0
        %v5693 = vadd.f32 0.0, %v5692
        %v5694 = vpop.f32.mrb[0].mxu0
        %v5695 = vpop.f32.mrb[0].mxu0
        %5696 = vdwg.mxu0
        %5697 = vmatprep.subr.bf16.mxu0 0
        %5698 = vmatpush1.bf16.msra.mxu0 %v5572
        %5699 = vmatprep.subr.bf16.mxu0 0
        %5700 = vmatpush1.bf16.msra.mxu0 0
        %5701 = vmatprep.subr.bf16.mxu0 0
        %5702 = vmatpush1.bf16.msra.mxu0 0
        %5703 = vmatprep.subr.bf16.mxu0 0
        %5704 = vmatpush1.bf16.msra.mxu0 0
        %5705 = vmatprep.subr.bf16.mxu0 0
        %5706 = vmatpush1.bf16.msra.mxu0 0
        %5707 = vmatprep.subr.bf16.mxu0 0
        %5708 = vmatpush1.bf16.msra.mxu0 0
        %5709 = vmatprep.subr.bf16.mxu0 0
        %5710 = vmatpush1.bf16.msra.mxu0 0
        %5711 = vmatprep.subr.bf16.mxu0 0
        %5712 = vmatpush1.bf16.msra.mxu0 0
        %5713 = vmatprep.subr.bf16.mxu0 0
        %5714 = vmatpush1.bf16.msra.mxu0 0
        %5715 = vmatprep.subr.bf16.mxu0 0
        %5716 = vmatpush1.bf16.msra.mxu0 0
        %5717 = vmatprep.subr.bf16.mxu0 0
        %5718 = vmatpush1.bf16.msra.mxu0 0
        %5719 = vmatprep.subr.bf16.mxu0 0
        %5720 = vmatpush1.bf16.msra.mxu0 0
        %5721 = vmatprep.subr.bf16.mxu0 0
        %5722 = vmatpush1.bf16.msra.mxu0 0
        %5723 = vmatprep.subr.bf16.mxu0 0
        %5724 = vmatpush1.bf16.msra.mxu0 0
        %5725 = vmatprep.subr.bf16.mxu0 0
        %5726 = vmatpush1.bf16.msra.mxu0 0
        %5727 = vmatprep.subr.bf16.mxu0 0
        %5728 = vmatpush1.bf16.msra.mxu0 0
        %5729 = vmatprep.mubr.bf16.mxu0 0
        %5730 = vmatmul.mubr.bf16.gmra.mrb[0].mxu0 %v5551
        %v5731 = vpop.f32.mrb[0].mxu0
        %v5732 = vadd.f32 0.0, %v5731
        %v5733 = vpop.f32.mrb[0].mxu0
        %v5734 = vpop.f32.mrb[0].mxu0
        %v5735 = vpop.f32.mrb[0].mxu0
        %5736 = vdwg.mxu0
        %v5737 = vadd.f32 %v5483, %v5609
        %v5738 = vadd.f32 %v5484, %v5611
        %v5739 = vadd.f32 %v5485, %v5650
        %v5740 = vadd.f32 %v5486, %v5652
        %v5741 = vadd.f32 %v5487, %v5691
        %v5742 = vadd.f32 %v5488, %v5693
        %v5743 = vadd.f32 %v5489, %v5732
        %s5744 = scalar_lea.vmem [#allocation5], 88
        %v5745 = vld [vmem:[%s5744] sm:$0xf]
        %v5746 = vld [vmem:[%s183 + $0x2] sm:$0xff]
        %v5747 = vld [vmem:[%s183 + $0xa] sm:$0x3f]
        %v5750 = vcombine.high %v5746, %v5746
        %v5752 = vunpack.c.l.s4 1983009808
        %v5753 = vunpack.c.0.s8 %v5752
        %v5754 = vlaneseq
        %v5755 = vshrl.u32 %v5754, 7
        %v5756 = vsub.s32 %v5753, %v5755
        %v5757 = vrot.slane %v5746, %v5756
        %v5759 = vunpack.c.l.s4 1983009808
        %v5760 = vunpack.c.0.s8 %v5759
        %v5761 = vlaneseq
        %v5762 = vshrl.u32 %v5761, 7
        %v5763 = vsub.s32 %v5760, %v5762
        %v5764 = vrot.slane %v5750, %v5763
        %v5765 = vcombine.high %v5757, %v5757
        %v5766 = vcombine.high %v5764, %v5764
        %v5767 = vcombine.high %v5747, %v5747
        %v5769 = vunpack.c.l.s4 1983009808
        %v5770 = vunpack.c.0.s8 %v5769
        %v5771 = vlaneseq
        %v5772 = vshrl.u32 %v5771, 7
        %v5773 = vsub.s32 %v5770, %v5772
        %v5774 = vrot.slane %v5747, %v5773
        %v5776 = vunpack.c.l.s4 1983009808
        %v5777 = vunpack.c.0.s8 %v5776
        %v5778 = vlaneseq
        %v5779 = vshrl.u32 %v5778, 7
        %v5780 = vsub.s32 %v5777, %v5779
        %v5781 = vrot.slane %v5767, %v5780
        %v5782 = vcombine.high %v5774, %v5774
        %5783 = vrot.lane.b32.xlu0 %v5757, 45
        %v5784 = vpop.permute.xlu0 %5783
        %5785 = vrot.lane.b32.xlu0 %v5765, 45
        %v5786 = vpop.permute.xlu0 %5785
        %5787 = vrot.lane.b32.xlu0 %v5764, 45
        %v5788 = vpop.permute.xlu0 %5787
        %5789 = vrot.lane.b32.xlu0 %v5766, 45
        %v5790 = vpop.permute.xlu0 %5789
        %5791 = vrot.lane.b32.xlu0 %v5774, 45
        %v5792 = vpop.permute.xlu0 %5791
        %5793 = vrot.lane.b32.xlu0 %v5782, 45
        %v5794 = vpop.permute.xlu0 %5793
        %5795 = vrot.lane.b32.xlu0 %v5781, 45
        %v5796 = vpop.permute.xlu0 %5795
        %vm5797 = vcmask 367616
        %v5798 = vsel %vm5797, %v5784, %v5786
        %v5799 = vsel %vm5797, %v5786, %v5788
        %v5800 = vsel %vm5797, %v5788, %v5790
        %v5801 = vsel %vm5797, %v5790, %v5792
        %v5802 = vsel %vm5797, %v5792, %v5794
        %v5803 = vsel %vm5797, %v5794, %v5796
        %v5805 = vsel %vm276, %v5745, 0
        %v5808 = vsel %vm280, %v5798, 0
        %v5811 = vsel %vm280, %v5799, 0
        %v5814 = vsel %vm280, %v5800, 0
        %v5817 = vsel %vm280, %v5801, 0
        %v5820 = vsel %vm280, %v5802, 0
        %v5823 = vsel %vm280, %v5803, 0
        %v5826 = vsel %vm280, %v5796, 0
        %5828 = vmatprep.subr.bf16.mxu0 %v5811
        %5829 = vmatpush1.bf16.msra.mxu0 %v5808
        %5830 = vmatprep.subr.bf16.mxu0 0
        %5831 = vmatpush1.bf16.msra.mxu0 0
        %5832 = vmatprep.subr.bf16.mxu0 0
        %5833 = vmatpush1.bf16.msra.mxu0 0
        %5834 = vmatprep.subr.bf16.mxu0 0
        %5835 = vmatpush1.bf16.msra.mxu0 0
        %5836 = vmatprep.subr.bf16.mxu0 0
        %5837 = vmatpush1.bf16.msra.mxu0 0
        %5838 = vmatprep.subr.bf16.mxu0 0
        %5839 = vmatpush1.bf16.msra.mxu0 0
        %5840 = vmatprep.subr.bf16.mxu0 0
        %5841 = vmatpush1.bf16.msra.mxu0 0
        %5842 = vmatprep.subr.bf16.mxu0 0
        %5843 = vmatpush1.bf16.msra.mxu0 0
        %5844 = vmatprep.subr.bf16.mxu0 0
        %5845 = vmatpush1.bf16.msra.mxu0 0
        %5846 = vmatprep.subr.bf16.mxu0 0
        %5847 = vmatpush1.bf16.msra.mxu0 0
        %5848 = vmatprep.subr.bf16.mxu0 0
        %5849 = vmatpush1.bf16.msra.mxu0 0
        %5850 = vmatprep.subr.bf16.mxu0 0
        %5851 = vmatpush1.bf16.msra.mxu0 0
        %5852 = vmatprep.subr.bf16.mxu0 0
        %5853 = vmatpush1.bf16.msra.mxu0 0
        %5854 = vmatprep.subr.bf16.mxu0 0
        %5855 = vmatpush1.bf16.msra.mxu0 0
        %5856 = vmatprep.subr.bf16.mxu0 0
        %5857 = vmatpush1.bf16.msra.mxu0 0
        %5858 = vmatprep.subr.bf16.mxu0 0
        %5859 = vmatpush1.bf16.msra.mxu0 0
        %5860 = vmatprep.mubr.bf16.mxu0 0
        %5861 = vmatmul.mubr.bf16.gmra.mrb[0].mxu0 %v5805
        %v5862 = vpop.f32.mrb[0].mxu0
        %v5863 = vadd.f32 0.0, %v5862
        %v5864 = vpop.f32.mrb[0].mxu0
        %v5865 = vadd.f32 0.0, %v5864
        %v5866 = vpop.f32.mrb[0].mxu0
        %v5867 = vpop.f32.mrb[0].mxu0
        %5868 = vdwg.mxu0
        %5869 = vmatprep.subr.bf16.mxu0 %v5817
        %5870 = vmatpush1.bf16.msra.mxu0 %v5814
        %5871 = vmatprep.subr.bf16.mxu0 0
        %5872 = vmatpush1.bf16.msra.mxu0 0
        %5873 = vmatprep.subr.bf16.mxu0 0
        %5874 = vmatpush1.bf16.msra.mxu0 0
        %5875 = vmatprep.subr.bf16.mxu0 0
        %5876 = vmatpush1.bf16.msra.mxu0 0
        %5877 = vmatprep.subr.bf16.mxu0 0
        %5878 = vmatpush1.bf16.msra.mxu0 0
        %5879 = vmatprep.subr.bf16.mxu0 0
        %5880 = vmatpush1.bf16.msra.mxu0 0
        %5881 = vmatprep.subr.bf16.mxu0 0
        %5882 = vmatpush1.bf16.msra.mxu0 0
        %5883 = vmatprep.subr.bf16.mxu0 0
        %5884 = vmatpush1.bf16.msra.mxu0 0
        %5885 = vmatprep.subr.bf16.mxu0 0
        %5886 = vmatpush1.bf16.msra.mxu0 0
        %5887 = vmatprep.subr.bf16.mxu0 0
        %5888 = vmatpush1.bf16.msra.mxu0 0
        %5889 = vmatprep.subr.bf16.mxu0 0
        %5890 = vmatpush1.bf16.msra.mxu0 0
        %5891 = vmatprep.subr.bf16.mxu0 0
        %5892 = vmatpush1.bf16.msra.mxu0 0
        %5893 = vmatprep.subr.bf16.mxu0 0
        %5894 = vmatpush1.bf16.msra.mxu0 0
        %5895 = vmatprep.subr.bf16.mxu0 0
        %5896 = vmatpush1.bf16.msra.mxu0 0
        %5897 = vmatprep.subr.bf16.mxu0 0
        %5898 = vmatpush1.bf16.msra.mxu0 0
        %5899 = vmatprep.subr.bf16.mxu0 0
        %5900 = vmatpush1.bf16.msra.mxu0 0
        %5901 = vmatprep.mubr.bf16.mxu0 0
        %5902 = vmatmul.mubr.bf16.gmra.mrb[0].mxu0 %v5805
        %v5903 = vpop.f32.mrb[0].mxu0
        %v5904 = vadd.f32 0.0, %v5903
        %v5905 = vpop.f32.mrb[0].mxu0
        %v5906 = vadd.f32 0.0, %v5905
        %v5907 = vpop.f32.mrb[0].mxu0
        %v5908 = vpop.f32.mrb[0].mxu0
        %5909 = vdwg.mxu0
        %5910 = vmatprep.subr.bf16.mxu0 %v5823
        %5911 = vmatpush1.bf16.msra.mxu0 %v5820
        %5912 = vmatprep.subr.bf16.mxu0 0
        %5913 = vmatpush1.bf16.msra.mxu0 0
        %5914 = vmatprep.subr.bf16.mxu0 0
        %5915 = vmatpush1.bf16.msra.mxu0 0
        %5916 = vmatprep.subr.bf16.mxu0 0
        %5917 = vmatpush1.bf16.msra.mxu0 0
        %5918 = vmatprep.subr.bf16.mxu0 0
        %5919 = vmatpush1.bf16.msra.mxu0 0
        %5920 = vmatprep.subr.bf16.mxu0 0
        %5921 = vmatpush1.bf16.msra.mxu0 0
        %5922 = vmatprep.subr.bf16.mxu0 0
        %5923 = vmatpush1.bf16.msra.mxu0 0
        %5924 = vmatprep.subr.bf16.mxu0 0
        %5925 = vmatpush1.bf16.msra.mxu0 0
        %5926 = vmatprep.subr.bf16.mxu0 0
        %5927 = vmatpush1.bf16.msra.mxu0 0
        %5928 = vmatprep.subr.bf16.mxu0 0
        %5929 = vmatpush1.bf16.msra.mxu0 0
        %5930 = vmatprep.subr.bf16.mxu0 0
        %5931 = vmatpush1.bf16.msra.mxu0 0
        %5932 = vmatprep.subr.bf16.mxu0 0
        %5933 = vmatpush1.bf16.msra.mxu0 0
        %5934 = vmatprep.subr.bf16.mxu0 0
        %5935 = vmatpush1.bf16.msra.mxu0 0
        %5936 = vmatprep.subr.bf16.mxu0 0
        %5937 = vmatpush1.bf16.msra.mxu0 0
        %5938 = vmatprep.subr.bf16.mxu0 0
        %5939 = vmatpush1.bf16.msra.mxu0 0
        %5940 = vmatprep.subr.bf16.mxu0 0
        %5941 = vmatpush1.bf16.msra.mxu0 0
        %5942 = vmatprep.mubr.bf16.mxu0 0
        %5943 = vmatmul.mubr.bf16.gmra.mrb[0].mxu0 %v5805
        %v5944 = vpop.f32.mrb[0].mxu0
        %v5945 = vadd.f32 0.0, %v5944
        %v5946 = vpop.f32.mrb[0].mxu0
        %v5947 = vadd.f32 0.0, %v5946
        %v5948 = vpop.f32.mrb[0].mxu0
        %v5949 = vpop.f32.mrb[0].mxu0
        %5950 = vdwg.mxu0
        %5951 = vmatprep.subr.bf16.mxu0 0
        %5952 = vmatpush1.bf16.msra.mxu0 %v5826
        %5953 = vmatprep.subr.bf16.mxu0 0
        %5954 = vmatpush1.bf16.msra.mxu0 0
        %5955 = vmatprep.subr.bf16.mxu0 0
        %5956 = vmatpush1.bf16.msra.mxu0 0
        %5957 = vmatprep.subr.bf16.mxu0 0
        %5958 = vmatpush1.bf16.msra.mxu0 0
        %5959 = vmatprep.subr.bf16.mxu0 0
        %5960 = vmatpush1.bf16.msra.mxu0 0
        %5961 = vmatprep.subr.bf16.mxu0 0
        %5962 = vmatpush1.bf16.msra.mxu0 0
        %5963 = vmatprep.subr.bf16.mxu0 0
        %5964 = vmatpush1.bf16.msra.mxu0 0
        %5965 = vmatprep.subr.bf16.mxu0 0
        %5966 = vmatpush1.bf16.msra.mxu0 0
        %5967 = vmatprep.subr.bf16.mxu0 0
        %5968 = vmatpush1.bf16.msra.mxu0 0
        %5969 = vmatprep.subr.bf16.mxu0 0
        %5970 = vmatpush1.bf16.msra.mxu0 0
        %5971 = vmatprep.subr.bf16.mxu0 0
        %5972 = vmatpush1.bf16.msra.mxu0 0
        %5973 = vmatprep.subr.bf16.mxu0 0
        %5974 = vmatpush1.bf16.msra.mxu0 0
        %5975 = vmatprep.subr.bf16.mxu0 0
        %5976 = vmatpush1.bf16.msra.mxu0 0
        %5977 = vmatprep.subr.bf16.mxu0 0
        %5978 = vmatpush1.bf16.msra.mxu0 0
        %5979 = vmatprep.subr.bf16.mxu0 0
        %5980 = vmatpush1.bf16.msra.mxu0 0
        %5981 = vmatprep.subr.bf16.mxu0 0
        %5982 = vmatpush1.bf16.msra.mxu0 0
        %5983 = vmatprep.mubr.bf16.mxu0 0
        %5984 = vmatmul.mubr.bf16.gmra.mrb[0].mxu0 %v5805
        %v5985 = vpop.f32.mrb[0].mxu0
        %v5986 = vadd.f32 0.0, %v5985
        %v5987 = vpop.f32.mrb[0].mxu0
        %v5988 = vpop.f32.mrb[0].mxu0
        %v5989 = vpop.f32.mrb[0].mxu0
        %5990 = vdwg.mxu0
        %v5991 = vadd.f32 %v5737, %v5863
        %v5992 = vadd.f32 %v5738, %v5865
        %v5993 = vadd.f32 %v5739, %v5904
        %v5994 = vadd.f32 %v5740, %v5906
        %v5995 = vadd.f32 %v5741, %v5945
        %v5996 = vadd.f32 %v5742, %v5947
        %v5997 = vadd.f32 %v5743, %v5986
        %s5998 = scalar_lea.vmem [#allocation5], 92
        %v5999 = vld [vmem:[%s5998] sm:$0xf]
        %v6000 = vld [vmem:[%s183 + $0x2] sm:$0xff]
        %v6001 = vld [vmem:[%s183 + $0xa] sm:$0x3f]
        %v6004 = vcombine.high %v6000, %v6000
        %v6006 = vunpack.c.l.s4 1983009808
        %v6007 = vunpack.c.0.s8 %v6006
        %v6008 = vlaneseq
        %v6009 = vshrl.u32 %v6008, 7
        %v6010 = vsub.s32 %v6007, %v6009
        %v6011 = vrot.slane %v6000, %v6010
        %v6013 = vunpack.c.l.s4 1983009808
        %v6014 = vunpack.c.0.s8 %v6013
        %v6015 = vlaneseq
        %v6016 = vshrl.u32 %v6015, 7
        %v6017 = vsub.s32 %v6014, %v6016
        %v6018 = vrot.slane %v6004, %v6017
        %v6019 = vcombine.high %v6011, %v6011
        %v6020 = vcombine.high %v6018, %v6018
        %v6021 = vcombine.high %v6001, %v6001
        %v6023 = vunpack.c.l.s4 1983009808
        %v6024 = vunpack.c.0.s8 %v6023
        %v6025 = vlaneseq
        %v6026 = vshrl.u32 %v6025, 7
        %v6027 = vsub.s32 %v6024, %v6026
        %v6028 = vrot.slane %v6001, %v6027
        %v6030 = vunpack.c.l.s4 1983009808
        %v6031 = vunpack.c.0.s8 %v6030
        %v6032 = vlaneseq
        %v6033 = vshrl.u32 %v6032, 7
        %v6034 = vsub.s32 %v6031, %v6033
        %v6035 = vrot.slane %v6021, %v6034
        %v6036 = vcombine.high %v6028, %v6028
        %6037 = vrot.lane.b32.xlu0 %v6011, 44
        %v6038 = vpop.permute.xlu0 %6037
        %6039 = vrot.lane.b32.xlu0 %v6019, 44
        %v6040 = vpop.permute.xlu0 %6039
        %6041 = vrot.lane.b32.xlu0 %v6018, 44
        %v6042 = vpop.permute.xlu0 %6041
        %6043 = vrot.lane.b32.xlu0 %v6020, 44
        %v6044 = vpop.permute.xlu0 %6043
        %6045 = vrot.lane.b32.xlu0 %v6028, 44
        %v6046 = vpop.permute.xlu0 %6045
        %6047 = vrot.lane.b32.xlu0 %v6036, 44
        %v6048 = vpop.permute.xlu0 %6047
        %6049 = vrot.lane.b32.xlu0 %v6035, 44
        %v6050 = vpop.permute.xlu0 %6049
        %vm6051 = vcmask 359424
        %v6052 = vsel %vm6051, %v6038, %v6040
        %v6053 = vsel %vm6051, %v6040, %v6042
        %v6054 = vsel %vm6051, %v6042, %v6044
        %v6055 = vsel %vm6051, %v6044, %v6046
        %v6056 = vsel %vm6051, %v6046, %v6048
        %v6057 = vsel %vm6051, %v6048, %v6050
        %v6059 = vsel %vm276, %v5999, 0
        %v6062 = vsel %vm280, %v6052, 0
        %v6065 = vsel %vm280, %v6053, 0
        %v6068 = vsel %vm280, %v6054, 0
        %v6071 = vsel %vm280, %v6055, 0
        %v6074 = vsel %vm280, %v6056, 0
        %v6077 = vsel %vm280, %v6057, 0
        %v6080 = vsel %vm280, %v6050, 0
        %6082 = vmatprep.subr.bf16.mxu0 %v6065
        %6083 = vmatpush1.bf16.msra.mxu0 %v6062
        %6084 = vmatprep.subr.bf16.mxu0 0
        %6085 = vmatpush1.bf16.msra.mxu0 0
        %6086 = vmatprep.subr.bf16.mxu0 0
        %6087 = vmatpush1.bf16.msra.mxu0 0
        %6088 = vmatprep.subr.bf16.mxu0 0
        %6089 = vmatpush1.bf16.msra.mxu0 0
        %6090 = vmatprep.subr.bf16.mxu0 0
        %6091 = vmatpush1.bf16.msra.mxu0 0
        %6092 = vmatprep.subr.bf16.mxu0 0
        %6093 = vmatpush1.bf16.msra.mxu0 0
        %6094 = vmatprep.subr.bf16.mxu0 0
        %6095 = vmatpush1.bf16.msra.mxu0 0
        %6096 = vmatprep.subr.bf16.mxu0 0
        %6097 = vmatpush1.bf16.msra.mxu0 0
        %6098 = vmatprep.subr.bf16.mxu0 0
        %6099 = vmatpush1.bf16.msra.mxu0 0
        %6100 = vmatprep.subr.bf16.mxu0 0
        %6101 = vmatpush1.bf16.msra.mxu0 0
        %6102 = vmatprep.subr.bf16.mxu0 0
        %6103 = vmatpush1.bf16.msra.mxu0 0
        %6104 = vmatprep.subr.bf16.mxu0 0
        %6105 = vmatpush1.bf16.msra.mxu0 0
        %6106 = vmatprep.subr.bf16.mxu0 0
        %6107 = vmatpush1.bf16.msra.mxu0 0
        %6108 = vmatprep.subr.bf16.mxu0 0
        %6109 = vmatpush1.bf16.msra.mxu0 0
        %6110 = vmatprep.subr.bf16.mxu0 0
        %6111 = vmatpush1.bf16.msra.mxu0 0
        %6112 = vmatprep.subr.bf16.mxu0 0
        %6113 = vmatpush1.bf16.msra.mxu0 0
        %6114 = vmatprep.mubr.bf16.mxu0 0
        %6115 = vmatmul.mubr.bf16.gmra.mrb[0].mxu0 %v6059
        %v6116 = vpop.f32.mrb[0].mxu0
        %v6117 = vadd.f32 0.0, %v6116
        %v6118 = vpop.f32.mrb[0].mxu0
        %v6119 = vadd.f32 0.0, %v6118
        %v6120 = vpop.f32.mrb[0].mxu0
        %v6121 = vpop.f32.mrb[0].mxu0
        %6122 = vdwg.mxu0
        %6123 = vmatprep.subr.bf16.mxu0 %v6071
        %6124 = vmatpush1.bf16.msra.mxu0 %v6068
        %6125 = vmatprep.subr.bf16.mxu0 0
        %6126 = vmatpush1.bf16.msra.mxu0 0
        %6127 = vmatprep.subr.bf16.mxu0 0
        %6128 = vmatpush1.bf16.msra.mxu0 0
        %6129 = vmatprep.subr.bf16.mxu0 0
        %6130 = vmatpush1.bf16.msra.mxu0 0
        %6131 = vmatprep.subr.bf16.mxu0 0
        %6132 = vmatpush1.bf16.msra.mxu0 0
        %6133 = vmatprep.subr.bf16.mxu0 0
        %6134 = vmatpush1.bf16.msra.mxu0 0
        %6135 = vmatprep.subr.bf16.mxu0 0
        %6136 = vmatpush1.bf16.msra.mxu0 0
        %6137 = vmatprep.subr.bf16.mxu0 0
        %6138 = vmatpush1.bf16.msra.mxu0 0
        %6139 = vmatprep.subr.bf16.mxu0 0
        %6140 = vmatpush1.bf16.msra.mxu0 0
        %6141 = vmatprep.subr.bf16.mxu0 0
        %6142 = vmatpush1.bf16.msra.mxu0 0
        %6143 = vmatprep.subr.bf16.mxu0 0
        %6144 = vmatpush1.bf16.msra.mxu0 0
        %6145 = vmatprep.subr.bf16.mxu0 0
        %6146 = vmatpush1.bf16.msra.mxu0 0
        %6147 = vmatprep.subr.bf16.mxu0 0
        %6148 = vmatpush1.bf16.msra.mxu0 0
        %6149 = vmatprep.subr.bf16.mxu0 0
        %6150 = vmatpush1.bf16.msra.mxu0 0
        %6151 = vmatprep.subr.bf16.mxu0 0
        %6152 = vmatpush1.bf16.msra.mxu0 0
        %6153 = vmatprep.subr.bf16.mxu0 0
        %6154 = vmatpush1.bf16.msra.mxu0 0
        %6155 = vmatprep.mubr.bf16.mxu0 0
        %6156 = vmatmul.mubr.bf16.gmra.mrb[0].mxu0 %v6059
        %v6157 = vpop.f32.mrb[0].mxu0
        %v6158 = vadd.f32 0.0, %v6157
        %v6159 = vpop.f32.mrb[0].mxu0
        %v6160 = vadd.f32 0.0, %v6159
        %v6161 = vpop.f32.mrb[0].mxu0
        %v6162 = vpop.f32.mrb[0].mxu0
        %6163 = vdwg.mxu0
        %6164 = vmatprep.subr.bf16.mxu0 %v6077
        %6165 = vmatpush1.bf16.msra.mxu0 %v6074
        %6166 = vmatprep.subr.bf16.mxu0 0
        %6167 = vmatpush1.bf16.msra.mxu0 0
        %6168 = vmatprep.subr.bf16.mxu0 0
        %6169 = vmatpush1.bf16.msra.mxu0 0
        %6170 = vmatprep.subr.bf16.mxu0 0
        %6171 = vmatpush1.bf16.msra.mxu0 0
        %6172 = vmatprep.subr.bf16.mxu0 0
        %6173 = vmatpush1.bf16.msra.mxu0 0
        %6174 = vmatprep.subr.bf16.mxu0 0
        %6175 = vmatpush1.bf16.msra.mxu0 0
        %6176 = vmatprep.subr.bf16.mxu0 0
        %6177 = vmatpush1.bf16.msra.mxu0 0
        %6178 = vmatprep.subr.bf16.mxu0 0
        %6179 = vmatpush1.bf16.msra.mxu0 0
        %6180 = vmatprep.subr.bf16.mxu0 0
        %6181 = vmatpush1.bf16.msra.mxu0 0
        %6182 = vmatprep.subr.bf16.mxu0 0
        %6183 = vmatpush1.bf16.msra.mxu0 0
        %6184 = vmatprep.subr.bf16.mxu0 0
        %6185 = vmatpush1.bf16.msra.mxu0 0
        %6186 = vmatprep.subr.bf16.mxu0 0
        %6187 = vmatpush1.bf16.msra.mxu0 0
        %6188 = vmatprep.subr.bf16.mxu0 0
        %6189 = vmatpush1.bf16.msra.mxu0 0
        %6190 = vmatprep.subr.bf16.mxu0 0
        %6191 = vmatpush1.bf16.msra.mxu0 0
        %6192 = vmatprep.subr.bf16.mxu0 0
        %6193 = vmatpush1.bf16.msra.mxu0 0
        %6194 = vmatprep.subr.bf16.mxu0 0
        %6195 = vmatpush1.bf16.msra.mxu0 0
        %6196 = vmatprep.mubr.bf16.mxu0 0
        %6197 = vmatmul.mubr.bf16.gmra.mrb[0].mxu0 %v6059
        %v6198 = vpop.f32.mrb[0].mxu0
        %v6199 = vadd.f32 0.0, %v6198
        %v6200 = vpop.f32.mrb[0].mxu0
        %v6201 = vadd.f32 0.0, %v6200
        %v6202 = vpop.f32.mrb[0].mxu0
        %v6203 = vpop.f32.mrb[0].mxu0
        %6204 = vdwg.mxu0
        %6205 = vmatprep.subr.bf16.mxu0 0
        %6206 = vmatpush1.bf16.msra.mxu0 %v6080
        %6207 = vmatprep.subr.bf16.mxu0 0
        %6208 = vmatpush1.bf16.msra.mxu0 0
        %6209 = vmatprep.subr.bf16.mxu0 0
        %6210 = vmatpush1.bf16.msra.mxu0 0
        %6211 = vmatprep.subr.bf16.mxu0 0
        %6212 = vmatpush1.bf16.msra.mxu0 0
        %6213 = vmatprep.subr.bf16.mxu0 0
        %6214 = vmatpush1.bf16.msra.mxu0 0
        %6215 = vmatprep.subr.bf16.mxu0 0
        %6216 = vmatpush1.bf16.msra.mxu0 0
        %6217 = vmatprep.subr.bf16.mxu0 0
        %6218 = vmatpush1.bf16.msra.mxu0 0
        %6219 = vmatprep.subr.bf16.mxu0 0
        %6220 = vmatpush1.bf16.msra.mxu0 0
        %6221 = vmatprep.subr.bf16.mxu0 0
        %6222 = vmatpush1.bf16.msra.mxu0 0
        %6223 = vmatprep.subr.bf16.mxu0 0
        %6224 = vmatpush1.bf16.msra.mxu0 0
        %6225 = vmatprep.subr.bf16.mxu0 0
        %6226 = vmatpush1.bf16.msra.mxu0 0
        %6227 = vmatprep.subr.bf16.mxu0 0
        %6228 = vmatpush1.bf16.msra.mxu0 0
        %6229 = vmatprep.subr.bf16.mxu0 0
        %6230 = vmatpush1.bf16.msra.mxu0 0
        %6231 = vmatprep.subr.bf16.mxu0 0
        %6232 = vmatpush1.bf16.msra.mxu0 0
        %6233 = vmatprep.subr.bf16.mxu0 0
        %6234 = vmatpush1.bf16.msra.mxu0 0
        %6235 = vmatprep.subr.bf16.mxu0 0
        %6236 = vmatpush1.bf16.msra.mxu0 0
        %6237 = vmatprep.mubr.bf16.mxu0 0
        %6238 = vmatmul.mubr.bf16.gmra.mrb[0].mxu0 %v6059
        %v6239 = vpop.f32.mrb[0].mxu0
        %v6240 = vadd.f32 0.0, %v6239
        %v6241 = vpop.f32.mrb[0].mxu0
        %v6242 = vpop.f32.mrb[0].mxu0
        %v6243 = vpop.f32.mrb[0].mxu0
        %6244 = vdwg.mxu0
        %v6245 = vadd.f32 %v5991, %v6117
        %v6246 = vadd.f32 %v5992, %v6119
        %v6247 = vadd.f32 %v5993, %v6158
        %v6248 = vadd.f32 %v5994, %v6160
        %v6249 = vadd.f32 %v5995, %v6199
        %v6250 = vadd.f32 %v5996, %v6201
        %v6251 = vadd.f32 %v5997, %v6240
        %s6252 = scalar_lea.vmem [#allocation5], 96
        %v6253 = vld [vmem:[%s6252] sm:$0xf]
        %v6254 = vld [vmem:[%s183 + $0x2] sm:$0xff]
        %v6255 = vld [vmem:[%s183 + $0xa] sm:$0x3f]
        %v6258 = vcombine.high %v6254, %v6254
        %v6260 = vunpack.c.l.s4 1983009808
        %v6261 = vunpack.c.0.s8 %v6260
        %v6262 = vlaneseq
        %v6263 = vshrl.u32 %v6262, 7
        %v6264 = vsub.s32 %v6261, %v6263
        %v6265 = vrot.slane %v6254, %v6264
        %v6267 = vunpack.c.l.s4 1983009808
        %v6268 = vunpack.c.0.s8 %v6267
        %v6269 = vlaneseq
        %v6270 = vshrl.u32 %v6269, 7
        %v6271 = vsub.s32 %v6268, %v6270
        %v6272 = vrot.slane %v6258, %v6271
        %v6273 = vcombine.high %v6265, %v6265
        %v6274 = vcombine.high %v6272, %v6272
        %v6275 = vcombine.high %v6255, %v6255
        %v6277 = vunpack.c.l.s4 1983009808
        %v6278 = vunpack.c.0.s8 %v6277
        %v6279 = vlaneseq
        %v6280 = vshrl.u32 %v6279, 7
        %v6281 = vsub.s32 %v6278, %v6280
        %v6282 = vrot.slane %v6255, %v6281
        %v6284 = vunpack.c.l.s4 1983009808
        %v6285 = vunpack.c.0.s8 %v6284
        %v6286 = vlaneseq
        %v6287 = vshrl.u32 %v6286, 7
        %v6288 = vsub.s32 %v6285, %v6287
        %v6289 = vrot.slane %v6275, %v6288
        %v6290 = vcombine.high %v6282, %v6282
        %6291 = vrot.lane.b32.xlu0 %v6265, 36
        %v6292 = vpop.permute.xlu0 %6291
        %6293 = vrot.lane.b32.xlu0 %v6273, 36
        %v6294 = vpop.permute.xlu0 %6293
        %6295 = vrot.lane.b32.xlu0 %v6272, 36
        %v6296 = vpop.permute.xlu0 %6295
        %6297 = vrot.lane.b32.xlu0 %v6274, 36
        %v6298 = vpop.permute.xlu0 %6297
        %6299 = vrot.lane.b32.xlu0 %v6282, 36
        %v6300 = vpop.permute.xlu0 %6299
        %6301 = vrot.lane.b32.xlu0 %v6290, 36
        %v6302 = vpop.permute.xlu0 %6301
        %6303 = vrot.lane.b32.xlu0 %v6289, 36
        %v6304 = vpop.permute.xlu0 %6303
        %vm6305 = vcmask 293888
        %v6306 = vsel %vm6305, %v6292, %v6294
        %v6307 = vsel %vm6305, %v6294, %v6296
        %v6308 = vsel %vm6305, %v6296, %v6298
        %v6309 = vsel %vm6305, %v6298, %v6300
        %v6310 = vsel %vm6305, %v6300, %v6302
        %v6311 = vsel %vm6305, %v6302, %v6304
        %v6313 = vsel %vm276, %v6253, 0
        %v6316 = vsel %vm280, %v6306, 0
        %v6319 = vsel %vm280, %v6307, 0
        %v6322 = vsel %vm280, %v6308, 0
        %v6325 = vsel %vm280, %v6309, 0
        %v6328 = vsel %vm280, %v6310, 0
        %v6331 = vsel %vm280, %v6311, 0
        %v6334 = vsel %vm280, %v6304, 0
        %6336 = vmatprep.subr.bf16.mxu0 %v6319
        %6337 = vmatpush1.bf16.msra.mxu0 %v6316
        %6338 = vmatprep.subr.bf16.mxu0 0
        %6339 = vmatpush1.bf16.msra.mxu0 0
        %6340 = vmatprep.subr.bf16.mxu0 0
        %6341 = vmatpush1.bf16.msra.mxu0 0
        %6342 = vmatprep.subr.bf16.mxu0 0
        %6343 = vmatpush1.bf16.msra.mxu0 0
        %6344 = vmatprep.subr.bf16.mxu0 0
        %6345 = vmatpush1.bf16.msra.mxu0 0
        %6346 = vmatprep.subr.bf16.mxu0 0
        %6347 = vmatpush1.bf16.msra.mxu0 0
        %6348 = vmatprep.subr.bf16.mxu0 0
        %6349 = vmatpush1.bf16.msra.mxu0 0
        %6350 = vmatprep.subr.bf16.mxu0 0
        %6351 = vmatpush1.bf16.msra.mxu0 0
        %6352 = vmatprep.subr.bf16.mxu0 0
        %6353 = vmatpush1.bf16.msra.mxu0 0
        %6354 = vmatprep.subr.bf16.mxu0 0
        %6355 = vmatpush1.bf16.msra.mxu0 0
        %6356 = vmatprep.subr.bf16.mxu0 0
        %6357 = vmatpush1.bf16.msra.mxu0 0
        %6358 = vmatprep.subr.bf16.mxu0 0
        %6359 = vmatpush1.bf16.msra.mxu0 0
        %6360 = vmatprep.subr.bf16.mxu0 0
        %6361 = vmatpush1.bf16.msra.mxu0 0
        %6362 = vmatprep.subr.bf16.mxu0 0
        %6363 = vmatpush1.bf16.msra.mxu0 0
        %6364 = vmatprep.subr.bf16.mxu0 0
        %6365 = vmatpush1.bf16.msra.mxu0 0
        %6366 = vmatprep.subr.bf16.mxu0 0
        %6367 = vmatpush1.bf16.msra.mxu0 0
        %6368 = vmatprep.mubr.bf16.mxu0 0
        %6369 = vmatmul.mubr.bf16.gmra.mrb[0].mxu0 %v6313
        %v6370 = vpop.f32.mrb[0].mxu0
        %v6371 = vadd.f32 0.0, %v6370
        %v6372 = vpop.f32.mrb[0].mxu0
        %v6373 = vadd.f32 0.0, %v6372
        %v6374 = vpop.f32.mrb[0].mxu0
        %v6375 = vpop.f32.mrb[0].mxu0
        %6376 = vdwg.mxu0
        %6377 = vmatprep.subr.bf16.mxu0 %v6325
        %6378 = vmatpush1.bf16.msra.mxu0 %v6322
        %6379 = vmatprep.subr.bf16.mxu0 0
        %6380 = vmatpush1.bf16.msra.mxu0 0
        %6381 = vmatprep.subr.bf16.mxu0 0
        %6382 = vmatpush1.bf16.msra.mxu0 0
        %6383 = vmatprep.subr.bf16.mxu0 0
        %6384 = vmatpush1.bf16.msra.mxu0 0
        %6385 = vmatprep.subr.bf16.mxu0 0
        %6386 = vmatpush1.bf16.msra.mxu0 0
        %6387 = vmatprep.subr.bf16.mxu0 0
        %6388 = vmatpush1.bf16.msra.mxu0 0
        %6389 = vmatprep.subr.bf16.mxu0 0
        %6390 = vmatpush1.bf16.msra.mxu0 0
        %6391 = vmatprep.subr.bf16.mxu0 0
        %6392 = vmatpush1.bf16.msra.mxu0 0
        %6393 = vmatprep.subr.bf16.mxu0 0
        %6394 = vmatpush1.bf16.msra.mxu0 0
        %6395 = vmatprep.subr.bf16.mxu0 0
        %6396 = vmatpush1.bf16.msra.mxu0 0
        %6397 = vmatprep.subr.bf16.mxu0 0
        %6398 = vmatpush1.bf16.msra.mxu0 0
        %6399 = vmatprep.subr.bf16.mxu0 0
        %6400 = vmatpush1.bf16.msra.mxu0 0
        %6401 = vmatprep.subr.bf16.mxu0 0
        %6402 = vmatpush1.bf16.msra.mxu0 0
        %6403 = vmatprep.subr.bf16.mxu0 0
        %6404 = vmatpush1.bf16.msra.mxu0 0
        %6405 = vmatprep.subr.bf16.mxu0 0
        %6406 = vmatpush1.bf16.msra.mxu0 0
        %6407 = vmatprep.subr.bf16.mxu0 0
        %6408 = vmatpush1.bf16.msra.mxu0 0
        %6409 = vmatprep.mubr.bf16.mxu0 0
        %6410 = vmatmul.mubr.bf16.gmra.mrb[0].mxu0 %v6313
        %v6411 = vpop.f32.mrb[0].mxu0
        %v6412 = vadd.f32 0.0, %v6411
        %v6413 = vpop.f32.mrb[0].mxu0
        %v6414 = vadd.f32 0.0, %v6413
        %v6415 = vpop.f32.mrb[0].mxu0
        %v6416 = vpop.f32.mrb[0].mxu0
        %6417 = vdwg.mxu0
        %6418 = vmatprep.subr.bf16.mxu0 %v6331
        %6419 = vmatpush1.bf16.msra.mxu0 %v6328
        %6420 = vmatprep.subr.bf16.mxu0 0
        %6421 = vmatpush1.bf16.msra.mxu0 0
        %6422 = vmatprep.subr.bf16.mxu0 0
        %6423 = vmatpush1.bf16.msra.mxu0 0
        %6424 = vmatprep.subr.bf16.mxu0 0
        %6425 = vmatpush1.bf16.msra.mxu0 0
        %6426 = vmatprep.subr.bf16.mxu0 0
        %6427 = vmatpush1.bf16.msra.mxu0 0
        %6428 = vmatprep.subr.bf16.mxu0 0
        %6429 = vmatpush1.bf16.msra.mxu0 0
        %6430 = vmatprep.subr.bf16.mxu0 0
        %6431 = vmatpush1.bf16.msra.mxu0 0
        %6432 = vmatprep.subr.bf16.mxu0 0
        %6433 = vmatpush1.bf16.msra.mxu0 0
        %6434 = vmatprep.subr.bf16.mxu0 0
        %6435 = vmatpush1.bf16.msra.mxu0 0
        %6436 = vmatprep.subr.bf16.mxu0 0
        %6437 = vmatpush1.bf16.msra.mxu0 0
        %6438 = vmatprep.subr.bf16.mxu0 0
        %6439 = vmatpush1.bf16.msra.mxu0 0
        %6440 = vmatprep.subr.bf16.mxu0 0
        %6441 = vmatpush1.bf16.msra.mxu0 0
        %6442 = vmatprep.subr.bf16.mxu0 0
        %6443 = vmatpush1.bf16.msra.mxu0 0
        %6444 = vmatprep.subr.bf16.mxu0 0
        %6445 = vmatpush1.bf16.msra.mxu0 0
        %6446 = vmatprep.subr.bf16.mxu0 0
        %6447 = vmatpush1.bf16.msra.mxu0 0
        %6448 = vmatprep.subr.bf16.mxu0 0
        %6449 = vmatpush1.bf16.msra.mxu0 0
        %6450 = vmatprep.mubr.bf16.mxu0 0
        %6451 = vmatmul.mubr.bf16.gmra.mrb[0].mxu0 %v6313
        %v6452 = vpop.f32.mrb[0].mxu0
        %v6453 = vadd.f32 0.0, %v6452
        %v6454 = vpop.f32.mrb[0].mxu0
        %v6455 = vadd.f32 0.0, %v6454
        %v6456 = vpop.f32.mrb[0].mxu0
        %v6457 = vpop.f32.mrb[0].mxu0
        %6458 = vdwg.mxu0
        %6459 = vmatprep.subr.bf16.mxu0 0
        %6460 = vmatpush1.bf16.msra.mxu0 %v6334
        %6461 = vmatprep.subr.bf16.mxu0 0
        %6462 = vmatpush1.bf16.msra.mxu0 0
        %6463 = vmatprep.subr.bf16.mxu0 0
        %6464 = vmatpush1.bf16.msra.mxu0 0
        %6465 = vmatprep.subr.bf16.mxu0 0
        %6466 = vmatpush1.bf16.msra.mxu0 0
        %6467 = vmatprep.subr.bf16.mxu0 0
        %6468 = vmatpush1.bf16.msra.mxu0 0
        %6469 = vmatprep.subr.bf16.mxu0 0
        %6470 = vmatpush1.bf16.msra.mxu0 0
        %6471 = vmatprep.subr.bf16.mxu0 0
        %6472 = vmatpush1.bf16.msra.mxu0 0
        %6473 = vmatprep.subr.bf16.mxu0 0
        %6474 = vmatpush1.bf16.msra.mxu0 0
        %6475 = vmatprep.subr.bf16.mxu0 0
        %6476 = vmatpush1.bf16.msra.mxu0 0
        %6477 = vmatprep.subr.bf16.mxu0 0
        %6478 = vmatpush1.bf16.msra.mxu0 0
        %6479 = vmatprep.subr.bf16.mxu0 0
        %6480 = vmatpush1.bf16.msra.mxu0 0
        %6481 = vmatprep.subr.bf16.mxu0 0
        %6482 = vmatpush1.bf16.msra.mxu0 0
        %6483 = vmatprep.subr.bf16.mxu0 0
        %6484 = vmatpush1.bf16.msra.mxu0 0
        %6485 = vmatprep.subr.bf16.mxu0 0
        %6486 = vmatpush1.bf16.msra.mxu0 0
        %6487 = vmatprep.subr.bf16.mxu0 0
        %6488 = vmatpush1.bf16.msra.mxu0 0
        %6489 = vmatprep.subr.bf16.mxu0 0
        %6490 = vmatpush1.bf16.msra.mxu0 0
        %6491 = vmatprep.mubr.bf16.mxu0 0
        %6492 = vmatmul.mubr.bf16.gmra.mrb[0].mxu0 %v6313
        %v6493 = vpop.f32.mrb[0].mxu0
        %v6494 = vadd.f32 0.0, %v6493
        %v6495 = vpop.f32.mrb[0].mxu0
        %v6496 = vpop.f32.mrb[0].mxu0
        %v6497 = vpop.f32.mrb[0].mxu0
        %6498 = vdwg.mxu0
        %v6499 = vadd.f32 %v6245, %v6371
        %v6500 = vadd.f32 %v6246, %v6373
        %v6501 = vadd.f32 %v6247, %v6412
        %v6502 = vadd.f32 %v6248, %v6414
        %v6503 = vadd.f32 %v6249, %v6453
        %v6504 = vadd.f32 %v6250, %v6455
        %v6505 = vadd.f32 %v6251, %v6494
        %s6506 = scalar_lea.vmem [#allocation5], 100
        %v6507 = vld [vmem:[%s6506] sm:$0xf]
        %v6508 = vld [vmem:[%s183 + $0x2] sm:$0xff]
        %v6509 = vld [vmem:[%s183 + $0xa] sm:$0x3f]
        %v6512 = vcombine.high %v6508, %v6508
        %v6514 = vunpack.c.l.s4 1983009808
        %v6515 = vunpack.c.0.s8 %v6514
        %v6516 = vlaneseq
        %v6517 = vshrl.u32 %v6516, 7
        %v6518 = vsub.s32 %v6515, %v6517
        %v6519 = vrot.slane %v6508, %v6518
        %v6521 = vunpack.c.l.s4 1983009808
        %v6522 = vunpack.c.0.s8 %v6521
        %v6523 = vlaneseq
        %v6524 = vshrl.u32 %v6523, 7
        %v6525 = vsub.s32 %v6522, %v6524
        %v6526 = vrot.slane %v6512, %v6525
        %v6527 = vcombine.high %v6519, %v6519
        %v6528 = vcombine.high %v6526, %v6526
        %v6529 = vcombine.high %v6509, %v6509
        %v6531 = vunpack.c.l.s4 1983009808
        %v6532 = vunpack.c.0.s8 %v6531
        %v6533 = vlaneseq
        %v6534 = vshrl.u32 %v6533, 7
        %v6535 = vsub.s32 %v6532, %v6534
        %v6536 = vrot.slane %v6509, %v6535
        %v6538 = vunpack.c.l.s4 1983009808
        %v6539 = vunpack.c.0.s8 %v6538
        %v6540 = vlaneseq
        %v6541 = vshrl.u32 %v6540, 7
        %v6542 = vsub.s32 %v6539, %v6541
        %v6543 = vrot.slane %v6529, %v6542
        %v6544 = vcombine.high %v6536, %v6536
        %6545 = vrot.lane.b32.xlu0 %v6519, 35
        %v6546 = vpop.permute.xlu0 %6545
        %6547 = vrot.lane.b32.xlu0 %v6527, 35
        %v6548 = vpop.permute.xlu0 %6547
        %6549 = vrot.lane.b32.xlu0 %v6526, 35
        %v6550 = vpop.permute.xlu0 %6549
        %6551 = vrot.lane.b32.xlu0 %v6528, 35
        %v6552 = vpop.permute.xlu0 %6551
        %6553 = vrot.lane.b32.xlu0 %v6536, 35
        %v6554 = vpop.permute.xlu0 %6553
        %6555 = vrot.lane.b32.xlu0 %v6544, 35
        %v6556 = vpop.permute.xlu0 %6555
        %6557 = vrot.lane.b32.xlu0 %v6543, 35
        %v6558 = vpop.permute.xlu0 %6557
        %vm6559 = vcmask 285696
        %v6560 = vsel %vm6559, %v6546, %v6548
        %v6561 = vsel %vm6559, %v6548, %v6550
        %v6562 = vsel %vm6559, %v6550, %v6552
        %v6563 = vsel %vm6559, %v6552, %v6554
        %v6564 = vsel %vm6559, %v6554, %v6556
        %v6565 = vsel %vm6559, %v6556, %v6558
        %v6567 = vsel %vm276, %v6507, 0
        %v6570 = vsel %vm280, %v6560, 0
        %v6573 = vsel %vm280, %v6561, 0
        %v6576 = vsel %vm280, %v6562, 0
        %v6579 = vsel %vm280, %v6563, 0
        %v6582 = vsel %vm280, %v6564, 0
        %v6585 = vsel %vm280, %v6565, 0
        %v6588 = vsel %vm280, %v6558, 0
        %6590 = vmatprep.subr.bf16.mxu0 %v6573
        %6591 = vmatpush1.bf16.msra.mxu0 %v6570
        %6592 = vmatprep.subr.bf16.mxu0 0
        %6593 = vmatpush1.bf16.msra.mxu0 0
        %6594 = vmatprep.subr.bf16.mxu0 0
        %6595 = vmatpush1.bf16.msra.mxu0 0
        %6596 = vmatprep.subr.bf16.mxu0 0
        %6597 = vmatpush1.bf16.msra.mxu0 0
        %6598 = vmatprep.subr.bf16.mxu0 0
        %6599 = vmatpush1.bf16.msra.mxu0 0
        %6600 = vmatprep.subr.bf16.mxu0 0
        %6601 = vmatpush1.bf16.msra.mxu0 0
        %6602 = vmatprep.subr.bf16.mxu0 0
        %6603 = vmatpush1.bf16.msra.mxu0 0
        %6604 = vmatprep.subr.bf16.mxu0 0
        %6605 = vmatpush1.bf16.msra.mxu0 0
        %6606 = vmatprep.subr.bf16.mxu0 0
        %6607 = vmatpush1.bf16.msra.mxu0 0
        %6608 = vmatprep.subr.bf16.mxu0 0
        %6609 = vmatpush1.bf16.msra.mxu0 0
        %6610 = vmatprep.subr.bf16.mxu0 0
        %6611 = vmatpush1.bf16.msra.mxu0 0
        %6612 = vmatprep.subr.bf16.mxu0 0
        %6613 = vmatpush1.bf16.msra.mxu0 0
        %6614 = vmatprep.subr.bf16.mxu0 0
        %6615 = vmatpush1.bf16.msra.mxu0 0
        %6616 = vmatprep.subr.bf16.mxu0 0
        %6617 = vmatpush1.bf16.msra.mxu0 0
        %6618 = vmatprep.subr.bf16.mxu0 0
        %6619 = vmatpush1.bf16.msra.mxu0 0
        %6620 = vmatprep.subr.bf16.mxu0 0
        %6621 = vmatpush1.bf16.msra.mxu0 0
        %6622 = vmatprep.mubr.bf16.mxu0 0
        %6623 = vmatmul.mubr.bf16.gmra.mrb[0].mxu0 %v6567
        %v6624 = vpop.f32.mrb[0].mxu0
        %v6625 = vadd.f32 0.0, %v6624
        %v6626 = vpop.f32.mrb[0].mxu0
        %v6627 = vadd.f32 0.0, %v6626
        %v6628 = vpop.f32.mrb[0].mxu0
        %v6629 = vpop.f32.mrb[0].mxu0
        %6630 = vdwg.mxu0
        %6631 = vmatprep.subr.bf16.mxu0 %v6579
        %6632 = vmatpush1.bf16.msra.mxu0 %v6576
        %6633 = vmatprep.subr.bf16.mxu0 0
        %6634 = vmatpush1.bf16.msra.mxu0 0
        %6635 = vmatprep.subr.bf16.mxu0 0
        %6636 = vmatpush1.bf16.msra.mxu0 0
        %6637 = vmatprep.subr.bf16.mxu0 0
        %6638 = vmatpush1.bf16.msra.mxu0 0
        %6639 = vmatprep.subr.bf16.mxu0 0
        %6640 = vmatpush1.bf16.msra.mxu0 0
        %6641 = vmatprep.subr.bf16.mxu0 0
        %6642 = vmatpush1.bf16.msra.mxu0 0
        %6643 = vmatprep.subr.bf16.mxu0 0
        %6644 = vmatpush1.bf16.msra.mxu0 0
        %6645 = vmatprep.subr.bf16.mxu0 0
        %6646 = vmatpush1.bf16.msra.mxu0 0
        %6647 = vmatprep.subr.bf16.mxu0 0
        %6648 = vmatpush1.bf16.msra.mxu0 0
        %6649 = vmatprep.subr.bf16.mxu0 0
        %6650 = vmatpush1.bf16.msra.mxu0 0
        %6651 = vmatprep.subr.bf16.mxu0 0
        %6652 = vmatpush1.bf16.msra.mxu0 0
        %6653 = vmatprep.subr.bf16.mxu0 0
        %6654 = vmatpush1.bf16.msra.mxu0 0
        %6655 = vmatprep.subr.bf16.mxu0 0
        %6656 = vmatpush1.bf16.msra.mxu0 0
        %6657 = vmatprep.subr.bf16.mxu0 0
        %6658 = vmatpush1.bf16.msra.mxu0 0
        %6659 = vmatprep.subr.bf16.mxu0 0
        %6660 = vmatpush1.bf16.msra.mxu0 0
        %6661 = vmatprep.subr.bf16.mxu0 0
        %6662 = vmatpush1.bf16.msra.mxu0 0
        %6663 = vmatprep.mubr.bf16.mxu0 0
        %6664 = vmatmul.mubr.bf16.gmra.mrb[0].mxu0 %v6567
        %v6665 = vpop.f32.mrb[0].mxu0
        %v6666 = vadd.f32 0.0, %v6665
        %v6667 = vpop.f32.mrb[0].mxu0
        %v6668 = vadd.f32 0.0, %v6667
        %v6669 = vpop.f32.mrb[0].mxu0
        %v6670 = vpop.f32.mrb[0].mxu0
        %6671 = vdwg.mxu0
        %6672 = vmatprep.subr.bf16.mxu0 %v6585
        %6673 = vmatpush1.bf16.msra.mxu0 %v6582
        %6674 = vmatprep.subr.bf16.mxu0 0
        %6675 = vmatpush1.bf16.msra.mxu0 0
        %6676 = vmatprep.subr.bf16.mxu0 0
        %6677 = vmatpush1.bf16.msra.mxu0 0
        %6678 = vmatprep.subr.bf16.mxu0 0
        %6679 = vmatpush1.bf16.msra.mxu0 0
        %6680 = vmatprep.subr.bf16.mxu0 0
        %6681 = vmatpush1.bf16.msra.mxu0 0
        %6682 = vmatprep.subr.bf16.mxu0 0
        %6683 = vmatpush1.bf16.msra.mxu0 0
        %6684 = vmatprep.subr.bf16.mxu0 0
        %6685 = vmatpush1.bf16.msra.mxu0 0
        %6686 = vmatprep.subr.bf16.mxu0 0
        %6687 = vmatpush1.bf16.msra.mxu0 0
        %6688 = vmatprep.subr.bf16.mxu0 0
        %6689 = vmatpush1.bf16.msra.mxu0 0
        %6690 = vmatprep.subr.bf16.mxu0 0
        %6691 = vmatpush1.bf16.msra.mxu0 0
        %6692 = vmatprep.subr.bf16.mxu0 0
        %6693 = vmatpush1.bf16.msra.mxu0 0
        %6694 = vmatprep.subr.bf16.mxu0 0
        %6695 = vmatpush1.bf16.msra.mxu0 0
        %6696 = vmatprep.subr.bf16.mxu0 0
        %6697 = vmatpush1.bf16.msra.mxu0 0
        %6698 = vmatprep.subr.bf16.mxu0 0
        %6699 = vmatpush1.bf16.msra.mxu0 0
        %6700 = vmatprep.subr.bf16.mxu0 0
        %6701 = vmatpush1.bf16.msra.mxu0 0
        %6702 = vmatprep.subr.bf16.mxu0 0
        %6703 = vmatpush1.bf16.msra.mxu0 0
        %6704 = vmatprep.mubr.bf16.mxu0 0
        %6705 = vmatmul.mubr.bf16.gmra.mrb[0].mxu0 %v6567
        %v6706 = vpop.f32.mrb[0].mxu0
        %v6707 = vadd.f32 0.0, %v6706
        %v6708 = vpop.f32.mrb[0].mxu0
        %v6709 = vadd.f32 0.0, %v6708
        %v6710 = vpop.f32.mrb[0].mxu0
        %v6711 = vpop.f32.mrb[0].mxu0
        %6712 = vdwg.mxu0
        %6713 = vmatprep.subr.bf16.mxu0 0
        %6714 = vmatpush1.bf16.msra.mxu0 %v6588
        %6715 = vmatprep.subr.bf16.mxu0 0
        %6716 = vmatpush1.bf16.msra.mxu0 0
        %6717 = vmatprep.subr.bf16.mxu0 0
        %6718 = vmatpush1.bf16.msra.mxu0 0
        %6719 = vmatprep.subr.bf16.mxu0 0
        %6720 = vmatpush1.bf16.msra.mxu0 0
        %6721 = vmatprep.subr.bf16.mxu0 0
        %6722 = vmatpush1.bf16.msra.mxu0 0
        %6723 = vmatprep.subr.bf16.mxu0 0
        %6724 = vmatpush1.bf16.msra.mxu0 0
        %6725 = vmatprep.subr.bf16.mxu0 0
        %6726 = vmatpush1.bf16.msra.mxu0 0
        %6727 = vmatprep.subr.bf16.mxu0 0
        %6728 = vmatpush1.bf16.msra.mxu0 0
        %6729 = vmatprep.subr.bf16.mxu0 0
        %6730 = vmatpush1.bf16.msra.mxu0 0
        %6731 = vmatprep.subr.bf16.mxu0 0
        %6732 = vmatpush1.bf16.msra.mxu0 0
        %6733 = vmatprep.subr.bf16.mxu0 0
        %6734 = vmatpush1.bf16.msra.mxu0 0
        %6735 = vmatprep.subr.bf16.mxu0 0
        %6736 = vmatpush1.bf16.msra.mxu0 0
        %6737 = vmatprep.subr.bf16.mxu0 0
        %6738 = vmatpush1.bf16.msra.mxu0 0
        %6739 = vmatprep.subr.bf16.mxu0 0
        %6740 = vmatpush1.bf16.msra.mxu0 0
        %6741 = vmatprep.subr.bf16.mxu0 0
        %6742 = vmatpush1.bf16.msra.mxu0 0
        %6743 = vmatprep.subr.bf16.mxu0 0
        %6744 = vmatpush1.bf16.msra.mxu0 0
        %6745 = vmatprep.mubr.bf16.mxu0 0
        %6746 = vmatmul.mubr.bf16.gmra.mrb[0].mxu0 %v6567
        %v6747 = vpop.f32.mrb[0].mxu0
        %v6748 = vadd.f32 0.0, %v6747
        %v6749 = vpop.f32.mrb[0].mxu0
        %v6750 = vpop.f32.mrb[0].mxu0
        %v6751 = vpop.f32.mrb[0].mxu0
        %6752 = vdwg.mxu0
        %v6753 = vadd.f32 %v6499, %v6625
        %v6754 = vadd.f32 %v6500, %v6627
        %v6755 = vadd.f32 %v6501, %v6666
        %v6756 = vadd.f32 %v6502, %v6668
        %v6757 = vadd.f32 %v6503, %v6707
        %v6758 = vadd.f32 %v6504, %v6709
        %v6759 = vadd.f32 %v6505, %v6748
        %s6760 = scalar_lea.vmem [#allocation5], 104
        %v6761 = vld [vmem:[%s6760] sm:$0xf]
        %v6762 = vld [vmem:[%s183 + $0x2] sm:$0xff]
        %v6763 = vld [vmem:[%s183 + $0xa] sm:$0x3f]
        %v6766 = vcombine.high %v6762, %v6762
        %v6768 = vunpack.c.l.s4 1983009808
        %v6769 = vunpack.c.0.s8 %v6768
        %v6770 = vlaneseq
        %v6771 = vshrl.u32 %v6770, 7
        %v6772 = vsub.s32 %v6769, %v6771
        %v6773 = vrot.slane %v6762, %v6772
        %v6775 = vunpack.c.l.s4 1983009808
        %v6776 = vunpack.c.0.s8 %v6775
        %v6777 = vlaneseq
        %v6778 = vshrl.u32 %v6777, 7
        %v6779 = vsub.s32 %v6776, %v6778
        %v6780 = vrot.slane %v6766, %v6779
        %v6781 = vcombine.high %v6773, %v6773
        %v6782 = vcombine.high %v6780, %v6780
        %v6783 = vcombine.high %v6763, %v6763
        %v6785 = vunpack.c.l.s4 1983009808
        %v6786 = vunpack.c.0.s8 %v6785
        %v6787 = vlaneseq
        %v6788 = vshrl.u32 %v6787, 7
        %v6789 = vsub.s32 %v6786, %v6788
        %v6790 = vrot.slane %v6763, %v6789
        %v6792 = vunpack.c.l.s4 1983009808
        %v6793 = vunpack.c.0.s8 %v6792
        %v6794 = vlaneseq
        %v6795 = vshrl.u32 %v6794, 7
        %v6796 = vsub.s32 %v6793, %v6795
        %v6797 = vrot.slane %v6783, %v6796
        %v6798 = vcombine.high %v6790, %v6790
        %6799 = vrot.lane.b32.xlu0 %v6773, 34
        %v6800 = vpop.permute.xlu0 %6799
        %6801 = vrot.lane.b32.xlu0 %v6781, 34
        %v6802 = vpop.permute.xlu0 %6801
        %6803 = vrot.lane.b32.xlu0 %v6780, 34
        %v6804 = vpop.permute.xlu0 %6803
        %6805 = vrot.lane.b32.xlu0 %v6782, 34
        %v6806 = vpop.permute.xlu0 %6805
        %6807 = vrot.lane.b32.xlu0 %v6790, 34
        %v6808 = vpop.permute.xlu0 %6807
        %6809 = vrot.lane.b32.xlu0 %v6798, 34
        %v6810 = vpop.permute.xlu0 %6809
        %6811 = vrot.lane.b32.xlu0 %v6797, 34
        %v6812 = vpop.permute.xlu0 %6811
        %vm6813 = vcmask 277504
        %v6814 = vsel %vm6813, %v6800, %v6802
        %v6815 = vsel %vm6813, %v6802, %v6804
        %v6816 = vsel %vm6813, %v6804, %v6806
        %v6817 = vsel %vm6813, %v6806, %v6808
        %v6818 = vsel %vm6813, %v6808, %v6810
        %v6819 = vsel %vm6813, %v6810, %v6812
        %v6821 = vsel %vm276, %v6761, 0
        %v6824 = vsel %vm280, %v6814, 0
        %v6827 = vsel %vm280, %v6815, 0
        %v6830 = vsel %vm280, %v6816, 0
        %v6833 = vsel %vm280, %v6817, 0
        %v6836 = vsel %vm280, %v6818, 0
        %v6839 = vsel %vm280, %v6819, 0
        %v6842 = vsel %vm280, %v6812, 0
        %6844 = vmatprep.subr.bf16.mxu0 %v6827
        %6845 = vmatpush1.bf16.msra.mxu0 %v6824
        %6846 = vmatprep.subr.bf16.mxu0 0
        %6847 = vmatpush1.bf16.msra.mxu0 0
        %6848 = vmatprep.subr.bf16.mxu0 0
        %6849 = vmatpush1.bf16.msra.mxu0 0
        %6850 = vmatprep.subr.bf16.mxu0 0
        %6851 = vmatpush1.bf16.msra.mxu0 0
        %6852 = vmatprep.subr.bf16.mxu0 0
        %6853 = vmatpush1.bf16.msra.mxu0 0
        %6854 = vmatprep.subr.bf16.mxu0 0
        %6855 = vmatpush1.bf16.msra.mxu0 0
        %6856 = vmatprep.subr.bf16.mxu0 0
        %6857 = vmatpush1.bf16.msra.mxu0 0
        %6858 = vmatprep.subr.bf16.mxu0 0
        %6859 = vmatpush1.bf16.msra.mxu0 0
        %6860 = vmatprep.subr.bf16.mxu0 0
        %6861 = vmatpush1.bf16.msra.mxu0 0
        %6862 = vmatprep.subr.bf16.mxu0 0
        %6863 = vmatpush1.bf16.msra.mxu0 0
        %6864 = vmatprep.subr.bf16.mxu0 0
        %6865 = vmatpush1.bf16.msra.mxu0 0
        %6866 = vmatprep.subr.bf16.mxu0 0
        %6867 = vmatpush1.bf16.msra.mxu0 0
        %6868 = vmatprep.subr.bf16.mxu0 0
        %6869 = vmatpush1.bf16.msra.mxu0 0
        %6870 = vmatprep.subr.bf16.mxu0 0
        %6871 = vmatpush1.bf16.msra.mxu0 0
        %6872 = vmatprep.subr.bf16.mxu0 0
        %6873 = vmatpush1.bf16.msra.mxu0 0
        %6874 = vmatprep.subr.bf16.mxu0 0
        %6875 = vmatpush1.bf16.msra.mxu0 0
        %6876 = vmatprep.mubr.bf16.mxu0 0
        %6877 = vmatmul.mubr.bf16.gmra.mrb[0].mxu0 %v6821
        %v6878 = vpop.f32.mrb[0].mxu0
        %v6879 = vadd.f32 0.0, %v6878
        %v6880 = vpop.f32.mrb[0].mxu0
        %v6881 = vadd.f32 0.0, %v6880
        %v6882 = vpop.f32.mrb[0].mxu0
        %v6883 = vpop.f32.mrb[0].mxu0
        %6884 = vdwg.mxu0
        %6885 = vmatprep.subr.bf16.mxu0 %v6833
        %6886 = vmatpush1.bf16.msra.mxu0 %v6830
        %6887 = vmatprep.subr.bf16.mxu0 0
        %6888 = vmatpush1.bf16.msra.mxu0 0
        %6889 = vmatprep.subr.bf16.mxu0 0
        %6890 = vmatpush1.bf16.msra.mxu0 0
        %6891 = vmatprep.subr.bf16.mxu0 0
        %6892 = vmatpush1.bf16.msra.mxu0 0
        %6893 = vmatprep.subr.bf16.mxu0 0
        %6894 = vmatpush1.bf16.msra.mxu0 0
        %6895 = vmatprep.subr.bf16.mxu0 0
        %6896 = vmatpush1.bf16.msra.mxu0 0
        %6897 = vmatprep.subr.bf16.mxu0 0
        %6898 = vmatpush1.bf16.msra.mxu0 0
        %6899 = vmatprep.subr.bf16.mxu0 0
        %6900 = vmatpush1.bf16.msra.mxu0 0
        %6901 = vmatprep.subr.bf16.mxu0 0
        %6902 = vmatpush1.bf16.msra.mxu0 0
        %6903 = vmatprep.subr.bf16.mxu0 0
        %6904 = vmatpush1.bf16.msra.mxu0 0
        %6905 = vmatprep.subr.bf16.mxu0 0
        %6906 = vmatpush1.bf16.msra.mxu0 0
        %6907 = vmatprep.subr.bf16.mxu0 0
        %6908 = vmatpush1.bf16.msra.mxu0 0
        %6909 = vmatprep.subr.bf16.mxu0 0
        %6910 = vmatpush1.bf16.msra.mxu0 0
        %6911 = vmatprep.subr.bf16.mxu0 0
        %6912 = vmatpush1.bf16.msra.mxu0 0
        %6913 = vmatprep.subr.bf16.mxu0 0
        %6914 = vmatpush1.bf16.msra.mxu0 0
        %6915 = vmatprep.subr.bf16.mxu0 0
        %6916 = vmatpush1.bf16.msra.mxu0 0
        %6917 = vmatprep.mubr.bf16.mxu0 0
        %6918 = vmatmul.mubr.bf16.gmra.mrb[0].mxu0 %v6821
        %v6919 = vpop.f32.mrb[0].mxu0
        %v6920 = vadd.f32 0.0, %v6919
        %v6921 = vpop.f32.mrb[0].mxu0
        %v6922 = vadd.f32 0.0, %v6921
        %v6923 = vpop.f32.mrb[0].mxu0
        %v6924 = vpop.f32.mrb[0].mxu0
        %6925 = vdwg.mxu0
        %6926 = vmatprep.subr.bf16.mxu0 %v6839
        %6927 = vmatpush1.bf16.msra.mxu0 %v6836
        %6928 = vmatprep.subr.bf16.mxu0 0
        %6929 = vmatpush1.bf16.msra.mxu0 0
        %6930 = vmatprep.subr.bf16.mxu0 0
        %6931 = vmatpush1.bf16.msra.mxu0 0
        %6932 = vmatprep.subr.bf16.mxu0 0
        %6933 = vmatpush1.bf16.msra.mxu0 0
        %6934 = vmatprep.subr.bf16.mxu0 0
        %6935 = vmatpush1.bf16.msra.mxu0 0
        %6936 = vmatprep.subr.bf16.mxu0 0
        %6937 = vmatpush1.bf16.msra.mxu0 0
        %6938 = vmatprep.subr.bf16.mxu0 0
        %6939 = vmatpush1.bf16.msra.mxu0 0
        %6940 = vmatprep.subr.bf16.mxu0 0
        %6941 = vmatpush1.bf16.msra.mxu0 0
        %6942 = vmatprep.subr.bf16.mxu0 0
        %6943 = vmatpush1.bf16.msra.mxu0 0
        %6944 = vmatprep.subr.bf16.mxu0 0
        %6945 = vmatpush1.bf16.msra.mxu0 0
        %6946 = vmatprep.subr.bf16.mxu0 0
        %6947 = vmatpush1.bf16.msra.mxu0 0
        %6948 = vmatprep.subr.bf16.mxu0 0
        %6949 = vmatpush1.bf16.msra.mxu0 0
        %6950 = vmatprep.subr.bf16.mxu0 0
        %6951 = vmatpush1.bf16.msra.mxu0 0
        %6952 = vmatprep.subr.bf16.mxu0 0
        %6953 = vmatpush1.bf16.msra.mxu0 0
        %6954 = vmatprep.subr.bf16.mxu0 0
        %6955 = vmatpush1.bf16.msra.mxu0 0
        %6956 = vmatprep.subr.bf16.mxu0 0
        %6957 = vmatpush1.bf16.msra.mxu0 0
        %6958 = vmatprep.mubr.bf16.mxu0 0
        %6959 = vmatmul.mubr.bf16.gmra.mrb[0].mxu0 %v6821
        %v6960 = vpop.f32.mrb[0].mxu0
        %v6961 = vadd.f32 0.0, %v6960
        %v6962 = vpop.f32.mrb[0].mxu0
        %v6963 = vadd.f32 0.0, %v6962
        %v6964 = vpop.f32.mrb[0].mxu0
        %v6965 = vpop.f32.mrb[0].mxu0
        %6966 = vdwg.mxu0
        %6967 = vmatprep.subr.bf16.mxu0 0
        %6968 = vmatpush1.bf16.msra.mxu0 %v6842
        %6969 = vmatprep.subr.bf16.mxu0 0
        %6970 = vmatpush1.bf16.msra.mxu0 0
        %6971 = vmatprep.subr.bf16.mxu0 0
        %6972 = vmatpush1.bf16.msra.mxu0 0
        %6973 = vmatprep.subr.bf16.mxu0 0
        %6974 = vmatpush1.bf16.msra.mxu0 0
        %6975 = vmatprep.subr.bf16.mxu0 0
        %6976 = vmatpush1.bf16.msra.mxu0 0
        %6977 = vmatprep.subr.bf16.mxu0 0
        %6978 = vmatpush1.bf16.msra.mxu0 0
        %6979 = vmatprep.subr.bf16.mxu0 0
        %6980 = vmatpush1.bf16.msra.mxu0 0
        %6981 = vmatprep.subr.bf16.mxu0 0
        %6982 = vmatpush1.bf16.msra.mxu0 0
        %6983 = vmatprep.subr.bf16.mxu0 0
        %6984 = vmatpush1.bf16.msra.mxu0 0
        %6985 = vmatprep.subr.bf16.mxu0 0
        %6986 = vmatpush1.bf16.msra.mxu0 0
        %6987 = vmatprep.subr.bf16.mxu0 0
        %6988 = vmatpush1.bf16.msra.mxu0 0
        %6989 = vmatprep.subr.bf16.mxu0 0
        %6990 = vmatpush1.bf16.msra.mxu0 0
        %6991 = vmatprep.subr.bf16.mxu0 0
        %6992 = vmatpush1.bf16.msra.mxu0 0
        %6993 = vmatprep.subr.bf16.mxu0 0
        %6994 = vmatpush1.bf16.msra.mxu0 0
        %6995 = vmatprep.subr.bf16.mxu0 0
        %6996 = vmatpush1.bf16.msra.mxu0 0
        %6997 = vmatprep.subr.bf16.mxu0 0
        %6998 = vmatpush1.bf16.msra.mxu0 0
        %6999 = vmatprep.mubr.bf16.mxu0 0
        %7000 = vmatmul.mubr.bf16.gmra.mrb[0].mxu0 %v6821
        %v7001 = vpop.f32.mrb[0].mxu0
        %v7002 = vadd.f32 0.0, %v7001
        %v7003 = vpop.f32.mrb[0].mxu0
        %v7004 = vpop.f32.mrb[0].mxu0
        %v7005 = vpop.f32.mrb[0].mxu0
        %7006 = vdwg.mxu0
        %v7007 = vadd.f32 %v6753, %v6879
        %v7008 = vadd.f32 %v6754, %v6881
        %v7009 = vadd.f32 %v6755, %v6920
        %v7010 = vadd.f32 %v6756, %v6922
        %v7011 = vadd.f32 %v6757, %v6961
        %v7012 = vadd.f32 %v6758, %v6963
        %v7013 = vadd.f32 %v6759, %v7002
        %v7014 = vld [vmem:[#allocation7] sm:$0xff]
        %7016 = vset.pattern.permute.xlu0 0
        %7017 = vperm.xlu0 %7016, %v7014
        %v7018 = vpop.permute.xlu0 %7017
        %v7020 = vadd.f32 %v7007, %v7018
        %v7021 = vadd.f32 %v7008, %v7018
        %v7022 = vadd.f32 %v7009, %v7018
        %v7023 = vadd.f32 %v7010, %v7018
        %v7024 = vadd.f32 %v7011, %v7018
        %v7025 = vadd.f32 %v7012, %v7018
        %v7026 = vadd.f32 %v7013, %v7018
        %vm7027 = vcmp.gt.f32.partialorder %v7020, 0.0
        %vm7028 = vcmp.gt.f32.partialorder %v7021, 0.0
        %vm7029 = vcmp.gt.f32.partialorder %v7022, 0.0
        %vm7030 = vcmp.gt.f32.partialorder %v7023, 0.0
        %vm7031 = vcmp.gt.f32.partialorder %v7024, 0.0
        %vm7032 = vcmp.gt.f32.partialorder %v7025, 0.0
        %vm7033 = vcmp.gt.f32.partialorder %v7026, 0.0
        %v7034 = vmul.f32 %v7020, 0.01
        %v7035 = vmul.f32 %v7021, 0.01
        %v7036 = vmul.f32 %v7022, 0.01
        %v7037 = vmul.f32 %v7023, 0.01
        %v7038 = vmul.f32 %v7024, 0.01
        %v7039 = vmul.f32 %v7025, 0.01
        %v7040 = vmul.f32 %v7026, 0.01
        %v7041 = vsel %vm7027, %v7020, %v7034
        %v7042 = vsel %vm7028, %v7021, %v7035
        %v7043 = vsel %vm7029, %v7022, %v7036
        %v7044 = vsel %vm7030, %v7023, %v7037
        %v7045 = vsel %vm7031, %v7024, %v7038
        %v7046 = vsel %vm7032, %v7025, %v7039
        %v7047 = vsel %vm7033, %v7026, %v7040
        %7048 = vst [vmem:[%s213] sm:$0xff] %v7041
        %7049 = vst [vmem:[%s213 + $0x8] sm:$0xff] %v7042
        %7050 = vst [vmem:[%s213 + $0x10] sm:$0xff] %v7043
        %7051 = vst [vmem:[%s213 + $0x18] sm:$0xff] %v7044
        %7052 = vst [vmem:[%s213 + $0x20] sm:$0xff] %v7045
        %7053 = vst [vmem:[%s213 + $0x28] sm:$0xff] %v7046
        %vm7054 = vcmask 80896
        %7055 = vst.msk [vmem:[%s213 + $0x30] sm:$0xff] %vm7054, %v7047
        %s7056 = sand.u32 %s97, 1
        %s7057 = scalar_lea.sflag [#allocation4], %s7056
        %s7058 = sand.u32 %s97, 1
        %s7059 = smul.addr %s7058, 56
        %s7060 = scalar_lea.vmem [#allocation8], %s7059
        // Predicated region
        $region45: #{conv3x3_leaky_pallas.1} parent=31 // pred_check
          %p7061 = pneg %p107
        $region46: #{conv3x3_leaky_pallas.1} parent=31 // pred_check_branch
          %7063 = sbr.rel (%p7061) target = $region48
        $region47: #{conv3x3_leaky_pallas.1} parent=31 // pred_region
          %s7065 = ssub.s32 896, 896
          %7066 = vsyncadd %s7057, %s7065
          %s7067 = smul.addr %s21, 7
          %s7068 = smul.addr %s7067, 128
          %s7069 = scalar_lea.hbm %s3, %s7068
          %s7071 = sshll.u32 %s7060, 4
          %s7072 = int_to_ptr.vmem [resolvable:$true] %s7071
          %7074 = dma.vmem_to_hbm [thread:$0]  %s7072, 896, %s7069, %s7057
        $region48: #{conv3x3_leaky_pallas.1} parent=31 // pred_fallthru
          _
      $region32: #{conv3x3_leaky_pallas.1} parent=5 // pred_fallthru
        _
      %p7075 = scmp.le.s32.totalorder 2, %s16
      // Predicated region
      $region49: #{conv3x3_leaky_pallas.1} parent=5 // pred_check
        %p7076 = pneg %p7075
      $region50: #{conv3x3_leaky_pallas.1} parent=5 // pred_check_branch
        %7078 = sbr.rel (%p7076) target = $region52
      $region51: #{conv3x3_leaky_pallas.1} parent=5 // pred_region
        %s7079 = ssub.s32 %s16, 2
        // Predicated region
        $region53: #{conv3x3_leaky_pallas.1} parent=51 // pred_check
          %p7080 = pneg %p113
        $region54: #{conv3x3_leaky_pallas.1} parent=51 // pred_check_branch
          %7082 = sbr.rel (%p7080) target = $region56
        $region55: #{conv3x3_leaky_pallas.1} parent=51 // pred_region
          %s7083 = sand.u32 %s98, 1
          %s7084 = scalar_lea.sflag [#allocation4], %s7083
          %s7085 = sand.u32 %s98, 1
          %s7086 = smul.addr %s7085, 56
          %s7087 = scalar_lea.vmem [#allocation8], %s7086
          %7088 = dma.done %s7084, 896
        $region56: #{conv3x3_leaky_pallas.1} parent=51 // pred_fallthru
          _
      $region52: #{conv3x3_leaky_pallas.1} parent=5 // pred_fallthru
        _
    $region6: #{conv3x3_leaky_pallas.1} parent=1 // loop_footer
      %s20 = sadd.s32 1, %s16
    $region7: #{conv3x3_leaky_pallas.1} parent=1 // loop_footer_branch
      %15 = sbr.rel target = $region3
    $region8: #{conv3x3_leaky_pallas.1} parent=1 // loop_exit
      _
    %7089 = vsyncpa [#allocation3], 1
    %s7090 = scalar_lea.sflag [#allocation3], 1
    %7091 = vsyncpa %s7090, 1
    %7092 = vsyncpa [#allocation6], 1
    %7093 = vsyncpa [#allocation4], 1
    %s7094 = scalar_lea.sflag [#allocation4], 1
    %7095 = vsyncpa %s7094, 1

</llo_original>
